<compile_context>
chip_gen: v7x
topology: tpu7x:2x2x1
jax: 0.10.0
libtpu: 0.0.40
codegen_flags: <defaults>
</compile_context>

<pallas_src>
import math

import jax
import jax.numpy as jnp
from jax import lax
from jax.experimental import pallas as pl
from jax.experimental.pallas import tpu as pltpu

# ---------------------------------------------------------------------------
# module-consistent hyper-parameters
# ---------------------------------------------------------------------------
MAX_LEN = 400          # input temporal length
FEAT_DIM = 4           # Conv1d channels == transformer feat_dim
D_MODEL = 32
N_HEADS = 4
NUM_LAYERS = 2
DIM_FF = 64
NUM_CLASSES = 3

KERNEL_SIZE = 5
DILATION = 9
POOL = 5
RF = (KERNEL_SIZE - 1) * DILATION          # receptive field - 1 = 36

L1 = MAX_LEN - RF               # 364  (conv1 output length)
P1 = L1 // POOL                 # 72   (pool1 output length)
L2 = P1 - RF                    # 36   (conv2 output length)
SEQ_LEN = L2 // POOL            # 7    (== post_conv_len probe in the PyTorch __init__)
HEAD_DIM = D_MODEL // N_HEADS

# valid shifted-window lengths for the pooling max (MaxPool1d floor behaviour preserved)
X1 = L1 - POOL + 1              # 360
X2 = L2 - POOL + 1              # 32

TB_TARGET = 32                  # samples per grid step: TB*SEQ_LEN ~= 224 ~ MXU width (v6e/v7x)
OUT_PAD = 128                   # lane-padded logits width -> unmasked vst stores


def _gelu(x):
    # TODO(synk): PyTorch F.gelu defaults to exact erf GELU; Mosaic-safe tanh approximation used here.
    c = math.sqrt(2.0 / math.pi)
    return 0.5 * x * (1.0 + jnp.tanh(c * (x + 0.044715 * x * x * x)))


# ---------------------------------------------------------------------------
# single fused kernel: conv stack + input proj + pos-enc + encoder layers + head
# (TB batch samples per grid step; batch folded into every matmul's M dimension)
# ---------------------------------------------------------------------------
def fused_forward_kernel(x_ref, wconv_ref, bconv_ref, wp_ref, pe_ref,
                         wcat_ref, wff2_ref, vcat_ref, wflat_ref, bout_ref,
                         o_ref):
    TBC = x_ref.shape[1]                 # TB * FEAT_DIM  (static, from block shape)
    TB = TBC // FEAT_DIM
    TBS = TB * SEQ_LEN
    NS = NUM_CLASSES * SEQ_LEN

    f32 = jnp.float32

    def iota_f(shape, d):
        return lax.broadcasted_iota(jnp.int32, shape, d).astype(f32)

    def gid(v, g):                       # floor(v / g) via float mul (exact for our small int ranges)
        return jnp.floor(v * (1.0 / g))

    def fmod(v, g):                      # v % g
        return v - g * gid(v, g)

    # ---- 0/1 selection / masking constants built on-core (hoisted; no HBM traffic, no extra inputs) ----
    r, c = iota_f((X1, P1), 0), iota_f((X1, P1), 1)
    sel1 = (r == POOL * c).astype(f32)                                     # pick every 5th column
    r, c = iota_f((X2, SEQ_LEN), 0), iota_f((X2, SEQ_LEN), 1)
    sel2 = (r == POOL * c).astype(f32)
    r, c = iota_f((TBS, SEQ_LEN), 0), iota_f((TBS, SEQ_LEN), 1)
    trep = (fmod(r, SEQ_LEN) == c).astype(f32)                             # vertical tiler of I_S
    r, c = iota_f((TBS, TBC), 0), iota_f((TBS, TBC), 1)
    mask_bt = (gid(r, SEQ_LEN) == gid(c, FEAT_DIM)).astype(f32)            # same-sample (t,s)x(t,c) mask
    r, c = iota_f((TBS, TBS), 0), iota_f((TBS, TBS), 1)
    attn_bias = jnp.where(gid(r, SEQ_LEN) == gid(c, SEQ_LEN), 0.0, -1e30)  # block-diag attention bias
    r, c = iota_f((TBS, NS), 0), iota_f((TBS, NS), 1)
    selmask = (fmod(r, SEQ_LEN) == fmod(c, SEQ_LEN)).astype(f32)           # head: keep s' == s entries
    r, c = iota_f((NS, OUT_PAD), 0), iota_f((NS, OUT_PAD), 1)
    colsum = (c == gid(r, SEQ_LEN)).astype(f32)                            # head: per-class column sum
    r, c = iota_f((TB, TBS), 0), iota_f((TB, TBS), 1)
    gsum = (gid(c, SEQ_LEN) == r).astype(f32)                              # head: per-sample row sum

    # ---------------- conv stage 1: dilated Conv1d -> GELU -> MaxPool1d(5) ----------------
    # per-tap accumulation with kron(I_TB, w_k) block-diagonal weights: one batched MXU dot per tap,
    # tap windows read straight from the VMEM ref (no concat of lane-shifted slices).
    y1 = bconv_ref[0]                                                       # (TB*C, 1)
    for k in range(KERNEL_SIZE):
        xk = x_ref[0, :, k * DILATION: k * DILATION + L1]                   # (TB*C, L1)
        y1 = y1 + jnp.dot(wconv_ref[k], xk, preferred_element_type=jnp.float32)
    y1 = _gelu(y1)                                                          # (TB*C, 364)
    m1 = y1[:, 0:X1]
    for q in range(1, POOL):
        m1 = jnp.maximum(m1, y1[:, q:q + X1])                               # rolling max (TB*C, 360)
    p1 = jnp.dot(m1, sel1, preferred_element_type=jnp.float32)              # (TB*C, 72)

    # ---------------- conv stage 2 ----------------
    y2 = bconv_ref[1]
    for k in range(KERNEL_SIZE):
        y2 = y2 + jnp.dot(wconv_ref[KERNEL_SIZE + k],
                          p1[:, k * DILATION: k * DILATION + L2],
                          preferred_element_type=jnp.float32)
    y2 = _gelu(y2)                                                          # (TB*C, 36)
    m2 = y2[:, 0:X2]
    for q in range(1, POOL):
        m2 = jnp.maximum(m2, y2[:, q:q + X2])                               # (TB*C, 32)
    p2 = jnp.dot(m2, sel2, preferred_element_type=jnp.float32)              # (TB*C, SEQ_LEN)

    # -------- batch-transpose (t,c)-rows -> (t,s)-rows fused into the input projection --------
    # z[t*S+s, d] = sum_c p2[t*C+c, s] * wp[c, d] * sqrt(D)   (+ b_p*sqrt(D) + pos-enc, folded into pe_ref)
    p2t = jnp.transpose(p2, (1, 0))                                         # (S, TB*C)   tiny 2-D transpose
    prep = jnp.dot(trep, p2t, preferred_element_type=jnp.float32)           # tile rows TB times -> (TB*S, TB*C)
    prep = prep * mask_bt                                                   # keep own-sample channels only
    z = jnp.dot(prep, wp_ref[...], preferred_element_type=jnp.float32) + pe_ref[...]   # (TB*S, D)

    # ---------------- TransformerBatchNormEncoderLayer x NUM_LAYERS ----------------
    scale = 1.0 / math.sqrt(HEAD_DIM)
    off = 3 * D_MODEL + DIM_FF
    for l in range(NUM_LAYERS):
        wqkv = wcat_ref[l, :, 0:3 * D_MODEL]                  # (D, 3D)
        wo = wcat_ref[l, :, 3 * D_MODEL:4 * D_MODEL]          # (D, D)   bn1 scale folded in
        wff1 = wcat_ref[l, :, 4 * D_MODEL:4 * D_MODEL + DIM_FF]
        bqkv = vcat_ref[l, :, 0:3 * D_MODEL]
        bff1 = vcat_ref[l, :, 3 * D_MODEL:3 * D_MODEL + DIM_FF]
        bn1s = vcat_ref[l, :, off:off + D_MODEL]
        b1f = vcat_ref[l, :, off + D_MODEL:off + 2 * D_MODEL]
        bn2s = vcat_ref[l, :, off + 2 * D_MODEL:off + 3 * D_MODEL]
        b2f = vcat_ref[l, :, off + 3 * D_MODEL:off + 4 * D_MODEL]

        qkv = jnp.dot(z, wqkv, preferred_element_type=jnp.float32) + bqkv   # (TB*S, 3D)
        ctx = []
        for h in range(N_HEADS):
            qh = qkv[:, h * HEAD_DIM:(h + 1) * HEAD_DIM] * scale
            kh = qkv[:, D_MODEL + h * HEAD_DIM:D_MODEL + (h + 1) * HEAD_DIM]
            vh = qkv[:, 2 * D_MODEL + h * HEAD_DIM:2 * D_MODEL + (h + 1) * HEAD_DIM]
            s = lax.dot_general(qh, kh, (((1,), (1,)), ((), ())),
                                preferred_element_type=jnp.float32)          # (TB*S, TB*S), all samples at once
            s = s + attn_bias                                                # block-diagonal (per-sample) mask
            s = s - jnp.max(s, axis=-1, keepdims=True)
            p = jnp.exp(s)
            p = p * (1.0 / jnp.sum(p, axis=-1, keepdims=True))               # exact softmax normalisation
            ctx.append(jnp.dot(p, vh, preferred_element_type=jnp.float32))   # (TB*S, hd)
        ctx = jnp.concatenate(ctx, axis=1)                                   # (TB*S, D)

        attn = jnp.dot(ctx, wo, preferred_element_type=jnp.float32)          # out-proj (bn1 scale folded)
        y = z * bn1s + attn + b1f                                            # residual 1 + BatchNorm1d (eval)
        h1 = _gelu(jnp.dot(y, wff1, preferred_element_type=jnp.float32) + bff1)
        ff = jnp.dot(h1, wff2_ref[l], preferred_element_type=jnp.float32)    # FFN-2 (bn2 scale folded)
        z = y * bn2s + ff + b2f                                              # residual 2 + BatchNorm1d (eval)

    # ---------------- head: gelu -> (mask = identity) -> flatten -> Linear(S*D, num_classes) ----------
    # logits[t, n] = sum_{s,d} gelu(z)[t*S+s, d] * wout[n, s, d]  computed as three small matmuls.
    g = _gelu(z)                                                             # (TB*S, D)
    ga = jnp.dot(g, wflat_ref[...], preferred_element_type=jnp.float32)      # (TB*S, 3*S)
    ga = ga * selmask                                                        # keep the s' == s entries
    per_cls = jnp.dot(ga, colsum, preferred_element_type=jnp.float32)        # (TB*S, OUT_PAD) class sums
    logits = jnp.dot(gsum, per_cls, preferred_element_type=jnp.float32) + bout_ref[...]   # (TB, OUT_PAD)
    o_ref[0] = logits                                                        # lane-dense (TB, 128) store


# ---------------------------------------------------------------------------
# wrapper: weight layout prep (all XLA-side, traced once under jit) + pallas_call
# ---------------------------------------------------------------------------
def fixed_positional_encoding(seq_len, d_model):
    pos = jnp.arange(seq_len, dtype=jnp.float32)[:, None]
    div = jnp.exp(jnp.arange(0, d_model, 2, dtype=jnp.float32) * (-math.log(10000.0) / d_model))
    ang = pos * div
    return jnp.stack([jnp.sin(ang), jnp.cos(ang)], axis=-1).reshape(seq_len, d_model)


def forward(X, params):
    # X: (B, FEAT_DIM, MAX_LEN) float32   (Conv1d NCL layout)
    B, C, L = X.shape
    assert C == FEAT_DIM and L == MAX_LEN
    eps = 1e-5

    # --- batch tile size: TB*SEQ_LEN ~ MXU width, and keep >= 2 grid steps when B >= 2 (2 TCs on v7x)
    TB = min(TB_TARGET, max(1, (B + 1) // 2))
    nblk = (B + TB - 1) // TB
    B_pad = nblk * TB
    Xf = X.astype(jnp.float32)
    if B_pad != B:
        Xf = jnp.concatenate([Xf, jnp.zeros((B_pad - B, C, L), jnp.float32)], axis=0)
    Xb = Xf.reshape(nblk, TB * C, L)                        # rows within a block: t*C + c

    # --- conv weights as kron(I_TB, w_k): batched block-diagonal per-tap matmul weights
    eye_tb = jnp.eye(TB, dtype=jnp.float32)

    def kron_taps(w):                                       # (C_out, C_in, K) -> (K, TB*C, TB*C)
        return jnp.stack([jnp.kron(eye_tb, w[:, :, k]) for k in range(KERNEL_SIZE)], axis=0)

    wconv = jnp.concatenate([kron_taps(params["conv1_w"]), kron_taps(params["conv2_w"])], axis=0)
    bconv = jnp.stack([jnp.tile(params["conv1_b"], TB).reshape(TB * C, 1),
                       jnp.tile(params["conv2_b"], TB).reshape(TB * C, 1)], axis=0)

    # --- input projection (tiled over samples, sqrt(d_model) and bias folded) + positional encoding
    sqrt_d = math.sqrt(D_MODEL)
    wp_rep = jnp.tile(params["proj_w"].T, (TB, 1)) * sqrt_d                           # (TB*C, D)
    pe = fixed_positional_encoding(SEQ_LEN, D_MODEL)
    pe_plus = jnp.tile(pe, (TB, 1)) + params["proj_b"].reshape(1, D_MODEL) * sqrt_d   # (TB*S, D)

    # --- transformer layers: BN folded into out-proj / FFN-2 weights & biases, everything concatenated
    wcat, wff2, vcat = [], [], []
    for lp in params["layers"]:
        s1 = lp["bn1_gamma"] / jnp.sqrt(lp["bn1_var"] + eps)
        b1f = lp["bn1_beta"] - lp["bn1_mean"] * s1 + lp["bo"] * s1
        s2 = lp["bn2_gamma"] / jnp.sqrt(lp["bn2_var"] + eps)
        b2f = lp["bn2_beta"] - lp["bn2_mean"] * s2 + lp["b2"] * s2
        wqkv = jnp.concatenate([lp["wq"].T, lp["wk"].T, lp["wv"].T], axis=1)          # (D, 3D)
        wo_f = lp["wo"].T * s1.reshape(1, D_MODEL)                                    # fold bn1 scale
        wff1 = lp["w1"].T                                                             # (D, FF)
        wcat.append(jnp.concatenate([wqkv, wo_f, wff1], axis=1))                      # (D, 4D+FF)
        wff2.append(lp["w2"].T * s2.reshape(1, D_MODEL))                              # (FF, D), bn2 folded
        bqkv = jnp.concatenate([lp["bq"], lp["bk"], lp["bv"]])
        vcat.append(jnp.concatenate([bqkv, lp["b1"], s1, b1f, s2, b2f]).reshape(1, -1))
    wcat = jnp.stack(wcat, axis=0)                                                    # (NL, D, 4D+FF)
    wff2 = jnp.stack(wff2, axis=0)                                                    # (NL, FF, D)
    vcat = jnp.stack(vcat, axis=0)                                                    # (NL, 1, 3D+FF+4D)

    # --- classification head: flatten order in the reference is (s, d) -> wout[n, s*D + d]
    wout = params["out_w"].reshape(NUM_CLASSES, SEQ_LEN, D_MODEL)
    wflat = jnp.transpose(wout, (2, 0, 1)).reshape(D_MODEL, NUM_CLASSES * SEQ_LEN)    # (D, 3*S)
    bout = jnp.zeros((1, OUT_PAD), jnp.float32).at[0, :NUM_CLASSES].set(params["out_b"])

    def rep(a):                     # replicated weight block: full array, constant index map
        nd = a.ndim
        return pl.BlockSpec(a.shape, lambda b, _n=nd: (0,) * _n)

    out = pl.pallas_call(
        fused_forward_kernel,
        out_shape=jax.ShapeDtypeStruct((nblk, TB, OUT_PAD), jnp.float32),
        grid=(nblk,),
        in_specs=[
            pl.BlockSpec((1, TB * C, MAX_LEN), lambda b: (b, 0, 0)),
            rep(wconv), rep(bconv), rep(wp_rep), rep(pe_plus),
            rep(wcat), rep(wff2), rep(vcat), rep(wflat), rep(bout),
        ],
        out_specs=pl.BlockSpec((1, TB, OUT_PAD), lambda b: (b, 0, 0)),
        compiler_params=pltpu.CompilerParams(dimension_semantics=("parallel",)),
    )(Xb, wconv, bconv, wp_rep, pe_plus, wcat, wff2, vcat, wflat, bout)

    return out.reshape(B_pad, OUT_PAD)[:B, :NUM_CLASSES]


# ---------------------------------------------------------------------------
# parameters
# ---------------------------------------------------------------------------
def init_params(key):
    keys = iter(jax.random.split(key, 64))

    def nrm(shape, s=0.1):
        return s * jax.random.normal(next(keys), shape, dtype=jnp.float32)

    def uni(shape, lo, hi):
        return jax.random.uniform(next(keys), shape, dtype=jnp.float32, minval=lo, maxval=hi)

    p = {
        "conv1_w": nrm((FEAT_DIM, FEAT_DIM, KERNEL_SIZE), 0.3),
        "conv1_b": nrm((FEAT_DIM,), 0.1),
        "conv2_w": nrm((FEAT_DIM, FEAT_DIM, KERNEL_SIZE), 0.3),
        "conv2_b": nrm((FEAT_DIM,), 0.1),
        "proj_w": nrm((D_MODEL, FEAT_DIM), 0.3),
        "proj_b": nrm((D_MODEL,), 0.1),
        "out_w": nrm((NUM_CLASSES, SEQ_LEN * D_MODEL), 0.1),
        "out_b": nrm((NUM_CLASSES,), 0.1),
        "layers": [],
    }
    for _ in range(NUM_LAYERS):
        p["layers"].append({
            "wq": nrm((D_MODEL, D_MODEL), 0.15), "bq": nrm((D_MODEL,), 0.05),
            "wk": nrm((D_MODEL, D_MODEL), 0.15), "bk": nrm((D_MODEL,), 0.05),
            "wv": nrm((D_MODEL, D_MODEL), 0.15), "bv": nrm((D_MODEL,), 0.05),
            "wo": nrm((D_MODEL, D_MODEL), 0.15), "bo": nrm((D_MODEL,), 0.05),
            "bn1_gamma": uni((D_MODEL,), 0.9, 1.1), "bn1_beta": nrm((D_MODEL,), 0.05),
            "bn1_mean": nrm((D_MODEL,), 0.05), "bn1_var": uni((D_MODEL,), 0.5, 1.5),
            "w1": nrm((DIM_FF, D_MODEL), 0.15), "b1": nrm((DIM_FF,), 0.05),
            "w2": nrm((D_MODEL, DIM_FF), 0.15), "b2": nrm((D_MODEL,), 0.05),
            "bn2_gamma": uni((D_MODEL,), 0.9, 1.1), "bn2_beta": nrm((D_MODEL,), 0.05),
            "bn2_mean": nrm((D_MODEL,), 0.05), "bn2_var": uni((D_MODEL,), 0.5, 1.5),
        })
    return p


if __name__ == "__main__":
    key = jax.random.PRNGKey(0)
    k_param, k_x = jax.random.split(key)
    params = init_params(k_param)
    # batch of 8 -> TB = 4 samples per grid step, grid = (2,)  (both v7x TensorCores get work)
    X = jax.random.normal(k_x, (8, FEAT_DIM, MAX_LEN), dtype=jnp.float32)

    logits = jax.jit(forward)(X, params)
    logits = jax.block_until_ready(logits)
    assert logits.shape == (8, NUM_CLASSES)
    assert bool(jnp.all(jnp.isfinite(logits)))
    print("KERNEL_OK")
</pallas_src>

<mosaic_0001>
module attributes {stable_mosaic.version = 11 : i64} {
  func.func @fused_forward_kernel(%arg0: i32, %arg1: memref<1x16x400xf32, #tpu.memory_space<vmem>>, %arg2: memref<10x16x16xf32, #tpu.memory_space<vmem>>, %arg3: memref<2x16x1xf32, #tpu.memory_space<vmem>>, %arg4: memref<16x32xf32, #tpu.memory_space<vmem>>, %arg5: memref<28x32xf32, #tpu.memory_space<vmem>>, %arg6: memref<2x32x192xf32, #tpu.memory_space<vmem>>, %arg7: memref<2x64x32xf32, #tpu.memory_space<vmem>>, %arg8: memref<2x1x288xf32, #tpu.memory_space<vmem>>, %arg9: memref<32x21xf32, #tpu.memory_space<vmem>>, %arg10: memref<1x128xf32, #tpu.memory_space<vmem>>, %arg11: memref<1x4x128xf32, #tpu.memory_space<vmem>>) attributes {dimension_semantics = [#tpu.dimension_semantics<parallel>], iteration_bounds = array<i64: 2>, scalar_prefetch = 0 : i64, scratch_operands = 0 : i64, tpu.core_type = #tpu.core_type<tc>, window_params = [{transform_indices = @transform_0, window_bounds = array<i64: 1, 16, 400>}, {pipeline_mode = #tpu.pipeline_mode<synchronous>, transform_indices = @transform_1, window_bounds = array<i64: 10, 16, 16>}, {pipeline_mode = #tpu.pipeline_mode<synchronous>, transform_indices = @transform_2, window_bounds = array<i64: 2, 16, 1>}, {pipeline_mode = #tpu.pipeline_mode<synchronous>, transform_indices = @transform_3, window_bounds = array<i64: 16, 32>}, {pipeline_mode = #tpu.pipeline_mode<synchronous>, transform_indices = @transform_4, window_bounds = array<i64: 28, 32>}, {pipeline_mode = #tpu.pipeline_mode<synchronous>, transform_indices = @transform_5, window_bounds = array<i64: 2, 32, 192>}, {pipeline_mode = #tpu.pipeline_mode<synchronous>, transform_indices = @transform_6, window_bounds = array<i64: 2, 64, 32>}, {pipeline_mode = #tpu.pipeline_mode<synchronous>, transform_indices = @transform_7, window_bounds = array<i64: 2, 1, 288>}, {pipeline_mode = #tpu.pipeline_mode<synchronous>, transform_indices = @transform_8, window_bounds = array<i64: 32, 21>}, {pipeline_mode = #tpu.pipeline_mode<synchronous>, transform_indices = @transform_9, window_bounds = array<i64: 1, 128>}, {transform_indices = @transform_10, window_bounds = array<i64: 1, 4, 128>}]} {
    %0 = tpu.iota {dimensions = array<i32: 0>} : vector<360x72xi32>
    %1 = arith.sitofp %0 : vector<360x72xi32> to vector<360x72xf32>
    %2 = tpu.iota {dimensions = array<i32: 1>} : vector<360x72xi32>
    %3 = arith.sitofp %2 : vector<360x72xi32> to vector<360x72xf32>
    %cst = arith.constant 5.000000e+00 : f32
    %4 = vector.broadcast %cst : f32 to vector<360x72xf32>
    %5 = arith.mulf %4, %3 : vector<360x72xf32>
    %6 = arith.cmpf oeq, %1, %5 : vector<360x72xf32>
    %7 = arith.extui %6 : vector<360x72xi1> to vector<360x72xi32>
    %8 = arith.sitofp %7 : vector<360x72xi32> to vector<360x72xf32>
    %9 = tpu.iota {dimensions = array<i32: 0>} : vector<32x7xi32>
    %10 = arith.sitofp %9 : vector<32x7xi32> to vector<32x7xf32>
    %11 = tpu.iota {dimensions = array<i32: 1>} : vector<32x7xi32>
    %12 = arith.sitofp %11 : vector<32x7xi32> to vector<32x7xf32>
    %cst_0 = arith.constant 5.000000e+00 : f32
    %13 = vector.broadcast %cst_0 : f32 to vector<32x7xf32>
    %14 = arith.mulf %13, %12 : vector<32x7xf32>
    %15 = arith.cmpf oeq, %10, %14 : vector<32x7xf32>
    %16 = arith.extui %15 : vector<32x7xi1> to vector<32x7xi32>
    %17 = arith.sitofp %16 : vector<32x7xi32> to vector<32x7xf32>
    %18 = tpu.iota {dimensions = array<i32: 0>} : vector<28x7xi32>
    %19 = arith.sitofp %18 : vector<28x7xi32> to vector<28x7xf32>
    %20 = tpu.iota {dimensions = array<i32: 1>} : vector<28x7xi32>
    %21 = arith.sitofp %20 : vector<28x7xi32> to vector<28x7xf32>
    %cst_1 = arith.constant 0.142857149 : f32
    %22 = vector.broadcast %cst_1 : f32 to vector<28x7xf32>
    %23 = arith.mulf %19, %22 : vector<28x7xf32>
    %24 = math.floor %23 : vector<28x7xf32>
    %cst_2 = arith.constant 7.000000e+00 : f32
    %25 = vector.broadcast %cst_2 : f32 to vector<28x7xf32>
    %26 = arith.mulf %25, %24 : vector<28x7xf32>
    %27 = arith.subf %19, %26 : vector<28x7xf32>
    %28 = arith.cmpf oeq, %27, %21 : vector<28x7xf32>
    %29 = arith.extui %28 : vector<28x7xi1> to vector<28x7xi32>
    %30 = arith.sitofp %29 : vector<28x7xi32> to vector<28x7xf32>
    %31 = tpu.iota {dimensions = array<i32: 0>} : vector<28x16xi32>
    %32 = arith.sitofp %31 : vector<28x16xi32> to vector<28x16xf32>
    %33 = tpu.iota {dimensions = array<i32: 1>} : vector<28x16xi32>
    %34 = arith.sitofp %33 : vector<28x16xi32> to vector<28x16xf32>
    %cst_3 = arith.constant 0.142857149 : f32
    %35 = vector.broadcast %cst_3 : f32 to vector<28x16xf32>
    %36 = arith.mulf %32, %35 : vector<28x16xf32>
    %37 = math.floor %36 : vector<28x16xf32>
    %cst_4 = arith.constant 2.500000e-01 : f32
    %38 = vector.broadcast %cst_4 : f32 to vector<28x16xf32>
    %39 = arith.mulf %34, %38 : vector<28x16xf32>
    %40 = math.floor %39 : vector<28x16xf32>
    %41 = arith.cmpf oeq, %37, %40 : vector<28x16xf32>
    %42 = arith.extui %41 : vector<28x16xi1> to vector<28x16xi32>
    %43 = arith.sitofp %42 : vector<28x16xi32> to vector<28x16xf32>
    %44 = tpu.iota {dimensions = array<i32: 0>} : vector<28x28xi32>
    %45 = arith.sitofp %44 : vector<28x28xi32> to vector<28x28xf32>
    %46 = tpu.iota {dimensions = array<i32: 1>} : vector<28x28xi32>
    %47 = arith.sitofp %46 : vector<28x28xi32> to vector<28x28xf32>
    %cst_5 = arith.constant 0.142857149 : f32
    %48 = vector.broadcast %cst_5 : f32 to vector<28x28xf32>
    %49 = arith.mulf %45, %48 : vector<28x28xf32>
    %50 = math.floor %49 : vector<28x28xf32>
    %cst_6 = arith.constant 0.142857149 : f32
    %51 = vector.broadcast %cst_6 : f32 to vector<28x28xf32>
    %52 = arith.mulf %47, %51 : vector<28x28xf32>
    %53 = math.floor %52 : vector<28x28xf32>
    %54 = arith.cmpf oeq, %50, %53 : vector<28x28xf32>
    %cst_7 = arith.constant 0.000000e+00 : f32
    %cst_8 = arith.constant -1.000000e+30 : f32
    %55 = vector.broadcast %cst_7 : f32 to vector<28x28xf32>
    %56 = vector.broadcast %cst_8 : f32 to vector<28x28xf32>
    %57 = arith.select %54, %55, %56 : vector<28x28xi1>, vector<28x28xf32>
    %58 = tpu.iota {dimensions = array<i32: 0>} : vector<28x21xi32>
    %59 = arith.sitofp %58 : vector<28x21xi32> to vector<28x21xf32>
    %60 = tpu.iota {dimensions = array<i32: 1>} : vector<28x21xi32>
    %61 = arith.sitofp %60 : vector<28x21xi32> to vector<28x21xf32>
    %cst_9 = arith.constant 0.142857149 : f32
    %62 = vector.broadcast %cst_9 : f32 to vector<28x21xf32>
    %63 = arith.mulf %59, %62 : vector<28x21xf32>
    %64 = math.floor %63 : vector<28x21xf32>
    %cst_10 = arith.constant 7.000000e+00 : f32
    %65 = vector.broadcast %cst_10 : f32 to vector<28x21xf32>
    %66 = arith.mulf %65, %64 : vector<28x21xf32>
    %67 = arith.subf %59, %66 : vector<28x21xf32>
    %cst_11 = arith.constant 0.142857149 : f32
    %68 = vector.broadcast %cst_11 : f32 to vector<28x21xf32>
    %69 = arith.mulf %61, %68 : vector<28x21xf32>
    %70 = math.floor %69 : vector<28x21xf32>
    %cst_12 = arith.constant 7.000000e+00 : f32
    %71 = vector.broadcast %cst_12 : f32 to vector<28x21xf32>
    %72 = arith.mulf %71, %70 : vector<28x21xf32>
    %73 = arith.subf %61, %72 : vector<28x21xf32>
    %74 = arith.cmpf oeq, %67, %73 : vector<28x21xf32>
    %75 = arith.extui %74 : vector<28x21xi1> to vector<28x21xi32>
    %76 = arith.sitofp %75 : vector<28x21xi32> to vector<28x21xf32>
    %77 = tpu.iota {dimensions = array<i32: 0>} : vector<21x128xi32>
    %78 = arith.sitofp %77 : vector<21x128xi32> to vector<21x128xf32>
    %79 = tpu.iota {dimensions = array<i32: 1>} : vector<21x128xi32>
    %80 = arith.sitofp %79 : vector<21x128xi32> to vector<21x128xf32>
    %cst_13 = arith.constant 0.142857149 : f32
    %81 = vector.broadcast %cst_13 : f32 to vector<21x128xf32>
    %82 = arith.mulf %78, %81 : vector<21x128xf32>
    %83 = math.floor %82 : vector<21x128xf32>
    %84 = arith.cmpf oeq, %80, %83 : vector<21x128xf32>
    %85 = arith.extui %84 : vector<21x128xi1> to vector<21x128xi32>
    %86 = arith.sitofp %85 : vector<21x128xi32> to vector<21x128xf32>
    %87 = tpu.iota {dimensions = array<i32: 0>} : vector<4x28xi32>
    %88 = arith.sitofp %87 : vector<4x28xi32> to vector<4x28xf32>
    %89 = tpu.iota {dimensions = array<i32: 1>} : vector<4x28xi32>
    %90 = arith.sitofp %89 : vector<4x28xi32> to vector<4x28xf32>
    %cst_14 = arith.constant 0.142857149 : f32
    %91 = vector.broadcast %cst_14 : f32 to vector<4x28xf32>
    %92 = arith.mulf %90, %91 : vector<4x28xf32>
    %93 = math.floor %92 : vector<4x28xf32>
    %94 = arith.cmpf oeq, %93, %88 : vector<4x28xf32>
    %95 = arith.extui %94 : vector<4x28xi1> to vector<4x28xi32>
    %96 = arith.sitofp %95 : vector<4x28xi32> to vector<4x28xf32>
    %c0 = arith.constant 0 : index
    %c0_15 = arith.constant 0 : index
    %c0_16 = arith.constant 0 : index
    %97 = vector.load %arg3[%c0, %c0_15, %c0_16] : memref<2x16x1xf32, #tpu.memory_space<vmem>>, vector<1x16x1xf32>
    %98 = vector.shape_cast %97 : vector<1x16x1xf32> to vector<16x1xf32>
    %c0_17 = arith.constant 0 : index
    %c0_18 = arith.constant 0 : index
    %c0_19 = arith.constant 0 : index
    %99 = vector.load %arg1[%c0_17, %c0_18, %c0_19] : memref<1x16x400xf32, #tpu.memory_space<vmem>>, vector<1x16x364xf32>
    %100 = vector.shape_cast %99 : vector<1x16x364xf32> to vector<16x364xf32>
    %c0_20 = arith.constant 0 : index
    %c0_21 = arith.constant 0 : index
    %c0_22 = arith.constant 0 : index
    %101 = vector.load %arg2[%c0_20, %c0_21, %c0_22] : memref<10x16x16xf32, #tpu.memory_space<vmem>>, vector<1x16x16xf32>
    %102 = vector.shape_cast %101 : vector<1x16x16xf32> to vector<16x16xf32>
    %cst_23 = arith.constant dense<0.000000e+00> : vector<16x364xf32>
    %103 = tpu.matmul %102, %100, %cst_23 {dimension_numbers = #tpu.dot_dimension_numbers<[1], [0], [0], [1], [0, 0, 1, 1], [], []>} : vector<16x16xf32>, vector<16x364xf32>, vector<16x364xf32> -> vector<16x364xf32>
    %104 = vector.broadcast %98 : vector<16x1xf32> to vector<16x364xf32>
    %105 = arith.addf %104, %103 : vector<16x364xf32>
    %c0_24 = arith.constant 0 : index
    %c0_25 = arith.constant 0 : index
    %c9 = arith.constant 9 : index
    %106 = vector.load %arg1[%c0_24, %c0_25, %c9] : memref<1x16x400xf32, #tpu.memory_space<vmem>>, vector<1x16x364xf32>
    %107 = vector.shape_cast %106 : vector<1x16x364xf32> to vector<16x364xf32>
    %c1 = arith.constant 1 : index
    %c0_26 = arith.constant 0 : index
    %c0_27 = arith.constant 0 : index
    %108 = vector.load %arg2[%c1, %c0_26, %c0_27] : memref<10x16x16xf32, #tpu.memory_space<vmem>>, vector<1x16x16xf32>
    %109 = vector.shape_cast %108 : vector<1x16x16xf32> to vector<16x16xf32>
    %cst_28 = arith.constant dense<0.000000e+00> : vector<16x364xf32>
    %110 = tpu.matmul %109, %107, %cst_28 {dimension_numbers = #tpu.dot_dimension_numbers<[1], [0], [0], [1], [0, 0, 1, 1], [], []>} : vector<16x16xf32>, vector<16x364xf32>, vector<16x364xf32> -> vector<16x364xf32>
    %111 = arith.addf %105, %110 : vector<16x364xf32>
    %c0_29 = arith.constant 0 : index
    %c0_30 = arith.constant 0 : index
    %c18 = arith.constant 18 : index
    %112 = vector.load %arg1[%c0_29, %c0_30, %c18] : memref<1x16x400xf32, #tpu.memory_space<vmem>>, vector<1x16x364xf32>
    %113 = vector.shape_cast %112 : vector<1x16x364xf32> to vector<16x364xf32>
    %c2 = arith.constant 2 : index
    %c0_31 = arith.constant 0 : index
    %c0_32 = arith.constant 0 : index
    %114 = vector.load %arg2[%c2, %c0_31, %c0_32] : memref<10x16x16xf32, #tpu.memory_space<vmem>>, vector<1x16x16xf32>
    %115 = vector.shape_cast %114 : vector<1x16x16xf32> to vector<16x16xf32>
    %cst_33 = arith.constant dense<0.000000e+00> : vector<16x364xf32>
    %116 = tpu.matmul %115, %113, %cst_33 {dimension_numbers = #tpu.dot_dimension_numbers<[1], [0], [0], [1], [0, 0, 1, 1], [], []>} : vector<16x16xf32>, vector<16x364xf32>, vector<16x364xf32> -> vector<16x364xf32>
    %117 = arith.addf %111, %116 : vector<16x364xf32>
    %c0_34 = arith.constant 0 : index
    %c0_35 = arith.constant 0 : index
    %c27 = arith.constant 27 : index
    %118 = vector.load %arg1[%c0_34, %c0_35, %c27] : memref<1x16x400xf32, #tpu.memory_space<vmem>>, vector<1x16x364xf32>
    %119 = vector.shape_cast %118 : vector<1x16x364xf32> to vector<16x364xf32>
    %c3 = arith.constant 3 : index
    %c0_36 = arith.constant 0 : index
    %c0_37 = arith.constant 0 : index
    %120 = vector.load %arg2[%c3, %c0_36, %c0_37] : memref<10x16x16xf32, #tpu.memory_space<vmem>>, vector<1x16x16xf32>
    %121 = vector.shape_cast %120 : vector<1x16x16xf32> to vector<16x16xf32>
    %cst_38 = arith.constant dense<0.000000e+00> : vector<16x364xf32>
    %122 = tpu.matmul %121, %119, %cst_38 {dimension_numbers = #tpu.dot_dimension_numbers<[1], [0], [0], [1], [0, 0, 1, 1], [], []>} : vector<16x16xf32>, vector<16x364xf32>, vector<16x364xf32> -> vector<16x364xf32>
    %123 = arith.addf %117, %122 : vector<16x364xf32>
    %c0_39 = arith.constant 0 : index
    %c0_40 = arith.constant 0 : index
    %c36 = arith.constant 36 : index
    %124 = vector.load %arg1[%c0_39, %c0_40, %c36] : memref<1x16x400xf32, #tpu.memory_space<vmem>>, vector<1x16x364xf32>
    %125 = vector.shape_cast %124 : vector<1x16x364xf32> to vector<16x364xf32>
    %c4 = arith.constant 4 : index
    %c0_41 = arith.constant 0 : index
    %c0_42 = arith.constant 0 : index
    %126 = vector.load %arg2[%c4, %c0_41, %c0_42] : memref<10x16x16xf32, #tpu.memory_space<vmem>>, vector<1x16x16xf32>
    %127 = vector.shape_cast %126 : vector<1x16x16xf32> to vector<16x16xf32>
    %cst_43 = arith.constant dense<0.000000e+00> : vector<16x364xf32>
    %128 = tpu.matmul %127, %125, %cst_43 {dimension_numbers = #tpu.dot_dimension_numbers<[1], [0], [0], [1], [0, 0, 1, 1], [], []>} : vector<16x16xf32>, vector<16x364xf32>, vector<16x364xf32> -> vector<16x364xf32>
    %129 = arith.addf %123, %128 : vector<16x364xf32>
    %cst_44 = arith.constant 5.000000e-01 : f32
    %130 = vector.broadcast %cst_44 : f32 to vector<16x364xf32>
    %131 = arith.mulf %130, %129 : vector<16x364xf32>
    %cst_45 = arith.constant 4.471500e-02 : f32
    %132 = vector.broadcast %cst_45 : f32 to vector<16x364xf32>
    %133 = arith.mulf %132, %129 : vector<16x364xf32>
    %134 = arith.mulf %133, %129 : vector<16x364xf32>
    %135 = arith.mulf %134, %129 : vector<16x364xf32>
    %136 = arith.addf %129, %135 : vector<16x364xf32>
    %cst_46 = arith.constant 0.797884583 : f32
    %137 = vector.broadcast %cst_46 : f32 to vector<16x364xf32>
    %138 = arith.mulf %137, %136 : vector<16x364xf32>
    %139 = math.tanh %138 : vector<16x364xf32>
    %cst_47 = arith.constant 1.000000e+00 : f32
    %140 = vector.broadcast %cst_47 : f32 to vector<16x364xf32>
    %141 = arith.addf %140, %139 : vector<16x364xf32>
    %142 = arith.mulf %131, %141 : vector<16x364xf32>
    %143 = vector.extract_strided_slice %142 {offsets = [0, 0], sizes = [16, 360], strides = [1, 1]} : vector<16x364xf32> to vector<16x360xf32>
    %144 = vector.extract_strided_slice %142 {offsets = [0, 1], sizes = [16, 360], strides = [1, 1]} : vector<16x364xf32> to vector<16x360xf32>
    %145 = arith.maximumf %143, %144 : vector<16x360xf32>
    %146 = vector.extract_strided_slice %142 {offsets = [0, 2], sizes = [16, 360], strides = [1, 1]} : vector<16x364xf32> to vector<16x360xf32>
    %147 = arith.maximumf %145, %146 : vector<16x360xf32>
    %148 = vector.extract_strided_slice %142 {offsets = [0, 3], sizes = [16, 360], strides = [1, 1]} : vector<16x364xf32> to vector<16x360xf32>
    %149 = arith.maximumf %147, %148 : vector<16x360xf32>
    %150 = vector.extract_strided_slice %142 {offsets = [0, 4], sizes = [16, 360], strides = [1, 1]} : vector<16x364xf32> to vector<16x360xf32>
    %151 = arith.maximumf %149, %150 : vector<16x360xf32>
    %cst_48 = arith.constant dense<0.000000e+00> : vector<16x72xf32>
    %152 = tpu.matmul %151, %8, %cst_48 {dimension_numbers = #tpu.dot_dimension_numbers<[1], [0], [0], [1], [0, 0, 1, 1], [], []>} : vector<16x360xf32>, vector<360x72xf32>, vector<16x72xf32> -> vector<16x72xf32>
    %c1_49 = arith.constant 1 : index
    %c0_50 = arith.constant 0 : index
    %c0_51 = arith.constant 0 : index
    %153 = vector.load %arg3[%c1_49, %c0_50, %c0_51] : memref<2x16x1xf32, #tpu.memory_space<vmem>>, vector<1x16x1xf32>
    %154 = vector.shape_cast %153 : vector<1x16x1xf32> to vector<16x1xf32>
    %c5 = arith.constant 5 : index
    %c0_52 = arith.constant 0 : index
    %c0_53 = arith.constant 0 : index
    %155 = vector.load %arg2[%c5, %c0_52, %c0_53] : memref<10x16x16xf32, #tpu.memory_space<vmem>>, vector<1x16x16xf32>
    %156 = vector.shape_cast %155 : vector<1x16x16xf32> to vector<16x16xf32>
    %157 = vector.extract_strided_slice %152 {offsets = [0, 0], sizes = [16, 36], strides = [1, 1]} : vector<16x72xf32> to vector<16x36xf32>
    %cst_54 = arith.constant dense<0.000000e+00> : vector<16x36xf32>
    %158 = tpu.matmul %156, %157, %cst_54 {dimension_numbers = #tpu.dot_dimension_numbers<[1], [0], [0], [1], [0, 0, 1, 1], [], []>} : vector<16x16xf32>, vector<16x36xf32>, vector<16x36xf32> -> vector<16x36xf32>
    %159 = vector.broadcast %154 : vector<16x1xf32> to vector<16x36xf32>
    %160 = arith.addf %159, %158 : vector<16x36xf32>
    %c6 = arith.constant 6 : index
    %c0_55 = arith.constant 0 : index
    %c0_56 = arith.constant 0 : index
    %161 = vector.load %arg2[%c6, %c0_55, %c0_56] : memref<10x16x16xf32, #tpu.memory_space<vmem>>, vector<1x16x16xf32>
    %162 = vector.shape_cast %161 : vector<1x16x16xf32> to vector<16x16xf32>
    %163 = vector.extract_strided_slice %152 {offsets = [0, 9], sizes = [16, 36], strides = [1, 1]} : vector<16x72xf32> to vector<16x36xf32>
    %cst_57 = arith.constant dense<0.000000e+00> : vector<16x36xf32>
    %164 = tpu.matmul %162, %163, %cst_57 {dimension_numbers = #tpu.dot_dimension_numbers<[1], [0], [0], [1], [0, 0, 1, 1], [], []>} : vector<16x16xf32>, vector<16x36xf32>, vector<16x36xf32> -> vector<16x36xf32>
    %165 = arith.addf %160, %164 : vector<16x36xf32>
    %c7 = arith.constant 7 : index
    %c0_58 = arith.constant 0 : index
    %c0_59 = arith.constant 0 : index
    %166 = vector.load %arg2[%c7, %c0_58, %c0_59] : memref<10x16x16xf32, #tpu.memory_space<vmem>>, vector<1x16x16xf32>
    %167 = vector.shape_cast %166 : vector<1x16x16xf32> to vector<16x16xf32>
    %168 = vector.extract_strided_slice %152 {offsets = [0, 18], sizes = [16, 36], strides = [1, 1]} : vector<16x72xf32> to vector<16x36xf32>
    %cst_60 = arith.constant dense<0.000000e+00> : vector<16x36xf32>
    %169 = tpu.matmul %167, %168, %cst_60 {dimension_numbers = #tpu.dot_dimension_numbers<[1], [0], [0], [1], [0, 0, 1, 1], [], []>} : vector<16x16xf32>, vector<16x36xf32>, vector<16x36xf32> -> vector<16x36xf32>
    %170 = arith.addf %165, %169 : vector<16x36xf32>
    %c8 = arith.constant 8 : index
    %c0_61 = arith.constant 0 : index
    %c0_62 = arith.constant 0 : index
    %171 = vector.load %arg2[%c8, %c0_61, %c0_62] : memref<10x16x16xf32, #tpu.memory_space<vmem>>, vector<1x16x16xf32>
    %172 = vector.shape_cast %171 : vector<1x16x16xf32> to vector<16x16xf32>
    %173 = vector.extract_strided_slice %152 {offsets = [0, 27], sizes = [16, 36], strides = [1, 1]} : vector<16x72xf32> to vector<16x36xf32>
    %cst_63 = arith.constant dense<0.000000e+00> : vector<16x36xf32>
    %174 = tpu.matmul %172, %173, %cst_63 {dimension_numbers = #tpu.dot_dimension_numbers<[1], [0], [0], [1], [0, 0, 1, 1], [], []>} : vector<16x16xf32>, vector<16x36xf32>, vector<16x36xf32> -> vector<16x36xf32>
    %175 = arith.addf %170, %174 : vector<16x36xf32>
    %c9_64 = arith.constant 9 : index
    %c0_65 = arith.constant 0 : index
    %c0_66 = arith.constant 0 : index
    %176 = vector.load %arg2[%c9_64, %c0_65, %c0_66] : memref<10x16x16xf32, #tpu.memory_space<vmem>>, vector<1x16x16xf32>
    %177 = vector.shape_cast %176 : vector<1x16x16xf32> to vector<16x16xf32>
    %178 = vector.extract_strided_slice %152 {offsets = [0, 36], sizes = [16, 36], strides = [1, 1]} : vector<16x72xf32> to vector<16x36xf32>
    %cst_67 = arith.constant dense<0.000000e+00> : vector<16x36xf32>
    %179 = tpu.matmul %177, %178, %cst_67 {dimension_numbers = #tpu.dot_dimension_numbers<[1], [0], [0], [1], [0, 0, 1, 1], [], []>} : vector<16x16xf32>, vector<16x36xf32>, vector<16x36xf32> -> vector<16x36xf32>
    %180 = arith.addf %175, %179 : vector<16x36xf32>
    %cst_68 = arith.constant 5.000000e-01 : f32
    %181 = vector.broadcast %cst_68 : f32 to vector<16x36xf32>
    %182 = arith.mulf %181, %180 : vector<16x36xf32>
    %cst_69 = arith.constant 4.471500e-02 : f32
    %183 = vector.broadcast %cst_69 : f32 to vector<16x36xf32>
    %184 = arith.mulf %183, %180 : vector<16x36xf32>
    %185 = arith.mulf %184, %180 : vector<16x36xf32>
    %186 = arith.mulf %185, %180 : vector<16x36xf32>
    %187 = arith.addf %180, %186 : vector<16x36xf32>
    %cst_70 = arith.constant 0.797884583 : f32
    %188 = vector.broadcast %cst_70 : f32 to vector<16x36xf32>
    %189 = arith.mulf %188, %187 : vector<16x36xf32>
    %190 = math.tanh %189 : vector<16x36xf32>
    %cst_71 = arith.constant 1.000000e+00 : f32
    %191 = vector.broadcast %cst_71 : f32 to vector<16x36xf32>
    %192 = arith.addf %191, %190 : vector<16x36xf32>
    %193 = arith.mulf %182, %192 : vector<16x36xf32>
    %194 = vector.extract_strided_slice %193 {offsets = [0, 0], sizes = [16, 32], strides = [1, 1]} : vector<16x36xf32> to vector<16x32xf32>
    %195 = vector.extract_strided_slice %193 {offsets = [0, 1], sizes = [16, 32], strides = [1, 1]} : vector<16x36xf32> to vector<16x32xf32>
    %196 = arith.maximumf %194, %195 : vector<16x32xf32>
    %197 = vector.extract_strided_slice %193 {offsets = [0, 2], sizes = [16, 32], strides = [1, 1]} : vector<16x36xf32> to vector<16x32xf32>
    %198 = arith.maximumf %196, %197 : vector<16x32xf32>
    %199 = vector.extract_strided_slice %193 {offsets = [0, 3], sizes = [16, 32], strides = [1, 1]} : vector<16x36xf32> to vector<16x32xf32>
    %200 = arith.maximumf %198, %199 : vector<16x32xf32>
    %201 = vector.extract_strided_slice %193 {offsets = [0, 4], sizes = [16, 32], strides = [1, 1]} : vector<16x36xf32> to vector<16x32xf32>
    %202 = arith.maximumf %200, %201 : vector<16x32xf32>
    %cst_72 = arith.constant dense<0.000000e+00> : vector<16x7xf32>
    %203 = tpu.matmul %202, %17, %cst_72 {dimension_numbers = #tpu.dot_dimension_numbers<[1], [0], [0], [1], [0, 0, 1, 1], [], []>} : vector<16x32xf32>, vector<32x7xf32>, vector<16x7xf32> -> vector<16x7xf32>
    %204 = tpu.transpose %203, [1, 0] : vector<16x7xf32> -> vector<7x16xf32>
    %cst_73 = arith.constant dense<0.000000e+00> : vector<28x16xf32>
    %205 = tpu.matmul %30, %204, %cst_73 {dimension_numbers = #tpu.dot_dimension_numbers<[1], [0], [0], [1], [0, 0, 1, 1], [], []>} : vector<28x7xf32>, vector<7x16xf32>, vector<28x16xf32> -> vector<28x16xf32>
    %206 = arith.mulf %205, %43 : vector<28x16xf32>
    %c0_74 = arith.constant 0 : index
    %c0_75 = arith.constant 0 : index
    %207 = vector.load %arg4[%c0_74, %c0_75] : memref<16x32xf32, #tpu.memory_space<vmem>>, vector<16x32xf32>
    %cst_76 = arith.constant dense<0.000000e+00> : vector<28x32xf32>
    %208 = tpu.matmul %206, %207, %cst_76 {dimension_numbers = #tpu.dot_dimension_numbers<[1], [0], [0], [1], [0, 0, 1, 1], [], []>} : vector<28x16xf32>, vector<16x32xf32>, vector<28x32xf32> -> vector<28x32xf32>
    %c0_77 = arith.constant 0 : index
    %c0_78 = arith.constant 0 : index
    %209 = vector.load %arg5[%c0_77, %c0_78] : memref<28x32xf32, #tpu.memory_space<vmem>>, vector<28x32xf32>
    %210 = arith.addf %208, %209 : vector<28x32xf32>
    %c0_79 = arith.constant 0 : index
    %c0_80 = arith.constant 0 : index
    %c0_81 = arith.constant 0 : index
    %211 = vector.load %arg6[%c0_79, %c0_80, %c0_81] : memref<2x32x192xf32, #tpu.memory_space<vmem>>, vector<1x32x96xf32>
    %212 = vector.shape_cast %211 : vector<1x32x96xf32> to vector<32x96xf32>
    %c0_82 = arith.constant 0 : index
    %c0_83 = arith.constant 0 : index
    %c96 = arith.constant 96 : index
    %213 = vector.load %arg6[%c0_82, %c0_83, %c96] : memref<2x32x192xf32, #tpu.memory_space<vmem>>, vector<1x32x32xf32>
    %214 = vector.shape_cast %213 : vector<1x32x32xf32> to vector<32x32xf32>
    %c0_84 = arith.constant 0 : index
    %c0_85 = arith.constant 0 : index
    %c128 = arith.constant 128 : index
    %215 = vector.load %arg6[%c0_84, %c0_85, %c128] : memref<2x32x192xf32, #tpu.memory_space<vmem>>, vector<1x32x64xf32>
    %216 = vector.shape_cast %215 : vector<1x32x64xf32> to vector<32x64xf32>
    %c0_86 = arith.constant 0 : index
    %c0_87 = arith.constant 0 : index
    %c0_88 = arith.constant 0 : index
    %217 = vector.load %arg8[%c0_86, %c0_87, %c0_88] : memref<2x1x288xf32, #tpu.memory_space<vmem>>, vector<1x1x96xf32>
    %218 = vector.shape_cast %217 : vector<1x1x96xf32> to vector<1x96xf32>
    %c0_89 = arith.constant 0 : index
    %c0_90 = arith.constant 0 : index
    %c96_91 = arith.constant 96 : index
    %219 = vector.load %arg8[%c0_89, %c0_90, %c96_91] : memref<2x1x288xf32, #tpu.memory_space<vmem>>, vector<1x1x64xf32>
    %220 = vector.shape_cast %219 : vector<1x1x64xf32> to vector<1x64xf32>
    %c0_92 = arith.constant 0 : index
    %c0_93 = arith.constant 0 : index
    %c160 = arith.constant 160 : index
    %221 = vector.load %arg8[%c0_92, %c0_93, %c160] : memref<2x1x288xf32, #tpu.memory_space<vmem>>, vector<1x1x32xf32>
    %222 = vector.shape_cast %221 : vector<1x1x32xf32> to vector<1x32xf32>
    %c0_94 = arith.constant 0 : index
    %c0_95 = arith.constant 0 : index
    %c192 = arith.constant 192 : index
    %223 = vector.load %arg8[%c0_94, %c0_95, %c192] : memref<2x1x288xf32, #tpu.memory_space<vmem>>, vector<1x1x32xf32>
    %224 = vector.shape_cast %223 : vector<1x1x32xf32> to vector<1x32xf32>
    %c0_96 = arith.constant 0 : index
    %c0_97 = arith.constant 0 : index
    %c224 = arith.constant 224 : index
    %225 = vector.load %arg8[%c0_96, %c0_97, %c224] : memref<2x1x288xf32, #tpu.memory_space<vmem>>, vector<1x1x32xf32>
    %226 = vector.shape_cast %225 : vector<1x1x32xf32> to vector<1x32xf32>
    %c0_98 = arith.constant 0 : index
    %c0_99 = arith.constant 0 : index
    %c256 = arith.constant 256 : index
    %227 = vector.load %arg8[%c0_98, %c0_99, %c256] : memref<2x1x288xf32, #tpu.memory_space<vmem>>, vector<1x1x32xf32>
    %228 = vector.shape_cast %227 : vector<1x1x32xf32> to vector<1x32xf32>
    %cst_100 = arith.constant dense<0.000000e+00> : vector<28x96xf32>
    %229 = tpu.matmul %210, %212, %cst_100 {dimension_numbers = #tpu.dot_dimension_numbers<[1], [0], [0], [1], [0, 0, 1, 1], [], []>} : vector<28x32xf32>, vector<32x96xf32>, vector<28x96xf32> -> vector<28x96xf32>
    %230 = vector.broadcast %218 : vector<1x96xf32> to vector<28x96xf32>
    %231 = arith.addf %229, %230 : vector<28x96xf32>
    %232 = vector.extract_strided_slice %231 {offsets = [0, 0], sizes = [28, 8], strides = [1, 1]} : vector<28x96xf32> to vector<28x8xf32>
    %cst_101 = arith.constant 0.353553385 : f32
    %233 = vector.broadcast %cst_101 : f32 to vector<28x8xf32>
    %234 = arith.mulf %232, %233 : vector<28x8xf32>
    %235 = vector.extract_strided_slice %231 {offsets = [0, 32], sizes = [28, 8], strides = [1, 1]} : vector<28x96xf32> to vector<28x8xf32>
    %236 = vector.extract_strided_slice %231 {offsets = [0, 64], sizes = [28, 8], strides = [1, 1]} : vector<28x96xf32> to vector<28x8xf32>
    %cst_102 = arith.constant dense<0.000000e+00> : vector<28x28xf32>
    %237 = tpu.matmul %234, %235, %cst_102 {dimension_numbers = #tpu.dot_dimension_numbers<[1], [1], [0], [0], [0, 0, 1, 0], [], []>} : vector<28x8xf32>, vector<28x8xf32>, vector<28x28xf32> -> vector<28x28xf32>
    %238 = arith.addf %237, %57 : vector<28x28xf32>
    %cst_103 = arith.constant dense<0xFF800000> : vector<28xf32>
    %239 = vector.multi_reduction <maximumf>, %238, %cst_103 [1] : vector<28x28xf32> to vector<28xf32>
    %240 = vector.shape_cast %239 : vector<28xf32> to vector<28x1xf32>
    %241 = vector.broadcast %240 : vector<28x1xf32> to vector<28x28xf32>
    %242 = arith.subf %238, %241 : vector<28x28xf32>
    %243 = math.exp %242 : vector<28x28xf32>
    %cst_104 = arith.constant dense<0.000000e+00> : vector<28xf32>
    %244 = vector.multi_reduction <add>, %243, %cst_104 [1] : vector<28x28xf32> to vector<28xf32>
    %245 = vector.shape_cast %244 : vector<28xf32> to vector<28x1xf32>
    %cst_105 = arith.constant 1.000000e+00 : f32
    %246 = vector.broadcast %cst_105 : f32 to vector<28x1xf32>
    %247 = arith.divf %246, %245 : vector<28x1xf32>
    %248 = vector.broadcast %247 : vector<28x1xf32> to vector<28x28xf32>
    %249 = arith.mulf %243, %248 : vector<28x28xf32>
    %cst_106 = arith.constant dense<0.000000e+00> : vector<28x8xf32>
    %250 = tpu.matmul %249, %236, %cst_106 {dimension_numbers = #tpu.dot_dimension_numbers<[1], [0], [0], [1], [0, 0, 1, 1], [], []>} : vector<28x28xf32>, vector<28x8xf32>, vector<28x8xf32> -> vector<28x8xf32>
    %251 = vector.extract_strided_slice %231 {offsets = [0, 8], sizes = [28, 8], strides = [1, 1]} : vector<28x96xf32> to vector<28x8xf32>
    %cst_107 = arith.constant 0.353553385 : f32
    %252 = vector.broadcast %cst_107 : f32 to vector<28x8xf32>
    %253 = arith.mulf %251, %252 : vector<28x8xf32>
    %254 = vector.extract_strided_slice %231 {offsets = [0, 40], sizes = [28, 8], strides = [1, 1]} : vector<28x96xf32> to vector<28x8xf32>
    %255 = vector.extract_strided_slice %231 {offsets = [0, 72], sizes = [28, 8], strides = [1, 1]} : vector<28x96xf32> to vector<28x8xf32>
    %cst_108 = arith.constant dense<0.000000e+00> : vector<28x28xf32>
    %256 = tpu.matmul %253, %254, %cst_108 {dimension_numbers = #tpu.dot_dimension_numbers<[1], [1], [0], [0], [0, 0, 1, 0], [], []>} : vector<28x8xf32>, vector<28x8xf32>, vector<28x28xf32> -> vector<28x28xf32>
    %257 = arith.addf %256, %57 : vector<28x28xf32>
    %cst_109 = arith.constant dense<0xFF800000> : vector<28xf32>
    %258 = vector.multi_reduction <maximumf>, %257, %cst_109 [1] : vector<28x28xf32> to vector<28xf32>
    %259 = vector.shape_cast %258 : vector<28xf32> to vector<28x1xf32>
    %260 = vector.broadcast %259 : vector<28x1xf32> to vector<28x28xf32>
    %261 = arith.subf %257, %260 : vector<28x28xf32>
    %262 = math.exp %261 : vector<28x28xf32>
    %cst_110 = arith.constant dense<0.000000e+00> : vector<28xf32>
    %263 = vector.multi_reduction <add>, %262, %cst_110 [1] : vector<28x28xf32> to vector<28xf32>
    %264 = vector.shape_cast %263 : vector<28xf32> to vector<28x1xf32>
    %cst_111 = arith.constant 1.000000e+00 : f32
    %265 = vector.broadcast %cst_111 : f32 to vector<28x1xf32>
    %266 = arith.divf %265, %264 : vector<28x1xf32>
    %267 = vector.broadcast %266 : vector<28x1xf32> to vector<28x28xf32>
    %268 = arith.mulf %262, %267 : vector<28x28xf32>
    %cst_112 = arith.constant dense<0.000000e+00> : vector<28x8xf32>
    %269 = tpu.matmul %268, %255, %cst_112 {dimension_numbers = #tpu.dot_dimension_numbers<[1], [0], [0], [1], [0, 0, 1, 1], [], []>} : vector<28x28xf32>, vector<28x8xf32>, vector<28x8xf32> -> vector<28x8xf32>
    %270 = vector.extract_strided_slice %231 {offsets = [0, 16], sizes = [28, 8], strides = [1, 1]} : vector<28x96xf32> to vector<28x8xf32>
    %cst_113 = arith.constant 0.353553385 : f32
    %271 = vector.broadcast %cst_113 : f32 to vector<28x8xf32>
    %272 = arith.mulf %270, %271 : vector<28x8xf32>
    %273 = vector.extract_strided_slice %231 {offsets = [0, 48], sizes = [28, 8], strides = [1, 1]} : vector<28x96xf32> to vector<28x8xf32>
    %274 = vector.extract_strided_slice %231 {offsets = [0, 80], sizes = [28, 8], strides = [1, 1]} : vector<28x96xf32> to vector<28x8xf32>
    %cst_114 = arith.constant dense<0.000000e+00> : vector<28x28xf32>
    %275 = tpu.matmul %272, %273, %cst_114 {dimension_numbers = #tpu.dot_dimension_numbers<[1], [1], [0], [0], [0, 0, 1, 0], [], []>} : vector<28x8xf32>, vector<28x8xf32>, vector<28x28xf32> -> vector<28x28xf32>
    %276 = arith.addf %275, %57 : vector<28x28xf32>
    %cst_115 = arith.constant dense<0xFF800000> : vector<28xf32>
    %277 = vector.multi_reduction <maximumf>, %276, %cst_115 [1] : vector<28x28xf32> to vector<28xf32>
    %278 = vector.shape_cast %277 : vector<28xf32> to vector<28x1xf32>
    %279 = vector.broadcast %278 : vector<28x1xf32> to vector<28x28xf32>
    %280 = arith.subf %276, %279 : vector<28x28xf32>
    %281 = math.exp %280 : vector<28x28xf32>
    %cst_116 = arith.constant dense<0.000000e+00> : vector<28xf32>
    %282 = vector.multi_reduction <add>, %281, %cst_116 [1] : vector<28x28xf32> to vector<28xf32>
    %283 = vector.shape_cast %282 : vector<28xf32> to vector<28x1xf32>
    %cst_117 = arith.constant 1.000000e+00 : f32
    %284 = vector.broadcast %cst_117 : f32 to vector<28x1xf32>
    %285 = arith.divf %284, %283 : vector<28x1xf32>
    %286 = vector.broadcast %285 : vector<28x1xf32> to vector<28x28xf32>
    %287 = arith.mulf %281, %286 : vector<28x28xf32>
    %cst_118 = arith.constant dense<0.000000e+00> : vector<28x8xf32>
    %288 = tpu.matmul %287, %274, %cst_118 {dimension_numbers = #tpu.dot_dimension_numbers<[1], [0], [0], [1], [0, 0, 1, 1], [], []>} : vector<28x28xf32>, vector<28x8xf32>, vector<28x8xf32> -> vector<28x8xf32>
    %289 = vector.extract_strided_slice %231 {offsets = [0, 24], sizes = [28, 8], strides = [1, 1]} : vector<28x96xf32> to vector<28x8xf32>
    %cst_119 = arith.constant 0.353553385 : f32
    %290 = vector.broadcast %cst_119 : f32 to vector<28x8xf32>
    %291 = arith.mulf %289, %290 : vector<28x8xf32>
    %292 = vector.extract_strided_slice %231 {offsets = [0, 56], sizes = [28, 8], strides = [1, 1]} : vector<28x96xf32> to vector<28x8xf32>
    %293 = vector.extract_strided_slice %231 {offsets = [0, 88], sizes = [28, 8], strides = [1, 1]} : vector<28x96xf32> to vector<28x8xf32>
    %cst_120 = arith.constant dense<0.000000e+00> : vector<28x28xf32>
    %294 = tpu.matmul %291, %292, %cst_120 {dimension_numbers = #tpu.dot_dimension_numbers<[1], [1], [0], [0], [0, 0, 1, 0], [], []>} : vector<28x8xf32>, vector<28x8xf32>, vector<28x28xf32> -> vector<28x28xf32>
    %295 = arith.addf %294, %57 : vector<28x28xf32>
    %cst_121 = arith.constant dense<0xFF800000> : vector<28xf32>
    %296 = vector.multi_reduction <maximumf>, %295, %cst_121 [1] : vector<28x28xf32> to vector<28xf32>
    %297 = vector.shape_cast %296 : vector<28xf32> to vector<28x1xf32>
    %298 = vector.broadcast %297 : vector<28x1xf32> to vector<28x28xf32>
    %299 = arith.subf %295, %298 : vector<28x28xf32>
    %300 = math.exp %299 : vector<28x28xf32>
    %cst_122 = arith.constant dense<0.000000e+00> : vector<28xf32>
    %301 = vector.multi_reduction <add>, %300, %cst_122 [1] : vector<28x28xf32> to vector<28xf32>
    %302 = vector.shape_cast %301 : vector<28xf32> to vector<28x1xf32>
    %cst_123 = arith.constant 1.000000e+00 : f32
    %303 = vector.broadcast %cst_123 : f32 to vector<28x1xf32>
    %304 = arith.divf %303, %302 : vector<28x1xf32>
    %305 = vector.broadcast %304 : vector<28x1xf32> to vector<28x28xf32>
    %306 = arith.mulf %300, %305 : vector<28x28xf32>
    %cst_124 = arith.constant dense<0.000000e+00> : vector<28x8xf32>
    %307 = tpu.matmul %306, %293, %cst_124 {dimension_numbers = #tpu.dot_dimension_numbers<[1], [0], [0], [1], [0, 0, 1, 1], [], []>} : vector<28x28xf32>, vector<28x8xf32>, vector<28x8xf32> -> vector<28x8xf32>
    %308 = tpu.concatenate %250, %269, %288, %307 in 1 : vector<28x8xf32>, vector<28x8xf32>, vector<28x8xf32>, vector<28x8xf32> -> vector<28x32xf32>
    %cst_125 = arith.constant dense<0.000000e+00> : vector<28x32xf32>
    %309 = tpu.matmul %308, %214, %cst_125 {dimension_numbers = #tpu.dot_dimension_numbers<[1], [0], [0], [1], [0, 0, 1, 1], [], []>} : vector<28x32xf32>, vector<32x32xf32>, vector<28x32xf32> -> vector<28x32xf32>
    %310 = vector.broadcast %222 : vector<1x32xf32> to vector<28x32xf32>
    %311 = arith.mulf %210, %310 : vector<28x32xf32>
    %312 = arith.addf %311, %309 : vector<28x32xf32>
    %313 = vector.broadcast %224 : vector<1x32xf32> to vector<28x32xf32>
    %314 = arith.addf %312, %313 : vector<28x32xf32>
    %cst_126 = arith.constant dense<0.000000e+00> : vector<28x64xf32>
    %315 = tpu.matmul %314, %216, %cst_126 {dimension_numbers = #tpu.dot_dimension_numbers<[1], [0], [0], [1], [0, 0, 1, 1], [], []>} : vector<28x32xf32>, vector<32x64xf32>, vector<28x64xf32> -> vector<28x64xf32>
    %316 = vector.broadcast %220 : vector<1x64xf32> to vector<28x64xf32>
    %317 = arith.addf %315, %316 : vector<28x64xf32>
    %cst_127 = arith.constant 5.000000e-01 : f32
    %318 = vector.broadcast %cst_127 : f32 to vector<28x64xf32>
    %319 = arith.mulf %318, %317 : vector<28x64xf32>
    %cst_128 = arith.constant 4.471500e-02 : f32
    %320 = vector.broadcast %cst_128 : f32 to vector<28x64xf32>
    %321 = arith.mulf %320, %317 : vector<28x64xf32>
    %322 = arith.mulf %321, %317 : vector<28x64xf32>
    %323 = arith.mulf %322, %317 : vector<28x64xf32>
    %324 = arith.addf %317, %323 : vector<28x64xf32>
    %cst_129 = arith.constant 0.797884583 : f32
    %325 = vector.broadcast %cst_129 : f32 to vector<28x64xf32>
    %326 = arith.mulf %325, %324 : vector<28x64xf32>
    %327 = math.tanh %326 : vector<28x64xf32>
    %cst_130 = arith.constant 1.000000e+00 : f32
    %328 = vector.broadcast %cst_130 : f32 to vector<28x64xf32>
    %329 = arith.addf %328, %327 : vector<28x64xf32>
    %330 = arith.mulf %319, %329 : vector<28x64xf32>
    %c0_131 = arith.constant 0 : index
    %c0_132 = arith.constant 0 : index
    %c0_133 = arith.constant 0 : index
    %331 = vector.load %arg7[%c0_131, %c0_132, %c0_133] : memref<2x64x32xf32, #tpu.memory_space<vmem>>, vector<1x64x32xf32>
    %332 = vector.shape_cast %331 : vector<1x64x32xf32> to vector<64x32xf32>
    %cst_134 = arith.constant dense<0.000000e+00> : vector<28x32xf32>
    %333 = tpu.matmul %330, %332, %cst_134 {dimension_numbers = #tpu.dot_dimension_numbers<[1], [0], [0], [1], [0, 0, 1, 1], [], []>} : vector<28x64xf32>, vector<64x32xf32>, vector<28x32xf32> -> vector<28x32xf32>
    %334 = vector.broadcast %226 : vector<1x32xf32> to vector<28x32xf32>
    %335 = arith.mulf %314, %334 : vector<28x32xf32>
    %336 = arith.addf %335, %333 : vector<28x32xf32>
    %337 = vector.broadcast %228 : vector<1x32xf32> to vector<28x32xf32>
    %338 = arith.addf %336, %337 : vector<28x32xf32>
    %c1_135 = arith.constant 1 : index
    %c0_136 = arith.constant 0 : index
    %c0_137 = arith.constant 0 : index
    %339 = vector.load %arg6[%c1_135, %c0_136, %c0_137] : memref<2x32x192xf32, #tpu.memory_space<vmem>>, vector<1x32x96xf32>
    %340 = vector.shape_cast %339 : vector<1x32x96xf32> to vector<32x96xf32>
    %c1_138 = arith.constant 1 : index
    %c0_139 = arith.constant 0 : index
    %c96_140 = arith.constant 96 : index
    %341 = vector.load %arg6[%c1_138, %c0_139, %c96_140] : memref<2x32x192xf32, #tpu.memory_space<vmem>>, vector<1x32x32xf32>
    %342 = vector.shape_cast %341 : vector<1x32x32xf32> to vector<32x32xf32>
    %c1_141 = arith.constant 1 : index
    %c0_142 = arith.constant 0 : index
    %c128_143 = arith.constant 128 : index
    %343 = vector.load %arg6[%c1_141, %c0_142, %c128_143] : memref<2x32x192xf32, #tpu.memory_space<vmem>>, vector<1x32x64xf32>
    %344 = vector.shape_cast %343 : vector<1x32x64xf32> to vector<32x64xf32>
    %c1_144 = arith.constant 1 : index
    %c0_145 = arith.constant 0 : index
    %c0_146 = arith.constant 0 : index
    %345 = vector.load %arg8[%c1_144, %c0_145, %c0_146] : memref<2x1x288xf32, #tpu.memory_space<vmem>>, vector<1x1x96xf32>
    %346 = vector.shape_cast %345 : vector<1x1x96xf32> to vector<1x96xf32>
    %c1_147 = arith.constant 1 : index
    %c0_148 = arith.constant 0 : index
    %c96_149 = arith.constant 96 : index
    %347 = vector.load %arg8[%c1_147, %c0_148, %c96_149] : memref<2x1x288xf32, #tpu.memory_space<vmem>>, vector<1x1x64xf32>
    %348 = vector.shape_cast %347 : vector<1x1x64xf32> to vector<1x64xf32>
    %c1_150 = arith.constant 1 : index
    %c0_151 = arith.constant 0 : index
    %c160_152 = arith.constant 160 : index
    %349 = vector.load %arg8[%c1_150, %c0_151, %c160_152] : memref<2x1x288xf32, #tpu.memory_space<vmem>>, vector<1x1x32xf32>
    %350 = vector.shape_cast %349 : vector<1x1x32xf32> to vector<1x32xf32>
    %c1_153 = arith.constant 1 : index
    %c0_154 = arith.constant 0 : index
    %c192_155 = arith.constant 192 : index
    %351 = vector.load %arg8[%c1_153, %c0_154, %c192_155] : memref<2x1x288xf32, #tpu.memory_space<vmem>>, vector<1x1x32xf32>
    %352 = vector.shape_cast %351 : vector<1x1x32xf32> to vector<1x32xf32>
    %c1_156 = arith.constant 1 : index
    %c0_157 = arith.constant 0 : index
    %c224_158 = arith.constant 224 : index
    %353 = vector.load %arg8[%c1_156, %c0_157, %c224_158] : memref<2x1x288xf32, #tpu.memory_space<vmem>>, vector<1x1x32xf32>
    %354 = vector.shape_cast %353 : vector<1x1x32xf32> to vector<1x32xf32>
    %c1_159 = arith.constant 1 : index
    %c0_160 = arith.constant 0 : index
    %c256_161 = arith.constant 256 : index
    %355 = vector.load %arg8[%c1_159, %c0_160, %c256_161] : memref<2x1x288xf32, #tpu.memory_space<vmem>>, vector<1x1x32xf32>
    %356 = vector.shape_cast %355 : vector<1x1x32xf32> to vector<1x32xf32>
    %cst_162 = arith.constant dense<0.000000e+00> : vector<28x96xf32>
    %357 = tpu.matmul %338, %340, %cst_162 {dimension_numbers = #tpu.dot_dimension_numbers<[1], [0], [0], [1], [0, 0, 1, 1], [], []>} : vector<28x32xf32>, vector<32x96xf32>, vector<28x96xf32> -> vector<28x96xf32>
    %358 = vector.broadcast %346 : vector<1x96xf32> to vector<28x96xf32>
    %359 = arith.addf %357, %358 : vector<28x96xf32>
    %360 = vector.extract_strided_slice %359 {offsets = [0, 0], sizes = [28, 8], strides = [1, 1]} : vector<28x96xf32> to vector<28x8xf32>
    %cst_163 = arith.constant 0.353553385 : f32
    %361 = vector.broadcast %cst_163 : f32 to vector<28x8xf32>
    %362 = arith.mulf %360, %361 : vector<28x8xf32>
    %363 = vector.extract_strided_slice %359 {offsets = [0, 32], sizes = [28, 8], strides = [1, 1]} : vector<28x96xf32> to vector<28x8xf32>
    %364 = vector.extract_strided_slice %359 {offsets = [0, 64], sizes = [28, 8], strides = [1, 1]} : vector<28x96xf32> to vector<28x8xf32>
    %cst_164 = arith.constant dense<0.000000e+00> : vector<28x28xf32>
    %365 = tpu.matmul %362, %363, %cst_164 {dimension_numbers = #tpu.dot_dimension_numbers<[1], [1], [0], [0], [0, 0, 1, 0], [], []>} : vector<28x8xf32>, vector<28x8xf32>, vector<28x28xf32> -> vector<28x28xf32>
    %366 = arith.addf %365, %57 : vector<28x28xf32>
    %cst_165 = arith.constant dense<0xFF800000> : vector<28xf32>
    %367 = vector.multi_reduction <maximumf>, %366, %cst_165 [1] : vector<28x28xf32> to vector<28xf32>
    %368 = vector.shape_cast %367 : vector<28xf32> to vector<28x1xf32>
    %369 = vector.broadcast %368 : vector<28x1xf32> to vector<28x28xf32>
    %370 = arith.subf %366, %369 : vector<28x28xf32>
    %371 = math.exp %370 : vector<28x28xf32>
    %cst_166 = arith.constant dense<0.000000e+00> : vector<28xf32>
    %372 = vector.multi_reduction <add>, %371, %cst_166 [1] : vector<28x28xf32> to vector<28xf32>
    %373 = vector.shape_cast %372 : vector<28xf32> to vector<28x1xf32>
    %cst_167 = arith.constant 1.000000e+00 : f32
    %374 = vector.broadcast %cst_167 : f32 to vector<28x1xf32>
    %375 = arith.divf %374, %373 : vector<28x1xf32>
    %376 = vector.broadcast %375 : vector<28x1xf32> to vector<28x28xf32>
    %377 = arith.mulf %371, %376 : vector<28x28xf32>
    %cst_168 = arith.constant dense<0.000000e+00> : vector<28x8xf32>
    %378 = tpu.matmul %377, %364, %cst_168 {dimension_numbers = #tpu.dot_dimension_numbers<[1], [0], [0], [1], [0, 0, 1, 1], [], []>} : vector<28x28xf32>, vector<28x8xf32>, vector<28x8xf32> -> vector<28x8xf32>
    %379 = vector.extract_strided_slice %359 {offsets = [0, 8], sizes = [28, 8], strides = [1, 1]} : vector<28x96xf32> to vector<28x8xf32>
    %cst_169 = arith.constant 0.353553385 : f32
    %380 = vector.broadcast %cst_169 : f32 to vector<28x8xf32>
    %381 = arith.mulf %379, %380 : vector<28x8xf32>
    %382 = vector.extract_strided_slice %359 {offsets = [0, 40], sizes = [28, 8], strides = [1, 1]} : vector<28x96xf32> to vector<28x8xf32>
    %383 = vector.extract_strided_slice %359 {offsets = [0, 72], sizes = [28, 8], strides = [1, 1]} : vector<28x96xf32> to vector<28x8xf32>
    %cst_170 = arith.constant dense<0.000000e+00> : vector<28x28xf32>
    %384 = tpu.matmul %381, %382, %cst_170 {dimension_numbers = #tpu.dot_dimension_numbers<[1], [1], [0], [0], [0, 0, 1, 0], [], []>} : vector<28x8xf32>, vector<28x8xf32>, vector<28x28xf32> -> vector<28x28xf32>
    %385 = arith.addf %384, %57 : vector<28x28xf32>
    %cst_171 = arith.constant dense<0xFF800000> : vector<28xf32>
    %386 = vector.multi_reduction <maximumf>, %385, %cst_171 [1] : vector<28x28xf32> to vector<28xf32>
    %387 = vector.shape_cast %386 : vector<28xf32> to vector<28x1xf32>
    %388 = vector.broadcast %387 : vector<28x1xf32> to vector<28x28xf32>
    %389 = arith.subf %385, %388 : vector<28x28xf32>
    %390 = math.exp %389 : vector<28x28xf32>
    %cst_172 = arith.constant dense<0.000000e+00> : vector<28xf32>
    %391 = vector.multi_reduction <add>, %390, %cst_172 [1] : vector<28x28xf32> to vector<28xf32>
    %392 = vector.shape_cast %391 : vector<28xf32> to vector<28x1xf32>
    %cst_173 = arith.constant 1.000000e+00 : f32
    %393 = vector.broadcast %cst_173 : f32 to vector<28x1xf32>
    %394 = arith.divf %393, %392 : vector<28x1xf32>
    %395 = vector.broadcast %394 : vector<28x1xf32> to vector<28x28xf32>
    %396 = arith.mulf %390, %395 : vector<28x28xf32>
    %cst_174 = arith.constant dense<0.000000e+00> : vector<28x8xf32>
    %397 = tpu.matmul %396, %383, %cst_174 {dimension_numbers = #tpu.dot_dimension_numbers<[1], [0], [0], [1], [0, 0, 1, 1], [], []>} : vector<28x28xf32>, vector<28x8xf32>, vector<28x8xf32> -> vector<28x8xf32>
    %398 = vector.extract_strided_slice %359 {offsets = [0, 16], sizes = [28, 8], strides = [1, 1]} : vector<28x96xf32> to vector<28x8xf32>
    %cst_175 = arith.constant 0.353553385 : f32
    %399 = vector.broadcast %cst_175 : f32 to vector<28x8xf32>
    %400 = arith.mulf %398, %399 : vector<28x8xf32>
    %401 = vector.extract_strided_slice %359 {offsets = [0, 48], sizes = [28, 8], strides = [1, 1]} : vector<28x96xf32> to vector<28x8xf32>
    %402 = vector.extract_strided_slice %359 {offsets = [0, 80], sizes = [28, 8], strides = [1, 1]} : vector<28x96xf32> to vector<28x8xf32>
    %cst_176 = arith.constant dense<0.000000e+00> : vector<28x28xf32>
    %403 = tpu.matmul %400, %401, %cst_176 {dimension_numbers = #tpu.dot_dimension_numbers<[1], [1], [0], [0], [0, 0, 1, 0], [], []>} : vector<28x8xf32>, vector<28x8xf32>, vector<28x28xf32> -> vector<28x28xf32>
    %404 = arith.addf %403, %57 : vector<28x28xf32>
    %cst_177 = arith.constant dense<0xFF800000> : vector<28xf32>
    %405 = vector.multi_reduction <maximumf>, %404, %cst_177 [1] : vector<28x28xf32> to vector<28xf32>
    %406 = vector.shape_cast %405 : vector<28xf32> to vector<28x1xf32>
    %407 = vector.broadcast %406 : vector<28x1xf32> to vector<28x28xf32>
    %408 = arith.subf %404, %407 : vector<28x28xf32>
    %409 = math.exp %408 : vector<28x28xf32>
    %cst_178 = arith.constant dense<0.000000e+00> : vector<28xf32>
    %410 = vector.multi_reduction <add>, %409, %cst_178 [1] : vector<28x28xf32> to vector<28xf32>
    %411 = vector.shape_cast %410 : vector<28xf32> to vector<28x1xf32>
    %cst_179 = arith.constant 1.000000e+00 : f32
    %412 = vector.broadcast %cst_179 : f32 to vector<28x1xf32>
    %413 = arith.divf %412, %411 : vector<28x1xf32>
    %414 = vector.broadcast %413 : vector<28x1xf32> to vector<28x28xf32>
    %415 = arith.mulf %409, %414 : vector<28x28xf32>
    %cst_180 = arith.constant dense<0.000000e+00> : vector<28x8xf32>
    %416 = tpu.matmul %415, %402, %cst_180 {dimension_numbers = #tpu.dot_dimension_numbers<[1], [0], [0], [1], [0, 0, 1, 1], [], []>} : vector<28x28xf32>, vector<28x8xf32>, vector<28x8xf32> -> vector<28x8xf32>
    %417 = vector.extract_strided_slice %359 {offsets = [0, 24], sizes = [28, 8], strides = [1, 1]} : vector<28x96xf32> to vector<28x8xf32>
    %cst_181 = arith.constant 0.353553385 : f32
    %418 = vector.broadcast %cst_181 : f32 to vector<28x8xf32>
    %419 = arith.mulf %417, %418 : vector<28x8xf32>
    %420 = vector.extract_strided_slice %359 {offsets = [0, 56], sizes = [28, 8], strides = [1, 1]} : vector<28x96xf32> to vector<28x8xf32>
    %421 = vector.extract_strided_slice %359 {offsets = [0, 88], sizes = [28, 8], strides = [1, 1]} : vector<28x96xf32> to vector<28x8xf32>
    %cst_182 = arith.constant dense<0.000000e+00> : vector<28x28xf32>
    %422 = tpu.matmul %419, %420, %cst_182 {dimension_numbers = #tpu.dot_dimension_numbers<[1], [1], [0], [0], [0, 0, 1, 0], [], []>} : vector<28x8xf32>, vector<28x8xf32>, vector<28x28xf32> -> vector<28x28xf32>
    %423 = arith.addf %422, %57 : vector<28x28xf32>
    %cst_183 = arith.constant dense<0xFF800000> : vector<28xf32>
    %424 = vector.multi_reduction <maximumf>, %423, %cst_183 [1] : vector<28x28xf32> to vector<28xf32>
    %425 = vector.shape_cast %424 : vector<28xf32> to vector<28x1xf32>
    %426 = vector.broadcast %425 : vector<28x1xf32> to vector<28x28xf32>
    %427 = arith.subf %423, %426 : vector<28x28xf32>
    %428 = math.exp %427 : vector<28x28xf32>
    %cst_184 = arith.constant dense<0.000000e+00> : vector<28xf32>
    %429 = vector.multi_reduction <add>, %428, %cst_184 [1] : vector<28x28xf32> to vector<28xf32>
    %430 = vector.shape_cast %429 : vector<28xf32> to vector<28x1xf32>
    %cst_185 = arith.constant 1.000000e+00 : f32
    %431 = vector.broadcast %cst_185 : f32 to vector<28x1xf32>
    %432 = arith.divf %431, %430 : vector<28x1xf32>
    %433 = vector.broadcast %432 : vector<28x1xf32> to vector<28x28xf32>
    %434 = arith.mulf %428, %433 : vector<28x28xf32>
    %cst_186 = arith.constant dense<0.000000e+00> : vector<28x8xf32>
    %435 = tpu.matmul %434, %421, %cst_186 {dimension_numbers = #tpu.dot_dimension_numbers<[1], [0], [0], [1], [0, 0, 1, 1], [], []>} : vector<28x28xf32>, vector<28x8xf32>, vector<28x8xf32> -> vector<28x8xf32>
    %436 = tpu.concatenate %378, %397, %416, %435 in 1 : vector<28x8xf32>, vector<28x8xf32>, vector<28x8xf32>, vector<28x8xf32> -> vector<28x32xf32>
    %cst_187 = arith.constant dense<0.000000e+00> : vector<28x32xf32>
    %437 = tpu.matmul %436, %342, %cst_187 {dimension_numbers = #tpu.dot_dimension_numbers<[1], [0], [0], [1], [0, 0, 1, 1], [], []>} : vector<28x32xf32>, vector<32x32xf32>, vector<28x32xf32> -> vector<28x32xf32>
    %438 = vector.broadcast %350 : vector<1x32xf32> to vector<28x32xf32>
    %439 = arith.mulf %338, %438 : vector<28x32xf32>
    %440 = arith.addf %439, %437 : vector<28x32xf32>
    %441 = vector.broadcast %352 : vector<1x32xf32> to vector<28x32xf32>
    %442 = arith.addf %440, %441 : vector<28x32xf32>
    %cst_188 = arith.constant dense<0.000000e+00> : vector<28x64xf32>
    %443 = tpu.matmul %442, %344, %cst_188 {dimension_numbers = #tpu.dot_dimension_numbers<[1], [0], [0], [1], [0, 0, 1, 1], [], []>} : vector<28x32xf32>, vector<32x64xf32>, vector<28x64xf32> -> vector<28x64xf32>
    %444 = vector.broadcast %348 : vector<1x64xf32> to vector<28x64xf32>
    %445 = arith.addf %443, %444 : vector<28x64xf32>
    %cst_189 = arith.constant 5.000000e-01 : f32
    %446 = vector.broadcast %cst_189 : f32 to vector<28x64xf32>
    %447 = arith.mulf %446, %445 : vector<28x64xf32>
    %cst_190 = arith.constant 4.471500e-02 : f32
    %448 = vector.broadcast %cst_190 : f32 to vector<28x64xf32>
    %449 = arith.mulf %448, %445 : vector<28x64xf32>
    %450 = arith.mulf %449, %445 : vector<28x64xf32>
    %451 = arith.mulf %450, %445 : vector<28x64xf32>
    %452 = arith.addf %445, %451 : vector<28x64xf32>
    %cst_191 = arith.constant 0.797884583 : f32
    %453 = vector.broadcast %cst_191 : f32 to vector<28x64xf32>
    %454 = arith.mulf %453, %452 : vector<28x64xf32>
    %455 = math.tanh %454 : vector<28x64xf32>
    %cst_192 = arith.constant 1.000000e+00 : f32
    %456 = vector.broadcast %cst_192 : f32 to vector<28x64xf32>
    %457 = arith.addf %456, %455 : vector<28x64xf32>
    %458 = arith.mulf %447, %457 : vector<28x64xf32>
    %c1_193 = arith.constant 1 : index
    %c0_194 = arith.constant 0 : index
    %c0_195 = arith.constant 0 : index
    %459 = vector.load %arg7[%c1_193, %c0_194, %c0_195] : memref<2x64x32xf32, #tpu.memory_space<vmem>>, vector<1x64x32xf32>
    %460 = vector.shape_cast %459 : vector<1x64x32xf32> to vector<64x32xf32>
    %cst_196 = arith.constant dense<0.000000e+00> : vector<28x32xf32>
    %461 = tpu.matmul %458, %460, %cst_196 {dimension_numbers = #tpu.dot_dimension_numbers<[1], [0], [0], [1], [0, 0, 1, 1], [], []>} : vector<28x64xf32>, vector<64x32xf32>, vector<28x32xf32> -> vector<28x32xf32>
    %462 = vector.broadcast %354 : vector<1x32xf32> to vector<28x32xf32>
    %463 = arith.mulf %442, %462 : vector<28x32xf32>
    %464 = arith.addf %463, %461 : vector<28x32xf32>
    %465 = vector.broadcast %356 : vector<1x32xf32> to vector<28x32xf32>
    %466 = arith.addf %464, %465 : vector<28x32xf32>
    %cst_197 = arith.constant 5.000000e-01 : f32
    %467 = vector.broadcast %cst_197 : f32 to vector<28x32xf32>
    %468 = arith.mulf %467, %466 : vector<28x32xf32>
    %cst_198 = arith.constant 4.471500e-02 : f32
    %469 = vector.broadcast %cst_198 : f32 to vector<28x32xf32>
    %470 = arith.mulf %469, %466 : vector<28x32xf32>
    %471 = arith.mulf %470, %466 : vector<28x32xf32>
    %472 = arith.mulf %471, %466 : vector<28x32xf32>
    %473 = arith.addf %466, %472 : vector<28x32xf32>
    %cst_199 = arith.constant 0.797884583 : f32
    %474 = vector.broadcast %cst_199 : f32 to vector<28x32xf32>
    %475 = arith.mulf %474, %473 : vector<28x32xf32>
    %476 = math.tanh %475 : vector<28x32xf32>
    %cst_200 = arith.constant 1.000000e+00 : f32
    %477 = vector.broadcast %cst_200 : f32 to vector<28x32xf32>
    %478 = arith.addf %477, %476 : vector<28x32xf32>
    %479 = arith.mulf %468, %478 : vector<28x32xf32>
    %c0_201 = arith.constant 0 : index
    %c0_202 = arith.constant 0 : index
    %480 = vector.load %arg9[%c0_201, %c0_202] : memref<32x21xf32, #tpu.memory_space<vmem>>, vector<32x21xf32>
    %cst_203 = arith.constant dense<0.000000e+00> : vector<28x21xf32>
    %481 = tpu.matmul %479, %480, %cst_203 {dimension_numbers = #tpu.dot_dimension_numbers<[1], [0], [0], [1], [0, 0, 1, 1], [], []>} : vector<28x32xf32>, vector<32x21xf32>, vector<28x21xf32> -> vector<28x21xf32>
    %482 = arith.mulf %481, %76 : vector<28x21xf32>
    %cst_204 = arith.constant dense<0.000000e+00> : vector<28x128xf32>
    %483 = tpu.matmul %482, %86, %cst_204 {dimension_numbers = #tpu.dot_dimension_numbers<[1], [0], [0], [1], [0, 0, 1, 1], [], []>} : vector<28x21xf32>, vector<21x128xf32>, vector<28x128xf32> -> vector<28x128xf32>
    %cst_205 = arith.constant dense<0.000000e+00> : vector<4x128xf32>
    %484 = tpu.matmul %96, %483, %cst_205 {dimension_numbers = #tpu.dot_dimension_numbers<[1], [0], [0], [1], [0, 0, 1, 1], [], []>} : vector<4x28xf32>, vector<28x128xf32>, vector<4x128xf32> -> vector<4x128xf32>
    %c0_206 = arith.constant 0 : index
    %c0_207 = arith.constant 0 : index
    %485 = vector.load %arg10[%c0_206, %c0_207] : memref<1x128xf32, #tpu.memory_space<vmem>>, vector<1x128xf32>
    %486 = vector.broadcast %485 : vector<1x128xf32> to vector<4x128xf32>
    %487 = arith.addf %484, %486 : vector<4x128xf32>
    %c0_208 = arith.constant 0 : index
    %c0_209 = arith.constant 0 : index
    %c0_210 = arith.constant 0 : index
    %488 = vector.load %arg11[%c0_208, %c0_209, %c0_210] : memref<1x4x128xf32, #tpu.memory_space<vmem>>, vector<1x4x128xf32>
    %489 = vector.shape_cast %488 : vector<1x4x128xf32> to vector<4x128xf32>
    %490 = vector.shape_cast %487 : vector<4x128xf32> to vector<1x4x128xf32>
    tpu.vector_store %arg11[%c0_208, %c0_209, %c0_210], %490 {strides = array<i32>} : memref<1x4x128xf32, #tpu.memory_space<vmem>>, vector<1x4x128xf32>,
    return
  }
  func.func @transform_0(%arg0: i32) -> (i32, i32, i32) {
    %c0_i32 = arith.constant 0 : i32
    %c0_i32_0 = arith.constant 0 : i32
    %c0_i32_1 = arith.constant 0 : i32
    return %arg0, %c0_i32, %c0_i32_0 : i32, i32, i32
  }
  func.func @transform_1(%arg0: i32) -> (i32, i32, i32) {
    %c0_i32 = arith.constant 0 : i32
    %c0_i32_0 = arith.constant 0 : i32
    %c0_i32_1 = arith.constant 0 : i32
    %c0_i32_2 = arith.constant 0 : i32
    return %c0_i32, %c0_i32_0, %c0_i32_1 : i32, i32, i32
  }
  func.func @transform_2(%arg0: i32) -> (i32, i32, i32) {
    %c0_i32 = arith.constant 0 : i32
    %c0_i32_0 = arith.constant 0 : i32
    %c0_i32_1 = arith.constant 0 : i32
    %c0_i32_2 = arith.constant 0 : i32
    return %c0_i32, %c0_i32_0, %c0_i32_1 : i32, i32, i32
  }
  func.func @transform_3(%arg0: i32) -> (i32, i32) {
    %c0_i32 = arith.constant 0 : i32
    %c0_i32_0 = arith.constant 0 : i32
    %c0_i32_1 = arith.constant 0 : i32
    return %c0_i32, %c0_i32_0 : i32, i32
  }
  func.func @transform_4(%arg0: i32) -> (i32, i32) {
    %c0_i32 = arith.constant 0 : i32
    %c0_i32_0 = arith.constant 0 : i32
    %c0_i32_1 = arith.constant 0 : i32
    return %c0_i32, %c0_i32_0 : i32, i32
  }
  func.func @transform_5(%arg0: i32) -> (i32, i32, i32) {
    %c0_i32 = arith.constant 0 : i32
    %c0_i32_0 = arith.constant 0 : i32
    %c0_i32_1 = arith.constant 0 : i32
    %c0_i32_2 = arith.constant 0 : i32
    return %c0_i32, %c0_i32_0, %c0_i32_1 : i32, i32, i32
  }
  func.func @transform_6(%arg0: i32) -> (i32, i32, i32) {
    %c0_i32 = arith.constant 0 : i32
    %c0_i32_0 = arith.constant 0 : i32
    %c0_i32_1 = arith.constant 0 : i32
    %c0_i32_2 = arith.constant 0 : i32
    return %c0_i32, %c0_i32_0, %c0_i32_1 : i32, i32, i32
  }
  func.func @transform_7(%arg0: i32) -> (i32, i32, i32) {
    %c0_i32 = arith.constant 0 : i32
    %c0_i32_0 = arith.constant 0 : i32
    %c0_i32_1 = arith.constant 0 : i32
    %c0_i32_2 = arith.constant 0 : i32
    return %c0_i32, %c0_i32_0, %c0_i32_1 : i32, i32, i32
  }
  func.func @transform_8(%arg0: i32) -> (i32, i32) {
    %c0_i32 = arith.constant 0 : i32
    %c0_i32_0 = arith.constant 0 : i32
    %c0_i32_1 = arith.constant 0 : i32
    return %c0_i32, %c0_i32_0 : i32, i32
  }
  func.func @transform_9(%arg0: i32) -> (i32, i32) {
    %c0_i32 = arith.constant 0 : i32
    %c0_i32_0 = arith.constant 0 : i32
    %c0_i32_1 = arith.constant 0 : i32
    return %c0_i32, %c0_i32_0 : i32, i32
  }
  func.func @transform_10(%arg0: i32) -> (i32, i32, i32) {
    %c0_i32 = arith.constant 0 : i32
    %c0_i32_0 = arith.constant 0 : i32
    %c0_i32_1 = arith.constant 0 : i32
    return %arg0, %c0_i32, %c0_i32_0 : i32, i32, i32
  }
}

</mosaic_0001>

<llo_original>
// kernel: tile.37
$region0: #{tile.37}
  %s0 = inlined_call_operand.vmem [shape: f32[4,7,32], index: 0, kind: input, shape index: {}]
  %s1 = inlined_call_operand.vmem [shape: f32[28,32], index: 1, kind: output, shape index: {}]
  %v2 = vld [vmem:[%s0] sm:$0x7f]
  %vm3 = vcmask 261120
  %4 = vst.msk [vmem:[%s1] sm:$0x7f] %vm3, %v2
  %s5 = scalar_lea.vmem %s0, 8
  %v6 = vld [vmem:[%s5] sm:$0x7f]
  %vm7 = vcmask 261120
  %s8 = scalar_lea.vmem %s1, 7
  %9 = vst.msk [vmem:[%s8] sm:$0x7f] %vm7, %v6
  %s10 = scalar_lea.vmem %s0, 16
  %v11 = vld [vmem:[%s10] sm:$0x7f]
  %vm12 = vcmask 261120
  %s13 = scalar_lea.vmem %s1, 14
  %14 = vst.msk [vmem:[%s13] sm:$0x7f] %vm12, %v11
  %s15 = scalar_lea.vmem %s0, 24
  %v16 = vld [vmem:[%s15] sm:$0x7f]
  %vm17 = vcmask 261120
  %s18 = scalar_lea.vmem %s1, 21
  %19 = vst.msk [vmem:[%s18] sm:$0x7f] %vm17, %v16

// kernel: tile.22
$region0: #{tile.22}
  #allocation0 [shape = 's32[1]{0}', space=sflag, size = 0x4, scoped, tag = 'scoped memory for tile.22']
  %s0 = inlined_call_operand.vmem [shape: f32[4], index: 0, kind: input, shape index: {}]
  %s1 = inlined_call_operand.vmem [shape: f32[4,4], index: 1, kind: output, shape index: {}]
  // Predicated region
  $region2: #{tile.22} parent=0 // pred_check
    _
  $region3: #{tile.22} parent=0 // pred_check_branch
    %3 = sbr.rel (0) target = $region5
  $region4: #{tile.22} parent=0 // pred_region
    _
  $region5: #{tile.22} parent=0 // pred_fallthru
    _
  %v4 = vld [vmem:[%s0] ss:$0 sm:$0xff]
  %5 = vst [vmem:[%s1] sm:$0xf] %v4

// kernel: tile.0
$region0: #{tile.0}
  %s0 = inlined_call_operand.vmem [shape: f32[4,4], index: 0, kind: input, shape index: {}]
  %s1 = inlined_call_operand.vmem [shape: f32[1,16,1], index: 1, kind: output, shape index: {}]
  $region1: #{tile.0} parent=0
    #allocation0 [shape = 'u8[4096]{0}', space=vmem, size = 0x1000, scoped, tag = 'scoped mem for input reshape']
    %s3 = sshllo.u32 0, 4
    %v4 = vld [vmem:[%s0] sm:%s3]
    %5 = vst [vmem:[#allocation0] sm:%s3] %v4
    %v6 = vld [vmem:[#allocation0] sm:$0xf]
    %vm7 = vcmask 7168
    %8 = vst.msk [vmem:[%s1] ss:$4 sm:$0xf] %vm7, %v6
    %v9 = vld [vmem:[#allocation0] sm:$0xf]
    %10 = vrot.lane.b32.xlu0 %v9, 127
    %v11 = vpop.permute.xlu0 %10
    %vm12 = vcmask 7168
    %s13 = scalar_lea.vmem %s1, 1
    %14 = vst.msk [vmem:[%s13] ss:$4 sm:$0xf] %vm12, %v11
    %v15 = vld [vmem:[#allocation0] sm:$0xf]
    %16 = vrot.lane.b32.xlu0 %v15, 126
    %v17 = vpop.permute.xlu0 %16
    %vm18 = vcmask 7168
    %s19 = scalar_lea.vmem %s1, 2
    %20 = vst.msk [vmem:[%s19] ss:$4 sm:$0xf] %vm18, %v17
    %v21 = vld [vmem:[#allocation0] sm:$0xf]
    %22 = vrot.lane.b32.xlu0 %v21, 125
    %v23 = vpop.permute.xlu0 %22
    %vm24 = vcmask 7168
    %s25 = scalar_lea.vmem %s1, 3
    %26 = vst.msk [vmem:[%s25] ss:$4 sm:$0xf] %vm24, %v23

// kernel: forward.1
$region0: #{forward.1}
  #allocation0 [shape = 'u32[]', space=smem, size = 0x4, offset = 0x4, fixed_abs, tag = 'smem constant byte address 0x4 - core index']
  #allocation1 [shape = 'u32[144,128]{1,0:T(1,128)}', space=vmem, size = 0x12000, scoped, tag = 'internal scratch']
  %s0 = inlined_call_operand.vmem [shape: f32[2,16,400], index: 0, kind: input, shape index: {}]
  %s1 = inlined_call_operand.vmem [shape: f32[10,16,16], index: 1, kind: input, shape index: {}]
  %s2 = inlined_call_operand.vmem [shape: f32[2,16,1], index: 2, kind: input, shape index: {}]
  %s3 = inlined_call_operand.vmem [shape: f32[16,32], index: 3, kind: input, shape index: {}]
  %s4 = inlined_call_operand.vmem [shape: f32[28,32], index: 4, kind: input, shape index: {}]
  %s5 = inlined_call_operand.vmem [shape: f32[2,32,192], index: 5, kind: input, shape index: {}]
  %s6 = inlined_call_operand.vmem [shape: f32[2,64,32], index: 6, kind: input, shape index: {}]
  %s7 = inlined_call_operand.vmem [shape: f32[2,1,288], index: 7, kind: input, shape index: {}]
  %s8 = inlined_call_operand.vmem [shape: f32[32,21], index: 8, kind: input, shape index: {}]
  %s9 = inlined_call_operand.vmem [shape: f32[1,128], index: 9, kind: input, shape index: {}]
  %s10 = inlined_call_operand.vmem [shape: f32[2,4,128], index: 10, kind: output, shape index: {}]
  %s11 = sld [smem:[#allocation0]]
  $region73: #{forward.1} parent=0
    _
  %s13 = ssub.s32 1, %s11
  %s14 = scalar_select 0, %s13, %s11
  loop: start=0, step=1, limit=4
  $region2: #{forward.1} parent=0 // loop_pre_header
    _
  $region3: #{forward.1} parent=0 // loop_header
    %s16 = sphi 0, %s20
    %p17 = scmp.ge.s32.totalorder %s16, 4
    %s26 = sphi 0, %s28
    %s29 = sphi 0, %s26
    %s30 = sphi 0, %s29
    %s46 = sphi 0, %s30
    %s50 = sphi 0, %s50
    %s52 = sphi 0, %s50
    %s53 = sphi 0, %s52
    %s67 = sphi 0, %s53
    %s71 = sphi 0, %s71
    %s73 = sphi 0, %s71
    %s74 = sphi 0, %s73
    %s88 = sphi 0, %s74
    %s92 = sphi 0, %s92
    %s94 = sphi 0, %s92
    %s95 = sphi 0, %s94
    %s109 = sphi 0, %s95
    %s113 = sphi 0, %s113
    %s115 = sphi 0, %s113
    %s116 = sphi 0, %s115
    %s130 = sphi 0, %s116
    %s134 = sphi 0, %s134
    %s136 = sphi 0, %s134
    %s137 = sphi 0, %s136
    %s151 = sphi 0, %s137
    %s155 = sphi 0, %s155
    %s157 = sphi 0, %s155
    %s158 = sphi 0, %s157
    %s172 = sphi 0, %s158
    %s176 = sphi 0, %s176
    %s178 = sphi 0, %s176
    %s179 = sphi 0, %s178
    %s193 = sphi 0, %s179
    %s197 = sphi 0, %s197
    %s199 = sphi 0, %s197
    %s200 = sphi 0, %s199
    %s214 = sphi 0, %s200
    %s218 = sphi 0, %s218
    %s220 = sphi 0, %s218
    %s221 = sphi 0, %s220
    %s235 = sphi 0, %s221
    %s241 = sphi 0, %s243
    %s244 = sphi 0, %s241
    %s245 = sphi 0, %s244
    %s261 = sphi 0, %s245
  $region4: #{forward.1} parent=0 // loop_header_branch
    %19 = sbr.rel (%p17) target = $region8
  $region5: #{forward.1} parent=0 // loop_body
    %s21 = ssub.s32 %s16, 1
    %s22 = ssub.s32 %s16, 2
    %s23 = sadd.s32 %s16, 1
    %s24 = ssub.s32 %s16, %s23
    %p25 = scmp.eq.s32.totalorder %s24, 0
    %s27 = sadd.s32 %s26, 1
    %s28 = scalar_select %p25, %s26, %s27
    %p31 = pneg %p25
    %p32 = scmp.eq.s32.totalorder %s16, 1
    %p33 = por %p31, %p32
    %p34 = scmp.ne.s32.totalorder %s26, %s29
    %p35 = scmp.eq.s32.totalorder %s16, 0
    %p36 = por %p34, %p35
    %p37 = scmp.ne.s32.totalorder %s26, %s29
    %p38 = scmp.eq.s32.totalorder %s21, 1
    %p39 = por %p37, %p38
    %p40 = scmp.ne.s32.totalorder %s29, %s30
    %p41 = scmp.eq.s32.totalorder %s21, 0
    %p42 = por %p40, %p41
    %p43 = scmp.ne.s32.totalorder %s29, %s30
    %p44 = scmp.eq.s32.totalorder %s22, 1
    %p45 = por %p43, %p44
    %p47 = scmp.ne.s32.totalorder %s30, %s46
    %p48 = scmp.eq.s32.totalorder %s22, 0
    %p49 = por %p47, %p48
    %s51 = sadd.s32 %s50, 1
    %p54 = scmp.eq.s32.totalorder %s16, 1
    %p55 = scmp.ne.s32.totalorder %s50, %s52
    %p56 = scmp.eq.s32.totalorder %s16, 0
    %p57 = por %p55, %p56
    %p58 = scmp.ne.s32.totalorder %s50, %s52
    %p59 = scmp.eq.s32.totalorder %s21, 1
    %p60 = por %p58, %p59
    %p61 = scmp.ne.s32.totalorder %s52, %s53
    %p62 = scmp.eq.s32.totalorder %s21, 0
    %p63 = por %p61, %p62
    %p64 = scmp.ne.s32.totalorder %s52, %s53
    %p65 = scmp.eq.s32.totalorder %s22, 1
    %p66 = por %p64, %p65
    %p68 = scmp.ne.s32.totalorder %s53, %s67
    %p69 = scmp.eq.s32.totalorder %s22, 0
    %p70 = por %p68, %p69
    %s72 = sadd.s32 %s71, 1
    %p75 = scmp.eq.s32.totalorder %s16, 1
    %p76 = scmp.ne.s32.totalorder %s71, %s73
    %p77 = scmp.eq.s32.totalorder %s16, 0
    %p78 = por %p76, %p77
    %p79 = scmp.ne.s32.totalorder %s71, %s73
    %p80 = scmp.eq.s32.totalorder %s21, 1
    %p81 = por %p79, %p80
    %p82 = scmp.ne.s32.totalorder %s73, %s74
    %p83 = scmp.eq.s32.totalorder %s21, 0
    %p84 = por %p82, %p83
    %p85 = scmp.ne.s32.totalorder %s73, %s74
    %p86 = scmp.eq.s32.totalorder %s22, 1
    %p87 = por %p85, %p86
    %p89 = scmp.ne.s32.totalorder %s74, %s88
    %p90 = scmp.eq.s32.totalorder %s22, 0
    %p91 = por %p89, %p90
    %s93 = sadd.s32 %s92, 1
    %p96 = scmp.eq.s32.totalorder %s16, 1
    %p97 = scmp.ne.s32.totalorder %s92, %s94
    %p98 = scmp.eq.s32.totalorder %s16, 0
    %p99 = por %p97, %p98
    %p100 = scmp.ne.s32.totalorder %s92, %s94
    %p101 = scmp.eq.s32.totalorder %s21, 1
    %p102 = por %p100, %p101
    %p103 = scmp.ne.s32.totalorder %s94, %s95
    %p104 = scmp.eq.s32.totalorder %s21, 0
    %p105 = por %p103, %p104
    %p106 = scmp.ne.s32.totalorder %s94, %s95
    %p107 = scmp.eq.s32.totalorder %s22, 1
    %p108 = por %p106, %p107
    %p110 = scmp.ne.s32.totalorder %s95, %s109
    %p111 = scmp.eq.s32.totalorder %s22, 0
    %p112 = por %p110, %p111
    %s114 = sadd.s32 %s113, 1
    %p117 = scmp.eq.s32.totalorder %s16, 1
    %p118 = scmp.ne.s32.totalorder %s113, %s115
    %p119 = scmp.eq.s32.totalorder %s16, 0
    %p120 = por %p118, %p119
    %p121 = scmp.ne.s32.totalorder %s113, %s115
    %p122 = scmp.eq.s32.totalorder %s21, 1
    %p123 = por %p121, %p122
    %p124 = scmp.ne.s32.totalorder %s115, %s116
    %p125 = scmp.eq.s32.totalorder %s21, 0
    %p126 = por %p124, %p125
    %p127 = scmp.ne.s32.totalorder %s115, %s116
    %p128 = scmp.eq.s32.totalorder %s22, 1
    %p129 = por %p127, %p128
    %p131 = scmp.ne.s32.totalorder %s116, %s130
    %p132 = scmp.eq.s32.totalorder %s22, 0
    %p133 = por %p131, %p132
    %s135 = sadd.s32 %s134, 1
    %p138 = scmp.eq.s32.totalorder %s16, 1
    %p139 = scmp.ne.s32.totalorder %s134, %s136
    %p140 = scmp.eq.s32.totalorder %s16, 0
    %p141 = por %p139, %p140
    %p142 = scmp.ne.s32.totalorder %s134, %s136
    %p143 = scmp.eq.s32.totalorder %s21, 1
    %p144 = por %p142, %p143
    %p145 = scmp.ne.s32.totalorder %s136, %s137
    %p146 = scmp.eq.s32.totalorder %s21, 0
    %p147 = por %p145, %p146
    %p148 = scmp.ne.s32.totalorder %s136, %s137
    %p149 = scmp.eq.s32.totalorder %s22, 1
    %p150 = por %p148, %p149
    %p152 = scmp.ne.s32.totalorder %s137, %s151
    %p153 = scmp.eq.s32.totalorder %s22, 0
    %p154 = por %p152, %p153
    %s156 = sadd.s32 %s155, 1
    %p159 = scmp.eq.s32.totalorder %s16, 1
    %p160 = scmp.ne.s32.totalorder %s155, %s157
    %p161 = scmp.eq.s32.totalorder %s16, 0
    %p162 = por %p160, %p161
    %p163 = scmp.ne.s32.totalorder %s155, %s157
    %p164 = scmp.eq.s32.totalorder %s21, 1
    %p165 = por %p163, %p164
    %p166 = scmp.ne.s32.totalorder %s157, %s158
    %p167 = scmp.eq.s32.totalorder %s21, 0
    %p168 = por %p166, %p167
    %p169 = scmp.ne.s32.totalorder %s157, %s158
    %p170 = scmp.eq.s32.totalorder %s22, 1
    %p171 = por %p169, %p170
    %p173 = scmp.ne.s32.totalorder %s158, %s172
    %p174 = scmp.eq.s32.totalorder %s22, 0
    %p175 = por %p173, %p174
    %s177 = sadd.s32 %s176, 1
    %p180 = scmp.eq.s32.totalorder %s16, 1
    %p181 = scmp.ne.s32.totalorder %s176, %s178
    %p182 = scmp.eq.s32.totalorder %s16, 0
    %p183 = por %p181, %p182
    %p184 = scmp.ne.s32.totalorder %s176, %s178
    %p185 = scmp.eq.s32.totalorder %s21, 1
    %p186 = por %p184, %p185
    %p187 = scmp.ne.s32.totalorder %s178, %s179
    %p188 = scmp.eq.s32.totalorder %s21, 0
    %p189 = por %p187, %p188
    %p190 = scmp.ne.s32.totalorder %s178, %s179
    %p191 = scmp.eq.s32.totalorder %s22, 1
    %p192 = por %p190, %p191
    %p194 = scmp.ne.s32.totalorder %s179, %s193
    %p195 = scmp.eq.s32.totalorder %s22, 0
    %p196 = por %p194, %p195
    %s198 = sadd.s32 %s197, 1
    %p201 = scmp.eq.s32.totalorder %s16, 1
    %p202 = scmp.ne.s32.totalorder %s197, %s199
    %p203 = scmp.eq.s32.totalorder %s16, 0
    %p204 = por %p202, %p203
    %p205 = scmp.ne.s32.totalorder %s197, %s199
    %p206 = scmp.eq.s32.totalorder %s21, 1
    %p207 = por %p205, %p206
    %p208 = scmp.ne.s32.totalorder %s199, %s200
    %p209 = scmp.eq.s32.totalorder %s21, 0
    %p210 = por %p208, %p209
    %p211 = scmp.ne.s32.totalorder %s199, %s200
    %p212 = scmp.eq.s32.totalorder %s22, 1
    %p213 = por %p211, %p212
    %p215 = scmp.ne.s32.totalorder %s200, %s214
    %p216 = scmp.eq.s32.totalorder %s22, 0
    %p217 = por %p215, %p216
    %s219 = sadd.s32 %s218, 1
    %p222 = scmp.eq.s32.totalorder %s16, 1
    %p223 = scmp.ne.s32.totalorder %s218, %s220
    %p224 = scmp.eq.s32.totalorder %s16, 0
    %p225 = por %p223, %p224
    %p226 = scmp.ne.s32.totalorder %s218, %s220
    %p227 = scmp.eq.s32.totalorder %s21, 1
    %p228 = por %p226, %p227
    %p229 = scmp.ne.s32.totalorder %s220, %s221
    %p230 = scmp.eq.s32.totalorder %s21, 0
    %p231 = por %p229, %p230
    %p232 = scmp.ne.s32.totalorder %s220, %s221
    %p233 = scmp.eq.s32.totalorder %s22, 1
    %p234 = por %p232, %p233
    %p236 = scmp.ne.s32.totalorder %s221, %s235
    %p237 = scmp.eq.s32.totalorder %s22, 0
    %p238 = por %p236, %p237
    %s239 = ssub.s32 %s16, %s23
    %p240 = scmp.eq.s32.totalorder %s239, 0
    %s242 = sadd.s32 %s241, 1
    %s243 = scalar_select %p240, %s241, %s242
    %p246 = pneg %p240
    %p247 = scmp.eq.s32.totalorder %s16, 1
    %p248 = por %p246, %p247
    %p249 = scmp.ne.s32.totalorder %s241, %s244
    %p250 = scmp.eq.s32.totalorder %s16, 0
    %p251 = por %p249, %p250
    %p252 = scmp.ne.s32.totalorder %s241, %s244
    %p253 = scmp.eq.s32.totalorder %s21, 1
    %p254 = por %p252, %p253
    %p255 = scmp.ne.s32.totalorder %s244, %s245
    %p256 = scmp.eq.s32.totalorder %s21, 0
    %p257 = por %p255, %p256
    %p258 = scmp.ne.s32.totalorder %s244, %s245
    %p259 = scmp.eq.s32.totalorder %s22, 1
    %p260 = por %p258, %p259
    %p262 = scmp.ne.s32.totalorder %s245, %s261
    %p263 = scmp.eq.s32.totalorder %s22, 0
    %p264 = por %p262, %p263
    %p265 = scmp.le.s32.totalorder 1, %s16
    %p266 = scmp.lt.s32.totalorder %s16, 3
    %p267 = pnand %p265, %p266
    %p268 = pneg %p267
    // Predicated region
    $region9: #{forward.1} parent=5 // pred_check
      _
    $region10: #{forward.1} parent=5 // pred_check_branch
      %270 = sbr.rel (%p267) target = $region12
    $region11: #{forward.1} parent=5 // pred_region
      %s271 = ssub.s32 %s16, 1
      // Predicated region
      $region13: #{forward.1} parent=11 // pred_check
        %p272 = pneg %p63
      $region14: #{forward.1} parent=11 // pred_check_branch
        %274 = sbr.rel (%p272) target = $region16
      $region15: #{forward.1} parent=11 // pred_region
        _
      $region16: #{forward.1} parent=11 // pred_fallthru
        _
      // Predicated region
      $region17: #{forward.1} parent=11 // pred_check
        %p275 = pneg %p84
      $region18: #{forward.1} parent=11 // pred_check_branch
        %277 = sbr.rel (%p275) target = $region20
      $region19: #{forward.1} parent=11 // pred_region
        _
      $region20: #{forward.1} parent=11 // pred_fallthru
        _
      // Predicated region
      $region21: #{forward.1} parent=11 // pred_check
        %p278 = pneg %p105
      $region22: #{forward.1} parent=11 // pred_check_branch
        %280 = sbr.rel (%p278) target = $region24
      $region23: #{forward.1} parent=11 // pred_region
        _
      $region24: #{forward.1} parent=11 // pred_fallthru
        _
      // Predicated region
      $region25: #{forward.1} parent=11 // pred_check
        %p281 = pneg %p126
      $region26: #{forward.1} parent=11 // pred_check_branch
        %283 = sbr.rel (%p281) target = $region28
      $region27: #{forward.1} parent=11 // pred_region
        _
      $region28: #{forward.1} parent=11 // pred_fallthru
        _
      // Predicated region
      $region29: #{forward.1} parent=11 // pred_check
        %p284 = pneg %p147
      $region30: #{forward.1} parent=11 // pred_check_branch
        %286 = sbr.rel (%p284) target = $region32
      $region31: #{forward.1} parent=11 // pred_region
        _
      $region32: #{forward.1} parent=11 // pred_fallthru
        _
      // Predicated region
      $region33: #{forward.1} parent=11 // pred_check
        %p287 = pneg %p168
      $region34: #{forward.1} parent=11 // pred_check_branch
        %289 = sbr.rel (%p287) target = $region36
      $region35: #{forward.1} parent=11 // pred_region
        _
      $region36: #{forward.1} parent=11 // pred_fallthru
        _
      // Predicated region
      $region37: #{forward.1} parent=11 // pred_check
        %p290 = pneg %p189
      $region38: #{forward.1} parent=11 // pred_check_branch
        %292 = sbr.rel (%p290) target = $region40
      $region39: #{forward.1} parent=11 // pred_region
        _
      $region40: #{forward.1} parent=11 // pred_fallthru
        _
      // Predicated region
      $region41: #{forward.1} parent=11 // pred_check
        %p293 = pneg %p210
      $region42: #{forward.1} parent=11 // pred_check_branch
        %295 = sbr.rel (%p293) target = $region44
      $region43: #{forward.1} parent=11 // pred_region
        _
      $region44: #{forward.1} parent=11 // pred_fallthru
        _
      // Predicated region
      $region45: #{forward.1} parent=11 // pred_check
        %p296 = pneg %p231
      $region46: #{forward.1} parent=11 // pred_check_branch
        %298 = sbr.rel (%p296) target = $region48
      $region47: #{forward.1} parent=11 // pred_region
        _
      $region48: #{forward.1} parent=11 // pred_fallthru
        _
    $region12: #{forward.1} parent=5 // pred_fallthru
      _
    %p299 = scmp.lt.s32.totalorder %s16, 2
    // Predicated region
    $region49: #{forward.1} parent=5 // pred_check
      %p300 = pneg %p299
    $region50: #{forward.1} parent=5 // pred_check_branch
      %302 = sbr.rel (%p300) target = $region52
    $region51: #{forward.1} parent=5 // pred_region
      // Predicated region
      $region53: #{forward.1} parent=51 // pred_check
        %p303 = pneg %p36
      $region54: #{forward.1} parent=51 // pred_check_branch
        %305 = sbr.rel (%p303) target = $region56
      $region55: #{forward.1} parent=51 // pred_region
        %p306 = scmp.lt.s32.totalorder %s16, 1
        %s307 = scalar_select %p306, %s16, 1
        %s308 = smul.addr %s307, 8
        %s309 = smul.addr %s308, 8
        %s310 = scalar_lea.vmem %s0, %s309
      $region56: #{forward.1} parent=51 // pred_fallthru
        _
    $region52: #{forward.1} parent=5 // pred_fallthru
      _
    %p311 = scmp.le.s32.totalorder 1, %s16
    %p312 = scmp.lt.s32.totalorder %s16, 3
    %p313 = pnand %p311, %p312
    %p314 = pneg %p313
    // Predicated region
    $region57: #{forward.1} parent=5 // pred_check
      _
    $region58: #{forward.1} parent=5 // pred_check_branch
      %316 = sbr.rel (%p313) target = $region60
    $region59: #{forward.1} parent=5 // pred_region
      %s317 = ssub.s32 %s16, 1
      %p318 = scmp.lt.s32.totalorder %s21, 1
      %s319 = scalar_select %p318, %s21, 1
      %s320 = smul.addr %s319, 8
      %s321 = smul.addr %s320, 8
      %s322 = scalar_lea.vmem %s0, %s321
      %p323 = pneg %p42
      %p324 = pneg %p39
      %p325 = pneg %p63
      %p326 = pneg %p60
      %p327 = pneg %p84
      %p328 = pneg %p81
      %p329 = pneg %p105
      %p330 = pneg %p102
      %p331 = pneg %p126
      %p332 = pneg %p123
      %p333 = pneg %p147
      %p334 = pneg %p144
      %p335 = pneg %p168
      %p336 = pneg %p165
      %p337 = pneg %p189
      %p338 = pneg %p186
      %p339 = pneg %p210
      %p340 = pneg %p207
      %p341 = pneg %p231
      %p342 = pneg %p228
      %p343 = pneg %p257
      %p344 = pneg %p254
      %p345 = scmp.lt.s32.totalorder %s21, 1
      %s346 = scalar_select %p345, %s21, 1
      %s347 = smul.addr %s346, 4
      %s348 = scalar_lea.vmem %s10, %s347
      %p349 = scmp.lt.s32.totalorder %s21, 1
      %s350 = scalar_select %p349, %s21, 1
      %s351 = smul.addr %s350, 8
      %s352 = smul.addr %s351, 8
      %s353 = scalar_lea.vmem %s0, %s352
      %p354 = scmp.lt.s32.totalorder %s21, 1
      %s355 = scalar_select %p354, %s21, 1
      %s356 = smul.addr %s355, 4
      %s357 = scalar_lea.vmem %s10, %s356
      %v358 = vlaneseq
      %v359 = vshrl.u32 %v358, 7
      %v360 = vadd.s32 %v359, 8
      %v361 = vadd.s32 %v359, 16
      %v362 = vadd.s32 %v359, 24
      %v363 = vadd.s32 %v359, 32
      %v364 = vadd.s32 %v359, 40
      %v365 = vadd.s32 %v359, 48
      %v366 = vadd.s32 %v359, 56
      %v367 = vadd.s32 %v359, 64
      %v368 = vadd.s32 %v359, 72
      %v369 = vadd.s32 %v359, 80
      %v370 = vadd.s32 %v359, 88
      %v371 = vadd.s32 %v359, 96
      %v372 = vadd.s32 %v359, 104
      %v373 = vadd.s32 %v359, 112
      %v374 = vadd.s32 %v359, 120
      %v375 = vadd.s32 %v359, 128
      %v376 = vadd.s32 %v359, 136
      %v377 = vadd.s32 %v359, 144
      %v378 = vadd.s32 %v359, 152
      %v379 = vadd.s32 %v359, 160
      %v380 = vadd.s32 %v359, 168
      %v381 = vadd.s32 %v359, 176
      %v382 = vadd.s32 %v359, 184
      %v383 = vadd.s32 %v359, 192
      %v384 = vadd.s32 %v359, 200
      %v385 = vadd.s32 %v359, 208
      %v386 = vadd.s32 %v359, 216
      %v387 = vadd.s32 %v359, 224
      %v388 = vadd.s32 %v359, 232
      %v389 = vadd.s32 %v359, 240
      %v390 = vadd.s32 %v359, 248
      %v391 = vadd.s32 %v359, 256
      %v392 = vadd.s32 %v359, 264
      %v393 = vadd.s32 %v359, 272
      %v394 = vadd.s32 %v359, 280
      %v395 = vadd.s32 %v359, 288
      %v396 = vadd.s32 %v359, 296
      %v397 = vadd.s32 %v359, 304
      %v398 = vadd.s32 %v359, 312
      %v399 = vadd.s32 %v359, 320
      %v400 = vadd.s32 %v359, 328
      %v401 = vadd.s32 %v359, 336
      %v402 = vadd.s32 %v359, 344
      %v403 = vadd.s32 %v359, 352
      %v404 = vcvt.s32.f32 %v359
      %v405 = vcvt.s32.f32 %v360
      %v406 = vcvt.s32.f32 %v361
      %v407 = vcvt.s32.f32 %v362
      %v408 = vcvt.s32.f32 %v363
      %v409 = vcvt.s32.f32 %v364
      %v410 = vcvt.s32.f32 %v365
      %v411 = vcvt.s32.f32 %v366
      %v412 = vcvt.s32.f32 %v367
      %v413 = vcvt.s32.f32 %v368
      %v414 = vcvt.s32.f32 %v369
      %v415 = vcvt.s32.f32 %v370
      %v416 = vcvt.s32.f32 %v371
      %v417 = vcvt.s32.f32 %v372
      %v418 = vcvt.s32.f32 %v373
      %v419 = vcvt.s32.f32 %v374
      %v420 = vcvt.s32.f32 %v375
      %v421 = vcvt.s32.f32 %v376
      %v422 = vcvt.s32.f32 %v377
      %v423 = vcvt.s32.f32 %v378
      %v424 = vcvt.s32.f32 %v379
      %v425 = vcvt.s32.f32 %v380
      %v426 = vcvt.s32.f32 %v381
      %v427 = vcvt.s32.f32 %v382
      %v428 = vcvt.s32.f32 %v383
      %v429 = vcvt.s32.f32 %v384
      %v430 = vcvt.s32.f32 %v385
      %v431 = vcvt.s32.f32 %v386
      %v432 = vcvt.s32.f32 %v387
      %v433 = vcvt.s32.f32 %v388
      %v434 = vcvt.s32.f32 %v389
      %v435 = vcvt.s32.f32 %v390
      %v436 = vcvt.s32.f32 %v391
      %v437 = vcvt.s32.f32 %v392
      %v438 = vcvt.s32.f32 %v393
      %v439 = vcvt.s32.f32 %v394
      %v440 = vcvt.s32.f32 %v395
      %v441 = vcvt.s32.f32 %v396
      %v442 = vcvt.s32.f32 %v397
      %v443 = vcvt.s32.f32 %v398
      %v444 = vcvt.s32.f32 %v399
      %v445 = vcvt.s32.f32 %v400
      %v446 = vcvt.s32.f32 %v401
      %v447 = vcvt.s32.f32 %v402
      %v448 = vcvt.s32.f32 %v403
      %v449 = vlaneseq
      %v450 = vand.u32 %v449, 127
      %v451 = vcvt.s32.f32 %v450
      %v452 = vmul.f32 %v451, 5.0
      %vm453 = vcmp.eq.f32.partialorder %v404, %v452
      %vm454 = vcmp.eq.f32.partialorder %v405, %v452
      %vm455 = vcmp.eq.f32.partialorder %v406, %v452
      %vm456 = vcmp.eq.f32.partialorder %v407, %v452
      %vm457 = vcmp.eq.f32.partialorder %v408, %v452
      %vm458 = vcmp.eq.f32.partialorder %v409, %v452
      %vm459 = vcmp.eq.f32.partialorder %v410, %v452
      %vm460 = vcmp.eq.f32.partialorder %v411, %v452
      %vm461 = vcmp.eq.f32.partialorder %v412, %v452
      %vm462 = vcmp.eq.f32.partialorder %v413, %v452
      %vm463 = vcmp.eq.f32.partialorder %v414, %v452
      %vm464 = vcmp.eq.f32.partialorder %v415, %v452
      %vm465 = vcmp.eq.f32.partialorder %v416, %v452
      %vm466 = vcmp.eq.f32.partialorder %v417, %v452
      %vm467 = vcmp.eq.f32.partialorder %v418, %v452
      %vm468 = vcmp.eq.f32.partialorder %v419, %v452
      %vm469 = vcmp.eq.f32.partialorder %v420, %v452
      %vm470 = vcmp.eq.f32.partialorder %v421, %v452
      %vm471 = vcmp.eq.f32.partialorder %v422, %v452
      %vm472 = vcmp.eq.f32.partialorder %v423, %v452
      %vm473 = vcmp.eq.f32.partialorder %v424, %v452
      %vm474 = vcmp.eq.f32.partialorder %v425, %v452
      %vm475 = vcmp.eq.f32.partialorder %v426, %v452
      %vm476 = vcmp.eq.f32.partialorder %v427, %v452
      %vm477 = vcmp.eq.f32.partialorder %v428, %v452
      %vm478 = vcmp.eq.f32.partialorder %v429, %v452
      %vm479 = vcmp.eq.f32.partialorder %v430, %v452
      %vm480 = vcmp.eq.f32.partialorder %v431, %v452
      %vm481 = vcmp.eq.f32.partialorder %v432, %v452
      %vm482 = vcmp.eq.f32.partialorder %v433, %v452
      %vm483 = vcmp.eq.f32.partialorder %v434, %v452
      %vm484 = vcmp.eq.f32.partialorder %v435, %v452
      %vm485 = vcmp.eq.f32.partialorder %v436, %v452
      %vm486 = vcmp.eq.f32.partialorder %v437, %v452
      %vm487 = vcmp.eq.f32.partialorder %v438, %v452
      %vm488 = vcmp.eq.f32.partialorder %v439, %v452
      %vm489 = vcmp.eq.f32.partialorder %v440, %v452
      %vm490 = vcmp.eq.f32.partialorder %v441, %v452
      %vm491 = vcmp.eq.f32.partialorder %v442, %v452
      %vm492 = vcmp.eq.f32.partialorder %v443, %v452
      %vm493 = vcmp.eq.f32.partialorder %v444, %v452
      %vm494 = vcmp.eq.f32.partialorder %v445, %v452
      %vm495 = vcmp.eq.f32.partialorder %v446, %v452
      %vm496 = vcmp.eq.f32.partialorder %v447, %v452
      %vm497 = vcmp.eq.f32.partialorder %v448, %v452
      %v498 = vsel %vm453, 1, 0
      %v499 = vsel %vm454, 1, 0
      %v500 = vsel %vm455, 1, 0
      %v501 = vsel %vm456, 1, 0
      %v502 = vsel %vm457, 1, 0
      %v503 = vsel %vm458, 1, 0
      %v504 = vsel %vm459, 1, 0
      %v505 = vsel %vm460, 1, 0
      %v506 = vsel %vm461, 1, 0
      %v507 = vsel %vm462, 1, 0
      %v508 = vsel %vm463, 1, 0
      %v509 = vsel %vm464, 1, 0
      %v510 = vsel %vm465, 1, 0
      %v511 = vsel %vm466, 1, 0
      %v512 = vsel %vm467, 1, 0
      %v513 = vsel %vm468, 1, 0
      %v514 = vsel %vm469, 1, 0
      %v515 = vsel %vm470, 1, 0
      %v516 = vsel %vm471, 1, 0
      %v517 = vsel %vm472, 1, 0
      %v518 = vsel %vm473, 1, 0
      %v519 = vsel %vm474, 1, 0
      %v520 = vsel %vm475, 1, 0
      %v521 = vsel %vm476, 1, 0
      %v522 = vsel %vm477, 1, 0
      %v523 = vsel %vm478, 1, 0
      %v524 = vsel %vm479, 1, 0
      %v525 = vsel %vm480, 1, 0
      %v526 = vsel %vm481, 1, 0
      %v527 = vsel %vm482, 1, 0
      %v528 = vsel %vm483, 1, 0
      %v529 = vsel %vm484, 1, 0
      %v530 = vsel %vm485, 1, 0
      %v531 = vsel %vm486, 1, 0
      %v532 = vsel %vm487, 1, 0
      %v533 = vsel %vm488, 1, 0
      %v534 = vsel %vm489, 1, 0
      %v535 = vsel %vm490, 1, 0
      %v536 = vsel %vm491, 1, 0
      %v537 = vsel %vm492, 1, 0
      %v538 = vsel %vm493, 1, 0
      %v539 = vsel %vm494, 1, 0
      %v540 = vsel %vm495, 1, 0
      %v541 = vsel %vm496, 1, 0
      %v542 = vsel %vm497, 1, 0
      %v543 = vcvt.s32.f32 %v498
      %v544 = vcvt.s32.f32 %v499
      %v545 = vcvt.s32.f32 %v500
      %v546 = vcvt.s32.f32 %v501
      %v547 = vcvt.s32.f32 %v502
      %v548 = vcvt.s32.f32 %v503
      %v549 = vcvt.s32.f32 %v504
      %v550 = vcvt.s32.f32 %v505
      %v551 = vcvt.s32.f32 %v506
      %v552 = vcvt.s32.f32 %v507
      %v553 = vcvt.s32.f32 %v508
      %v554 = vcvt.s32.f32 %v509
      %v555 = vcvt.s32.f32 %v510
      %v556 = vcvt.s32.f32 %v511
      %v557 = vcvt.s32.f32 %v512
      %v558 = vcvt.s32.f32 %v513
      %v559 = vcvt.s32.f32 %v514
      %v560 = vcvt.s32.f32 %v515
      %v561 = vcvt.s32.f32 %v516
      %v562 = vcvt.s32.f32 %v517
      %v563 = vcvt.s32.f32 %v518
      %v564 = vcvt.s32.f32 %v519
      %v565 = vcvt.s32.f32 %v520
      %v566 = vcvt.s32.f32 %v521
      %v567 = vcvt.s32.f32 %v522
      %v568 = vcvt.s32.f32 %v523
      %v569 = vcvt.s32.f32 %v524
      %v570 = vcvt.s32.f32 %v525
      %v571 = vcvt.s32.f32 %v526
      %v572 = vcvt.s32.f32 %v527
      %v573 = vcvt.s32.f32 %v528
      %v574 = vcvt.s32.f32 %v529
      %v575 = vcvt.s32.f32 %v530
      %v576 = vcvt.s32.f32 %v531
      %v577 = vcvt.s32.f32 %v532
      %v578 = vcvt.s32.f32 %v533
      %v579 = vcvt.s32.f32 %v534
      %v580 = vcvt.s32.f32 %v535
      %v581 = vcvt.s32.f32 %v536
      %v582 = vcvt.s32.f32 %v537
      %v583 = vcvt.s32.f32 %v538
      %v584 = vcvt.s32.f32 %v539
      %v585 = vcvt.s32.f32 %v540
      %v586 = vcvt.s32.f32 %v541
      %v587 = vcvt.s32.f32 %v542
      %v588 = vmul.f32 %v404, 0.14285715
      %v589 = vmul.f32 %v405, 0.14285715
      %v590 = vmul.f32 %v406, 0.14285715
      %v591 = vmul.f32 %v407, 0.14285715
      %v592 = vfloor.f32 %v588
      %v593 = vfloor.f32 %v589
      %v594 = vfloor.f32 %v590
      %v595 = vfloor.f32 %v591
      %v596 = vmul.f32 %v592, 7.0
      %v597 = vmul.f32 %v593, 7.0
      %v598 = vmul.f32 %v594, 7.0
      %v599 = vmul.f32 %v595, 7.0
      %v600 = vsub.f32 %v404, %v596
      %v601 = vsub.f32 %v405, %v597
      %v602 = vsub.f32 %v406, %v598
      %v603 = vsub.f32 %v407, %v599
      %vm604 = vcmp.eq.f32.partialorder %v600, %v451
      %vm605 = vcmp.eq.f32.partialorder %v601, %v451
      %vm606 = vcmp.eq.f32.partialorder %v602, %v451
      %vm607 = vcmp.eq.f32.partialorder %v603, %v451
      %v608 = vsel %vm604, 1, 0
      %v609 = vsel %vm605, 1, 0
      %v610 = vsel %vm606, 1, 0
      %v611 = vsel %vm607, 1, 0
      %v612 = vcvt.s32.f32 %v608
      %v613 = vcvt.s32.f32 %v609
      %v614 = vcvt.s32.f32 %v610
      %v615 = vcvt.s32.f32 %v611
      %v616 = vmul.f32 %v451, 0.25
      %v617 = vfloor.f32 %v616
      %vm618 = vcmp.eq.f32.partialorder %v592, %v617
      %vm619 = vcmp.eq.f32.partialorder %v593, %v617
      %vm620 = vcmp.eq.f32.partialorder %v594, %v617
      %vm621 = vcmp.eq.f32.partialorder %v595, %v617
      %v622 = vsel %vm618, 1, 0
      %v623 = vsel %vm619, 1, 0
      %v624 = vsel %vm620, 1, 0
      %v625 = vsel %vm621, 1, 0
      %v626 = vcvt.s32.f32 %v622
      %v627 = vcvt.s32.f32 %v623
      %v628 = vcvt.s32.f32 %v624
      %v629 = vcvt.s32.f32 %v625
      %v630 = vmul.f32 %v451, 0.14285715
      %v631 = vfloor.f32 %v630
      %vm632 = vcmp.eq.f32.partialorder %v592, %v631
      %vm633 = vcmp.eq.f32.partialorder %v593, %v631
      %vm634 = vcmp.eq.f32.partialorder %v594, %v631
      %vm635 = vcmp.eq.f32.partialorder %v595, %v631
      %v636 = vsel %vm632, 0.0, -1e+30
      %v637 = vsel %vm633, 0.0, -1e+30
      %v638 = vsel %vm634, 0.0, -1e+30
      %v639 = vsel %vm635, 0.0, -1e+30
      %v640 = vmul.f32 %v631, 7.0
      %v641 = vsub.f32 %v451, %v640
      %vm642 = vcmp.eq.f32.partialorder %v600, %v641
      %vm643 = vcmp.eq.f32.partialorder %v601, %v641
      %vm644 = vcmp.eq.f32.partialorder %v602, %v641
      %vm645 = vcmp.eq.f32.partialorder %v603, %v641
      %v646 = vsel %vm642, 1, 0
      %v647 = vsel %vm643, 1, 0
      %v648 = vsel %vm644, 1, 0
      %v649 = vsel %vm645, 1, 0
      %v650 = vcvt.s32.f32 %v646
      %v651 = vcvt.s32.f32 %v647
      %v652 = vcvt.s32.f32 %v648
      %v653 = vcvt.s32.f32 %v649
      %vm654 = vcmp.eq.f32.partialorder %v451, %v592
      %vm655 = vcmp.eq.f32.partialorder %v451, %v593
      %vm656 = vcmp.eq.f32.partialorder %v451, %v594
      %v657 = vsel %vm654, 1, 0
      %v658 = vsel %vm655, 1, 0
      %v659 = vsel %vm656, 1, 0
      %v660 = vcvt.s32.f32 %v657
      %v661 = vcvt.s32.f32 %v658
      %v662 = vcvt.s32.f32 %v659
      %vm663 = vcmp.eq.f32.partialorder %v631, %v404
      %v664 = vsel %vm663, 1, 0
      %v665 = vcvt.s32.f32 %v664
      %v666 = vld [vmem:[%s2] sm:$0xff]
      %v667 = vld [vmem:[%s2 + $0x8] sm:$0xff]
      %v668 = vld [vmem:[%s353] sm:$0xff]
      %v669 = vld [vmem:[%s353 + $0x8] sm:$0xff]
      %v670 = vld [vmem:[%s353 + $0x10] sm:$0xff]
      %v671 = vld [vmem:[%s353 + $0x20] sm:$0xff]
      %v672 = vld [vmem:[%s353 + $0x28] sm:$0xff]
      %v673 = vld [vmem:[%s353 + $0x30] sm:$0xff]
      %v674 = vld [vmem:[%s1] sm:$0xff]
      %v675 = vld [vmem:[%s1 + $0x8] sm:$0xff]
      %vm676 = vcmask 130048
      %v678 = vsel %vm676, %v674, 0
      %v681 = vsel %vm676, %v675, 0
      %683 = vmatprep.subr.mxu0 %v669
      %684 = vmatpush1.msra.mxu0 %v668
      %685 = vmatprep.subr.mxu0 %v672
      %686 = vmatpush1.msra.mxu0 %v671
      %687 = vmatprep.subr.mxu0 0.0
      %688 = vmatpush1.msra.mxu0 0.0
      %689 = vmatprep.subr.mxu0 0.0
      %690 = vmatpush1.msra.mxu0 0.0
      %691 = vmatprep.subr.mxu0 0.0
      %692 = vmatpush1.msra.mxu0 0.0
      %693 = vmatprep.subr.mxu0 0.0
      %694 = vmatpush1.msra.mxu0 0.0
      %695 = vmatprep.subr.mxu0 0.0
      %696 = vmatpush1.msra.mxu0 0.0
      %697 = vmatprep.subr.mxu0 0.0
      %698 = vmatpush1.msra.mxu0 0.0
      %699 = vmatprep.subr.mxu0 0.0
      %700 = vmatpush1.msra.mxu0 0.0
      %701 = vmatprep.subr.mxu0 0.0
      %702 = vmatpush1.msra.mxu0 0.0
      %703 = vmatprep.subr.mxu0 0.0
      %704 = vmatpush1.msra.mxu0 0.0
      %705 = vmatprep.subr.mxu0 0.0
      %706 = vmatpush1.msra.mxu0 0.0
      %707 = vmatprep.subr.mxu0 0.0
      %708 = vmatpush1.msra.mxu0 0.0
      %709 = vmatprep.subr.mxu0 0.0
      %710 = vmatpush1.msra.mxu0 0.0
      %711 = vmatprep.subr.mxu0 0.0
      %712 = vmatpush1.msra.mxu0 0.0
      %713 = vmatprep.subr.mxu0 0.0
      %714 = vmatpush1.msra.mxu0 0.0
      %715 = vmatprep.subr.mxu0 0.0
      %716 = vmatpush1.msra.mxu0 0.0
      %717 = vmatprep.subr.mxu0 0.0
      %718 = vmatpush1.msra.mxu0 0.0
      %719 = vmatprep.subr.mxu0 0.0
      %720 = vmatpush1.msra.mxu0 0.0
      %721 = vmatprep.subr.mxu0 0.0
      %722 = vmatpush1.msra.mxu0 0.0
      %723 = vmatprep.subr.mxu0 0.0
      %724 = vmatpush1.msra.mxu0 0.0
      %725 = vmatprep.subr.mxu0 0.0
      %726 = vmatpush1.msra.mxu0 0.0
      %727 = vmatprep.subr.mxu0 0.0
      %728 = vmatpush1.msra.mxu0 0.0
      %729 = vmatprep.subr.mxu0 0.0
      %730 = vmatpush1.msra.mxu0 0.0
      %731 = vmatprep.subr.mxu0 0.0
      %732 = vmatpush1.msra.mxu0 0.0
      %733 = vmatprep.subr.mxu0 0.0
      %734 = vmatpush1.msra.mxu0 0.0
      %735 = vmatprep.subr.mxu0 0.0
      %736 = vmatpush1.msra.mxu0 0.0
      %737 = vmatprep.subr.mxu0 0.0
      %738 = vmatpush1.msra.mxu0 0.0
      %739 = vmatprep.subr.mxu0 0.0
      %740 = vmatpush1.msra.mxu0 0.0
      %741 = vmatprep.subr.mxu0 0.0
      %742 = vmatpush1.msra.mxu0 0.0
      %743 = vmatprep.subr.mxu0 0.0
      %744 = vmatpush1.msra.mxu0 0.0
      %745 = vmatprep.subr.mxu0 0.0
      %746 = vmatpush1.msra.mxu0 0.0
      %747 = vmatprep.mubr.f32.mxu0 0.0
      %748 = vmatmul.mubr.f32.gmra.mrb[0].mxu0 %v678
      %v749 = vpop.f32.mrb[0].mxu0
      %v750 = vadd.f32 0.0, %v749
      %v751 = vpop.f32.mrb[0].mxu0
      %v752 = vadd.f32 0.0, %v751
      %753 = vmatprep.mubr.f32.mxu0 0.0
      %754 = vmatmul.mubr.f32.gmra.mrb[0].mxu0 %v681
      %v755 = vpop.f32.mrb[0].mxu0
      %v756 = vadd.f32 0.0, %v755
      %v757 = vpop.f32.mrb[0].mxu0
      %v758 = vadd.f32 0.0, %v757
      %759 = vdwg.mxu0
      %760 = vmatprep.subr.mxu0 0.0
      %761 = vmatpush1.msra.mxu0 %v670
      %762 = vmatprep.subr.mxu0 0.0
      %763 = vmatpush1.msra.mxu0 %v673
      %764 = vmatprep.subr.mxu0 0.0
      %765 = vmatpush1.msra.mxu0 0.0
      %766 = vmatprep.subr.mxu0 0.0
      %767 = vmatpush1.msra.mxu0 0.0
      %768 = vmatprep.subr.mxu0 0.0
      %769 = vmatpush1.msra.mxu0 0.0
      %770 = vmatprep.subr.mxu0 0.0
      %771 = vmatpush1.msra.mxu0 0.0
      %772 = vmatprep.subr.mxu0 0.0
      %773 = vmatpush1.msra.mxu0 0.0
      %774 = vmatprep.subr.mxu0 0.0
      %775 = vmatpush1.msra.mxu0 0.0
      %776 = vmatprep.subr.mxu0 0.0
      %777 = vmatpush1.msra.mxu0 0.0
      %778 = vmatprep.subr.mxu0 0.0
      %779 = vmatpush1.msra.mxu0 0.0
      %780 = vmatprep.subr.mxu0 0.0
      %781 = vmatpush1.msra.mxu0 0.0
      %782 = vmatprep.subr.mxu0 0.0
      %783 = vmatpush1.msra.mxu0 0.0
      %784 = vmatprep.subr.mxu0 0.0
      %785 = vmatpush1.msra.mxu0 0.0
      %786 = vmatprep.subr.mxu0 0.0
      %787 = vmatpush1.msra.mxu0 0.0
      %788 = vmatprep.subr.mxu0 0.0
      %789 = vmatpush1.msra.mxu0 0.0
      %790 = vmatprep.subr.mxu0 0.0
      %791 = vmatpush1.msra.mxu0 0.0
      %792 = vmatprep.subr.mxu0 0.0
      %793 = vmatpush1.msra.mxu0 0.0
      %794 = vmatprep.subr.mxu0 0.0
      %795 = vmatpush1.msra.mxu0 0.0
      %796 = vmatprep.subr.mxu0 0.0
      %797 = vmatpush1.msra.mxu0 0.0
      %798 = vmatprep.subr.mxu0 0.0
      %799 = vmatpush1.msra.mxu0 0.0
      %800 = vmatprep.subr.mxu0 0.0
      %801 = vmatpush1.msra.mxu0 0.0
      %802 = vmatprep.subr.mxu0 0.0
      %803 = vmatpush1.msra.mxu0 0.0
      %804 = vmatprep.subr.mxu0 0.0
      %805 = vmatpush1.msra.mxu0 0.0
      %806 = vmatprep.subr.mxu0 0.0
      %807 = vmatpush1.msra.mxu0 0.0
      %808 = vmatprep.subr.mxu0 0.0
      %809 = vmatpush1.msra.mxu0 0.0
      %810 = vmatprep.subr.mxu0 0.0
      %811 = vmatpush1.msra.mxu0 0.0
      %812 = vmatprep.subr.mxu0 0.0
      %813 = vmatpush1.msra.mxu0 0.0
      %814 = vmatprep.subr.mxu0 0.0
      %815 = vmatpush1.msra.mxu0 0.0
      %816 = vmatprep.subr.mxu0 0.0
      %817 = vmatpush1.msra.mxu0 0.0
      %818 = vmatprep.subr.mxu0 0.0
      %819 = vmatpush1.msra.mxu0 0.0
      %820 = vmatprep.subr.mxu0 0.0
      %821 = vmatpush1.msra.mxu0 0.0
      %822 = vmatprep.subr.mxu0 0.0
      %823 = vmatpush1.msra.mxu0 0.0
      %824 = vmatprep.mubr.f32.mxu0 0.0
      %825 = vmatmul.mubr.f32.gmra.mrb[0].mxu0 %v678
      %v826 = vpop.f32.mrb[0].mxu0
      %v827 = vadd.f32 0.0, %v826
      %v828 = vpop.f32.mrb[0].mxu0
      %829 = vmatprep.mubr.f32.mxu0 0.0
      %830 = vmatmul.mubr.f32.gmra.mrb[0].mxu0 %v681
      %v831 = vpop.f32.mrb[0].mxu0
      %v832 = vadd.f32 0.0, %v831
      %v833 = vpop.f32.mrb[0].mxu0
      %834 = vdwg.mxu0
      %836 = vset.pattern.permute.xlu0 0
      %837 = vperm.xlu0 %836, %v666
      %v838 = vpop.permute.xlu0 %837
      %841 = vset.pattern.permute.xlu0 0
      %842 = vperm.xlu0 %841, %v667
      %v843 = vpop.permute.xlu0 %842
      %v845 = vadd.f32 %v838, %v750
      %v846 = vadd.f32 %v838, %v752
      %v847 = vadd.f32 %v838, %v827
      %v848 = vadd.f32 %v843, %v756
      %v849 = vadd.f32 %v843, %v758
      %v850 = vadd.f32 %v843, %v832
      %s851 = scalar_lea.vmem %s1, 16
      %v852 = vld [vmem:[%s851] sm:$0xff]
      %v853 = vld [vmem:[%s851 + $0x8] sm:$0xff]
      %860 = vrot.lane.b32.xlu0 %v668, 119
      %v861 = vpop.permute.xlu0 %860
      %862 = vrot.lane.b32.xlu0 %v669, 119
      %v863 = vpop.permute.xlu0 %862
      %864 = vrot.lane.b32.xlu0 %v670, 119
      %v865 = vpop.permute.xlu0 %864
      %866 = vrot.lane.b32.xlu0 %v671, 119
      %v867 = vpop.permute.xlu0 %866
      %868 = vrot.lane.b32.xlu0 %v672, 119
      %v869 = vpop.permute.xlu0 %868
      %870 = vrot.lane.b32.xlu0 %v673, 119
      %v871 = vpop.permute.xlu0 %870
      %vm872 = vcmask 973824
      %v873 = vsel %vm872, %v861, %v863
      %v874 = vsel %vm872, %v863, %v865
      %v875 = vsel %vm872, %v867, %v869
      %v876 = vsel %vm872, %v869, %v871
      %v884 = vsel %vm676, %v852, 0
      %v887 = vsel %vm676, %v853, 0
      %889 = vmatprep.subr.mxu0 %v874
      %890 = vmatpush1.msra.mxu0 %v873
      %891 = vmatprep.subr.mxu0 %v876
      %892 = vmatpush1.msra.mxu0 %v875
      %893 = vmatprep.subr.mxu0 0.0
      %894 = vmatpush1.msra.mxu0 0.0
      %895 = vmatprep.subr.mxu0 0.0
      %896 = vmatpush1.msra.mxu0 0.0
      %897 = vmatprep.subr.mxu0 0.0
      %898 = vmatpush1.msra.mxu0 0.0
      %899 = vmatprep.subr.mxu0 0.0
      %900 = vmatpush1.msra.mxu0 0.0
      %901 = vmatprep.subr.mxu0 0.0
      %902 = vmatpush1.msra.mxu0 0.0
      %903 = vmatprep.subr.mxu0 0.0
      %904 = vmatpush1.msra.mxu0 0.0
      %905 = vmatprep.subr.mxu0 0.0
      %906 = vmatpush1.msra.mxu0 0.0
      %907 = vmatprep.subr.mxu0 0.0
      %908 = vmatpush1.msra.mxu0 0.0
      %909 = vmatprep.subr.mxu0 0.0
      %910 = vmatpush1.msra.mxu0 0.0
      %911 = vmatprep.subr.mxu0 0.0
      %912 = vmatpush1.msra.mxu0 0.0
      %913 = vmatprep.subr.mxu0 0.0
      %914 = vmatpush1.msra.mxu0 0.0
      %915 = vmatprep.subr.mxu0 0.0
      %916 = vmatpush1.msra.mxu0 0.0
      %917 = vmatprep.subr.mxu0 0.0
      %918 = vmatpush1.msra.mxu0 0.0
      %919 = vmatprep.subr.mxu0 0.0
      %920 = vmatpush1.msra.mxu0 0.0
      %921 = vmatprep.subr.mxu0 0.0
      %922 = vmatpush1.msra.mxu0 0.0
      %923 = vmatprep.subr.mxu0 0.0
      %924 = vmatpush1.msra.mxu0 0.0
      %925 = vmatprep.subr.mxu0 0.0
      %926 = vmatpush1.msra.mxu0 0.0
      %927 = vmatprep.subr.mxu0 0.0
      %928 = vmatpush1.msra.mxu0 0.0
      %929 = vmatprep.subr.mxu0 0.0
      %930 = vmatpush1.msra.mxu0 0.0
      %931 = vmatprep.subr.mxu0 0.0
      %932 = vmatpush1.msra.mxu0 0.0
      %933 = vmatprep.subr.mxu0 0.0
      %934 = vmatpush1.msra.mxu0 0.0
      %935 = vmatprep.subr.mxu0 0.0
      %936 = vmatpush1.msra.mxu0 0.0
      %937 = vmatprep.subr.mxu0 0.0
      %938 = vmatpush1.msra.mxu0 0.0
      %939 = vmatprep.subr.mxu0 0.0
      %940 = vmatpush1.msra.mxu0 0.0
      %941 = vmatprep.subr.mxu0 0.0
      %942 = vmatpush1.msra.mxu0 0.0
      %943 = vmatprep.subr.mxu0 0.0
      %944 = vmatpush1.msra.mxu0 0.0
      %945 = vmatprep.subr.mxu0 0.0
      %946 = vmatpush1.msra.mxu0 0.0
      %947 = vmatprep.subr.mxu0 0.0
      %948 = vmatpush1.msra.mxu0 0.0
      %949 = vmatprep.subr.mxu0 0.0
      %950 = vmatpush1.msra.mxu0 0.0
      %951 = vmatprep.subr.mxu0 0.0
      %952 = vmatpush1.msra.mxu0 0.0
      %953 = vmatprep.mubr.f32.mxu0 0.0
      %954 = vmatmul.mubr.f32.gmra.mrb[0].mxu0 %v884
      %v955 = vpop.f32.mrb[0].mxu0
      %v956 = vadd.f32 0.0, %v955
      %v957 = vpop.f32.mrb[0].mxu0
      %v958 = vadd.f32 0.0, %v957
      %959 = vmatprep.mubr.f32.mxu0 0.0
      %960 = vmatmul.mubr.f32.gmra.mrb[0].mxu0 %v887
      %v961 = vpop.f32.mrb[0].mxu0
      %v962 = vadd.f32 0.0, %v961
      %v963 = vpop.f32.mrb[0].mxu0
      %v964 = vadd.f32 0.0, %v963
      %965 = vdwg.mxu0
      %966 = vmatprep.subr.mxu0 0.0
      %967 = vmatpush1.msra.mxu0 %v865
      %968 = vmatprep.subr.mxu0 0.0
      %969 = vmatpush1.msra.mxu0 %v871
      %970 = vmatprep.subr.mxu0 0.0
      %971 = vmatpush1.msra.mxu0 0.0
      %972 = vmatprep.subr.mxu0 0.0
      %973 = vmatpush1.msra.mxu0 0.0
      %974 = vmatprep.subr.mxu0 0.0
      %975 = vmatpush1.msra.mxu0 0.0
      %976 = vmatprep.subr.mxu0 0.0
      %977 = vmatpush1.msra.mxu0 0.0
      %978 = vmatprep.subr.mxu0 0.0
      %979 = vmatpush1.msra.mxu0 0.0
      %980 = vmatprep.subr.mxu0 0.0
      %981 = vmatpush1.msra.mxu0 0.0
      %982 = vmatprep.subr.mxu0 0.0
      %983 = vmatpush1.msra.mxu0 0.0
      %984 = vmatprep.subr.mxu0 0.0
      %985 = vmatpush1.msra.mxu0 0.0
      %986 = vmatprep.subr.mxu0 0.0
      %987 = vmatpush1.msra.mxu0 0.0
      %988 = vmatprep.subr.mxu0 0.0
      %989 = vmatpush1.msra.mxu0 0.0
      %990 = vmatprep.subr.mxu0 0.0
      %991 = vmatpush1.msra.mxu0 0.0
      %992 = vmatprep.subr.mxu0 0.0
      %993 = vmatpush1.msra.mxu0 0.0
      %994 = vmatprep.subr.mxu0 0.0
      %995 = vmatpush1.msra.mxu0 0.0
      %996 = vmatprep.subr.mxu0 0.0
      %997 = vmatpush1.msra.mxu0 0.0
      %998 = vmatprep.subr.mxu0 0.0
      %999 = vmatpush1.msra.mxu0 0.0
      %1000 = vmatprep.subr.mxu0 0.0
      %1001 = vmatpush1.msra.mxu0 0.0
      %1002 = vmatprep.subr.mxu0 0.0
      %1003 = vmatpush1.msra.mxu0 0.0
      %1004 = vmatprep.subr.mxu0 0.0
      %1005 = vmatpush1.msra.mxu0 0.0
      %1006 = vmatprep.subr.mxu0 0.0
      %1007 = vmatpush1.msra.mxu0 0.0
      %1008 = vmatprep.subr.mxu0 0.0
      %1009 = vmatpush1.msra.mxu0 0.0
      %1010 = vmatprep.subr.mxu0 0.0
      %1011 = vmatpush1.msra.mxu0 0.0
      %1012 = vmatprep.subr.mxu0 0.0
      %1013 = vmatpush1.msra.mxu0 0.0
      %1014 = vmatprep.subr.mxu0 0.0
      %1015 = vmatpush1.msra.mxu0 0.0
      %1016 = vmatprep.subr.mxu0 0.0
      %1017 = vmatpush1.msra.mxu0 0.0
      %1018 = vmatprep.subr.mxu0 0.0
      %1019 = vmatpush1.msra.mxu0 0.0
      %1020 = vmatprep.subr.mxu0 0.0
      %1021 = vmatpush1.msra.mxu0 0.0
      %1022 = vmatprep.subr.mxu0 0.0
      %1023 = vmatpush1.msra.mxu0 0.0
      %1024 = vmatprep.subr.mxu0 0.0
      %1025 = vmatpush1.msra.mxu0 0.0
      %1026 = vmatprep.subr.mxu0 0.0
      %1027 = vmatpush1.msra.mxu0 0.0
      %1028 = vmatprep.subr.mxu0 0.0
      %1029 = vmatpush1.msra.mxu0 0.0
      %1030 = vmatprep.mubr.f32.mxu0 0.0
      %1031 = vmatmul.mubr.f32.gmra.mrb[0].mxu0 %v884
      %v1032 = vpop.f32.mrb[0].mxu0
      %v1033 = vadd.f32 0.0, %v1032
      %v1034 = vpop.f32.mrb[0].mxu0
      %1035 = vmatprep.mubr.f32.mxu0 0.0
      %1036 = vmatmul.mubr.f32.gmra.mrb[0].mxu0 %v887
      %v1037 = vpop.f32.mrb[0].mxu0
      %v1038 = vadd.f32 0.0, %v1037
      %v1039 = vpop.f32.mrb[0].mxu0
      %1040 = vdwg.mxu0
      %v1041 = vadd.f32 %v845, %v956
      %v1042 = vadd.f32 %v846, %v958
      %v1043 = vadd.f32 %v847, %v1033
      %v1044 = vadd.f32 %v848, %v962
      %v1045 = vadd.f32 %v849, %v964
      %v1046 = vadd.f32 %v850, %v1038
      %s1047 = scalar_lea.vmem %s1, 32
      %v1048 = vld [vmem:[%s1047] sm:$0xff]
      %v1049 = vld [vmem:[%s1047 + $0x8] sm:$0xff]
      %1050 = vrot.lane.b32.xlu0 %v668, 110
      %v1051 = vpop.permute.xlu0 %1050
      %1052 = vrot.lane.b32.xlu0 %v669, 110
      %v1053 = vpop.permute.xlu0 %1052
      %1054 = vrot.lane.b32.xlu0 %v670, 110
      %v1055 = vpop.permute.xlu0 %1054
      %1056 = vrot.lane.b32.xlu0 %v671, 110
      %v1057 = vpop.permute.xlu0 %1056
      %1058 = vrot.lane.b32.xlu0 %v672, 110
      %v1059 = vpop.permute.xlu0 %1058
      %1060 = vrot.lane.b32.xlu0 %v673, 110
      %v1061 = vpop.permute.xlu0 %1060
      %vm1062 = vcmask 900096
      %v1063 = vsel %vm1062, %v1051, %v1053
      %v1064 = vsel %vm1062, %v1053, %v1055
      %v1065 = vsel %vm1062, %v1057, %v1059
      %v1066 = vsel %vm1062, %v1059, %v1061
      %v1074 = vsel %vm676, %v1048, 0
      %v1077 = vsel %vm676, %v1049, 0
      %1079 = vmatprep.subr.mxu0 %v1064
      %1080 = vmatpush1.msra.mxu0 %v1063
      %1081 = vmatprep.subr.mxu0 %v1066
      %1082 = vmatpush1.msra.mxu0 %v1065
      %1083 = vmatprep.subr.mxu0 0.0
      %1084 = vmatpush1.msra.mxu0 0.0
      %1085 = vmatprep.subr.mxu0 0.0
      %1086 = vmatpush1.msra.mxu0 0.0
      %1087 = vmatprep.subr.mxu0 0.0
      %1088 = vmatpush1.msra.mxu0 0.0
      %1089 = vmatprep.subr.mxu0 0.0
      %1090 = vmatpush1.msra.mxu0 0.0
      %1091 = vmatprep.subr.mxu0 0.0
      %1092 = vmatpush1.msra.mxu0 0.0
      %1093 = vmatprep.subr.mxu0 0.0
      %1094 = vmatpush1.msra.mxu0 0.0
      %1095 = vmatprep.subr.mxu0 0.0
      %1096 = vmatpush1.msra.mxu0 0.0
      %1097 = vmatprep.subr.mxu0 0.0
      %1098 = vmatpush1.msra.mxu0 0.0
      %1099 = vmatprep.subr.mxu0 0.0
      %1100 = vmatpush1.msra.mxu0 0.0
      %1101 = vmatprep.subr.mxu0 0.0
      %1102 = vmatpush1.msra.mxu0 0.0
      %1103 = vmatprep.subr.mxu0 0.0
      %1104 = vmatpush1.msra.mxu0 0.0
      %1105 = vmatprep.subr.mxu0 0.0
      %1106 = vmatpush1.msra.mxu0 0.0
      %1107 = vmatprep.subr.mxu0 0.0
      %1108 = vmatpush1.msra.mxu0 0.0
      %1109 = vmatprep.subr.mxu0 0.0
      %1110 = vmatpush1.msra.mxu0 0.0
      %1111 = vmatprep.subr.mxu0 0.0
      %1112 = vmatpush1.msra.mxu0 0.0
      %1113 = vmatprep.subr.mxu0 0.0
      %1114 = vmatpush1.msra.mxu0 0.0
      %1115 = vmatprep.subr.mxu0 0.0
      %1116 = vmatpush1.msra.mxu0 0.0
      %1117 = vmatprep.subr.mxu0 0.0
      %1118 = vmatpush1.msra.mxu0 0.0
      %1119 = vmatprep.subr.mxu0 0.0
      %1120 = vmatpush1.msra.mxu0 0.0
      %1121 = vmatprep.subr.mxu0 0.0
      %1122 = vmatpush1.msra.mxu0 0.0
      %1123 = vmatprep.subr.mxu0 0.0
      %1124 = vmatpush1.msra.mxu0 0.0
      %1125 = vmatprep.subr.mxu0 0.0
      %1126 = vmatpush1.msra.mxu0 0.0
      %1127 = vmatprep.subr.mxu0 0.0
      %1128 = vmatpush1.msra.mxu0 0.0
      %1129 = vmatprep.subr.mxu0 0.0
      %1130 = vmatpush1.msra.mxu0 0.0
      %1131 = vmatprep.subr.mxu0 0.0
      %1132 = vmatpush1.msra.mxu0 0.0
      %1133 = vmatprep.subr.mxu0 0.0
      %1134 = vmatpush1.msra.mxu0 0.0
      %1135 = vmatprep.subr.mxu0 0.0
      %1136 = vmatpush1.msra.mxu0 0.0
      %1137 = vmatprep.subr.mxu0 0.0
      %1138 = vmatpush1.msra.mxu0 0.0
      %1139 = vmatprep.subr.mxu0 0.0
      %1140 = vmatpush1.msra.mxu0 0.0
      %1141 = vmatprep.subr.mxu0 0.0
      %1142 = vmatpush1.msra.mxu0 0.0
      %1143 = vmatprep.mubr.f32.mxu0 0.0
      %1144 = vmatmul.mubr.f32.gmra.mrb[0].mxu0 %v1074
      %v1145 = vpop.f32.mrb[0].mxu0
      %v1146 = vadd.f32 0.0, %v1145
      %v1147 = vpop.f32.mrb[0].mxu0
      %v1148 = vadd.f32 0.0, %v1147
      %1149 = vmatprep.mubr.f32.mxu0 0.0
      %1150 = vmatmul.mubr.f32.gmra.mrb[0].mxu0 %v1077
      %v1151 = vpop.f32.mrb[0].mxu0
      %v1152 = vadd.f32 0.0, %v1151
      %v1153 = vpop.f32.mrb[0].mxu0
      %v1154 = vadd.f32 0.0, %v1153
      %1155 = vdwg.mxu0
      %1156 = vmatprep.subr.mxu0 0.0
      %1157 = vmatpush1.msra.mxu0 %v1055
      %1158 = vmatprep.subr.mxu0 0.0
      %1159 = vmatpush1.msra.mxu0 %v1061
      %1160 = vmatprep.subr.mxu0 0.0
      %1161 = vmatpush1.msra.mxu0 0.0
      %1162 = vmatprep.subr.mxu0 0.0
      %1163 = vmatpush1.msra.mxu0 0.0
      %1164 = vmatprep.subr.mxu0 0.0
      %1165 = vmatpush1.msra.mxu0 0.0
      %1166 = vmatprep.subr.mxu0 0.0
      %1167 = vmatpush1.msra.mxu0 0.0
      %1168 = vmatprep.subr.mxu0 0.0
      %1169 = vmatpush1.msra.mxu0 0.0
      %1170 = vmatprep.subr.mxu0 0.0
      %1171 = vmatpush1.msra.mxu0 0.0
      %1172 = vmatprep.subr.mxu0 0.0
      %1173 = vmatpush1.msra.mxu0 0.0
      %1174 = vmatprep.subr.mxu0 0.0
      %1175 = vmatpush1.msra.mxu0 0.0
      %1176 = vmatprep.subr.mxu0 0.0
      %1177 = vmatpush1.msra.mxu0 0.0
      %1178 = vmatprep.subr.mxu0 0.0
      %1179 = vmatpush1.msra.mxu0 0.0
      %1180 = vmatprep.subr.mxu0 0.0
      %1181 = vmatpush1.msra.mxu0 0.0
      %1182 = vmatprep.subr.mxu0 0.0
      %1183 = vmatpush1.msra.mxu0 0.0
      %1184 = vmatprep.subr.mxu0 0.0
      %1185 = vmatpush1.msra.mxu0 0.0
      %1186 = vmatprep.subr.mxu0 0.0
      %1187 = vmatpush1.msra.mxu0 0.0
      %1188 = vmatprep.subr.mxu0 0.0
      %1189 = vmatpush1.msra.mxu0 0.0
      %1190 = vmatprep.subr.mxu0 0.0
      %1191 = vmatpush1.msra.mxu0 0.0
      %1192 = vmatprep.subr.mxu0 0.0
      %1193 = vmatpush1.msra.mxu0 0.0
      %1194 = vmatprep.subr.mxu0 0.0
      %1195 = vmatpush1.msra.mxu0 0.0
      %1196 = vmatprep.subr.mxu0 0.0
      %1197 = vmatpush1.msra.mxu0 0.0
      %1198 = vmatprep.subr.mxu0 0.0
      %1199 = vmatpush1.msra.mxu0 0.0
      %1200 = vmatprep.subr.mxu0 0.0
      %1201 = vmatpush1.msra.mxu0 0.0
      %1202 = vmatprep.subr.mxu0 0.0
      %1203 = vmatpush1.msra.mxu0 0.0
      %1204 = vmatprep.subr.mxu0 0.0
      %1205 = vmatpush1.msra.mxu0 0.0
      %1206 = vmatprep.subr.mxu0 0.0
      %1207 = vmatpush1.msra.mxu0 0.0
      %1208 = vmatprep.subr.mxu0 0.0
      %1209 = vmatpush1.msra.mxu0 0.0
      %1210 = vmatprep.subr.mxu0 0.0
      %1211 = vmatpush1.msra.mxu0 0.0
      %1212 = vmatprep.subr.mxu0 0.0
      %1213 = vmatpush1.msra.mxu0 0.0
      %1214 = vmatprep.subr.mxu0 0.0
      %1215 = vmatpush1.msra.mxu0 0.0
      %1216 = vmatprep.subr.mxu0 0.0
      %1217 = vmatpush1.msra.mxu0 0.0
      %1218 = vmatprep.subr.mxu0 0.0
      %1219 = vmatpush1.msra.mxu0 0.0
      %1220 = vmatprep.mubr.f32.mxu0 0.0
      %1221 = vmatmul.mubr.f32.gmra.mrb[0].mxu0 %v1074
      %v1222 = vpop.f32.mrb[0].mxu0
      %v1223 = vadd.f32 0.0, %v1222
      %v1224 = vpop.f32.mrb[0].mxu0
      %1225 = vmatprep.mubr.f32.mxu0 0.0
      %1226 = vmatmul.mubr.f32.gmra.mrb[0].mxu0 %v1077
      %v1227 = vpop.f32.mrb[0].mxu0
      %v1228 = vadd.f32 0.0, %v1227
      %v1229 = vpop.f32.mrb[0].mxu0
      %1230 = vdwg.mxu0
      %v1231 = vadd.f32 %v1041, %v1146
      %v1232 = vadd.f32 %v1042, %v1148
      %v1233 = vadd.f32 %v1043, %v1223
      %v1234 = vadd.f32 %v1044, %v1152
      %v1235 = vadd.f32 %v1045, %v1154
      %v1236 = vadd.f32 %v1046, %v1228
      %v1237 = vld [vmem:[%s353] sm:$0xff]
      %v1238 = vld [vmem:[%s353 + $0x8] sm:$0xff]
      %v1239 = vld [vmem:[%s353 + $0x10] sm:$0xff]
      %v1240 = vld [vmem:[%s353 + $0x18] sm:$0xff]
      %v1241 = vld [vmem:[%s353 + $0x20] sm:$0xff]
      %v1242 = vld [vmem:[%s353 + $0x28] sm:$0xff]
      %v1243 = vld [vmem:[%s353 + $0x30] sm:$0xff]
      %v1244 = vld [vmem:[%s353 + $0x38] sm:$0xff]
      %s1245 = scalar_lea.vmem %s1, 48
      %v1246 = vld [vmem:[%s1245] sm:$0xff]
      %v1247 = vld [vmem:[%s1245 + $0x8] sm:$0xff]
      %1256 = vrot.lane.b32.xlu0 %v1237, 101
      %v1257 = vpop.permute.xlu0 %1256
      %1258 = vrot.lane.b32.xlu0 %v1238, 101
      %v1259 = vpop.permute.xlu0 %1258
      %1260 = vrot.lane.b32.xlu0 %v1239, 101
      %v1261 = vpop.permute.xlu0 %1260
      %1262 = vrot.lane.b32.xlu0 %v1240, 101
      %v1263 = vpop.permute.xlu0 %1262
      %1264 = vrot.lane.b32.xlu0 %v1241, 101
      %v1265 = vpop.permute.xlu0 %1264
      %1266 = vrot.lane.b32.xlu0 %v1242, 101
      %v1267 = vpop.permute.xlu0 %1266
      %1268 = vrot.lane.b32.xlu0 %v1243, 101
      %v1269 = vpop.permute.xlu0 %1268
      %1270 = vrot.lane.b32.xlu0 %v1244, 101
      %v1271 = vpop.permute.xlu0 %1270
      %vm1272 = vcmask 826368
      %v1273 = vsel %vm1272, %v1257, %v1259
      %v1274 = vsel %vm1272, %v1259, %v1261
      %v1275 = vsel %vm1272, %v1261, %v1263
      %v1276 = vsel %vm1272, %v1265, %v1267
      %v1277 = vsel %vm1272, %v1267, %v1269
      %v1278 = vsel %vm1272, %v1269, %v1271
      %v1286 = vsel %vm676, %v1246, 0
      %v1289 = vsel %vm676, %v1247, 0
      %1291 = vmatprep.subr.mxu0 %v1274
      %1292 = vmatpush1.msra.mxu0 %v1273
      %1293 = vmatprep.subr.mxu0 %v1277
      %1294 = vmatpush1.msra.mxu0 %v1276
      %1295 = vmatprep.subr.mxu0 0.0
      %1296 = vmatpush1.msra.mxu0 0.0
      %1297 = vmatprep.subr.mxu0 0.0
      %1298 = vmatpush1.msra.mxu0 0.0
      %1299 = vmatprep.subr.mxu0 0.0
      %1300 = vmatpush1.msra.mxu0 0.0
      %1301 = vmatprep.subr.mxu0 0.0
      %1302 = vmatpush1.msra.mxu0 0.0
      %1303 = vmatprep.subr.mxu0 0.0
      %1304 = vmatpush1.msra.mxu0 0.0
      %1305 = vmatprep.subr.mxu0 0.0
      %1306 = vmatpush1.msra.mxu0 0.0
      %1307 = vmatprep.subr.mxu0 0.0
      %1308 = vmatpush1.msra.mxu0 0.0
      %1309 = vmatprep.subr.mxu0 0.0
      %1310 = vmatpush1.msra.mxu0 0.0
      %1311 = vmatprep.subr.mxu0 0.0
      %1312 = vmatpush1.msra.mxu0 0.0
      %1313 = vmatprep.subr.mxu0 0.0
      %1314 = vmatpush1.msra.mxu0 0.0
      %1315 = vmatprep.subr.mxu0 0.0
      %1316 = vmatpush1.msra.mxu0 0.0
      %1317 = vmatprep.subr.mxu0 0.0
      %1318 = vmatpush1.msra.mxu0 0.0
      %1319 = vmatprep.subr.mxu0 0.0
      %1320 = vmatpush1.msra.mxu0 0.0
      %1321 = vmatprep.subr.mxu0 0.0
      %1322 = vmatpush1.msra.mxu0 0.0
      %1323 = vmatprep.subr.mxu0 0.0
      %1324 = vmatpush1.msra.mxu0 0.0
      %1325 = vmatprep.subr.mxu0 0.0
      %1326 = vmatpush1.msra.mxu0 0.0
      %1327 = vmatprep.subr.mxu0 0.0
      %1328 = vmatpush1.msra.mxu0 0.0
      %1329 = vmatprep.subr.mxu0 0.0
      %1330 = vmatpush1.msra.mxu0 0.0
      %1331 = vmatprep.subr.mxu0 0.0
      %1332 = vmatpush1.msra.mxu0 0.0
      %1333 = vmatprep.subr.mxu0 0.0
      %1334 = vmatpush1.msra.mxu0 0.0
      %1335 = vmatprep.subr.mxu0 0.0
      %1336 = vmatpush1.msra.mxu0 0.0
      %1337 = vmatprep.subr.mxu0 0.0
      %1338 = vmatpush1.msra.mxu0 0.0
      %1339 = vmatprep.subr.mxu0 0.0
      %1340 = vmatpush1.msra.mxu0 0.0
      %1341 = vmatprep.subr.mxu0 0.0
      %1342 = vmatpush1.msra.mxu0 0.0
      %1343 = vmatprep.subr.mxu0 0.0
      %1344 = vmatpush1.msra.mxu0 0.0
      %1345 = vmatprep.subr.mxu0 0.0
      %1346 = vmatpush1.msra.mxu0 0.0
      %1347 = vmatprep.subr.mxu0 0.0
      %1348 = vmatpush1.msra.mxu0 0.0
      %1349 = vmatprep.subr.mxu0 0.0
      %1350 = vmatpush1.msra.mxu0 0.0
      %1351 = vmatprep.subr.mxu0 0.0
      %1352 = vmatpush1.msra.mxu0 0.0
      %1353 = vmatprep.subr.mxu0 0.0
      %1354 = vmatpush1.msra.mxu0 0.0
      %1355 = vmatprep.mubr.f32.mxu0 0.0
      %1356 = vmatmul.mubr.f32.gmra.mrb[0].mxu0 %v1286
      %v1357 = vpop.f32.mrb[0].mxu0
      %v1358 = vadd.f32 0.0, %v1357
      %v1359 = vpop.f32.mrb[0].mxu0
      %v1360 = vadd.f32 0.0, %v1359
      %1361 = vmatprep.mubr.f32.mxu0 0.0
      %1362 = vmatmul.mubr.f32.gmra.mrb[0].mxu0 %v1289
      %v1363 = vpop.f32.mrb[0].mxu0
      %v1364 = vadd.f32 0.0, %v1363
      %v1365 = vpop.f32.mrb[0].mxu0
      %v1366 = vadd.f32 0.0, %v1365
      %1367 = vdwg.mxu0
      %1368 = vmatprep.subr.mxu0 0.0
      %1369 = vmatpush1.msra.mxu0 %v1275
      %1370 = vmatprep.subr.mxu0 0.0
      %1371 = vmatpush1.msra.mxu0 %v1278
      %1372 = vmatprep.subr.mxu0 0.0
      %1373 = vmatpush1.msra.mxu0 0.0
      %1374 = vmatprep.subr.mxu0 0.0
      %1375 = vmatpush1.msra.mxu0 0.0
      %1376 = vmatprep.subr.mxu0 0.0
      %1377 = vmatpush1.msra.mxu0 0.0
      %1378 = vmatprep.subr.mxu0 0.0
      %1379 = vmatpush1.msra.mxu0 0.0
      %1380 = vmatprep.subr.mxu0 0.0
      %1381 = vmatpush1.msra.mxu0 0.0
      %1382 = vmatprep.subr.mxu0 0.0
      %1383 = vmatpush1.msra.mxu0 0.0
      %1384 = vmatprep.subr.mxu0 0.0
      %1385 = vmatpush1.msra.mxu0 0.0
      %1386 = vmatprep.subr.mxu0 0.0
      %1387 = vmatpush1.msra.mxu0 0.0
      %1388 = vmatprep.subr.mxu0 0.0
      %1389 = vmatpush1.msra.mxu0 0.0
      %1390 = vmatprep.subr.mxu0 0.0
      %1391 = vmatpush1.msra.mxu0 0.0
      %1392 = vmatprep.subr.mxu0 0.0
      %1393 = vmatpush1.msra.mxu0 0.0
      %1394 = vmatprep.subr.mxu0 0.0
      %1395 = vmatpush1.msra.mxu0 0.0
      %1396 = vmatprep.subr.mxu0 0.0
      %1397 = vmatpush1.msra.mxu0 0.0
      %1398 = vmatprep.subr.mxu0 0.0
      %1399 = vmatpush1.msra.mxu0 0.0
      %1400 = vmatprep.subr.mxu0 0.0
      %1401 = vmatpush1.msra.mxu0 0.0
      %1402 = vmatprep.subr.mxu0 0.0
      %1403 = vmatpush1.msra.mxu0 0.0
      %1404 = vmatprep.subr.mxu0 0.0
      %1405 = vmatpush1.msra.mxu0 0.0
      %1406 = vmatprep.subr.mxu0 0.0
      %1407 = vmatpush1.msra.mxu0 0.0
      %1408 = vmatprep.subr.mxu0 0.0
      %1409 = vmatpush1.msra.mxu0 0.0
      %1410 = vmatprep.subr.mxu0 0.0
      %1411 = vmatpush1.msra.mxu0 0.0
      %1412 = vmatprep.subr.mxu0 0.0
      %1413 = vmatpush1.msra.mxu0 0.0
      %1414 = vmatprep.subr.mxu0 0.0
      %1415 = vmatpush1.msra.mxu0 0.0
      %1416 = vmatprep.subr.mxu0 0.0
      %1417 = vmatpush1.msra.mxu0 0.0
      %1418 = vmatprep.subr.mxu0 0.0
      %1419 = vmatpush1.msra.mxu0 0.0
      %1420 = vmatprep.subr.mxu0 0.0
      %1421 = vmatpush1.msra.mxu0 0.0
      %1422 = vmatprep.subr.mxu0 0.0
      %1423 = vmatpush1.msra.mxu0 0.0
      %1424 = vmatprep.subr.mxu0 0.0
      %1425 = vmatpush1.msra.mxu0 0.0
      %1426 = vmatprep.subr.mxu0 0.0
      %1427 = vmatpush1.msra.mxu0 0.0
      %1428 = vmatprep.subr.mxu0 0.0
      %1429 = vmatpush1.msra.mxu0 0.0
      %1430 = vmatprep.subr.mxu0 0.0
      %1431 = vmatpush1.msra.mxu0 0.0
      %1432 = vmatprep.mubr.f32.mxu0 0.0
      %1433 = vmatmul.mubr.f32.gmra.mrb[0].mxu0 %v1286
      %v1434 = vpop.f32.mrb[0].mxu0
      %v1435 = vadd.f32 0.0, %v1434
      %v1436 = vpop.f32.mrb[0].mxu0
      %1437 = vmatprep.mubr.f32.mxu0 0.0
      %1438 = vmatmul.mubr.f32.gmra.mrb[0].mxu0 %v1289
      %v1439 = vpop.f32.mrb[0].mxu0
      %v1440 = vadd.f32 0.0, %v1439
      %v1441 = vpop.f32.mrb[0].mxu0
      %1442 = vdwg.mxu0
      %v1443 = vadd.f32 %v1231, %v1358
      %v1444 = vadd.f32 %v1232, %v1360
      %v1445 = vadd.f32 %v1233, %v1435
      %v1446 = vadd.f32 %v1234, %v1364
      %v1447 = vadd.f32 %v1235, %v1366
      %v1448 = vadd.f32 %v1236, %v1440
      %s1449 = scalar_lea.vmem %s1, 64
      %v1450 = vld [vmem:[%s1449] sm:$0xff]
      %v1451 = vld [vmem:[%s1449 + $0x8] sm:$0xff]
      %1452 = vrot.lane.b32.xlu0 %v1237, 92
      %v1453 = vpop.permute.xlu0 %1452
      %1454 = vrot.lane.b32.xlu0 %v1238, 92
      %v1455 = vpop.permute.xlu0 %1454
      %1456 = vrot.lane.b32.xlu0 %v1239, 92
      %v1457 = vpop.permute.xlu0 %1456
      %1458 = vrot.lane.b32.xlu0 %v1240, 92
      %v1459 = vpop.permute.xlu0 %1458
      %1460 = vrot.lane.b32.xlu0 %v1241, 92
      %v1461 = vpop.permute.xlu0 %1460
      %1462 = vrot.lane.b32.xlu0 %v1242, 92
      %v1463 = vpop.permute.xlu0 %1462
      %1464 = vrot.lane.b32.xlu0 %v1243, 92
      %v1465 = vpop.permute.xlu0 %1464
      %1466 = vrot.lane.b32.xlu0 %v1244, 92
      %v1467 = vpop.permute.xlu0 %1466
      %vm1468 = vcmask 752640
      %v1469 = vsel %vm1468, %v1453, %v1455
      %v1470 = vsel %vm1468, %v1455, %v1457
      %v1471 = vsel %vm1468, %v1457, %v1459
      %v1472 = vsel %vm1468, %v1461, %v1463
      %v1473 = vsel %vm1468, %v1463, %v1465
      %v1474 = vsel %vm1468, %v1465, %v1467
      %v1482 = vsel %vm676, %v1450, 0
      %v1485 = vsel %vm676, %v1451, 0
      %1487 = vmatprep.subr.mxu0 %v1470
      %1488 = vmatpush1.msra.mxu0 %v1469
      %1489 = vmatprep.subr.mxu0 %v1473
      %1490 = vmatpush1.msra.mxu0 %v1472
      %1491 = vmatprep.subr.mxu0 0.0
      %1492 = vmatpush1.msra.mxu0 0.0
      %1493 = vmatprep.subr.mxu0 0.0
      %1494 = vmatpush1.msra.mxu0 0.0
      %1495 = vmatprep.subr.mxu0 0.0
      %1496 = vmatpush1.msra.mxu0 0.0
      %1497 = vmatprep.subr.mxu0 0.0
      %1498 = vmatpush1.msra.mxu0 0.0
      %1499 = vmatprep.subr.mxu0 0.0
      %1500 = vmatpush1.msra.mxu0 0.0
      %1501 = vmatprep.subr.mxu0 0.0
      %1502 = vmatpush1.msra.mxu0 0.0
      %1503 = vmatprep.subr.mxu0 0.0
      %1504 = vmatpush1.msra.mxu0 0.0
      %1505 = vmatprep.subr.mxu0 0.0
      %1506 = vmatpush1.msra.mxu0 0.0
      %1507 = vmatprep.subr.mxu0 0.0
      %1508 = vmatpush1.msra.mxu0 0.0
      %1509 = vmatprep.subr.mxu0 0.0
      %1510 = vmatpush1.msra.mxu0 0.0
      %1511 = vmatprep.subr.mxu0 0.0
      %1512 = vmatpush1.msra.mxu0 0.0
      %1513 = vmatprep.subr.mxu0 0.0
      %1514 = vmatpush1.msra.mxu0 0.0
      %1515 = vmatprep.subr.mxu0 0.0
      %1516 = vmatpush1.msra.mxu0 0.0
      %1517 = vmatprep.subr.mxu0 0.0
      %1518 = vmatpush1.msra.mxu0 0.0
      %1519 = vmatprep.subr.mxu0 0.0
      %1520 = vmatpush1.msra.mxu0 0.0
      %1521 = vmatprep.subr.mxu0 0.0
      %1522 = vmatpush1.msra.mxu0 0.0
      %1523 = vmatprep.subr.mxu0 0.0
      %1524 = vmatpush1.msra.mxu0 0.0
      %1525 = vmatprep.subr.mxu0 0.0
      %1526 = vmatpush1.msra.mxu0 0.0
      %1527 = vmatprep.subr.mxu0 0.0
      %1528 = vmatpush1.msra.mxu0 0.0
      %1529 = vmatprep.subr.mxu0 0.0
      %1530 = vmatpush1.msra.mxu0 0.0
      %1531 = vmatprep.subr.mxu0 0.0
      %1532 = vmatpush1.msra.mxu0 0.0
      %1533 = vmatprep.subr.mxu0 0.0
      %1534 = vmatpush1.msra.mxu0 0.0
      %1535 = vmatprep.subr.mxu0 0.0
      %1536 = vmatpush1.msra.mxu0 0.0
      %1537 = vmatprep.subr.mxu0 0.0
      %1538 = vmatpush1.msra.mxu0 0.0
      %1539 = vmatprep.subr.mxu0 0.0
      %1540 = vmatpush1.msra.mxu0 0.0
      %1541 = vmatprep.subr.mxu0 0.0
      %1542 = vmatpush1.msra.mxu0 0.0
      %1543 = vmatprep.subr.mxu0 0.0
      %1544 = vmatpush1.msra.mxu0 0.0
      %1545 = vmatprep.subr.mxu0 0.0
      %1546 = vmatpush1.msra.mxu0 0.0
      %1547 = vmatprep.subr.mxu0 0.0
      %1548 = vmatpush1.msra.mxu0 0.0
      %1549 = vmatprep.subr.mxu0 0.0
      %1550 = vmatpush1.msra.mxu0 0.0
      %1551 = vmatprep.mubr.f32.mxu0 0.0
      %1552 = vmatmul.mubr.f32.gmra.mrb[0].mxu0 %v1482
      %v1553 = vpop.f32.mrb[0].mxu0
      %v1554 = vadd.f32 0.0, %v1553
      %v1555 = vpop.f32.mrb[0].mxu0
      %v1556 = vadd.f32 0.0, %v1555
      %1557 = vmatprep.mubr.f32.mxu0 0.0
      %1558 = vmatmul.mubr.f32.gmra.mrb[0].mxu0 %v1485
      %v1559 = vpop.f32.mrb[0].mxu0
      %v1560 = vadd.f32 0.0, %v1559
      %v1561 = vpop.f32.mrb[0].mxu0
      %v1562 = vadd.f32 0.0, %v1561
      %1563 = vdwg.mxu0
      %1564 = vmatprep.subr.mxu0 0.0
      %1565 = vmatpush1.msra.mxu0 %v1471
      %1566 = vmatprep.subr.mxu0 0.0
      %1567 = vmatpush1.msra.mxu0 %v1474
      %1568 = vmatprep.subr.mxu0 0.0
      %1569 = vmatpush1.msra.mxu0 0.0
      %1570 = vmatprep.subr.mxu0 0.0
      %1571 = vmatpush1.msra.mxu0 0.0
      %1572 = vmatprep.subr.mxu0 0.0
      %1573 = vmatpush1.msra.mxu0 0.0
      %1574 = vmatprep.subr.mxu0 0.0
      %1575 = vmatpush1.msra.mxu0 0.0
      %1576 = vmatprep.subr.mxu0 0.0
      %1577 = vmatpush1.msra.mxu0 0.0
      %1578 = vmatprep.subr.mxu0 0.0
      %1579 = vmatpush1.msra.mxu0 0.0
      %1580 = vmatprep.subr.mxu0 0.0
      %1581 = vmatpush1.msra.mxu0 0.0
      %1582 = vmatprep.subr.mxu0 0.0
      %1583 = vmatpush1.msra.mxu0 0.0
      %1584 = vmatprep.subr.mxu0 0.0
      %1585 = vmatpush1.msra.mxu0 0.0
      %1586 = vmatprep.subr.mxu0 0.0
      %1587 = vmatpush1.msra.mxu0 0.0
      %1588 = vmatprep.subr.mxu0 0.0
      %1589 = vmatpush1.msra.mxu0 0.0
      %1590 = vmatprep.subr.mxu0 0.0
      %1591 = vmatpush1.msra.mxu0 0.0
      %1592 = vmatprep.subr.mxu0 0.0
      %1593 = vmatpush1.msra.mxu0 0.0
      %1594 = vmatprep.subr.mxu0 0.0
      %1595 = vmatpush1.msra.mxu0 0.0
      %1596 = vmatprep.subr.mxu0 0.0
      %1597 = vmatpush1.msra.mxu0 0.0
      %1598 = vmatprep.subr.mxu0 0.0
      %1599 = vmatpush1.msra.mxu0 0.0
      %1600 = vmatprep.subr.mxu0 0.0
      %1601 = vmatpush1.msra.mxu0 0.0
      %1602 = vmatprep.subr.mxu0 0.0
      %1603 = vmatpush1.msra.mxu0 0.0
      %1604 = vmatprep.subr.mxu0 0.0
      %1605 = vmatpush1.msra.mxu0 0.0
      %1606 = vmatprep.subr.mxu0 0.0
      %1607 = vmatpush1.msra.mxu0 0.0
      %1608 = vmatprep.subr.mxu0 0.0
      %1609 = vmatpush1.msra.mxu0 0.0
      %1610 = vmatprep.subr.mxu0 0.0
      %1611 = vmatpush1.msra.mxu0 0.0
      %1612 = vmatprep.subr.mxu0 0.0
      %1613 = vmatpush1.msra.mxu0 0.0
      %1614 = vmatprep.subr.mxu0 0.0
      %1615 = vmatpush1.msra.mxu0 0.0
      %1616 = vmatprep.subr.mxu0 0.0
      %1617 = vmatpush1.msra.mxu0 0.0
      %1618 = vmatprep.subr.mxu0 0.0
      %1619 = vmatpush1.msra.mxu0 0.0
      %1620 = vmatprep.subr.mxu0 0.0
      %1621 = vmatpush1.msra.mxu0 0.0
      %1622 = vmatprep.subr.mxu0 0.0
      %1623 = vmatpush1.msra.mxu0 0.0
      %1624 = vmatprep.subr.mxu0 0.0
      %1625 = vmatpush1.msra.mxu0 0.0
      %1626 = vmatprep.subr.mxu0 0.0
      %1627 = vmatpush1.msra.mxu0 0.0
      %1628 = vmatprep.mubr.f32.mxu0 0.0
      %1629 = vmatmul.mubr.f32.gmra.mrb[0].mxu0 %v1482
      %v1630 = vpop.f32.mrb[0].mxu0
      %v1631 = vadd.f32 0.0, %v1630
      %v1632 = vpop.f32.mrb[0].mxu0
      %1633 = vmatprep.mubr.f32.mxu0 0.0
      %1634 = vmatmul.mubr.f32.gmra.mrb[0].mxu0 %v1485
      %v1635 = vpop.f32.mrb[0].mxu0
      %v1636 = vadd.f32 0.0, %v1635
      %v1637 = vpop.f32.mrb[0].mxu0
      %1638 = vdwg.mxu0
      %v1639 = vadd.f32 %v1443, %v1554
      %v1640 = vadd.f32 %v1444, %v1556
      %v1641 = vadd.f32 %v1445, %v1631
      %v1642 = vadd.f32 %v1446, %v1560
      %v1643 = vadd.f32 %v1447, %v1562
      %v1644 = vadd.f32 %v1448, %v1636
      %v1645 = vmul.f32 %v1639, 0.5
      %v1646 = vmul.f32 %v1640, 0.5
      %v1647 = vmul.f32 %v1641, 0.5
      %v1648 = vmul.f32 %v1642, 0.5
      %v1649 = vmul.f32 %v1643, 0.5
      %v1650 = vmul.f32 %v1644, 0.5
      %v1651 = vmul.f32 %v1639, 0.044715
      %v1652 = vmul.f32 %v1640, 0.044715
      %v1653 = vmul.f32 %v1641, 0.044715
      %v1654 = vmul.f32 %v1642, 0.044715
      %v1655 = vmul.f32 %v1643, 0.044715
      %v1656 = vmul.f32 %v1644, 0.044715
      %v1657 = vmul.f32 %v1651, %v1639
      %v1658 = vmul.f32 %v1652, %v1640
      %v1659 = vmul.f32 %v1653, %v1641
      %v1660 = vmul.f32 %v1654, %v1642
      %v1661 = vmul.f32 %v1655, %v1643
      %v1662 = vmul.f32 %v1656, %v1644
      %v1663 = vmul.f32 %v1657, %v1639
      %v1664 = vmul.f32 %v1658, %v1640
      %v1665 = vmul.f32 %v1659, %v1641
      %v1666 = vmul.f32 %v1660, %v1642
      %v1667 = vmul.f32 %v1661, %v1643
      %v1668 = vmul.f32 %v1662, %v1644
      %v1669 = vadd.f32 %v1639, %v1663
      %v1670 = vadd.f32 %v1640, %v1664
      %v1671 = vadd.f32 %v1641, %v1665
      %v1672 = vadd.f32 %v1642, %v1666
      %v1673 = vadd.f32 %v1643, %v1667
      %v1674 = vadd.f32 %v1644, %v1668
      %v1675 = vmul.f32 %v1669, 0.7978846
      %v1676 = vmul.f32 %v1670, 0.7978846
      %v1677 = vmul.f32 %v1671, 0.7978846
      %v1678 = vmul.f32 %v1672, 0.7978846
      %v1679 = vmul.f32 %v1673, 0.7978846
      %v1680 = vmul.f32 %v1674, 0.7978846
      %v1681 = vtanh.pop %v1675
      %v1682 = vtanh.pop %v1676
      %v1683 = vtanh.pop %v1677
      %v1684 = vtanh.pop %v1678
      %v1685 = vtanh.pop %v1679
      %v1686 = vtanh.pop %v1680
      %v1687 = vadd.f32 %v1681, 1.0
      %v1688 = vadd.f32 %v1682, 1.0
      %v1689 = vadd.f32 %v1683, 1.0
      %v1690 = vadd.f32 %v1684, 1.0
      %v1691 = vadd.f32 %v1685, 1.0
      %v1692 = vadd.f32 %v1686, 1.0
      %v1693 = vmul.f32 %v1645, %v1687
      %v1694 = vmul.f32 %v1646, %v1688
      %v1695 = vmul.f32 %v1647, %v1689
      %v1696 = vmul.f32 %v1648, %v1690
      %v1697 = vmul.f32 %v1649, %v1691
      %v1698 = vmul.f32 %v1650, %v1692
      %1705 = vrot.lane.b32.xlu0 %v1693, 127
      %v1706 = vpop.permute.xlu0 %1705
      %1707 = vrot.lane.b32.xlu0 %v1694, 127
      %v1708 = vpop.permute.xlu0 %1707
      %1709 = vrot.lane.b32.xlu0 %v1695, 127
      %v1710 = vpop.permute.xlu0 %1709
      %1711 = vrot.lane.b32.xlu0 %v1696, 127
      %v1712 = vpop.permute.xlu0 %1711
      %1713 = vrot.lane.b32.xlu0 %v1697, 127
      %v1714 = vpop.permute.xlu0 %1713
      %1715 = vrot.lane.b32.xlu0 %v1698, 127
      %v1716 = vpop.permute.xlu0 %1715
      %vm1717 = vcmask 1039360
      %v1718 = vsel %vm1717, %v1706, %v1708
      %v1719 = vsel %vm1717, %v1708, %v1710
      %v1720 = vsel %vm1717, %v1712, %v1714
      %v1721 = vsel %vm1717, %v1714, %v1716
      %v1728 = vmax.f32 %v1693, %v1718
      %v1729 = vmax.f32 %v1694, %v1719
      %v1730 = vmax.f32 %v1695, %v1710
      %v1731 = vmax.f32 %v1696, %v1720
      %v1732 = vmax.f32 %v1697, %v1721
      %v1733 = vmax.f32 %v1698, %v1716
      %1734 = vrot.lane.b32.xlu0 %v1693, 126
      %v1735 = vpop.permute.xlu0 %1734
      %1736 = vrot.lane.b32.xlu0 %v1694, 126
      %v1737 = vpop.permute.xlu0 %1736
      %1738 = vrot.lane.b32.xlu0 %v1695, 126
      %v1739 = vpop.permute.xlu0 %1738
      %1740 = vrot.lane.b32.xlu0 %v1696, 126
      %v1741 = vpop.permute.xlu0 %1740
      %1742 = vrot.lane.b32.xlu0 %v1697, 126
      %v1743 = vpop.permute.xlu0 %1742
      %1744 = vrot.lane.b32.xlu0 %v1698, 126
      %v1745 = vpop.permute.xlu0 %1744
      %vm1746 = vcmask 1031168
      %v1747 = vsel %vm1746, %v1735, %v1737
      %v1748 = vsel %vm1746, %v1737, %v1739
      %v1749 = vsel %vm1746, %v1741, %v1743
      %v1750 = vsel %vm1746, %v1743, %v1745
      %v1757 = vmax.f32 %v1728, %v1747
      %v1758 = vmax.f32 %v1729, %v1748
      %v1759 = vmax.f32 %v1730, %v1739
      %v1760 = vmax.f32 %v1731, %v1749
      %v1761 = vmax.f32 %v1732, %v1750
      %v1762 = vmax.f32 %v1733, %v1745
      %1763 = vrot.lane.b32.xlu0 %v1693, 125
      %v1764 = vpop.permute.xlu0 %1763
      %1765 = vrot.lane.b32.xlu0 %v1694, 125
      %v1766 = vpop.permute.xlu0 %1765
      %1767 = vrot.lane.b32.xlu0 %v1695, 125
      %v1768 = vpop.permute.xlu0 %1767
      %1769 = vrot.lane.b32.xlu0 %v1696, 125
      %v1770 = vpop.permute.xlu0 %1769
      %1771 = vrot.lane.b32.xlu0 %v1697, 125
      %v1772 = vpop.permute.xlu0 %1771
      %1773 = vrot.lane.b32.xlu0 %v1698, 125
      %v1774 = vpop.permute.xlu0 %1773
      %vm1775 = vcmask 1022976
      %v1776 = vsel %vm1775, %v1764, %v1766
      %v1777 = vsel %vm1775, %v1766, %v1768
      %v1778 = vsel %vm1775, %v1770, %v1772
      %v1779 = vsel %vm1775, %v1772, %v1774
      %v1786 = vmax.f32 %v1757, %v1776
      %v1787 = vmax.f32 %v1758, %v1777
      %v1788 = vmax.f32 %v1759, %v1768
      %v1789 = vmax.f32 %v1760, %v1778
      %v1790 = vmax.f32 %v1761, %v1779
      %v1791 = vmax.f32 %v1762, %v1774
      %1792 = vrot.lane.b32.xlu0 %v1693, 124
      %v1793 = vpop.permute.xlu0 %1792
      %1794 = vrot.lane.b32.xlu0 %v1694, 124
      %v1795 = vpop.permute.xlu0 %1794
      %1796 = vrot.lane.b32.xlu0 %v1695, 124
      %v1797 = vpop.permute.xlu0 %1796
      %1798 = vrot.lane.b32.xlu0 %v1696, 124
      %v1799 = vpop.permute.xlu0 %1798
      %1800 = vrot.lane.b32.xlu0 %v1697, 124
      %v1801 = vpop.permute.xlu0 %1800
      %1802 = vrot.lane.b32.xlu0 %v1698, 124
      %v1803 = vpop.permute.xlu0 %1802
      %vm1804 = vcmask 1014784
      %v1805 = vsel %vm1804, %v1793, %v1795
      %v1806 = vsel %vm1804, %v1795, %v1797
      %v1807 = vsel %vm1804, %v1799, %v1801
      %v1808 = vsel %vm1804, %v1801, %v1803
      %v1815 = vmax.f32 %v1786, %v1805
      %v1816 = vmax.f32 %v1787, %v1806
      %v1817 = vmax.f32 %v1788, %v1797
      %v1818 = vmax.f32 %v1789, %v1807
      %v1819 = vmax.f32 %v1790, %v1808
      %v1820 = vmax.f32 %v1791, %v1803
      %vm1821 = vcmask 850944
      %v1823 = vsel %vm1821, %v1817, 0
      %v1826 = vsel %vm1821, %v1820, 0
      %1828 = vmatprep.subr.mxu0 0.0
      %1829 = vmatpush1.msra.mxu0 %v543
      %1830 = vmatprep.subr.mxu0 0.0
      %1831 = vmatpush1.msra.mxu0 %v544
      %1832 = vmatprep.subr.mxu0 0.0
      %1833 = vmatpush1.msra.mxu0 %v545
      %1834 = vmatprep.subr.mxu0 0.0
      %1835 = vmatpush1.msra.mxu0 %v546
      %1836 = vmatprep.subr.mxu0 0.0
      %1837 = vmatpush1.msra.mxu0 %v547
      %1838 = vmatprep.subr.mxu0 0.0
      %1839 = vmatpush1.msra.mxu0 %v548
      %1840 = vmatprep.subr.mxu0 0.0
      %1841 = vmatpush1.msra.mxu0 %v549
      %1842 = vmatprep.subr.mxu0 0.0
      %1843 = vmatpush1.msra.mxu0 %v550
      %1844 = vmatprep.subr.mxu0 0.0
      %1845 = vmatpush1.msra.mxu0 %v551
      %1846 = vmatprep.subr.mxu0 0.0
      %1847 = vmatpush1.msra.mxu0 %v552
      %1848 = vmatprep.subr.mxu0 0.0
      %1849 = vmatpush1.msra.mxu0 %v553
      %1850 = vmatprep.subr.mxu0 0.0
      %1851 = vmatpush1.msra.mxu0 %v554
      %1852 = vmatprep.subr.mxu0 0.0
      %1853 = vmatpush1.msra.mxu0 %v555
      %1854 = vmatprep.subr.mxu0 0.0
      %1855 = vmatpush1.msra.mxu0 %v556
      %1856 = vmatprep.subr.mxu0 0.0
      %1857 = vmatpush1.msra.mxu0 %v557
      %1858 = vmatprep.subr.mxu0 0.0
      %1859 = vmatpush1.msra.mxu0 %v558
      %1860 = vmatprep.subr.mxu0 0.0
      %1861 = vmatpush1.msra.mxu0 %v559
      %1862 = vmatprep.subr.mxu0 0.0
      %1863 = vmatpush1.msra.mxu0 %v560
      %1864 = vmatprep.subr.mxu0 0.0
      %1865 = vmatpush1.msra.mxu0 %v561
      %1866 = vmatprep.subr.mxu0 0.0
      %1867 = vmatpush1.msra.mxu0 %v562
      %1868 = vmatprep.subr.mxu0 0.0
      %1869 = vmatpush1.msra.mxu0 %v563
      %1870 = vmatprep.subr.mxu0 0.0
      %1871 = vmatpush1.msra.mxu0 %v564
      %1872 = vmatprep.subr.mxu0 0.0
      %1873 = vmatpush1.msra.mxu0 %v565
      %1874 = vmatprep.subr.mxu0 0.0
      %1875 = vmatpush1.msra.mxu0 %v566
      %1876 = vmatprep.subr.mxu0 0.0
      %1877 = vmatpush1.msra.mxu0 %v567
      %1878 = vmatprep.subr.mxu0 0.0
      %1879 = vmatpush1.msra.mxu0 %v568
      %1880 = vmatprep.subr.mxu0 0.0
      %1881 = vmatpush1.msra.mxu0 %v569
      %1882 = vmatprep.subr.mxu0 0.0
      %1883 = vmatpush1.msra.mxu0 %v570
      %1884 = vmatprep.subr.mxu0 0.0
      %1885 = vmatpush1.msra.mxu0 %v571
      %1886 = vmatprep.subr.mxu0 0.0
      %1887 = vmatpush1.msra.mxu0 %v572
      %1888 = vmatprep.subr.mxu0 0.0
      %1889 = vmatpush1.msra.mxu0 %v573
      %1890 = vmatprep.subr.mxu0 0.0
      %1891 = vmatpush1.msra.mxu0 %v574
      %1892 = vmatprep.mubr.f32.mxu0 %v1816
      %1893 = vmatmul.mubr.f32.gmra.mrb[0].mxu0 %v1815
      %v1894 = vpop.f32.mrb[0].mxu0
      %v1895 = vadd.f32 0.0, %v1894
      %v1896 = vpop.f32.mrb[0].mxu0
      %1897 = vmatprep.mubr.f32.mxu0 %v1819
      %1898 = vmatmul.mubr.f32.gmra.mrb[0].mxu0 %v1818
      %v1899 = vpop.f32.mrb[0].mxu0
      %v1900 = vadd.f32 0.0, %v1899
      %v1901 = vpop.f32.mrb[0].mxu0
      %1902 = vdwg.mxu0
      %1903 = vmatprep.subr.mxu0 0.0
      %1904 = vmatpush1.msra.mxu0 %v575
      %1905 = vmatprep.subr.mxu0 0.0
      %1906 = vmatpush1.msra.mxu0 %v576
      %1907 = vmatprep.subr.mxu0 0.0
      %1908 = vmatpush1.msra.mxu0 %v577
      %1909 = vmatprep.subr.mxu0 0.0
      %1910 = vmatpush1.msra.mxu0 %v578
      %1911 = vmatprep.subr.mxu0 0.0
      %1912 = vmatpush1.msra.mxu0 %v579
      %1913 = vmatprep.subr.mxu0 0.0
      %1914 = vmatpush1.msra.mxu0 %v580
      %1915 = vmatprep.subr.mxu0 0.0
      %1916 = vmatpush1.msra.mxu0 %v581
      %1917 = vmatprep.subr.mxu0 0.0
      %1918 = vmatpush1.msra.mxu0 %v582
      %1919 = vmatprep.subr.mxu0 0.0
      %1920 = vmatpush1.msra.mxu0 %v583
      %1921 = vmatprep.subr.mxu0 0.0
      %1922 = vmatpush1.msra.mxu0 %v584
      %1923 = vmatprep.subr.mxu0 0.0
      %1924 = vmatpush1.msra.mxu0 %v585
      %1925 = vmatprep.subr.mxu0 0.0
      %1926 = vmatpush1.msra.mxu0 %v586
      %1927 = vmatprep.subr.mxu0 0.0
      %1928 = vmatpush1.msra.mxu0 %v587
      %1929 = vmatprep.subr.mxu0 0.0
      %1930 = vmatpush1.msra.mxu0 0.0
      %1931 = vmatprep.subr.mxu0 0.0
      %1932 = vmatpush1.msra.mxu0 0.0
      %1933 = vmatprep.subr.mxu0 0.0
      %1934 = vmatpush1.msra.mxu0 0.0
      %1935 = vmatprep.subr.mxu0 0.0
      %1936 = vmatpush1.msra.mxu0 0.0
      %1937 = vmatprep.subr.mxu0 0.0
      %1938 = vmatpush1.msra.mxu0 0.0
      %1939 = vmatprep.subr.mxu0 0.0
      %1940 = vmatpush1.msra.mxu0 0.0
      %1941 = vmatprep.subr.mxu0 0.0
      %1942 = vmatpush1.msra.mxu0 0.0
      %1943 = vmatprep.subr.mxu0 0.0
      %1944 = vmatpush1.msra.mxu0 0.0
      %1945 = vmatprep.subr.mxu0 0.0
      %1946 = vmatpush1.msra.mxu0 0.0
      %1947 = vmatprep.subr.mxu0 0.0
      %1948 = vmatpush1.msra.mxu0 0.0
      %1949 = vmatprep.subr.mxu0 0.0
      %1950 = vmatpush1.msra.mxu0 0.0
      %1951 = vmatprep.subr.mxu0 0.0
      %1952 = vmatpush1.msra.mxu0 0.0
      %1953 = vmatprep.subr.mxu0 0.0
      %1954 = vmatpush1.msra.mxu0 0.0
      %1955 = vmatprep.subr.mxu0 0.0
      %1956 = vmatpush1.msra.mxu0 0.0
      %1957 = vmatprep.subr.mxu0 0.0
      %1958 = vmatpush1.msra.mxu0 0.0
      %1959 = vmatprep.subr.mxu0 0.0
      %1960 = vmatpush1.msra.mxu0 0.0
      %1961 = vmatprep.subr.mxu0 0.0
      %1962 = vmatpush1.msra.mxu0 0.0
      %1963 = vmatprep.subr.mxu0 0.0
      %1964 = vmatpush1.msra.mxu0 0.0
      %1965 = vmatprep.subr.mxu0 0.0
      %1966 = vmatpush1.msra.mxu0 0.0
      %1967 = vmatprep.mubr.f32.mxu0 0.0
      %1968 = vmatmul.mubr.f32.gmra.mrb[0].mxu0 %v1823
      %v1969 = vpop.f32.mrb[0].mxu0
      %v1970 = vadd.f32 %v1895, %v1969
      %v1971 = vpop.f32.mrb[0].mxu0
      %1972 = vmatprep.mubr.f32.mxu0 0.0
      %1973 = vmatmul.mubr.f32.gmra.mrb[0].mxu0 %v1826
      %v1974 = vpop.f32.mrb[0].mxu0
      %v1975 = vadd.f32 %v1900, %v1974
      %v1976 = vpop.f32.mrb[0].mxu0
      %1977 = vdwg.mxu0
      %s1978 = scalar_lea.vmem %s2, 16
      %v1979 = vld [vmem:[%s1978] sm:$0xff]
      %v1980 = vld [vmem:[%s1978 + $0x8] sm:$0xff]
      %s1981 = scalar_lea.vmem %s1, 80
      %v1982 = vld [vmem:[%s1981] sm:$0xff]
      %v1983 = vld [vmem:[%s1981 + $0x8] sm:$0xff]
      %v1985 = vsel %vm676, %v1982, 0
      %v1988 = vsel %vm676, %v1983, 0
      %1990 = vmatprep.subr.mxu0 0.0
      %1991 = vmatpush1.msra.mxu0 %v1970
      %1992 = vmatprep.subr.mxu0 0.0
      %1993 = vmatpush1.msra.mxu0 %v1975
      %1994 = vmatprep.subr.mxu0 0.0
      %1995 = vmatpush1.msra.mxu0 0.0
      %1996 = vmatprep.subr.mxu0 0.0
      %1997 = vmatpush1.msra.mxu0 0.0
      %1998 = vmatprep.subr.mxu0 0.0
      %1999 = vmatpush1.msra.mxu0 0.0
      %2000 = vmatprep.subr.mxu0 0.0
      %2001 = vmatpush1.msra.mxu0 0.0
      %2002 = vmatprep.subr.mxu0 0.0
      %2003 = vmatpush1.msra.mxu0 0.0
      %2004 = vmatprep.subr.mxu0 0.0
      %2005 = vmatpush1.msra.mxu0 0.0
      %2006 = vmatprep.subr.mxu0 0.0
      %2007 = vmatpush1.msra.mxu0 0.0
      %2008 = vmatprep.subr.mxu0 0.0
      %2009 = vmatpush1.msra.mxu0 0.0
      %2010 = vmatprep.subr.mxu0 0.0
      %2011 = vmatpush1.msra.mxu0 0.0
      %2012 = vmatprep.subr.mxu0 0.0
      %2013 = vmatpush1.msra.mxu0 0.0
      %2014 = vmatprep.subr.mxu0 0.0
      %2015 = vmatpush1.msra.mxu0 0.0
      %2016 = vmatprep.subr.mxu0 0.0
      %2017 = vmatpush1.msra.mxu0 0.0
      %2018 = vmatprep.subr.mxu0 0.0
      %2019 = vmatpush1.msra.mxu0 0.0
      %2020 = vmatprep.subr.mxu0 0.0
      %2021 = vmatpush1.msra.mxu0 0.0
      %2022 = vmatprep.subr.mxu0 0.0
      %2023 = vmatpush1.msra.mxu0 0.0
      %2024 = vmatprep.subr.mxu0 0.0
      %2025 = vmatpush1.msra.mxu0 0.0
      %2026 = vmatprep.subr.mxu0 0.0
      %2027 = vmatpush1.msra.mxu0 0.0
      %2028 = vmatprep.subr.mxu0 0.0
      %2029 = vmatpush1.msra.mxu0 0.0
      %2030 = vmatprep.subr.mxu0 0.0
      %2031 = vmatpush1.msra.mxu0 0.0
      %2032 = vmatprep.subr.mxu0 0.0
      %2033 = vmatpush1.msra.mxu0 0.0
      %2034 = vmatprep.subr.mxu0 0.0
      %2035 = vmatpush1.msra.mxu0 0.0
      %2036 = vmatprep.subr.mxu0 0.0
      %2037 = vmatpush1.msra.mxu0 0.0
      %2038 = vmatprep.subr.mxu0 0.0
      %2039 = vmatpush1.msra.mxu0 0.0
      %2040 = vmatprep.subr.mxu0 0.0
      %2041 = vmatpush1.msra.mxu0 0.0
      %2042 = vmatprep.subr.mxu0 0.0
      %2043 = vmatpush1.msra.mxu0 0.0
      %2044 = vmatprep.subr.mxu0 0.0
      %2045 = vmatpush1.msra.mxu0 0.0
      %2046 = vmatprep.subr.mxu0 0.0
      %2047 = vmatpush1.msra.mxu0 0.0
      %2048 = vmatprep.subr.mxu0 0.0
      %2049 = vmatpush1.msra.mxu0 0.0
      %2050 = vmatprep.subr.mxu0 0.0
      %2051 = vmatpush1.msra.mxu0 0.0
      %2052 = vmatprep.subr.mxu0 0.0
      %2053 = vmatpush1.msra.mxu0 0.0
      %2054 = vmatprep.mubr.f32.mxu0 0.0
      %2055 = vmatmul.mubr.f32.gmra.mrb[0].mxu0 %v1985
      %v2056 = vpop.f32.mrb[0].mxu0
      %v2057 = vadd.f32 0.0, %v2056
      %v2058 = vpop.f32.mrb[0].mxu0
      %2059 = vmatprep.mubr.f32.mxu0 0.0
      %2060 = vmatmul.mubr.f32.gmra.mrb[0].mxu0 %v1988
      %v2061 = vpop.f32.mrb[0].mxu0
      %v2062 = vadd.f32 0.0, %v2061
      %v2063 = vpop.f32.mrb[0].mxu0
      %2064 = vdwg.mxu0
      %2066 = vset.pattern.permute.xlu0 0
      %2067 = vperm.xlu0 %2066, %v1979
      %v2068 = vpop.permute.xlu0 %2067
      %2071 = vset.pattern.permute.xlu0 0
      %2072 = vperm.xlu0 %2071, %v1980
      %v2073 = vpop.permute.xlu0 %2072
      %v2075 = vadd.f32 %v2068, %v2057
      %v2076 = vadd.f32 %v2073, %v2062
      %s2077 = scalar_lea.vmem %s1, 96
      %v2078 = vld [vmem:[%s2077] sm:$0xff]
      %v2079 = vld [vmem:[%s2077 + $0x8] sm:$0xff]
      %2082 = vrot.lane.b32.xlu0 %v1970, 119
      %v2083 = vpop.permute.xlu0 %2082
      %2084 = vrot.lane.b32.xlu0 %v1975, 119
      %v2085 = vpop.permute.xlu0 %2084
      %v2089 = vsel %vm676, %v2078, 0
      %v2092 = vsel %vm676, %v2079, 0
      %2094 = vmatprep.subr.mxu0 0.0
      %2095 = vmatpush1.msra.mxu0 %v2083
      %2096 = vmatprep.subr.mxu0 0.0
      %2097 = vmatpush1.msra.mxu0 %v2085
      %2098 = vmatprep.subr.mxu0 0.0
      %2099 = vmatpush1.msra.mxu0 0.0
      %2100 = vmatprep.subr.mxu0 0.0
      %2101 = vmatpush1.msra.mxu0 0.0
      %2102 = vmatprep.subr.mxu0 0.0
      %2103 = vmatpush1.msra.mxu0 0.0
      %2104 = vmatprep.subr.mxu0 0.0
      %2105 = vmatpush1.msra.mxu0 0.0
      %2106 = vmatprep.subr.mxu0 0.0
      %2107 = vmatpush1.msra.mxu0 0.0
      %2108 = vmatprep.subr.mxu0 0.0
      %2109 = vmatpush1.msra.mxu0 0.0
      %2110 = vmatprep.subr.mxu0 0.0
      %2111 = vmatpush1.msra.mxu0 0.0
      %2112 = vmatprep.subr.mxu0 0.0
      %2113 = vmatpush1.msra.mxu0 0.0
      %2114 = vmatprep.subr.mxu0 0.0
      %2115 = vmatpush1.msra.mxu0 0.0
      %2116 = vmatprep.subr.mxu0 0.0
      %2117 = vmatpush1.msra.mxu0 0.0
      %2118 = vmatprep.subr.mxu0 0.0
      %2119 = vmatpush1.msra.mxu0 0.0
      %2120 = vmatprep.subr.mxu0 0.0
      %2121 = vmatpush1.msra.mxu0 0.0
      %2122 = vmatprep.subr.mxu0 0.0
      %2123 = vmatpush1.msra.mxu0 0.0
      %2124 = vmatprep.subr.mxu0 0.0
      %2125 = vmatpush1.msra.mxu0 0.0
      %2126 = vmatprep.subr.mxu0 0.0
      %2127 = vmatpush1.msra.mxu0 0.0
      %2128 = vmatprep.subr.mxu0 0.0
      %2129 = vmatpush1.msra.mxu0 0.0
      %2130 = vmatprep.subr.mxu0 0.0
      %2131 = vmatpush1.msra.mxu0 0.0
      %2132 = vmatprep.subr.mxu0 0.0
      %2133 = vmatpush1.msra.mxu0 0.0
      %2134 = vmatprep.subr.mxu0 0.0
      %2135 = vmatpush1.msra.mxu0 0.0
      %2136 = vmatprep.subr.mxu0 0.0
      %2137 = vmatpush1.msra.mxu0 0.0
      %2138 = vmatprep.subr.mxu0 0.0
      %2139 = vmatpush1.msra.mxu0 0.0
      %2140 = vmatprep.subr.mxu0 0.0
      %2141 = vmatpush1.msra.mxu0 0.0
      %2142 = vmatprep.subr.mxu0 0.0
      %2143 = vmatpush1.msra.mxu0 0.0
      %2144 = vmatprep.subr.mxu0 0.0
      %2145 = vmatpush1.msra.mxu0 0.0
      %2146 = vmatprep.subr.mxu0 0.0
      %2147 = vmatpush1.msra.mxu0 0.0
      %2148 = vmatprep.subr.mxu0 0.0
      %2149 = vmatpush1.msra.mxu0 0.0
      %2150 = vmatprep.subr.mxu0 0.0
      %2151 = vmatpush1.msra.mxu0 0.0
      %2152 = vmatprep.subr.mxu0 0.0
      %2153 = vmatpush1.msra.mxu0 0.0
      %2154 = vmatprep.subr.mxu0 0.0
      %2155 = vmatpush1.msra.mxu0 0.0
      %2156 = vmatprep.subr.mxu0 0.0
      %2157 = vmatpush1.msra.mxu0 0.0
      %2158 = vmatprep.mubr.f32.mxu0 0.0
      %2159 = vmatmul.mubr.f32.gmra.mrb[0].mxu0 %v2089
      %v2160 = vpop.f32.mrb[0].mxu0
      %v2161 = vadd.f32 0.0, %v2160
      %v2162 = vpop.f32.mrb[0].mxu0
      %2163 = vmatprep.mubr.f32.mxu0 0.0
      %2164 = vmatmul.mubr.f32.gmra.mrb[0].mxu0 %v2092
      %v2165 = vpop.f32.mrb[0].mxu0
      %v2166 = vadd.f32 0.0, %v2165
      %v2167 = vpop.f32.mrb[0].mxu0
      %2168 = vdwg.mxu0
      %v2169 = vadd.f32 %v2075, %v2161
      %v2170 = vadd.f32 %v2076, %v2166
      %s2171 = scalar_lea.vmem %s1, 112
      %v2172 = vld [vmem:[%s2171] sm:$0xff]
      %v2173 = vld [vmem:[%s2171 + $0x8] sm:$0xff]
      %2174 = vrot.lane.b32.xlu0 %v1970, 110
      %v2175 = vpop.permute.xlu0 %2174
      %2176 = vrot.lane.b32.xlu0 %v1975, 110
      %v2177 = vpop.permute.xlu0 %2176
      %v2181 = vsel %vm676, %v2172, 0
      %v2184 = vsel %vm676, %v2173, 0
      %2186 = vmatprep.subr.mxu0 0.0
      %2187 = vmatpush1.msra.mxu0 %v2175
      %2188 = vmatprep.subr.mxu0 0.0
      %2189 = vmatpush1.msra.mxu0 %v2177
      %2190 = vmatprep.subr.mxu0 0.0
      %2191 = vmatpush1.msra.mxu0 0.0
      %2192 = vmatprep.subr.mxu0 0.0
      %2193 = vmatpush1.msra.mxu0 0.0
      %2194 = vmatprep.subr.mxu0 0.0
      %2195 = vmatpush1.msra.mxu0 0.0
      %2196 = vmatprep.subr.mxu0 0.0
      %2197 = vmatpush1.msra.mxu0 0.0
      %2198 = vmatprep.subr.mxu0 0.0
      %2199 = vmatpush1.msra.mxu0 0.0
      %2200 = vmatprep.subr.mxu0 0.0
      %2201 = vmatpush1.msra.mxu0 0.0
      %2202 = vmatprep.subr.mxu0 0.0
      %2203 = vmatpush1.msra.mxu0 0.0
      %2204 = vmatprep.subr.mxu0 0.0
      %2205 = vmatpush1.msra.mxu0 0.0
      %2206 = vmatprep.subr.mxu0 0.0
      %2207 = vmatpush1.msra.mxu0 0.0
      %2208 = vmatprep.subr.mxu0 0.0
      %2209 = vmatpush1.msra.mxu0 0.0
      %2210 = vmatprep.subr.mxu0 0.0
      %2211 = vmatpush1.msra.mxu0 0.0
      %2212 = vmatprep.subr.mxu0 0.0
      %2213 = vmatpush1.msra.mxu0 0.0
      %2214 = vmatprep.subr.mxu0 0.0
      %2215 = vmatpush1.msra.mxu0 0.0
      %2216 = vmatprep.subr.mxu0 0.0
      %2217 = vmatpush1.msra.mxu0 0.0
      %2218 = vmatprep.subr.mxu0 0.0
      %2219 = vmatpush1.msra.mxu0 0.0
      %2220 = vmatprep.subr.mxu0 0.0
      %2221 = vmatpush1.msra.mxu0 0.0
      %2222 = vmatprep.subr.mxu0 0.0
      %2223 = vmatpush1.msra.mxu0 0.0
      %2224 = vmatprep.subr.mxu0 0.0
      %2225 = vmatpush1.msra.mxu0 0.0
      %2226 = vmatprep.subr.mxu0 0.0
      %2227 = vmatpush1.msra.mxu0 0.0
      %2228 = vmatprep.subr.mxu0 0.0
      %2229 = vmatpush1.msra.mxu0 0.0
      %2230 = vmatprep.subr.mxu0 0.0
      %2231 = vmatpush1.msra.mxu0 0.0
      %2232 = vmatprep.subr.mxu0 0.0
      %2233 = vmatpush1.msra.mxu0 0.0
      %2234 = vmatprep.subr.mxu0 0.0
      %2235 = vmatpush1.msra.mxu0 0.0
      %2236 = vmatprep.subr.mxu0 0.0
      %2237 = vmatpush1.msra.mxu0 0.0
      %2238 = vmatprep.subr.mxu0 0.0
      %2239 = vmatpush1.msra.mxu0 0.0
      %2240 = vmatprep.subr.mxu0 0.0
      %2241 = vmatpush1.msra.mxu0 0.0
      %2242 = vmatprep.subr.mxu0 0.0
      %2243 = vmatpush1.msra.mxu0 0.0
      %2244 = vmatprep.subr.mxu0 0.0
      %2245 = vmatpush1.msra.mxu0 0.0
      %2246 = vmatprep.subr.mxu0 0.0
      %2247 = vmatpush1.msra.mxu0 0.0
      %2248 = vmatprep.subr.mxu0 0.0
      %2249 = vmatpush1.msra.mxu0 0.0
      %2250 = vmatprep.mubr.f32.mxu0 0.0
      %2251 = vmatmul.mubr.f32.gmra.mrb[0].mxu0 %v2181
      %v2252 = vpop.f32.mrb[0].mxu0
      %v2253 = vadd.f32 0.0, %v2252
      %v2254 = vpop.f32.mrb[0].mxu0
      %2255 = vmatprep.mubr.f32.mxu0 0.0
      %2256 = vmatmul.mubr.f32.gmra.mrb[0].mxu0 %v2184
      %v2257 = vpop.f32.mrb[0].mxu0
      %v2258 = vadd.f32 0.0, %v2257
      %v2259 = vpop.f32.mrb[0].mxu0
      %2260 = vdwg.mxu0
      %v2261 = vadd.f32 %v2169, %v2253
      %v2262 = vadd.f32 %v2170, %v2258
      %s2263 = scalar_lea.vmem %s1, 128
      %v2264 = vld [vmem:[%s2263] sm:$0xff]
      %v2265 = vld [vmem:[%s2263 + $0x8] sm:$0xff]
      %2266 = vrot.lane.b32.xlu0 %v1970, 101
      %v2267 = vpop.permute.xlu0 %2266
      %2268 = vrot.lane.b32.xlu0 %v1975, 101
      %v2269 = vpop.permute.xlu0 %2268
      %v2273 = vsel %vm676, %v2264, 0
      %v2276 = vsel %vm676, %v2265, 0
      %2278 = vmatprep.subr.mxu0 0.0
      %2279 = vmatpush1.msra.mxu0 %v2267
      %2280 = vmatprep.subr.mxu0 0.0
      %2281 = vmatpush1.msra.mxu0 %v2269
      %2282 = vmatprep.subr.mxu0 0.0
      %2283 = vmatpush1.msra.mxu0 0.0
      %2284 = vmatprep.subr.mxu0 0.0
      %2285 = vmatpush1.msra.mxu0 0.0
      %2286 = vmatprep.subr.mxu0 0.0
      %2287 = vmatpush1.msra.mxu0 0.0
      %2288 = vmatprep.subr.mxu0 0.0
      %2289 = vmatpush1.msra.mxu0 0.0
      %2290 = vmatprep.subr.mxu0 0.0
      %2291 = vmatpush1.msra.mxu0 0.0
      %2292 = vmatprep.subr.mxu0 0.0
      %2293 = vmatpush1.msra.mxu0 0.0
      %2294 = vmatprep.subr.mxu0 0.0
      %2295 = vmatpush1.msra.mxu0 0.0
      %2296 = vmatprep.subr.mxu0 0.0
      %2297 = vmatpush1.msra.mxu0 0.0
      %2298 = vmatprep.subr.mxu0 0.0
      %2299 = vmatpush1.msra.mxu0 0.0
      %2300 = vmatprep.subr.mxu0 0.0
      %2301 = vmatpush1.msra.mxu0 0.0
      %2302 = vmatprep.subr.mxu0 0.0
      %2303 = vmatpush1.msra.mxu0 0.0
      %2304 = vmatprep.subr.mxu0 0.0
      %2305 = vmatpush1.msra.mxu0 0.0
      %2306 = vmatprep.subr.mxu0 0.0
      %2307 = vmatpush1.msra.mxu0 0.0
      %2308 = vmatprep.subr.mxu0 0.0
      %2309 = vmatpush1.msra.mxu0 0.0
      %2310 = vmatprep.subr.mxu0 0.0
      %2311 = vmatpush1.msra.mxu0 0.0
      %2312 = vmatprep.subr.mxu0 0.0
      %2313 = vmatpush1.msra.mxu0 0.0
      %2314 = vmatprep.subr.mxu0 0.0
      %2315 = vmatpush1.msra.mxu0 0.0
      %2316 = vmatprep.subr.mxu0 0.0
      %2317 = vmatpush1.msra.mxu0 0.0
      %2318 = vmatprep.subr.mxu0 0.0
      %2319 = vmatpush1.msra.mxu0 0.0
      %2320 = vmatprep.subr.mxu0 0.0
      %2321 = vmatpush1.msra.mxu0 0.0
      %2322 = vmatprep.subr.mxu0 0.0
      %2323 = vmatpush1.msra.mxu0 0.0
      %2324 = vmatprep.subr.mxu0 0.0
      %2325 = vmatpush1.msra.mxu0 0.0
      %2326 = vmatprep.subr.mxu0 0.0
      %2327 = vmatpush1.msra.mxu0 0.0
      %2328 = vmatprep.subr.mxu0 0.0
      %2329 = vmatpush1.msra.mxu0 0.0
      %2330 = vmatprep.subr.mxu0 0.0
      %2331 = vmatpush1.msra.mxu0 0.0
      %2332 = vmatprep.subr.mxu0 0.0
      %2333 = vmatpush1.msra.mxu0 0.0
      %2334 = vmatprep.subr.mxu0 0.0
      %2335 = vmatpush1.msra.mxu0 0.0
      %2336 = vmatprep.subr.mxu0 0.0
      %2337 = vmatpush1.msra.mxu0 0.0
      %2338 = vmatprep.subr.mxu0 0.0
      %2339 = vmatpush1.msra.mxu0 0.0
      %2340 = vmatprep.subr.mxu0 0.0
      %2341 = vmatpush1.msra.mxu0 0.0
      %2342 = vmatprep.mubr.f32.mxu0 0.0
      %2343 = vmatmul.mubr.f32.gmra.mrb[0].mxu0 %v2273
      %v2344 = vpop.f32.mrb[0].mxu0
      %v2345 = vadd.f32 0.0, %v2344
      %v2346 = vpop.f32.mrb[0].mxu0
      %2347 = vmatprep.mubr.f32.mxu0 0.0
      %2348 = vmatmul.mubr.f32.gmra.mrb[0].mxu0 %v2276
      %v2349 = vpop.f32.mrb[0].mxu0
      %v2350 = vadd.f32 0.0, %v2349
      %v2351 = vpop.f32.mrb[0].mxu0
      %2352 = vdwg.mxu0
      %v2353 = vadd.f32 %v2261, %v2345
      %v2354 = vadd.f32 %v2262, %v2350
      %s2355 = scalar_lea.vmem %s1, 144
      %v2356 = vld [vmem:[%s2355] sm:$0xff]
      %v2357 = vld [vmem:[%s2355 + $0x8] sm:$0xff]
      %2358 = vrot.lane.b32.xlu0 %v1970, 92
      %v2359 = vpop.permute.xlu0 %2358
      %2360 = vrot.lane.b32.xlu0 %v1975, 92
      %v2361 = vpop.permute.xlu0 %2360
      %v2365 = vsel %vm676, %v2356, 0
      %v2368 = vsel %vm676, %v2357, 0
      %2370 = vmatprep.subr.mxu0 0.0
      %2371 = vmatpush1.msra.mxu0 %v2359
      %2372 = vmatprep.subr.mxu0 0.0
      %2373 = vmatpush1.msra.mxu0 %v2361
      %2374 = vmatprep.subr.mxu0 0.0
      %2375 = vmatpush1.msra.mxu0 0.0
      %2376 = vmatprep.subr.mxu0 0.0
      %2377 = vmatpush1.msra.mxu0 0.0
      %2378 = vmatprep.subr.mxu0 0.0
      %2379 = vmatpush1.msra.mxu0 0.0
      %2380 = vmatprep.subr.mxu0 0.0
      %2381 = vmatpush1.msra.mxu0 0.0
      %2382 = vmatprep.subr.mxu0 0.0
      %2383 = vmatpush1.msra.mxu0 0.0
      %2384 = vmatprep.subr.mxu0 0.0
      %2385 = vmatpush1.msra.mxu0 0.0
      %2386 = vmatprep.subr.mxu0 0.0
      %2387 = vmatpush1.msra.mxu0 0.0
      %2388 = vmatprep.subr.mxu0 0.0
      %2389 = vmatpush1.msra.mxu0 0.0
      %2390 = vmatprep.subr.mxu0 0.0
      %2391 = vmatpush1.msra.mxu0 0.0
      %2392 = vmatprep.subr.mxu0 0.0
      %2393 = vmatpush1.msra.mxu0 0.0
      %2394 = vmatprep.subr.mxu0 0.0
      %2395 = vmatpush1.msra.mxu0 0.0
      %2396 = vmatprep.subr.mxu0 0.0
      %2397 = vmatpush1.msra.mxu0 0.0
      %2398 = vmatprep.subr.mxu0 0.0
      %2399 = vmatpush1.msra.mxu0 0.0
      %2400 = vmatprep.subr.mxu0 0.0
      %2401 = vmatpush1.msra.mxu0 0.0
      %2402 = vmatprep.subr.mxu0 0.0
      %2403 = vmatpush1.msra.mxu0 0.0
      %2404 = vmatprep.subr.mxu0 0.0
      %2405 = vmatpush1.msra.mxu0 0.0
      %2406 = vmatprep.subr.mxu0 0.0
      %2407 = vmatpush1.msra.mxu0 0.0
      %2408 = vmatprep.subr.mxu0 0.0
      %2409 = vmatpush1.msra.mxu0 0.0
      %2410 = vmatprep.subr.mxu0 0.0
      %2411 = vmatpush1.msra.mxu0 0.0
      %2412 = vmatprep.subr.mxu0 0.0
      %2413 = vmatpush1.msra.mxu0 0.0
      %2414 = vmatprep.subr.mxu0 0.0
      %2415 = vmatpush1.msra.mxu0 0.0
      %2416 = vmatprep.subr.mxu0 0.0
      %2417 = vmatpush1.msra.mxu0 0.0
      %2418 = vmatprep.subr.mxu0 0.0
      %2419 = vmatpush1.msra.mxu0 0.0
      %2420 = vmatprep.subr.mxu0 0.0
      %2421 = vmatpush1.msra.mxu0 0.0
      %2422 = vmatprep.subr.mxu0 0.0
      %2423 = vmatpush1.msra.mxu0 0.0
      %2424 = vmatprep.subr.mxu0 0.0
      %2425 = vmatpush1.msra.mxu0 0.0
      %2426 = vmatprep.subr.mxu0 0.0
      %2427 = vmatpush1.msra.mxu0 0.0
      %2428 = vmatprep.subr.mxu0 0.0
      %2429 = vmatpush1.msra.mxu0 0.0
      %2430 = vmatprep.subr.mxu0 0.0
      %2431 = vmatpush1.msra.mxu0 0.0
      %2432 = vmatprep.subr.mxu0 0.0
      %2433 = vmatpush1.msra.mxu0 0.0
      %2434 = vmatprep.mubr.f32.mxu0 0.0
      %2435 = vmatmul.mubr.f32.gmra.mrb[0].mxu0 %v2365
      %v2436 = vpop.f32.mrb[0].mxu0
      %v2437 = vadd.f32 0.0, %v2436
      %v2438 = vpop.f32.mrb[0].mxu0
      %2439 = vmatprep.mubr.f32.mxu0 0.0
      %2440 = vmatmul.mubr.f32.gmra.mrb[0].mxu0 %v2368
      %v2441 = vpop.f32.mrb[0].mxu0
      %v2442 = vadd.f32 0.0, %v2441
      %v2443 = vpop.f32.mrb[0].mxu0
      %2444 = vdwg.mxu0
      %v2445 = vadd.f32 %v2353, %v2437
      %v2446 = vadd.f32 %v2354, %v2442
      %v2447 = vmul.f32 %v2445, 0.5
      %v2448 = vmul.f32 %v2446, 0.5
      %v2449 = vmul.f32 %v2445, 0.044715
      %v2450 = vmul.f32 %v2446, 0.044715
      %v2451 = vmul.f32 %v2449, %v2445
      %v2452 = vmul.f32 %v2450, %v2446
      %v2453 = vmul.f32 %v2451, %v2445
      %v2454 = vmul.f32 %v2452, %v2446
      %v2455 = vadd.f32 %v2445, %v2453
      %v2456 = vadd.f32 %v2446, %v2454
      %v2457 = vmul.f32 %v2455, 0.7978846
      %v2458 = vmul.f32 %v2456, 0.7978846
      %v2459 = vtanh.pop %v2457
      %v2460 = vtanh.pop %v2458
      %v2461 = vadd.f32 %v2459, 1.0
      %v2462 = vadd.f32 %v2460, 1.0
      %v2463 = vmul.f32 %v2447, %v2461
      %v2464 = vmul.f32 %v2448, %v2462
      %2467 = vrot.lane.b32.xlu0 %v2463, 127
      %v2468 = vpop.permute.xlu0 %2467
      %2469 = vrot.lane.b32.xlu0 %v2464, 127
      %v2470 = vpop.permute.xlu0 %2469
      %v2473 = vmax.f32 %v2463, %v2468
      %v2474 = vmax.f32 %v2464, %v2470
      %2475 = vrot.lane.b32.xlu0 %v2463, 126
      %v2476 = vpop.permute.xlu0 %2475
      %2477 = vrot.lane.b32.xlu0 %v2464, 126
      %v2478 = vpop.permute.xlu0 %2477
      %v2481 = vmax.f32 %v2473, %v2476
      %v2482 = vmax.f32 %v2474, %v2478
      %2483 = vrot.lane.b32.xlu0 %v2463, 125
      %v2484 = vpop.permute.xlu0 %2483
      %2485 = vrot.lane.b32.xlu0 %v2464, 125
      %v2486 = vpop.permute.xlu0 %2485
      %v2489 = vmax.f32 %v2481, %v2484
      %v2490 = vmax.f32 %v2482, %v2486
      %2491 = vrot.lane.b32.xlu0 %v2463, 124
      %v2492 = vpop.permute.xlu0 %2491
      %2493 = vrot.lane.b32.xlu0 %v2464, 124
      %v2494 = vpop.permute.xlu0 %2493
      %v2497 = vmax.f32 %v2489, %v2492
      %v2498 = vmax.f32 %v2490, %v2494
      %vm2499 = vcmask 261120
      %v2501 = vsel %vm2499, %v2497, 0
      %v2504 = vsel %vm2499, %v2498, 0
      %2506 = vmatprep.subr.mxu0 0.0
      %2507 = vmatpush1.msra.mxu0 %v543
      %2508 = vmatprep.subr.mxu0 0.0
      %2509 = vmatpush1.msra.mxu0 %v544
      %2510 = vmatprep.subr.mxu0 0.0
      %2511 = vmatpush1.msra.mxu0 %v545
      %2512 = vmatprep.subr.mxu0 0.0
      %2513 = vmatpush1.msra.mxu0 %v546
      %2514 = vmatprep.subr.mxu0 0.0
      %2515 = vmatpush1.msra.mxu0 0.0
      %2516 = vmatprep.subr.mxu0 0.0
      %2517 = vmatpush1.msra.mxu0 0.0
      %2518 = vmatprep.subr.mxu0 0.0
      %2519 = vmatpush1.msra.mxu0 0.0
      %2520 = vmatprep.subr.mxu0 0.0
      %2521 = vmatpush1.msra.mxu0 0.0
      %2522 = vmatprep.subr.mxu0 0.0
      %2523 = vmatpush1.msra.mxu0 0.0
      %2524 = vmatprep.subr.mxu0 0.0
      %2525 = vmatpush1.msra.mxu0 0.0
      %2526 = vmatprep.subr.mxu0 0.0
      %2527 = vmatpush1.msra.mxu0 0.0
      %2528 = vmatprep.subr.mxu0 0.0
      %2529 = vmatpush1.msra.mxu0 0.0
      %2530 = vmatprep.subr.mxu0 0.0
      %2531 = vmatpush1.msra.mxu0 0.0
      %2532 = vmatprep.subr.mxu0 0.0
      %2533 = vmatpush1.msra.mxu0 0.0
      %2534 = vmatprep.subr.mxu0 0.0
      %2535 = vmatpush1.msra.mxu0 0.0
      %2536 = vmatprep.subr.mxu0 0.0
      %2537 = vmatpush1.msra.mxu0 0.0
      %2538 = vmatprep.subr.mxu0 0.0
      %2539 = vmatpush1.msra.mxu0 0.0
      %2540 = vmatprep.subr.mxu0 0.0
      %2541 = vmatpush1.msra.mxu0 0.0
      %2542 = vmatprep.subr.mxu0 0.0
      %2543 = vmatpush1.msra.mxu0 0.0
      %2544 = vmatprep.subr.mxu0 0.0
      %2545 = vmatpush1.msra.mxu0 0.0
      %2546 = vmatprep.subr.mxu0 0.0
      %2547 = vmatpush1.msra.mxu0 0.0
      %2548 = vmatprep.subr.mxu0 0.0
      %2549 = vmatpush1.msra.mxu0 0.0
      %2550 = vmatprep.subr.mxu0 0.0
      %2551 = vmatpush1.msra.mxu0 0.0
      %2552 = vmatprep.subr.mxu0 0.0
      %2553 = vmatpush1.msra.mxu0 0.0
      %2554 = vmatprep.subr.mxu0 0.0
      %2555 = vmatpush1.msra.mxu0 0.0
      %2556 = vmatprep.subr.mxu0 0.0
      %2557 = vmatpush1.msra.mxu0 0.0
      %2558 = vmatprep.subr.mxu0 0.0
      %2559 = vmatpush1.msra.mxu0 0.0
      %2560 = vmatprep.subr.mxu0 0.0
      %2561 = vmatpush1.msra.mxu0 0.0
      %2562 = vmatprep.subr.mxu0 0.0
      %2563 = vmatpush1.msra.mxu0 0.0
      %2564 = vmatprep.subr.mxu0 0.0
      %2565 = vmatpush1.msra.mxu0 0.0
      %2566 = vmatprep.subr.mxu0 0.0
      %2567 = vmatpush1.msra.mxu0 0.0
      %2568 = vmatprep.subr.mxu0 0.0
      %2569 = vmatpush1.msra.mxu0 0.0
      %2570 = vmatprep.mubr.f32.mxu0 0.0
      %2571 = vmatmul.mubr.f32.gmra.mrb[0].mxu0 %v2501
      %v2572 = vpop.f32.mrb[0].mxu0
      %v2573 = vadd.f32 0.0, %v2572
      %v2574 = vpop.f32.mrb[0].mxu0
      %2575 = vmatprep.mubr.f32.mxu0 0.0
      %2576 = vmatmul.mubr.f32.gmra.mrb[0].mxu0 %v2504
      %v2577 = vpop.f32.mrb[0].mxu0
      %v2578 = vadd.f32 0.0, %v2577
      %v2579 = vpop.f32.mrb[0].mxu0
      %2580 = vdwg.mxu0
      %vm2581 = vcmask 56320
      %v2583 = vsel %vm2581, %v612, 0
      %v2586 = vsel %vm2581, %v613, 0
      %v2589 = vsel %vm2581, %v614, 0
      %v2592 = vsel %vm2581, %v615, 0
      %v2595 = vsel %vm2581, %v2573, 0
      %v2598 = vsel %vm2581, %v2578, 0
      %2600 = vmatprep.subr.mxu0 0.0
      %2601 = vmatpush1.xpose.msra.mxu0 %v2595
      %2602 = vmatprep.subr.mxu0 0.0
      %2603 = vmatpush1.xpose.msra.mxu0 %v2598
      %2604 = vmatprep.subr.mxu0 0.0
      %2605 = vmatpush1.xpose.msra.mxu0 0.0
      %2606 = vmatprep.subr.mxu0 0.0
      %2607 = vmatpush1.xpose.msra.mxu0 0.0
      %2608 = vmatprep.subr.mxu0 0.0
      %2609 = vmatpush1.xpose.msra.mxu0 0.0
      %2610 = vmatprep.subr.mxu0 0.0
      %2611 = vmatpush1.xpose.msra.mxu0 0.0
      %2612 = vmatprep.subr.mxu0 0.0
      %2613 = vmatpush1.xpose.msra.mxu0 0.0
      %2614 = vmatprep.subr.mxu0 0.0
      %2615 = vmatpush1.xpose.msra.mxu0 0.0
      %2616 = vmatprep.subr.mxu0 0.0
      %2617 = vmatpush1.xpose.msra.mxu0 0.0
      %2618 = vmatprep.subr.mxu0 0.0
      %2619 = vmatpush1.xpose.msra.mxu0 0.0
      %2620 = vmatprep.subr.mxu0 0.0
      %2621 = vmatpush1.xpose.msra.mxu0 0.0
      %2622 = vmatprep.subr.mxu0 0.0
      %2623 = vmatpush1.xpose.msra.mxu0 0.0
      %2624 = vmatprep.subr.mxu0 0.0
      %2625 = vmatpush1.xpose.msra.mxu0 0.0
      %2626 = vmatprep.subr.mxu0 0.0
      %2627 = vmatpush1.xpose.msra.mxu0 0.0
      %2628 = vmatprep.subr.mxu0 0.0
      %2629 = vmatpush1.xpose.msra.mxu0 0.0
      %2630 = vmatprep.subr.mxu0 0.0
      %2631 = vmatpush1.xpose.msra.mxu0 0.0
      %2632 = vmatprep.subr.mxu0 0.0
      %2633 = vmatpush1.xpose.msra.mxu0 0.0
      %2634 = vmatprep.subr.mxu0 0.0
      %2635 = vmatpush1.xpose.msra.mxu0 0.0
      %2636 = vmatprep.subr.mxu0 0.0
      %2637 = vmatpush1.xpose.msra.mxu0 0.0
      %2638 = vmatprep.subr.mxu0 0.0
      %2639 = vmatpush1.xpose.msra.mxu0 0.0
      %2640 = vmatprep.subr.mxu0 0.0
      %2641 = vmatpush1.xpose.msra.mxu0 0.0
      %2642 = vmatprep.subr.mxu0 0.0
      %2643 = vmatpush1.xpose.msra.mxu0 0.0
      %2644 = vmatprep.subr.mxu0 0.0
      %2645 = vmatpush1.xpose.msra.mxu0 0.0
      %2646 = vmatprep.subr.mxu0 0.0
      %2647 = vmatpush1.xpose.msra.mxu0 0.0
      %2648 = vmatprep.subr.mxu0 0.0
      %2649 = vmatpush1.xpose.msra.mxu0 0.0
      %2650 = vmatprep.subr.mxu0 0.0
      %2651 = vmatpush1.xpose.msra.mxu0 0.0
      %2652 = vmatprep.subr.mxu0 0.0
      %2653 = vmatpush1.xpose.msra.mxu0 0.0
      %2654 = vmatprep.subr.mxu0 0.0
      %2655 = vmatpush1.xpose.msra.mxu0 0.0
      %2656 = vmatprep.subr.mxu0 0.0
      %2657 = vmatpush1.xpose.msra.mxu0 0.0
      %2658 = vmatprep.subr.mxu0 0.0
      %2659 = vmatpush1.xpose.msra.mxu0 0.0
      %2660 = vmatprep.subr.mxu0 0.0
      %2661 = vmatpush1.xpose.msra.mxu0 0.0
      %2662 = vmatprep.subr.mxu0 0.0
      %2663 = vmatpush1.xpose.msra.mxu0 0.0
      %2664 = vmatprep.mubr.f32.mxu0 0.0
      %2665 = vmatmul.mubr.f32.gmra.mrb[0].mxu0 %v2583
      %v2666 = vpop.f32.mrb[0].mxu0
      %v2667 = vadd.f32 0.0, %v2666
      %v2668 = vpop.f32.mrb[0].mxu0
      %2669 = vmatprep.mubr.f32.mxu0 0.0
      %2670 = vmatmul.mubr.f32.gmra.mrb[0].mxu0 %v2586
      %v2671 = vpop.f32.mrb[0].mxu0
      %v2672 = vadd.f32 0.0, %v2671
      %v2673 = vpop.f32.mrb[0].mxu0
      %2674 = vmatprep.mubr.f32.mxu0 0.0
      %2675 = vmatmul.mubr.f32.gmra.mrb[0].mxu0 %v2589
      %v2676 = vpop.f32.mrb[0].mxu0
      %v2677 = vadd.f32 0.0, %v2676
      %v2678 = vpop.f32.mrb[0].mxu0
      %2679 = vmatprep.mubr.f32.mxu0 0.0
      %2680 = vmatmul.mubr.f32.gmra.mrb[0].mxu0 %v2592
      %v2681 = vpop.f32.mrb[0].mxu0
      %v2682 = vadd.f32 0.0, %v2681
      %v2683 = vpop.f32.mrb[0].mxu0
      %2684 = vdwg.mxu0
      %v2685 = vmul.f32 %v2667, %v626
      %v2686 = vmul.f32 %v2672, %v627
      %v2687 = vmul.f32 %v2677, %v628
      %v2688 = vmul.f32 %v2682, %v629
      %v2689 = vld [vmem:[%s3] sm:$0xff]
      %v2690 = vld [vmem:[%s3 + $0x8] sm:$0xff]
      %v2691 = vld [vmem:[%s4] sm:$0xff]
      %v2692 = vld [vmem:[%s4 + $0x8] sm:$0xff]
      %v2693 = vld [vmem:[%s4 + $0x10] sm:$0xff]
      %v2694 = vld [vmem:[%s4 + $0x18] sm:$0xf]
      %v2696 = vsel %vm676, %v2685, 0
      %v2699 = vsel %vm676, %v2686, 0
      %v2702 = vsel %vm676, %v2687, 0
      %v2705 = vsel %vm676, %v2688, 0
      %2707 = vmatprep.subr.mxu0 0.0
      %2708 = vmatpush1.msra.mxu0 %v2689
      %2709 = vmatprep.subr.mxu0 0.0
      %2710 = vmatpush1.msra.mxu0 %v2690
      %2711 = vmatprep.subr.mxu0 0.0
      %2712 = vmatpush1.msra.mxu0 0.0
      %2713 = vmatprep.subr.mxu0 0.0
      %2714 = vmatpush1.msra.mxu0 0.0
      %2715 = vmatprep.subr.mxu0 0.0
      %2716 = vmatpush1.msra.mxu0 0.0
      %2717 = vmatprep.subr.mxu0 0.0
      %2718 = vmatpush1.msra.mxu0 0.0
      %2719 = vmatprep.subr.mxu0 0.0
      %2720 = vmatpush1.msra.mxu0 0.0
      %2721 = vmatprep.subr.mxu0 0.0
      %2722 = vmatpush1.msra.mxu0 0.0
      %2723 = vmatprep.subr.mxu0 0.0
      %2724 = vmatpush1.msra.mxu0 0.0
      %2725 = vmatprep.subr.mxu0 0.0
      %2726 = vmatpush1.msra.mxu0 0.0
      %2727 = vmatprep.subr.mxu0 0.0
      %2728 = vmatpush1.msra.mxu0 0.0
      %2729 = vmatprep.subr.mxu0 0.0
      %2730 = vmatpush1.msra.mxu0 0.0
      %2731 = vmatprep.subr.mxu0 0.0
      %2732 = vmatpush1.msra.mxu0 0.0
      %2733 = vmatprep.subr.mxu0 0.0
      %2734 = vmatpush1.msra.mxu0 0.0
      %2735 = vmatprep.subr.mxu0 0.0
      %2736 = vmatpush1.msra.mxu0 0.0
      %2737 = vmatprep.subr.mxu0 0.0
      %2738 = vmatpush1.msra.mxu0 0.0
      %2739 = vmatprep.subr.mxu0 0.0
      %2740 = vmatpush1.msra.mxu0 0.0
      %2741 = vmatprep.subr.mxu0 0.0
      %2742 = vmatpush1.msra.mxu0 0.0
      %2743 = vmatprep.subr.mxu0 0.0
      %2744 = vmatpush1.msra.mxu0 0.0
      %2745 = vmatprep.subr.mxu0 0.0
      %2746 = vmatpush1.msra.mxu0 0.0
      %2747 = vmatprep.subr.mxu0 0.0
      %2748 = vmatpush1.msra.mxu0 0.0
      %2749 = vmatprep.subr.mxu0 0.0
      %2750 = vmatpush1.msra.mxu0 0.0
      %2751 = vmatprep.subr.mxu0 0.0
      %2752 = vmatpush1.msra.mxu0 0.0
      %2753 = vmatprep.subr.mxu0 0.0
      %2754 = vmatpush1.msra.mxu0 0.0
      %2755 = vmatprep.subr.mxu0 0.0
      %2756 = vmatpush1.msra.mxu0 0.0
      %2757 = vmatprep.subr.mxu0 0.0
      %2758 = vmatpush1.msra.mxu0 0.0
      %2759 = vmatprep.subr.mxu0 0.0
      %2760 = vmatpush1.msra.mxu0 0.0
      %2761 = vmatprep.subr.mxu0 0.0
      %2762 = vmatpush1.msra.mxu0 0.0
      %2763 = vmatprep.subr.mxu0 0.0
      %2764 = vmatpush1.msra.mxu0 0.0
      %2765 = vmatprep.subr.mxu0 0.0
      %2766 = vmatpush1.msra.mxu0 0.0
      %2767 = vmatprep.subr.mxu0 0.0
      %2768 = vmatpush1.msra.mxu0 0.0
      %2769 = vmatprep.subr.mxu0 0.0
      %2770 = vmatpush1.msra.mxu0 0.0
      %2771 = vmatprep.mubr.f32.mxu0 0.0
      %2772 = vmatmul.mubr.f32.gmra.mrb[0].mxu0 %v2696
      %v2773 = vpop.f32.mrb[0].mxu0
      %v2774 = vadd.f32 %v2691, %v2773
      %v2775 = vpop.f32.mrb[0].mxu0
      %2776 = vmatprep.mubr.f32.mxu0 0.0
      %2777 = vmatmul.mubr.f32.gmra.mrb[0].mxu0 %v2699
      %v2778 = vpop.f32.mrb[0].mxu0
      %v2779 = vadd.f32 %v2692, %v2778
      %v2780 = vpop.f32.mrb[0].mxu0
      %2781 = vmatprep.mubr.f32.mxu0 0.0
      %2782 = vmatmul.mubr.f32.gmra.mrb[0].mxu0 %v2702
      %v2783 = vpop.f32.mrb[0].mxu0
      %v2784 = vadd.f32 %v2693, %v2783
      %v2785 = vpop.f32.mrb[0].mxu0
      %2786 = vmatprep.mubr.f32.mxu0 0.0
      %2787 = vmatmul.mubr.f32.gmra.mrb[0].mxu0 %v2705
      %v2788 = vpop.f32.mrb[0].mxu0
      %v2789 = vadd.f32 %v2694, %v2788
      %v2790 = vpop.f32.mrb[0].mxu0
      %2791 = vdwg.mxu0
      %v2792 = vld [vmem:[%s5] sm:$0xff]
      %v2793 = vld [vmem:[%s5 + $0x10] sm:$0xff]
      %v2794 = vld [vmem:[%s5 + $0x20] sm:$0xff]
      %v2795 = vld [vmem:[%s5 + $0x30] sm:$0xff]
      %v2796 = vld [vmem:[%s5 + $0x8] sm:$0xff]
      %v2797 = vld [vmem:[%s5 + $0x18] sm:$0xff]
      %v2798 = vld [vmem:[%s5 + $0x28] sm:$0xff]
      %v2799 = vld [vmem:[%s5 + $0x38] sm:$0xff]
      %v2800 = vld [vmem:[%s7] sm:$0x1]
      %v2801 = vld [vmem:[%s7] sm:$0x3]
      %v2802 = vld [vmem:[%s7 + $0x1] sm:$0x1]
      %v2803 = vld [vmem:[%s7 + $0x2] sm:$0x1]
      %v2805 = vlaneseq
      %v2806 = vshrl.u32 %v2805, 7
      %v2807 = vsub.s32 0, %v2806
      %v2808 = vrot.slane %v2800, %v2807
      %v2811 = vsel %vm2499, %v2774, 0
      %v2814 = vsel %vm2499, %v2779, 0
      %v2817 = vsel %vm2499, %v2784, 0
      %v2820 = vsel %vm2499, %v2789, 0
      %2822 = vmatprep.subr.mxu0 0.0
      %2823 = vmatpush1.msra.mxu0 %v2792
      %2824 = vmatprep.subr.mxu0 0.0
      %2825 = vmatpush1.msra.mxu0 %v2793
      %2826 = vmatprep.subr.mxu0 0.0
      %2827 = vmatpush1.msra.mxu0 %v2794
      %2828 = vmatprep.subr.mxu0 0.0
      %2829 = vmatpush1.msra.mxu0 %v2795
      %2830 = vmatprep.subr.mxu0 0.0
      %2831 = vmatpush1.msra.mxu0 0.0
      %2832 = vmatprep.subr.mxu0 0.0
      %2833 = vmatpush1.msra.mxu0 0.0
      %2834 = vmatprep.subr.mxu0 0.0
      %2835 = vmatpush1.msra.mxu0 0.0
      %2836 = vmatprep.subr.mxu0 0.0
      %2837 = vmatpush1.msra.mxu0 0.0
      %2838 = vmatprep.subr.mxu0 0.0
      %2839 = vmatpush1.msra.mxu0 0.0
      %2840 = vmatprep.subr.mxu0 0.0
      %2841 = vmatpush1.msra.mxu0 0.0
      %2842 = vmatprep.subr.mxu0 0.0
      %2843 = vmatpush1.msra.mxu0 0.0
      %2844 = vmatprep.subr.mxu0 0.0
      %2845 = vmatpush1.msra.mxu0 0.0
      %2846 = vmatprep.subr.mxu0 0.0
      %2847 = vmatpush1.msra.mxu0 0.0
      %2848 = vmatprep.subr.mxu0 0.0
      %2849 = vmatpush1.msra.mxu0 0.0
      %2850 = vmatprep.subr.mxu0 0.0
      %2851 = vmatpush1.msra.mxu0 0.0
      %2852 = vmatprep.subr.mxu0 0.0
      %2853 = vmatpush1.msra.mxu0 0.0
      %2854 = vmatprep.subr.mxu0 0.0
      %2855 = vmatpush1.msra.mxu0 0.0
      %2856 = vmatprep.subr.mxu0 0.0
      %2857 = vmatpush1.msra.mxu0 0.0
      %2858 = vmatprep.subr.mxu0 0.0
      %2859 = vmatpush1.msra.mxu0 0.0
      %2860 = vmatprep.subr.mxu0 0.0
      %2861 = vmatpush1.msra.mxu0 0.0
      %2862 = vmatprep.subr.mxu0 0.0
      %2863 = vmatpush1.msra.mxu0 0.0
      %2864 = vmatprep.subr.mxu0 0.0
      %2865 = vmatpush1.msra.mxu0 0.0
      %2866 = vmatprep.subr.mxu0 0.0
      %2867 = vmatpush1.msra.mxu0 0.0
      %2868 = vmatprep.subr.mxu0 0.0
      %2869 = vmatpush1.msra.mxu0 0.0
      %2870 = vmatprep.subr.mxu0 0.0
      %2871 = vmatpush1.msra.mxu0 0.0
      %2872 = vmatprep.subr.mxu0 0.0
      %2873 = vmatpush1.msra.mxu0 0.0
      %2874 = vmatprep.subr.mxu0 0.0
      %2875 = vmatpush1.msra.mxu0 0.0
      %2876 = vmatprep.subr.mxu0 0.0
      %2877 = vmatpush1.msra.mxu0 0.0
      %2878 = vmatprep.subr.mxu0 0.0
      %2879 = vmatpush1.msra.mxu0 0.0
      %2880 = vmatprep.subr.mxu0 0.0
      %2881 = vmatpush1.msra.mxu0 0.0
      %2882 = vmatprep.subr.mxu0 0.0
      %2883 = vmatpush1.msra.mxu0 0.0
      %2884 = vmatprep.subr.mxu0 0.0
      %2885 = vmatpush1.msra.mxu0 0.0
      %2886 = vmatprep.mubr.f32.mxu0 0.0
      %2887 = vmatmul.mubr.f32.gmra.mrb[0].mxu0 %v2811
      %v2888 = vpop.f32.mrb[0].mxu0
      %v2889 = vadd.f32 %v2808, %v2888
      %v2890 = vpop.f32.mrb[0].mxu0
      %2891 = vmatprep.mubr.f32.mxu0 0.0
      %2892 = vmatmul.mubr.f32.gmra.mrb[0].mxu0 %v2814
      %v2893 = vpop.f32.mrb[0].mxu0
      %v2894 = vadd.f32 %v2808, %v2893
      %v2895 = vpop.f32.mrb[0].mxu0
      %2896 = vmatprep.mubr.f32.mxu0 0.0
      %2897 = vmatmul.mubr.f32.gmra.mrb[0].mxu0 %v2817
      %v2898 = vpop.f32.mrb[0].mxu0
      %v2899 = vadd.f32 %v2808, %v2898
      %v2900 = vpop.f32.mrb[0].mxu0
      %2901 = vmatprep.mubr.f32.mxu0 0.0
      %2902 = vmatmul.mubr.f32.gmra.mrb[0].mxu0 %v2820
      %v2903 = vpop.f32.mrb[0].mxu0
      %v2904 = vadd.f32 %v2808, %v2903
      %v2905 = vpop.f32.mrb[0].mxu0
      %2906 = vdwg.mxu0
      %v2907 = vmul.f32 %v2889, 0.35355338
      %v2908 = vmul.f32 %v2894, 0.35355338
      %v2909 = vmul.f32 %v2899, 0.35355338
      %v2910 = vmul.f32 %v2904, 0.35355338
      %2915 = vrot.lane.b32.xlu0 %v2889, 96
      %v2916 = vpop.permute.xlu0 %2915
      %2917 = vrot.lane.b32.xlu0 %v2894, 96
      %v2918 = vpop.permute.xlu0 %2917
      %2919 = vrot.lane.b32.xlu0 %v2899, 96
      %v2920 = vpop.permute.xlu0 %2919
      %2921 = vrot.lane.b32.xlu0 %v2904, 96
      %v2922 = vpop.permute.xlu0 %2921
      %vm2923 = vcmask 64512
      %v2925 = vsel %vm2923, %v2907, 0
      %v2928 = vsel %vm2923, %v2908, 0
      %v2931 = vsel %vm2923, %v2909, 0
      %v2934 = vsel %vm2923, %v2910, 0
      %v2936 = vsel %vm2923, %v2916, 0
      %v2938 = vsel %vm2923, %v2918, 0
      %v2940 = vsel %vm2923, %v2920, 0
      %v2942 = vsel %vm2923, %v2922, 0
      %2944 = vmatprep.subr.mxu0 0.0
      %2945 = vmatpush1.xpose.msra.mxu0 %v2936
      %2946 = vmatprep.subr.mxu0 0.0
      %2947 = vmatpush1.xpose.msra.mxu0 %v2938
      %2948 = vmatprep.subr.mxu0 0.0
      %2949 = vmatpush1.xpose.msra.mxu0 %v2940
      %2950 = vmatprep.subr.mxu0 0.0
      %2951 = vmatpush1.xpose.msra.mxu0 %v2942
      %2952 = vmatprep.subr.mxu0 0.0
      %2953 = vmatpush1.xpose.msra.mxu0 0.0
      %2954 = vmatprep.subr.mxu0 0.0
      %2955 = vmatpush1.xpose.msra.mxu0 0.0
      %2956 = vmatprep.subr.mxu0 0.0
      %2957 = vmatpush1.xpose.msra.mxu0 0.0
      %2958 = vmatprep.subr.mxu0 0.0
      %2959 = vmatpush1.xpose.msra.mxu0 0.0
      %2960 = vmatprep.subr.mxu0 0.0
      %2961 = vmatpush1.xpose.msra.mxu0 0.0
      %2962 = vmatprep.subr.mxu0 0.0
      %2963 = vmatpush1.xpose.msra.mxu0 0.0
      %2964 = vmatprep.subr.mxu0 0.0
      %2965 = vmatpush1.xpose.msra.mxu0 0.0
      %2966 = vmatprep.subr.mxu0 0.0
      %2967 = vmatpush1.xpose.msra.mxu0 0.0
      %2968 = vmatprep.subr.mxu0 0.0
      %2969 = vmatpush1.xpose.msra.mxu0 0.0
      %2970 = vmatprep.subr.mxu0 0.0
      %2971 = vmatpush1.xpose.msra.mxu0 0.0
      %2972 = vmatprep.subr.mxu0 0.0
      %2973 = vmatpush1.xpose.msra.mxu0 0.0
      %2974 = vmatprep.subr.mxu0 0.0
      %2975 = vmatpush1.xpose.msra.mxu0 0.0
      %2976 = vmatprep.subr.mxu0 0.0
      %2977 = vmatpush1.xpose.msra.mxu0 0.0
      %2978 = vmatprep.subr.mxu0 0.0
      %2979 = vmatpush1.xpose.msra.mxu0 0.0
      %2980 = vmatprep.subr.mxu0 0.0
      %2981 = vmatpush1.xpose.msra.mxu0 0.0
      %2982 = vmatprep.subr.mxu0 0.0
      %2983 = vmatpush1.xpose.msra.mxu0 0.0
      %2984 = vmatprep.subr.mxu0 0.0
      %2985 = vmatpush1.xpose.msra.mxu0 0.0
      %2986 = vmatprep.subr.mxu0 0.0
      %2987 = vmatpush1.xpose.msra.mxu0 0.0
      %2988 = vmatprep.subr.mxu0 0.0
      %2989 = vmatpush1.xpose.msra.mxu0 0.0
      %2990 = vmatprep.subr.mxu0 0.0
      %2991 = vmatpush1.xpose.msra.mxu0 0.0
      %2992 = vmatprep.subr.mxu0 0.0
      %2993 = vmatpush1.xpose.msra.mxu0 0.0
      %2994 = vmatprep.subr.mxu0 0.0
      %2995 = vmatpush1.xpose.msra.mxu0 0.0
      %2996 = vmatprep.subr.mxu0 0.0
      %2997 = vmatpush1.xpose.msra.mxu0 0.0
      %2998 = vmatprep.subr.mxu0 0.0
      %2999 = vmatpush1.xpose.msra.mxu0 0.0
      %3000 = vmatprep.subr.mxu0 0.0
      %3001 = vmatpush1.xpose.msra.mxu0 0.0
      %3002 = vmatprep.subr.mxu0 0.0
      %3003 = vmatpush1.xpose.msra.mxu0 0.0
      %3004 = vmatprep.subr.mxu0 0.0
      %3005 = vmatpush1.xpose.msra.mxu0 0.0
      %3006 = vmatprep.subr.mxu0 0.0
      %3007 = vmatpush1.xpose.msra.mxu0 0.0
      %3008 = vmatprep.mubr.f32.mxu0 0.0
      %3009 = vmatmul.mubr.f32.gmra.mrb[0].mxu0 %v2925
      %v3010 = vpop.f32.mrb[0].mxu0
      %v3011 = vadd.f32 %v636, %v3010
      %v3012 = vpop.f32.mrb[0].mxu0
      %3013 = vmatprep.mubr.f32.mxu0 0.0
      %3014 = vmatmul.mubr.f32.gmra.mrb[0].mxu0 %v2928
      %v3015 = vpop.f32.mrb[0].mxu0
      %v3016 = vadd.f32 %v637, %v3015
      %v3017 = vpop.f32.mrb[0].mxu0
      %3018 = vmatprep.mubr.f32.mxu0 0.0
      %3019 = vmatmul.mubr.f32.gmra.mrb[0].mxu0 %v2931
      %v3020 = vpop.f32.mrb[0].mxu0
      %v3021 = vadd.f32 %v638, %v3020
      %v3022 = vpop.f32.mrb[0].mxu0
      %3023 = vmatprep.mubr.f32.mxu0 0.0
      %3024 = vmatmul.mubr.f32.gmra.mrb[0].mxu0 %v2934
      %v3025 = vpop.f32.mrb[0].mxu0
      %v3026 = vadd.f32 %v639, %v3025
      %v3027 = vpop.f32.mrb[0].mxu0
      %3028 = vdwg.mxu0
      %vm3029 = vcmask 228352
      %v3030 = vsel %vm3029, %v3011, -inf
      %3031 = vmax.xlane.f32.xlu0 %v3030
      %v3032 = vpop.xlane.xlu0 %3031
      %v3033 = vsel %vm3029, %v3016, -inf
      %3034 = vmax.xlane.f32.xlu0 %v3033
      %v3035 = vpop.xlane.xlu0 %3034
      %v3036 = vsel %vm3029, %v3021, -inf
      %3037 = vmax.xlane.f32.xlu0 %v3036
      %v3038 = vpop.xlane.xlu0 %3037
      %vm3039 = vcmask 224256
      %v3040 = vsel %vm3039, %v3026, -inf
      %3041 = vmax.xlane.f32.xlu0 %v3040
      %v3042 = vpop.xlane.xlu0 %3041
      %v3043 = vsub.f32 %v3011, %v3032
      %v3044 = vsub.f32 %v3016, %v3035
      %v3045 = vsub.f32 %v3021, %v3038
      %v3046 = vsub.f32 %v3026, %v3042
      %v3047 = vmul.f32 %v3043, 1.442695
      %v3048 = vpow.pop %v3047
      %v3049 = vmul.f32 %v3044, 1.442695
      %v3050 = vpow.pop %v3049
      %v3051 = vmul.f32 %v3045, 1.442695
      %v3052 = vpow.pop %v3051
      %v3053 = vmul.f32 %v3046, 1.442695
      %v3054 = vpow.pop %v3053
      %v3055 = vsel %vm3029, %v3048, 0.0
      %3056 = vadd.xlane.f32.xlu0 %v3055
      %v3057 = vpop.xlane.xlu0 %3056
      %v3058 = vsel %vm3029, %v3050, 0.0
      %3059 = vadd.xlane.f32.xlu0 %v3058
      %v3060 = vpop.xlane.xlu0 %3059
      %v3061 = vsel %vm3029, %v3052, 0.0
      %3062 = vadd.xlane.f32.xlu0 %v3061
      %v3063 = vpop.xlane.xlu0 %3062
      %v3064 = vsel %vm3039, %v3054, 0.0
      %3065 = vadd.xlane.f32.xlu0 %v3064
      %v3066 = vpop.xlane.xlu0 %3065
      %v3067 = vrcp.pop %v3057
      %v3068 = vmul.f32 1.0, %v3067
      %v3069 = vrcp.pop %v3060
      %v3070 = vmul.f32 1.0, %v3069
      %v3071 = vrcp.pop %v3063
      %v3072 = vmul.f32 1.0, %v3071
      %v3073 = vrcp.pop %v3066
      %v3074 = vmul.f32 1.0, %v3073
      %v3075 = vmul.f32 %v3048, %v3068
      %v3076 = vmul.f32 %v3050, %v3070
      %v3077 = vmul.f32 %v3052, %v3072
      %v3078 = vmul.f32 %v3054, %v3074
      %3079 = vrot.lane.b32.xlu0 %v2889, 64
      %v3080 = vpop.permute.xlu0 %3079
      %3081 = vrot.lane.b32.xlu0 %v2894, 64
      %v3082 = vpop.permute.xlu0 %3081
      %3083 = vrot.lane.b32.xlu0 %v2899, 64
      %v3084 = vpop.permute.xlu0 %3083
      %3085 = vrot.lane.b32.xlu0 %v2904, 64
      %v3086 = vpop.permute.xlu0 %3085
      %v3091 = vsel %vm3029, %v3075, 0
      %v3094 = vsel %vm3029, %v3076, 0
      %v3097 = vsel %vm3029, %v3077, 0
      %v3100 = vsel %vm3029, %v3078, 0
      %vm3102 = vcmask 1043456
      %v3103 = vsel %vm3102, %v3086, 0
      %3105 = vmatprep.subr.mxu0 0.0
      %3106 = vmatpush1.msra.mxu0 %v3080
      %3107 = vmatprep.subr.mxu0 0.0
      %3108 = vmatpush1.msra.mxu0 %v3082
      %3109 = vmatprep.subr.mxu0 0.0
      %3110 = vmatpush1.msra.mxu0 %v3084
      %3111 = vmatprep.subr.mxu0 0.0
      %3112 = vmatpush1.msra.mxu0 %v3103
      %3113 = vmatprep.subr.mxu0 0.0
      %3114 = vmatpush1.msra.mxu0 0.0
      %3115 = vmatprep.subr.mxu0 0.0
      %3116 = vmatpush1.msra.mxu0 0.0
      %3117 = vmatprep.subr.mxu0 0.0
      %3118 = vmatpush1.msra.mxu0 0.0
      %3119 = vmatprep.subr.mxu0 0.0
      %3120 = vmatpush1.msra.mxu0 0.0
      %3121 = vmatprep.subr.mxu0 0.0
      %3122 = vmatpush1.msra.mxu0 0.0
      %3123 = vmatprep.subr.mxu0 0.0
      %3124 = vmatpush1.msra.mxu0 0.0
      %3125 = vmatprep.subr.mxu0 0.0
      %3126 = vmatpush1.msra.mxu0 0.0
      %3127 = vmatprep.subr.mxu0 0.0
      %3128 = vmatpush1.msra.mxu0 0.0
      %3129 = vmatprep.subr.mxu0 0.0
      %3130 = vmatpush1.msra.mxu0 0.0
      %3131 = vmatprep.subr.mxu0 0.0
      %3132 = vmatpush1.msra.mxu0 0.0
      %3133 = vmatprep.subr.mxu0 0.0
      %3134 = vmatpush1.msra.mxu0 0.0
      %3135 = vmatprep.subr.mxu0 0.0
      %3136 = vmatpush1.msra.mxu0 0.0
      %3137 = vmatprep.subr.mxu0 0.0
      %3138 = vmatpush1.msra.mxu0 0.0
      %3139 = vmatprep.subr.mxu0 0.0
      %3140 = vmatpush1.msra.mxu0 0.0
      %3141 = vmatprep.subr.mxu0 0.0
      %3142 = vmatpush1.msra.mxu0 0.0
      %3143 = vmatprep.subr.mxu0 0.0
      %3144 = vmatpush1.msra.mxu0 0.0
      %3145 = vmatprep.subr.mxu0 0.0
      %3146 = vmatpush1.msra.mxu0 0.0
      %3147 = vmatprep.subr.mxu0 0.0
      %3148 = vmatpush1.msra.mxu0 0.0
      %3149 = vmatprep.subr.mxu0 0.0
      %3150 = vmatpush1.msra.mxu0 0.0
      %3151 = vmatprep.subr.mxu0 0.0
      %3152 = vmatpush1.msra.mxu0 0.0
      %3153 = vmatprep.subr.mxu0 0.0
      %3154 = vmatpush1.msra.mxu0 0.0
      %3155 = vmatprep.subr.mxu0 0.0
      %3156 = vmatpush1.msra.mxu0 0.0
      %3157 = vmatprep.subr.mxu0 0.0
      %3158 = vmatpush1.msra.mxu0 0.0
      %3159 = vmatprep.subr.mxu0 0.0
      %3160 = vmatpush1.msra.mxu0 0.0
      %3161 = vmatprep.subr.mxu0 0.0
      %3162 = vmatpush1.msra.mxu0 0.0
      %3163 = vmatprep.subr.mxu0 0.0
      %3164 = vmatpush1.msra.mxu0 0.0
      %3165 = vmatprep.subr.mxu0 0.0
      %3166 = vmatpush1.msra.mxu0 0.0
      %3167 = vmatprep.subr.mxu0 0.0
      %3168 = vmatpush1.msra.mxu0 0.0
      %3169 = vmatprep.mubr.f32.mxu0 0.0
      %3170 = vmatmul.mubr.f32.gmra.mrb[0].mxu0 %v3091
      %v3171 = vpop.f32.mrb[0].mxu0
      %v3172 = vadd.f32 0.0, %v3171
      %v3173 = vpop.f32.mrb[0].mxu0
      %3174 = vmatprep.mubr.f32.mxu0 0.0
      %3175 = vmatmul.mubr.f32.gmra.mrb[0].mxu0 %v3094
      %v3176 = vpop.f32.mrb[0].mxu0
      %v3177 = vadd.f32 0.0, %v3176
      %v3178 = vpop.f32.mrb[0].mxu0
      %3179 = vmatprep.mubr.f32.mxu0 0.0
      %3180 = vmatmul.mubr.f32.gmra.mrb[0].mxu0 %v3097
      %v3181 = vpop.f32.mrb[0].mxu0
      %v3182 = vadd.f32 0.0, %v3181
      %v3183 = vpop.f32.mrb[0].mxu0
      %3184 = vmatprep.mubr.f32.mxu0 0.0
      %3185 = vmatmul.mubr.f32.gmra.mrb[0].mxu0 %v3100
      %v3186 = vpop.f32.mrb[0].mxu0
      %v3187 = vadd.f32 0.0, %v3186
      %v3188 = vpop.f32.mrb[0].mxu0
      %3189 = vdwg.mxu0
      %3190 = vrot.lane.b32.xlu0 %v2907, 120
      %v3191 = vpop.permute.xlu0 %3190
      %3192 = vrot.lane.b32.xlu0 %v2908, 120
      %v3193 = vpop.permute.xlu0 %3192
      %3194 = vrot.lane.b32.xlu0 %v2909, 120
      %v3195 = vpop.permute.xlu0 %3194
      %3196 = vrot.lane.b32.xlu0 %v2910, 120
      %v3197 = vpop.permute.xlu0 %3196
      %3198 = vrot.lane.b32.xlu0 %v2889, 88
      %v3199 = vpop.permute.xlu0 %3198
      %3200 = vrot.lane.b32.xlu0 %v2894, 88
      %v3201 = vpop.permute.xlu0 %3200
      %3202 = vrot.lane.b32.xlu0 %v2899, 88
      %v3203 = vpop.permute.xlu0 %3202
      %3204 = vrot.lane.b32.xlu0 %v2904, 88
      %v3205 = vpop.permute.xlu0 %3204
      %v3206 = vsel %vm2923, %v3191, 0
      %v3208 = vsel %vm2923, %v3193, 0
      %v3210 = vsel %vm2923, %v3195, 0
      %v3212 = vsel %vm2923, %v3197, 0
      %v3214 = vsel %vm2923, %v3199, 0
      %v3216 = vsel %vm2923, %v3201, 0
      %v3218 = vsel %vm2923, %v3203, 0
      %v3220 = vsel %vm2923, %v3205, 0
      %3222 = vmatprep.subr.mxu0 0.0
      %3223 = vmatpush1.xpose.msra.mxu0 %v3214
      %3224 = vmatprep.subr.mxu0 0.0
      %3225 = vmatpush1.xpose.msra.mxu0 %v3216
      %3226 = vmatprep.subr.mxu0 0.0
      %3227 = vmatpush1.xpose.msra.mxu0 %v3218
      %3228 = vmatprep.subr.mxu0 0.0
      %3229 = vmatpush1.xpose.msra.mxu0 %v3220
      %3230 = vmatprep.subr.mxu0 0.0
      %3231 = vmatpush1.xpose.msra.mxu0 0.0
      %3232 = vmatprep.subr.mxu0 0.0
      %3233 = vmatpush1.xpose.msra.mxu0 0.0
      %3234 = vmatprep.subr.mxu0 0.0
      %3235 = vmatpush1.xpose.msra.mxu0 0.0
      %3236 = vmatprep.subr.mxu0 0.0
      %3237 = vmatpush1.xpose.msra.mxu0 0.0
      %3238 = vmatprep.subr.mxu0 0.0
      %3239 = vmatpush1.xpose.msra.mxu0 0.0
      %3240 = vmatprep.subr.mxu0 0.0
      %3241 = vmatpush1.xpose.msra.mxu0 0.0
      %3242 = vmatprep.subr.mxu0 0.0
      %3243 = vmatpush1.xpose.msra.mxu0 0.0
      %3244 = vmatprep.subr.mxu0 0.0
      %3245 = vmatpush1.xpose.msra.mxu0 0.0
      %3246 = vmatprep.subr.mxu0 0.0
      %3247 = vmatpush1.xpose.msra.mxu0 0.0
      %3248 = vmatprep.subr.mxu0 0.0
      %3249 = vmatpush1.xpose.msra.mxu0 0.0
      %3250 = vmatprep.subr.mxu0 0.0
      %3251 = vmatpush1.xpose.msra.mxu0 0.0
      %3252 = vmatprep.subr.mxu0 0.0
      %3253 = vmatpush1.xpose.msra.mxu0 0.0
      %3254 = vmatprep.subr.mxu0 0.0
      %3255 = vmatpush1.xpose.msra.mxu0 0.0
      %3256 = vmatprep.subr.mxu0 0.0
      %3257 = vmatpush1.xpose.msra.mxu0 0.0
      %3258 = vmatprep.subr.mxu0 0.0
      %3259 = vmatpush1.xpose.msra.mxu0 0.0
      %3260 = vmatprep.subr.mxu0 0.0
      %3261 = vmatpush1.xpose.msra.mxu0 0.0
      %3262 = vmatprep.subr.mxu0 0.0
      %3263 = vmatpush1.xpose.msra.mxu0 0.0
      %3264 = vmatprep.subr.mxu0 0.0
      %3265 = vmatpush1.xpose.msra.mxu0 0.0
      %3266 = vmatprep.subr.mxu0 0.0
      %3267 = vmatpush1.xpose.msra.mxu0 0.0
      %3268 = vmatprep.subr.mxu0 0.0
      %3269 = vmatpush1.xpose.msra.mxu0 0.0
      %3270 = vmatprep.subr.mxu0 0.0
      %3271 = vmatpush1.xpose.msra.mxu0 0.0
      %3272 = vmatprep.subr.mxu0 0.0
      %3273 = vmatpush1.xpose.msra.mxu0 0.0
      %3274 = vmatprep.subr.mxu0 0.0
      %3275 = vmatpush1.xpose.msra.mxu0 0.0
      %3276 = vmatprep.subr.mxu0 0.0
      %3277 = vmatpush1.xpose.msra.mxu0 0.0
      %3278 = vmatprep.subr.mxu0 0.0
      %3279 = vmatpush1.xpose.msra.mxu0 0.0
      %3280 = vmatprep.subr.mxu0 0.0
      %3281 = vmatpush1.xpose.msra.mxu0 0.0
      %3282 = vmatprep.subr.mxu0 0.0
      %3283 = vmatpush1.xpose.msra.mxu0 0.0
      %3284 = vmatprep.subr.mxu0 0.0
      %3285 = vmatpush1.xpose.msra.mxu0 0.0
      %3286 = vmatprep.mubr.f32.mxu0 0.0
      %3287 = vmatmul.mubr.f32.gmra.mrb[0].mxu0 %v3206
      %v3288 = vpop.f32.mrb[0].mxu0
      %v3289 = vadd.f32 %v636, %v3288
      %v3290 = vpop.f32.mrb[0].mxu0
      %3291 = vmatprep.mubr.f32.mxu0 0.0
      %3292 = vmatmul.mubr.f32.gmra.mrb[0].mxu0 %v3208
      %v3293 = vpop.f32.mrb[0].mxu0
      %v3294 = vadd.f32 %v637, %v3293
      %v3295 = vpop.f32.mrb[0].mxu0
      %3296 = vmatprep.mubr.f32.mxu0 0.0
      %3297 = vmatmul.mubr.f32.gmra.mrb[0].mxu0 %v3210
      %v3298 = vpop.f32.mrb[0].mxu0
      %v3299 = vadd.f32 %v638, %v3298
      %v3300 = vpop.f32.mrb[0].mxu0
      %3301 = vmatprep.mubr.f32.mxu0 0.0
      %3302 = vmatmul.mubr.f32.gmra.mrb[0].mxu0 %v3212
      %v3303 = vpop.f32.mrb[0].mxu0
      %v3304 = vadd.f32 %v639, %v3303
      %v3305 = vpop.f32.mrb[0].mxu0
      %3306 = vdwg.mxu0
      %v3307 = vsel %vm3029, %v3289, -inf
      %3308 = vmax.xlane.f32.xlu0 %v3307
      %v3309 = vpop.xlane.xlu0 %3308
      %v3310 = vsel %vm3029, %v3294, -inf
      %3311 = vmax.xlane.f32.xlu0 %v3310
      %v3312 = vpop.xlane.xlu0 %3311
      %v3313 = vsel %vm3029, %v3299, -inf
      %3314 = vmax.xlane.f32.xlu0 %v3313
      %v3315 = vpop.xlane.xlu0 %3314
      %v3316 = vsel %vm3039, %v3304, -inf
      %3317 = vmax.xlane.f32.xlu0 %v3316
      %v3318 = vpop.xlane.xlu0 %3317
      %v3319 = vsub.f32 %v3289, %v3309
      %v3320 = vsub.f32 %v3294, %v3312
      %v3321 = vsub.f32 %v3299, %v3315
      %v3322 = vsub.f32 %v3304, %v3318
      %v3323 = vmul.f32 %v3319, 1.442695
      %v3324 = vpow.pop %v3323
      %v3325 = vmul.f32 %v3320, 1.442695
      %v3326 = vpow.pop %v3325
      %v3327 = vmul.f32 %v3321, 1.442695
      %v3328 = vpow.pop %v3327
      %v3329 = vmul.f32 %v3322, 1.442695
      %v3330 = vpow.pop %v3329
      %v3331 = vsel %vm3029, %v3324, 0.0
      %3332 = vadd.xlane.f32.xlu0 %v3331
      %v3333 = vpop.xlane.xlu0 %3332
      %v3334 = vsel %vm3029, %v3326, 0.0
      %3335 = vadd.xlane.f32.xlu0 %v3334
      %v3336 = vpop.xlane.xlu0 %3335
      %v3337 = vsel %vm3029, %v3328, 0.0
      %3338 = vadd.xlane.f32.xlu0 %v3337
      %v3339 = vpop.xlane.xlu0 %3338
      %v3340 = vsel %vm3039, %v3330, 0.0
      %3341 = vadd.xlane.f32.xlu0 %v3340
      %v3342 = vpop.xlane.xlu0 %3341
      %v3343 = vrcp.pop %v3333
      %v3344 = vmul.f32 1.0, %v3343
      %v3345 = vrcp.pop %v3336
      %v3346 = vmul.f32 1.0, %v3345
      %v3347 = vrcp.pop %v3339
      %v3348 = vmul.f32 1.0, %v3347
      %v3349 = vrcp.pop %v3342
      %v3350 = vmul.f32 1.0, %v3349
      %v3351 = vmul.f32 %v3324, %v3344
      %v3352 = vmul.f32 %v3326, %v3346
      %v3353 = vmul.f32 %v3328, %v3348
      %v3354 = vmul.f32 %v3330, %v3350
      %3355 = vrot.lane.b32.xlu0 %v2889, 56
      %v3356 = vpop.permute.xlu0 %3355
      %3357 = vrot.lane.b32.xlu0 %v2894, 56
      %v3358 = vpop.permute.xlu0 %3357
      %3359 = vrot.lane.b32.xlu0 %v2899, 56
      %v3360 = vpop.permute.xlu0 %3359
      %3361 = vrot.lane.b32.xlu0 %v2904, 56
      %v3362 = vpop.permute.xlu0 %3361
      %v3367 = vsel %vm3029, %v3351, 0
      %v3370 = vsel %vm3029, %v3352, 0
      %v3373 = vsel %vm3029, %v3353, 0
      %v3376 = vsel %vm3029, %v3354, 0
      %v3378 = vsel %vm3102, %v3362, 0
      %3380 = vmatprep.subr.mxu0 0.0
      %3381 = vmatpush1.msra.mxu0 %v3356
      %3382 = vmatprep.subr.mxu0 0.0
      %3383 = vmatpush1.msra.mxu0 %v3358
      %3384 = vmatprep.subr.mxu0 0.0
      %3385 = vmatpush1.msra.mxu0 %v3360
      %3386 = vmatprep.subr.mxu0 0.0
      %3387 = vmatpush1.msra.mxu0 %v3378
      %3388 = vmatprep.subr.mxu0 0.0
      %3389 = vmatpush1.msra.mxu0 0.0
      %3390 = vmatprep.subr.mxu0 0.0
      %3391 = vmatpush1.msra.mxu0 0.0
      %3392 = vmatprep.subr.mxu0 0.0
      %3393 = vmatpush1.msra.mxu0 0.0
      %3394 = vmatprep.subr.mxu0 0.0
      %3395 = vmatpush1.msra.mxu0 0.0
      %3396 = vmatprep.subr.mxu0 0.0
      %3397 = vmatpush1.msra.mxu0 0.0
      %3398 = vmatprep.subr.mxu0 0.0
      %3399 = vmatpush1.msra.mxu0 0.0
      %3400 = vmatprep.subr.mxu0 0.0
      %3401 = vmatpush1.msra.mxu0 0.0
      %3402 = vmatprep.subr.mxu0 0.0
      %3403 = vmatpush1.msra.mxu0 0.0
      %3404 = vmatprep.subr.mxu0 0.0
      %3405 = vmatpush1.msra.mxu0 0.0
      %3406 = vmatprep.subr.mxu0 0.0
      %3407 = vmatpush1.msra.mxu0 0.0
      %3408 = vmatprep.subr.mxu0 0.0
      %3409 = vmatpush1.msra.mxu0 0.0
      %3410 = vmatprep.subr.mxu0 0.0
      %3411 = vmatpush1.msra.mxu0 0.0
      %3412 = vmatprep.subr.mxu0 0.0
      %3413 = vmatpush1.msra.mxu0 0.0
      %3414 = vmatprep.subr.mxu0 0.0
      %3415 = vmatpush1.msra.mxu0 0.0
      %3416 = vmatprep.subr.mxu0 0.0
      %3417 = vmatpush1.msra.mxu0 0.0
      %3418 = vmatprep.subr.mxu0 0.0
      %3419 = vmatpush1.msra.mxu0 0.0
      %3420 = vmatprep.subr.mxu0 0.0
      %3421 = vmatpush1.msra.mxu0 0.0
      %3422 = vmatprep.subr.mxu0 0.0
      %3423 = vmatpush1.msra.mxu0 0.0
      %3424 = vmatprep.subr.mxu0 0.0
      %3425 = vmatpush1.msra.mxu0 0.0
      %3426 = vmatprep.subr.mxu0 0.0
      %3427 = vmatpush1.msra.mxu0 0.0
      %3428 = vmatprep.subr.mxu0 0.0
      %3429 = vmatpush1.msra.mxu0 0.0
      %3430 = vmatprep.subr.mxu0 0.0
      %3431 = vmatpush1.msra.mxu0 0.0
      %3432 = vmatprep.subr.mxu0 0.0
      %3433 = vmatpush1.msra.mxu0 0.0
      %3434 = vmatprep.subr.mxu0 0.0
      %3435 = vmatpush1.msra.mxu0 0.0
      %3436 = vmatprep.subr.mxu0 0.0
      %3437 = vmatpush1.msra.mxu0 0.0
      %3438 = vmatprep.subr.mxu0 0.0
      %3439 = vmatpush1.msra.mxu0 0.0
      %3440 = vmatprep.subr.mxu0 0.0
      %3441 = vmatpush1.msra.mxu0 0.0
      %3442 = vmatprep.subr.mxu0 0.0
      %3443 = vmatpush1.msra.mxu0 0.0
      %3444 = vmatprep.mubr.f32.mxu0 0.0
      %3445 = vmatmul.mubr.f32.gmra.mrb[0].mxu0 %v3367
      %v3446 = vpop.f32.mrb[0].mxu0
      %v3447 = vadd.f32 0.0, %v3446
      %v3448 = vpop.f32.mrb[0].mxu0
      %3449 = vmatprep.mubr.f32.mxu0 0.0
      %3450 = vmatmul.mubr.f32.gmra.mrb[0].mxu0 %v3370
      %v3451 = vpop.f32.mrb[0].mxu0
      %v3452 = vadd.f32 0.0, %v3451
      %v3453 = vpop.f32.mrb[0].mxu0
      %3454 = vmatprep.mubr.f32.mxu0 0.0
      %3455 = vmatmul.mubr.f32.gmra.mrb[0].mxu0 %v3373
      %v3456 = vpop.f32.mrb[0].mxu0
      %v3457 = vadd.f32 0.0, %v3456
      %v3458 = vpop.f32.mrb[0].mxu0
      %3459 = vmatprep.mubr.f32.mxu0 0.0
      %3460 = vmatmul.mubr.f32.gmra.mrb[0].mxu0 %v3376
      %v3461 = vpop.f32.mrb[0].mxu0
      %v3462 = vadd.f32 0.0, %v3461
      %v3463 = vpop.f32.mrb[0].mxu0
      %3464 = vdwg.mxu0
      %3465 = vrot.lane.b32.xlu0 %v2907, 112
      %v3466 = vpop.permute.xlu0 %3465
      %3467 = vrot.lane.b32.xlu0 %v2908, 112
      %v3468 = vpop.permute.xlu0 %3467
      %3469 = vrot.lane.b32.xlu0 %v2909, 112
      %v3470 = vpop.permute.xlu0 %3469
      %3471 = vrot.lane.b32.xlu0 %v2910, 112
      %v3472 = vpop.permute.xlu0 %3471
      %3473 = vrot.lane.b32.xlu0 %v2889, 80
      %v3474 = vpop.permute.xlu0 %3473
      %3475 = vrot.lane.b32.xlu0 %v2894, 80
      %v3476 = vpop.permute.xlu0 %3475
      %3477 = vrot.lane.b32.xlu0 %v2899, 80
      %v3478 = vpop.permute.xlu0 %3477
      %3479 = vrot.lane.b32.xlu0 %v2904, 80
      %v3480 = vpop.permute.xlu0 %3479
      %v3481 = vsel %vm2923, %v3466, 0
      %v3483 = vsel %vm2923, %v3468, 0
      %v3485 = vsel %vm2923, %v3470, 0
      %v3487 = vsel %vm2923, %v3472, 0
      %v3489 = vsel %vm2923, %v3474, 0
      %v3491 = vsel %vm2923, %v3476, 0
      %v3493 = vsel %vm2923, %v3478, 0
      %v3495 = vsel %vm2923, %v3480, 0
      %3497 = vmatprep.subr.mxu0 0.0
      %3498 = vmatpush1.xpose.msra.mxu0 %v3489
      %3499 = vmatprep.subr.mxu0 0.0
      %3500 = vmatpush1.xpose.msra.mxu0 %v3491
      %3501 = vmatprep.subr.mxu0 0.0
      %3502 = vmatpush1.xpose.msra.mxu0 %v3493
      %3503 = vmatprep.subr.mxu0 0.0
      %3504 = vmatpush1.xpose.msra.mxu0 %v3495
      %3505 = vmatprep.subr.mxu0 0.0
      %3506 = vmatpush1.xpose.msra.mxu0 0.0
      %3507 = vmatprep.subr.mxu0 0.0
      %3508 = vmatpush1.xpose.msra.mxu0 0.0
      %3509 = vmatprep.subr.mxu0 0.0
      %3510 = vmatpush1.xpose.msra.mxu0 0.0
      %3511 = vmatprep.subr.mxu0 0.0
      %3512 = vmatpush1.xpose.msra.mxu0 0.0
      %3513 = vmatprep.subr.mxu0 0.0
      %3514 = vmatpush1.xpose.msra.mxu0 0.0
      %3515 = vmatprep.subr.mxu0 0.0
      %3516 = vmatpush1.xpose.msra.mxu0 0.0
      %3517 = vmatprep.subr.mxu0 0.0
      %3518 = vmatpush1.xpose.msra.mxu0 0.0
      %3519 = vmatprep.subr.mxu0 0.0
      %3520 = vmatpush1.xpose.msra.mxu0 0.0
      %3521 = vmatprep.subr.mxu0 0.0
      %3522 = vmatpush1.xpose.msra.mxu0 0.0
      %3523 = vmatprep.subr.mxu0 0.0
      %3524 = vmatpush1.xpose.msra.mxu0 0.0
      %3525 = vmatprep.subr.mxu0 0.0
      %3526 = vmatpush1.xpose.msra.mxu0 0.0
      %3527 = vmatprep.subr.mxu0 0.0
      %3528 = vmatpush1.xpose.msra.mxu0 0.0
      %3529 = vmatprep.subr.mxu0 0.0
      %3530 = vmatpush1.xpose.msra.mxu0 0.0
      %3531 = vmatprep.subr.mxu0 0.0
      %3532 = vmatpush1.xpose.msra.mxu0 0.0
      %3533 = vmatprep.subr.mxu0 0.0
      %3534 = vmatpush1.xpose.msra.mxu0 0.0
      %3535 = vmatprep.subr.mxu0 0.0
      %3536 = vmatpush1.xpose.msra.mxu0 0.0
      %3537 = vmatprep.subr.mxu0 0.0
      %3538 = vmatpush1.xpose.msra.mxu0 0.0
      %3539 = vmatprep.subr.mxu0 0.0
      %3540 = vmatpush1.xpose.msra.mxu0 0.0
      %3541 = vmatprep.subr.mxu0 0.0
      %3542 = vmatpush1.xpose.msra.mxu0 0.0
      %3543 = vmatprep.subr.mxu0 0.0
      %3544 = vmatpush1.xpose.msra.mxu0 0.0
      %3545 = vmatprep.subr.mxu0 0.0
      %3546 = vmatpush1.xpose.msra.mxu0 0.0
      %3547 = vmatprep.subr.mxu0 0.0
      %3548 = vmatpush1.xpose.msra.mxu0 0.0
      %3549 = vmatprep.subr.mxu0 0.0
      %3550 = vmatpush1.xpose.msra.mxu0 0.0
      %3551 = vmatprep.subr.mxu0 0.0
      %3552 = vmatpush1.xpose.msra.mxu0 0.0
      %3553 = vmatprep.subr.mxu0 0.0
      %3554 = vmatpush1.xpose.msra.mxu0 0.0
      %3555 = vmatprep.subr.mxu0 0.0
      %3556 = vmatpush1.xpose.msra.mxu0 0.0
      %3557 = vmatprep.subr.mxu0 0.0
      %3558 = vmatpush1.xpose.msra.mxu0 0.0
      %3559 = vmatprep.subr.mxu0 0.0
      %3560 = vmatpush1.xpose.msra.mxu0 0.0
      %3561 = vmatprep.mubr.f32.mxu0 0.0
      %3562 = vmatmul.mubr.f32.gmra.mrb[0].mxu0 %v3481
      %v3563 = vpop.f32.mrb[0].mxu0
      %v3564 = vadd.f32 %v636, %v3563
      %v3565 = vpop.f32.mrb[0].mxu0
      %3566 = vmatprep.mubr.f32.mxu0 0.0
      %3567 = vmatmul.mubr.f32.gmra.mrb[0].mxu0 %v3483
      %v3568 = vpop.f32.mrb[0].mxu0
      %v3569 = vadd.f32 %v637, %v3568
      %v3570 = vpop.f32.mrb[0].mxu0
      %3571 = vmatprep.mubr.f32.mxu0 0.0
      %3572 = vmatmul.mubr.f32.gmra.mrb[0].mxu0 %v3485
      %v3573 = vpop.f32.mrb[0].mxu0
      %v3574 = vadd.f32 %v638, %v3573
      %v3575 = vpop.f32.mrb[0].mxu0
      %3576 = vmatprep.mubr.f32.mxu0 0.0
      %3577 = vmatmul.mubr.f32.gmra.mrb[0].mxu0 %v3487
      %v3578 = vpop.f32.mrb[0].mxu0
      %v3579 = vadd.f32 %v639, %v3578
      %v3580 = vpop.f32.mrb[0].mxu0
      %3581 = vdwg.mxu0
      %v3582 = vsel %vm3029, %v3564, -inf
      %3583 = vmax.xlane.f32.xlu0 %v3582
      %v3584 = vpop.xlane.xlu0 %3583
      %v3585 = vsel %vm3029, %v3569, -inf
      %3586 = vmax.xlane.f32.xlu0 %v3585
      %v3587 = vpop.xlane.xlu0 %3586
      %v3588 = vsel %vm3029, %v3574, -inf
      %3589 = vmax.xlane.f32.xlu0 %v3588
      %v3590 = vpop.xlane.xlu0 %3589
      %v3591 = vsel %vm3039, %v3579, -inf
      %3592 = vmax.xlane.f32.xlu0 %v3591
      %v3593 = vpop.xlane.xlu0 %3592
      %v3594 = vsub.f32 %v3564, %v3584
      %v3595 = vsub.f32 %v3569, %v3587
      %v3596 = vsub.f32 %v3574, %v3590
      %v3597 = vsub.f32 %v3579, %v3593
      %v3598 = vmul.f32 %v3594, 1.442695
      %v3599 = vpow.pop %v3598
      %v3600 = vmul.f32 %v3595, 1.442695
      %v3601 = vpow.pop %v3600
      %v3602 = vmul.f32 %v3596, 1.442695
      %v3603 = vpow.pop %v3602
      %v3604 = vmul.f32 %v3597, 1.442695
      %v3605 = vpow.pop %v3604
      %v3606 = vsel %vm3029, %v3599, 0.0
      %3607 = vadd.xlane.f32.xlu0 %v3606
      %v3608 = vpop.xlane.xlu0 %3607
      %v3609 = vsel %vm3029, %v3601, 0.0
      %3610 = vadd.xlane.f32.xlu0 %v3609
      %v3611 = vpop.xlane.xlu0 %3610
      %v3612 = vsel %vm3029, %v3603, 0.0
      %3613 = vadd.xlane.f32.xlu0 %v3612
      %v3614 = vpop.xlane.xlu0 %3613
      %v3615 = vsel %vm3039, %v3605, 0.0
      %3616 = vadd.xlane.f32.xlu0 %v3615
      %v3617 = vpop.xlane.xlu0 %3616
      %v3618 = vrcp.pop %v3608
      %v3619 = vmul.f32 1.0, %v3618
      %v3620 = vrcp.pop %v3611
      %v3621 = vmul.f32 1.0, %v3620
      %v3622 = vrcp.pop %v3614
      %v3623 = vmul.f32 1.0, %v3622
      %v3624 = vrcp.pop %v3617
      %v3625 = vmul.f32 1.0, %v3624
      %v3626 = vmul.f32 %v3599, %v3619
      %v3627 = vmul.f32 %v3601, %v3621
      %v3628 = vmul.f32 %v3603, %v3623
      %v3629 = vmul.f32 %v3605, %v3625
      %3630 = vrot.lane.b32.xlu0 %v2889, 48
      %v3631 = vpop.permute.xlu0 %3630
      %3632 = vrot.lane.b32.xlu0 %v2894, 48
      %v3633 = vpop.permute.xlu0 %3632
      %3634 = vrot.lane.b32.xlu0 %v2899, 48
      %v3635 = vpop.permute.xlu0 %3634
      %3636 = vrot.lane.b32.xlu0 %v2904, 48
      %v3637 = vpop.permute.xlu0 %3636
      %v3642 = vsel %vm3029, %v3626, 0
      %v3645 = vsel %vm3029, %v3627, 0
      %v3648 = vsel %vm3029, %v3628, 0
      %v3651 = vsel %vm3029, %v3629, 0
      %v3653 = vsel %vm3102, %v3637, 0
      %3655 = vmatprep.subr.mxu0 0.0
      %3656 = vmatpush1.msra.mxu0 %v3631
      %3657 = vmatprep.subr.mxu0 0.0
      %3658 = vmatpush1.msra.mxu0 %v3633
      %3659 = vmatprep.subr.mxu0 0.0
      %3660 = vmatpush1.msra.mxu0 %v3635
      %3661 = vmatprep.subr.mxu0 0.0
      %3662 = vmatpush1.msra.mxu0 %v3653
      %3663 = vmatprep.subr.mxu0 0.0
      %3664 = vmatpush1.msra.mxu0 0.0
      %3665 = vmatprep.subr.mxu0 0.0
      %3666 = vmatpush1.msra.mxu0 0.0
      %3667 = vmatprep.subr.mxu0 0.0
      %3668 = vmatpush1.msra.mxu0 0.0
      %3669 = vmatprep.subr.mxu0 0.0
      %3670 = vmatpush1.msra.mxu0 0.0
      %3671 = vmatprep.subr.mxu0 0.0
      %3672 = vmatpush1.msra.mxu0 0.0
      %3673 = vmatprep.subr.mxu0 0.0
      %3674 = vmatpush1.msra.mxu0 0.0
      %3675 = vmatprep.subr.mxu0 0.0
      %3676 = vmatpush1.msra.mxu0 0.0
      %3677 = vmatprep.subr.mxu0 0.0
      %3678 = vmatpush1.msra.mxu0 0.0
      %3679 = vmatprep.subr.mxu0 0.0
      %3680 = vmatpush1.msra.mxu0 0.0
      %3681 = vmatprep.subr.mxu0 0.0
      %3682 = vmatpush1.msra.mxu0 0.0
      %3683 = vmatprep.subr.mxu0 0.0
      %3684 = vmatpush1.msra.mxu0 0.0
      %3685 = vmatprep.subr.mxu0 0.0
      %3686 = vmatpush1.msra.mxu0 0.0
      %3687 = vmatprep.subr.mxu0 0.0
      %3688 = vmatpush1.msra.mxu0 0.0
      %3689 = vmatprep.subr.mxu0 0.0
      %3690 = vmatpush1.msra.mxu0 0.0
      %3691 = vmatprep.subr.mxu0 0.0
      %3692 = vmatpush1.msra.mxu0 0.0
      %3693 = vmatprep.subr.mxu0 0.0
      %3694 = vmatpush1.msra.mxu0 0.0
      %3695 = vmatprep.subr.mxu0 0.0
      %3696 = vmatpush1.msra.mxu0 0.0
      %3697 = vmatprep.subr.mxu0 0.0
      %3698 = vmatpush1.msra.mxu0 0.0
      %3699 = vmatprep.subr.mxu0 0.0
      %3700 = vmatpush1.msra.mxu0 0.0
      %3701 = vmatprep.subr.mxu0 0.0
      %3702 = vmatpush1.msra.mxu0 0.0
      %3703 = vmatprep.subr.mxu0 0.0
      %3704 = vmatpush1.msra.mxu0 0.0
      %3705 = vmatprep.subr.mxu0 0.0
      %3706 = vmatpush1.msra.mxu0 0.0
      %3707 = vmatprep.subr.mxu0 0.0
      %3708 = vmatpush1.msra.mxu0 0.0
      %3709 = vmatprep.subr.mxu0 0.0
      %3710 = vmatpush1.msra.mxu0 0.0
      %3711 = vmatprep.subr.mxu0 0.0
      %3712 = vmatpush1.msra.mxu0 0.0
      %3713 = vmatprep.subr.mxu0 0.0
      %3714 = vmatpush1.msra.mxu0 0.0
      %3715 = vmatprep.subr.mxu0 0.0
      %3716 = vmatpush1.msra.mxu0 0.0
      %3717 = vmatprep.subr.mxu0 0.0
      %3718 = vmatpush1.msra.mxu0 0.0
      %3719 = vmatprep.mubr.f32.mxu0 0.0
      %3720 = vmatmul.mubr.f32.gmra.mrb[0].mxu0 %v3642
      %v3721 = vpop.f32.mrb[0].mxu0
      %v3722 = vadd.f32 0.0, %v3721
      %v3723 = vpop.f32.mrb[0].mxu0
      %3724 = vmatprep.mubr.f32.mxu0 0.0
      %3725 = vmatmul.mubr.f32.gmra.mrb[0].mxu0 %v3645
      %v3726 = vpop.f32.mrb[0].mxu0
      %v3727 = vadd.f32 0.0, %v3726
      %v3728 = vpop.f32.mrb[0].mxu0
      %3729 = vmatprep.mubr.f32.mxu0 0.0
      %3730 = vmatmul.mubr.f32.gmra.mrb[0].mxu0 %v3648
      %v3731 = vpop.f32.mrb[0].mxu0
      %v3732 = vadd.f32 0.0, %v3731
      %v3733 = vpop.f32.mrb[0].mxu0
      %3734 = vmatprep.mubr.f32.mxu0 0.0
      %3735 = vmatmul.mubr.f32.gmra.mrb[0].mxu0 %v3651
      %v3736 = vpop.f32.mrb[0].mxu0
      %v3737 = vadd.f32 0.0, %v3736
      %v3738 = vpop.f32.mrb[0].mxu0
      %3739 = vdwg.mxu0
      %3740 = vrot.lane.b32.xlu0 %v2907, 104
      %v3741 = vpop.permute.xlu0 %3740
      %3742 = vrot.lane.b32.xlu0 %v2908, 104
      %v3743 = vpop.permute.xlu0 %3742
      %3744 = vrot.lane.b32.xlu0 %v2909, 104
      %v3745 = vpop.permute.xlu0 %3744
      %3746 = vrot.lane.b32.xlu0 %v2910, 104
      %v3747 = vpop.permute.xlu0 %3746
      %3748 = vrot.lane.b32.xlu0 %v2889, 72
      %v3749 = vpop.permute.xlu0 %3748
      %3750 = vrot.lane.b32.xlu0 %v2894, 72
      %v3751 = vpop.permute.xlu0 %3750
      %3752 = vrot.lane.b32.xlu0 %v2899, 72
      %v3753 = vpop.permute.xlu0 %3752
      %3754 = vrot.lane.b32.xlu0 %v2904, 72
      %v3755 = vpop.permute.xlu0 %3754
      %v3756 = vsel %vm2923, %v3741, 0
      %v3758 = vsel %vm2923, %v3743, 0
      %v3760 = vsel %vm2923, %v3745, 0
      %v3762 = vsel %vm2923, %v3747, 0
      %v3764 = vsel %vm2923, %v3749, 0
      %v3766 = vsel %vm2923, %v3751, 0
      %v3768 = vsel %vm2923, %v3753, 0
      %v3770 = vsel %vm2923, %v3755, 0
      %3772 = vmatprep.subr.mxu0 0.0
      %3773 = vmatpush1.xpose.msra.mxu0 %v3764
      %3774 = vmatprep.subr.mxu0 0.0
      %3775 = vmatpush1.xpose.msra.mxu0 %v3766
      %3776 = vmatprep.subr.mxu0 0.0
      %3777 = vmatpush1.xpose.msra.mxu0 %v3768
      %3778 = vmatprep.subr.mxu0 0.0
      %3779 = vmatpush1.xpose.msra.mxu0 %v3770
      %3780 = vmatprep.subr.mxu0 0.0
      %3781 = vmatpush1.xpose.msra.mxu0 0.0
      %3782 = vmatprep.subr.mxu0 0.0
      %3783 = vmatpush1.xpose.msra.mxu0 0.0
      %3784 = vmatprep.subr.mxu0 0.0
      %3785 = vmatpush1.xpose.msra.mxu0 0.0
      %3786 = vmatprep.subr.mxu0 0.0
      %3787 = vmatpush1.xpose.msra.mxu0 0.0
      %3788 = vmatprep.subr.mxu0 0.0
      %3789 = vmatpush1.xpose.msra.mxu0 0.0
      %3790 = vmatprep.subr.mxu0 0.0
      %3791 = vmatpush1.xpose.msra.mxu0 0.0
      %3792 = vmatprep.subr.mxu0 0.0
      %3793 = vmatpush1.xpose.msra.mxu0 0.0
      %3794 = vmatprep.subr.mxu0 0.0
      %3795 = vmatpush1.xpose.msra.mxu0 0.0
      %3796 = vmatprep.subr.mxu0 0.0
      %3797 = vmatpush1.xpose.msra.mxu0 0.0
      %3798 = vmatprep.subr.mxu0 0.0
      %3799 = vmatpush1.xpose.msra.mxu0 0.0
      %3800 = vmatprep.subr.mxu0 0.0
      %3801 = vmatpush1.xpose.msra.mxu0 0.0
      %3802 = vmatprep.subr.mxu0 0.0
      %3803 = vmatpush1.xpose.msra.mxu0 0.0
      %3804 = vmatprep.subr.mxu0 0.0
      %3805 = vmatpush1.xpose.msra.mxu0 0.0
      %3806 = vmatprep.subr.mxu0 0.0
      %3807 = vmatpush1.xpose.msra.mxu0 0.0
      %3808 = vmatprep.subr.mxu0 0.0
      %3809 = vmatpush1.xpose.msra.mxu0 0.0
      %3810 = vmatprep.subr.mxu0 0.0
      %3811 = vmatpush1.xpose.msra.mxu0 0.0
      %3812 = vmatprep.subr.mxu0 0.0
      %3813 = vmatpush1.xpose.msra.mxu0 0.0
      %3814 = vmatprep.subr.mxu0 0.0
      %3815 = vmatpush1.xpose.msra.mxu0 0.0
      %3816 = vmatprep.subr.mxu0 0.0
      %3817 = vmatpush1.xpose.msra.mxu0 0.0
      %3818 = vmatprep.subr.mxu0 0.0
      %3819 = vmatpush1.xpose.msra.mxu0 0.0
      %3820 = vmatprep.subr.mxu0 0.0
      %3821 = vmatpush1.xpose.msra.mxu0 0.0
      %3822 = vmatprep.subr.mxu0 0.0
      %3823 = vmatpush1.xpose.msra.mxu0 0.0
      %3824 = vmatprep.subr.mxu0 0.0
      %3825 = vmatpush1.xpose.msra.mxu0 0.0
      %3826 = vmatprep.subr.mxu0 0.0
      %3827 = vmatpush1.xpose.msra.mxu0 0.0
      %3828 = vmatprep.subr.mxu0 0.0
      %3829 = vmatpush1.xpose.msra.mxu0 0.0
      %3830 = vmatprep.subr.mxu0 0.0
      %3831 = vmatpush1.xpose.msra.mxu0 0.0
      %3832 = vmatprep.subr.mxu0 0.0
      %3833 = vmatpush1.xpose.msra.mxu0 0.0
      %3834 = vmatprep.subr.mxu0 0.0
      %3835 = vmatpush1.xpose.msra.mxu0 0.0
      %3836 = vmatprep.mubr.f32.mxu0 0.0
      %3837 = vmatmul.mubr.f32.gmra.mrb[0].mxu0 %v3756
      %v3838 = vpop.f32.mrb[0].mxu0
      %v3839 = vadd.f32 %v636, %v3838
      %v3840 = vpop.f32.mrb[0].mxu0
      %3841 = vmatprep.mubr.f32.mxu0 0.0
      %3842 = vmatmul.mubr.f32.gmra.mrb[0].mxu0 %v3758
      %v3843 = vpop.f32.mrb[0].mxu0
      %v3844 = vadd.f32 %v637, %v3843
      %v3845 = vpop.f32.mrb[0].mxu0
      %3846 = vmatprep.mubr.f32.mxu0 0.0
      %3847 = vmatmul.mubr.f32.gmra.mrb[0].mxu0 %v3760
      %v3848 = vpop.f32.mrb[0].mxu0
      %v3849 = vadd.f32 %v638, %v3848
      %v3850 = vpop.f32.mrb[0].mxu0
      %3851 = vmatprep.mubr.f32.mxu0 0.0
      %3852 = vmatmul.mubr.f32.gmra.mrb[0].mxu0 %v3762
      %v3853 = vpop.f32.mrb[0].mxu0
      %v3854 = vadd.f32 %v639, %v3853
      %v3855 = vpop.f32.mrb[0].mxu0
      %3856 = vdwg.mxu0
      %v3857 = vsel %vm3029, %v3839, -inf
      %3858 = vmax.xlane.f32.xlu0 %v3857
      %v3859 = vpop.xlane.xlu0 %3858
      %v3860 = vsel %vm3029, %v3844, -inf
      %3861 = vmax.xlane.f32.xlu0 %v3860
      %v3862 = vpop.xlane.xlu0 %3861
      %v3863 = vsel %vm3029, %v3849, -inf
      %3864 = vmax.xlane.f32.xlu0 %v3863
      %v3865 = vpop.xlane.xlu0 %3864
      %v3866 = vsel %vm3039, %v3854, -inf
      %3867 = vmax.xlane.f32.xlu0 %v3866
      %v3868 = vpop.xlane.xlu0 %3867
      %v3869 = vsub.f32 %v3839, %v3859
      %v3870 = vsub.f32 %v3844, %v3862
      %v3871 = vsub.f32 %v3849, %v3865
      %v3872 = vsub.f32 %v3854, %v3868
      %v3873 = vmul.f32 %v3869, 1.442695
      %v3874 = vpow.pop %v3873
      %v3875 = vmul.f32 %v3870, 1.442695
      %v3876 = vpow.pop %v3875
      %v3877 = vmul.f32 %v3871, 1.442695
      %v3878 = vpow.pop %v3877
      %v3879 = vmul.f32 %v3872, 1.442695
      %v3880 = vpow.pop %v3879
      %v3881 = vsel %vm3029, %v3874, 0.0
      %3882 = vadd.xlane.f32.xlu0 %v3881
      %v3883 = vpop.xlane.xlu0 %3882
      %v3884 = vsel %vm3029, %v3876, 0.0
      %3885 = vadd.xlane.f32.xlu0 %v3884
      %v3886 = vpop.xlane.xlu0 %3885
      %v3887 = vsel %vm3029, %v3878, 0.0
      %3888 = vadd.xlane.f32.xlu0 %v3887
      %v3889 = vpop.xlane.xlu0 %3888
      %v3890 = vsel %vm3039, %v3880, 0.0
      %3891 = vadd.xlane.f32.xlu0 %v3890
      %v3892 = vpop.xlane.xlu0 %3891
      %v3893 = vrcp.pop %v3883
      %v3894 = vmul.f32 1.0, %v3893
      %v3895 = vrcp.pop %v3886
      %v3896 = vmul.f32 1.0, %v3895
      %v3897 = vrcp.pop %v3889
      %v3898 = vmul.f32 1.0, %v3897
      %v3899 = vrcp.pop %v3892
      %v3900 = vmul.f32 1.0, %v3899
      %v3901 = vmul.f32 %v3874, %v3894
      %v3902 = vmul.f32 %v3876, %v3896
      %v3903 = vmul.f32 %v3878, %v3898
      %v3904 = vmul.f32 %v3880, %v3900
      %3905 = vrot.lane.b32.xlu0 %v2889, 40
      %v3906 = vpop.permute.xlu0 %3905
      %3907 = vrot.lane.b32.xlu0 %v2894, 40
      %v3908 = vpop.permute.xlu0 %3907
      %3909 = vrot.lane.b32.xlu0 %v2899, 40
      %v3910 = vpop.permute.xlu0 %3909
      %3911 = vrot.lane.b32.xlu0 %v2904, 40
      %v3912 = vpop.permute.xlu0 %3911
      %v3917 = vsel %vm3029, %v3901, 0
      %v3920 = vsel %vm3029, %v3902, 0
      %v3923 = vsel %vm3029, %v3903, 0
      %v3926 = vsel %vm3029, %v3904, 0
      %v3928 = vsel %vm3102, %v3912, 0
      %3930 = vmatprep.subr.mxu0 0.0
      %3931 = vmatpush1.msra.mxu0 %v3906
      %3932 = vmatprep.subr.mxu0 0.0
      %3933 = vmatpush1.msra.mxu0 %v3908
      %3934 = vmatprep.subr.mxu0 0.0
      %3935 = vmatpush1.msra.mxu0 %v3910
      %3936 = vmatprep.subr.mxu0 0.0
      %3937 = vmatpush1.msra.mxu0 %v3928
      %3938 = vmatprep.subr.mxu0 0.0
      %3939 = vmatpush1.msra.mxu0 0.0
      %3940 = vmatprep.subr.mxu0 0.0
      %3941 = vmatpush1.msra.mxu0 0.0
      %3942 = vmatprep.subr.mxu0 0.0
      %3943 = vmatpush1.msra.mxu0 0.0
      %3944 = vmatprep.subr.mxu0 0.0
      %3945 = vmatpush1.msra.mxu0 0.0
      %3946 = vmatprep.subr.mxu0 0.0
      %3947 = vmatpush1.msra.mxu0 0.0
      %3948 = vmatprep.subr.mxu0 0.0
      %3949 = vmatpush1.msra.mxu0 0.0
      %3950 = vmatprep.subr.mxu0 0.0
      %3951 = vmatpush1.msra.mxu0 0.0
      %3952 = vmatprep.subr.mxu0 0.0
      %3953 = vmatpush1.msra.mxu0 0.0
      %3954 = vmatprep.subr.mxu0 0.0
      %3955 = vmatpush1.msra.mxu0 0.0
      %3956 = vmatprep.subr.mxu0 0.0
      %3957 = vmatpush1.msra.mxu0 0.0
      %3958 = vmatprep.subr.mxu0 0.0
      %3959 = vmatpush1.msra.mxu0 0.0
      %3960 = vmatprep.subr.mxu0 0.0
      %3961 = vmatpush1.msra.mxu0 0.0
      %3962 = vmatprep.subr.mxu0 0.0
      %3963 = vmatpush1.msra.mxu0 0.0
      %3964 = vmatprep.subr.mxu0 0.0
      %3965 = vmatpush1.msra.mxu0 0.0
      %3966 = vmatprep.subr.mxu0 0.0
      %3967 = vmatpush1.msra.mxu0 0.0
      %3968 = vmatprep.subr.mxu0 0.0
      %3969 = vmatpush1.msra.mxu0 0.0
      %3970 = vmatprep.subr.mxu0 0.0
      %3971 = vmatpush1.msra.mxu0 0.0
      %3972 = vmatprep.subr.mxu0 0.0
      %3973 = vmatpush1.msra.mxu0 0.0
      %3974 = vmatprep.subr.mxu0 0.0
      %3975 = vmatpush1.msra.mxu0 0.0
      %3976 = vmatprep.subr.mxu0 0.0
      %3977 = vmatpush1.msra.mxu0 0.0
      %3978 = vmatprep.subr.mxu0 0.0
      %3979 = vmatpush1.msra.mxu0 0.0
      %3980 = vmatprep.subr.mxu0 0.0
      %3981 = vmatpush1.msra.mxu0 0.0
      %3982 = vmatprep.subr.mxu0 0.0
      %3983 = vmatpush1.msra.mxu0 0.0
      %3984 = vmatprep.subr.mxu0 0.0
      %3985 = vmatpush1.msra.mxu0 0.0
      %3986 = vmatprep.subr.mxu0 0.0
      %3987 = vmatpush1.msra.mxu0 0.0
      %3988 = vmatprep.subr.mxu0 0.0
      %3989 = vmatpush1.msra.mxu0 0.0
      %3990 = vmatprep.subr.mxu0 0.0
      %3991 = vmatpush1.msra.mxu0 0.0
      %3992 = vmatprep.subr.mxu0 0.0
      %3993 = vmatpush1.msra.mxu0 0.0
      %3994 = vmatprep.mubr.f32.mxu0 0.0
      %3995 = vmatmul.mubr.f32.gmra.mrb[0].mxu0 %v3917
      %v3996 = vpop.f32.mrb[0].mxu0
      %v3997 = vadd.f32 0.0, %v3996
      %v3998 = vpop.f32.mrb[0].mxu0
      %3999 = vmatprep.mubr.f32.mxu0 0.0
      %4000 = vmatmul.mubr.f32.gmra.mrb[0].mxu0 %v3920
      %v4001 = vpop.f32.mrb[0].mxu0
      %v4002 = vadd.f32 0.0, %v4001
      %v4003 = vpop.f32.mrb[0].mxu0
      %4004 = vmatprep.mubr.f32.mxu0 0.0
      %4005 = vmatmul.mubr.f32.gmra.mrb[0].mxu0 %v3923
      %v4006 = vpop.f32.mrb[0].mxu0
      %v4007 = vadd.f32 0.0, %v4006
      %v4008 = vpop.f32.mrb[0].mxu0
      %4009 = vmatprep.mubr.f32.mxu0 0.0
      %4010 = vmatmul.mubr.f32.gmra.mrb[0].mxu0 %v3926
      %v4011 = vpop.f32.mrb[0].mxu0
      %v4012 = vadd.f32 0.0, %v4011
      %v4013 = vpop.f32.mrb[0].mxu0
      %4014 = vdwg.mxu0
      %4019 = vrot.lane.b32.xlu0 %v3447, 8
      %v4020 = vpop.permute.xlu0 %4019
      %4021 = vrot.lane.b32.xlu0 %v3452, 8
      %v4022 = vpop.permute.xlu0 %4021
      %4023 = vrot.lane.b32.xlu0 %v3457, 8
      %v4024 = vpop.permute.xlu0 %4023
      %4025 = vrot.lane.b32.xlu0 %v3462, 8
      %v4026 = vpop.permute.xlu0 %4025
      %4035 = vrot.lane.b32.xlu0 %v3722, 16
      %v4036 = vpop.permute.xlu0 %4035
      %4037 = vrot.lane.b32.xlu0 %v3727, 16
      %v4038 = vpop.permute.xlu0 %4037
      %4039 = vrot.lane.b32.xlu0 %v3732, 16
      %v4040 = vpop.permute.xlu0 %4039
      %4041 = vrot.lane.b32.xlu0 %v3737, 16
      %v4042 = vpop.permute.xlu0 %4041
      %4051 = vrot.lane.b32.xlu0 %v3997, 24
      %v4052 = vpop.permute.xlu0 %4051
      %4053 = vrot.lane.b32.xlu0 %v4002, 24
      %v4054 = vpop.permute.xlu0 %4053
      %4055 = vrot.lane.b32.xlu0 %v4007, 24
      %v4056 = vpop.permute.xlu0 %4055
      %4057 = vrot.lane.b32.xlu0 %v4012, 24
      %v4058 = vpop.permute.xlu0 %4057
      %v4063 = vsel %vm2923, %v3172, %v4020
      %v4064 = vsel %vm2923, %v3177, %v4022
      %v4065 = vsel %vm2923, %v3182, %v4024
      %v4066 = vsel %vm2923, %v3187, %v4026
      %v4067 = vsel %vm676, %v4063, %v4036
      %v4068 = vsel %vm676, %v4064, %v4038
      %v4069 = vsel %vm676, %v4065, %v4040
      %v4070 = vsel %vm676, %v4066, %v4042
      %vm4071 = vcmask 195584
      %v4072 = vsel %vm4071, %v4067, %v4052
      %v4073 = vsel %vm4071, %v4068, %v4054
      %v4074 = vsel %vm4071, %v4069, %v4056
      %v4075 = vsel %vm4071, %v4070, %v4058
      %4080 = vrot.lane.b32.xlu0 %v2792, 32
      %v4081 = vpop.permute.xlu0 %4080
      %4082 = vrot.lane.b32.xlu0 %v2793, 32
      %v4083 = vpop.permute.xlu0 %4082
      %4084 = vrot.lane.b32.xlu0 %v2794, 32
      %v4085 = vpop.permute.xlu0 %4084
      %4086 = vrot.lane.b32.xlu0 %v2795, 32
      %v4087 = vpop.permute.xlu0 %4086
      %v4093 = vsel %vm2499, %v4072, 0
      %v4096 = vsel %vm2499, %v4073, 0
      %v4099 = vsel %vm2499, %v4074, 0
      %v4102 = vsel %vm2499, %v4075, 0
      %4104 = vmatprep.subr.mxu0 0.0
      %4105 = vmatpush1.msra.mxu0 %v4081
      %4106 = vmatprep.subr.mxu0 0.0
      %4107 = vmatpush1.msra.mxu0 %v4083
      %4108 = vmatprep.subr.mxu0 0.0
      %4109 = vmatpush1.msra.mxu0 %v4085
      %4110 = vmatprep.subr.mxu0 0.0
      %4111 = vmatpush1.msra.mxu0 %v4087
      %4112 = vmatprep.subr.mxu0 0.0
      %4113 = vmatpush1.msra.mxu0 0.0
      %4114 = vmatprep.subr.mxu0 0.0
      %4115 = vmatpush1.msra.mxu0 0.0
      %4116 = vmatprep.subr.mxu0 0.0
      %4117 = vmatpush1.msra.mxu0 0.0
      %4118 = vmatprep.subr.mxu0 0.0
      %4119 = vmatpush1.msra.mxu0 0.0
      %4120 = vmatprep.subr.mxu0 0.0
      %4121 = vmatpush1.msra.mxu0 0.0
      %4122 = vmatprep.subr.mxu0 0.0
      %4123 = vmatpush1.msra.mxu0 0.0
      %4124 = vmatprep.subr.mxu0 0.0
      %4125 = vmatpush1.msra.mxu0 0.0
      %4126 = vmatprep.subr.mxu0 0.0
      %4127 = vmatpush1.msra.mxu0 0.0
      %4128 = vmatprep.subr.mxu0 0.0
      %4129 = vmatpush1.msra.mxu0 0.0
      %4130 = vmatprep.subr.mxu0 0.0
      %4131 = vmatpush1.msra.mxu0 0.0
      %4132 = vmatprep.subr.mxu0 0.0
      %4133 = vmatpush1.msra.mxu0 0.0
      %4134 = vmatprep.subr.mxu0 0.0
      %4135 = vmatpush1.msra.mxu0 0.0
      %4136 = vmatprep.subr.mxu0 0.0
      %4137 = vmatpush1.msra.mxu0 0.0
      %4138 = vmatprep.subr.mxu0 0.0
      %4139 = vmatpush1.msra.mxu0 0.0
      %4140 = vmatprep.subr.mxu0 0.0
      %4141 = vmatpush1.msra.mxu0 0.0
      %4142 = vmatprep.subr.mxu0 0.0
      %4143 = vmatpush1.msra.mxu0 0.0
      %4144 = vmatprep.subr.mxu0 0.0
      %4145 = vmatpush1.msra.mxu0 0.0
      %4146 = vmatprep.subr.mxu0 0.0
      %4147 = vmatpush1.msra.mxu0 0.0
      %4148 = vmatprep.subr.mxu0 0.0
      %4149 = vmatpush1.msra.mxu0 0.0
      %4150 = vmatprep.subr.mxu0 0.0
      %4151 = vmatpush1.msra.mxu0 0.0
      %4152 = vmatprep.subr.mxu0 0.0
      %4153 = vmatpush1.msra.mxu0 0.0
      %4154 = vmatprep.subr.mxu0 0.0
      %4155 = vmatpush1.msra.mxu0 0.0
      %4156 = vmatprep.subr.mxu0 0.0
      %4157 = vmatpush1.msra.mxu0 0.0
      %4158 = vmatprep.subr.mxu0 0.0
      %4159 = vmatpush1.msra.mxu0 0.0
      %4160 = vmatprep.subr.mxu0 0.0
      %4161 = vmatpush1.msra.mxu0 0.0
      %4162 = vmatprep.subr.mxu0 0.0
      %4163 = vmatpush1.msra.mxu0 0.0
      %4164 = vmatprep.subr.mxu0 0.0
      %4165 = vmatpush1.msra.mxu0 0.0
      %4166 = vmatprep.subr.mxu0 0.0
      %4167 = vmatpush1.msra.mxu0 0.0
      %4168 = vmatprep.mubr.f32.mxu0 0.0
      %4169 = vmatmul.mubr.f32.gmra.mrb[0].mxu0 %v4093
      %v4170 = vpop.f32.mrb[0].mxu0
      %v4171 = vadd.f32 0.0, %v4170
      %v4172 = vpop.f32.mrb[0].mxu0
      %4173 = vmatprep.mubr.f32.mxu0 0.0
      %4174 = vmatmul.mubr.f32.gmra.mrb[0].mxu0 %v4096
      %v4175 = vpop.f32.mrb[0].mxu0
      %v4176 = vadd.f32 0.0, %v4175
      %v4177 = vpop.f32.mrb[0].mxu0
      %4178 = vmatprep.mubr.f32.mxu0 0.0
      %4179 = vmatmul.mubr.f32.gmra.mrb[0].mxu0 %v4099
      %v4180 = vpop.f32.mrb[0].mxu0
      %v4181 = vadd.f32 0.0, %v4180
      %v4182 = vpop.f32.mrb[0].mxu0
      %4183 = vmatprep.mubr.f32.mxu0 0.0
      %4184 = vmatmul.mubr.f32.gmra.mrb[0].mxu0 %v4102
      %v4185 = vpop.f32.mrb[0].mxu0
      %v4186 = vadd.f32 0.0, %v4185
      %v4187 = vpop.f32.mrb[0].mxu0
      %4188 = vdwg.mxu0
      %v4190 = vlaneseq
      %v4191 = vshrl.u32 %v4190, 7
      %v4192 = vsub.s32 0, %v4191
      %v4193 = vrot.slane %v2802, %v4192
      %4194 = vrot.lane.b32.xlu0 %v4193, 96
      %v4195 = vpop.permute.xlu0 %4194
      %v4197 = vmul.f32 %v2774, %v4195
      %v4198 = vmul.f32 %v2779, %v4195
      %v4199 = vmul.f32 %v2784, %v4195
      %v4200 = vmul.f32 %v2789, %v4195
      %v4201 = vadd.f32 %v4197, %v4171
      %v4202 = vadd.f32 %v4198, %v4176
      %v4203 = vadd.f32 %v4199, %v4181
      %v4204 = vadd.f32 %v4200, %v4186
      %4205 = vrot.lane.b32.xlu0 %v4193, 64
      %v4206 = vpop.permute.xlu0 %4205
      %v4208 = vadd.f32 %v4201, %v4206
      %v4209 = vadd.f32 %v4202, %v4206
      %v4210 = vadd.f32 %v4203, %v4206
      %v4211 = vadd.f32 %v4204, %v4206
      %v4213 = vlaneseq
      %v4214 = vshrl.u32 %v4213, 7
      %v4215 = vsub.s32 0, %v4214
      %v4216 = vrot.slane %v2801, %v4215
      %v4217 = vlaneseq
      %v4218 = vshrl.u32 %v4217, 7
      %v4219 = vsub.s32 1, %v4218
      %v4220 = vrot.slane %v2801, %v4219
      %4221 = vrot.lane.b32.xlu0 %v4216, 32
      %v4222 = vpop.permute.xlu0 %4221
      %4223 = vrot.lane.b32.xlu0 %v4220, 32
      %v4224 = vpop.permute.xlu0 %4223
      %v4225 = vsel %vm2499, %v4222, %v4224
      %v4228 = vsel %vm2499, %v4208, 0
      %v4231 = vsel %vm2499, %v4209, 0
      %v4234 = vsel %vm2499, %v4210, 0
      %v4237 = vsel %vm2499, %v4211, 0
      %4239 = vmatprep.subr.mxu0 0.0
      %4240 = vmatpush1.msra.mxu0 %v2796
      %4241 = vmatprep.subr.mxu0 0.0
      %4242 = vmatpush1.msra.mxu0 %v2797
      %4243 = vmatprep.subr.mxu0 0.0
      %4244 = vmatpush1.msra.mxu0 %v2798
      %4245 = vmatprep.subr.mxu0 0.0
      %4246 = vmatpush1.msra.mxu0 %v2799
      %4247 = vmatprep.subr.mxu0 0.0
      %4248 = vmatpush1.msra.mxu0 0.0
      %4249 = vmatprep.subr.mxu0 0.0
      %4250 = vmatpush1.msra.mxu0 0.0
      %4251 = vmatprep.subr.mxu0 0.0
      %4252 = vmatpush1.msra.mxu0 0.0
      %4253 = vmatprep.subr.mxu0 0.0
      %4254 = vmatpush1.msra.mxu0 0.0
      %4255 = vmatprep.subr.mxu0 0.0
      %4256 = vmatpush1.msra.mxu0 0.0
      %4257 = vmatprep.subr.mxu0 0.0
      %4258 = vmatpush1.msra.mxu0 0.0
      %4259 = vmatprep.subr.mxu0 0.0
      %4260 = vmatpush1.msra.mxu0 0.0
      %4261 = vmatprep.subr.mxu0 0.0
      %4262 = vmatpush1.msra.mxu0 0.0
      %4263 = vmatprep.subr.mxu0 0.0
      %4264 = vmatpush1.msra.mxu0 0.0
      %4265 = vmatprep.subr.mxu0 0.0
      %4266 = vmatpush1.msra.mxu0 0.0
      %4267 = vmatprep.subr.mxu0 0.0
      %4268 = vmatpush1.msra.mxu0 0.0
      %4269 = vmatprep.subr.mxu0 0.0
      %4270 = vmatpush1.msra.mxu0 0.0
      %4271 = vmatprep.subr.mxu0 0.0
      %4272 = vmatpush1.msra.mxu0 0.0
      %4273 = vmatprep.subr.mxu0 0.0
      %4274 = vmatpush1.msra.mxu0 0.0
      %4275 = vmatprep.subr.mxu0 0.0
      %4276 = vmatpush1.msra.mxu0 0.0
      %4277 = vmatprep.subr.mxu0 0.0
      %4278 = vmatpush1.msra.mxu0 0.0
      %4279 = vmatprep.subr.mxu0 0.0
      %4280 = vmatpush1.msra.mxu0 0.0
      %4281 = vmatprep.subr.mxu0 0.0
      %4282 = vmatpush1.msra.mxu0 0.0
      %4283 = vmatprep.subr.mxu0 0.0
      %4284 = vmatpush1.msra.mxu0 0.0
      %4285 = vmatprep.subr.mxu0 0.0
      %4286 = vmatpush1.msra.mxu0 0.0
      %4287 = vmatprep.subr.mxu0 0.0
      %4288 = vmatpush1.msra.mxu0 0.0
      %4289 = vmatprep.subr.mxu0 0.0
      %4290 = vmatpush1.msra.mxu0 0.0
      %4291 = vmatprep.subr.mxu0 0.0
      %4292 = vmatpush1.msra.mxu0 0.0
      %4293 = vmatprep.subr.mxu0 0.0
      %4294 = vmatpush1.msra.mxu0 0.0
      %4295 = vmatprep.subr.mxu0 0.0
      %4296 = vmatpush1.msra.mxu0 0.0
      %4297 = vmatprep.subr.mxu0 0.0
      %4298 = vmatpush1.msra.mxu0 0.0
      %4299 = vmatprep.subr.mxu0 0.0
      %4300 = vmatpush1.msra.mxu0 0.0
      %4301 = vmatprep.subr.mxu0 0.0
      %4302 = vmatpush1.msra.mxu0 0.0
      %4303 = vmatprep.mubr.f32.mxu0 0.0
      %4304 = vmatmul.mubr.f32.gmra.mrb[0].mxu0 %v4228
      %v4305 = vpop.f32.mrb[0].mxu0
      %v4306 = vadd.f32 %v4225, %v4305
      %v4307 = vpop.f32.mrb[0].mxu0
      %4308 = vmatprep.mubr.f32.mxu0 0.0
      %4309 = vmatmul.mubr.f32.gmra.mrb[0].mxu0 %v4231
      %v4310 = vpop.f32.mrb[0].mxu0
      %v4311 = vadd.f32 %v4225, %v4310
      %v4312 = vpop.f32.mrb[0].mxu0
      %4313 = vmatprep.mubr.f32.mxu0 0.0
      %4314 = vmatmul.mubr.f32.gmra.mrb[0].mxu0 %v4234
      %v4315 = vpop.f32.mrb[0].mxu0
      %v4316 = vadd.f32 %v4225, %v4315
      %v4317 = vpop.f32.mrb[0].mxu0
      %4318 = vmatprep.mubr.f32.mxu0 0.0
      %4319 = vmatmul.mubr.f32.gmra.mrb[0].mxu0 %v4237
      %v4320 = vpop.f32.mrb[0].mxu0
      %v4321 = vadd.f32 %v4225, %v4320
      %v4322 = vpop.f32.mrb[0].mxu0
      %4323 = vdwg.mxu0
      %v4324 = vmul.f32 %v4306, 0.5
      %v4325 = vmul.f32 %v4311, 0.5
      %v4326 = vmul.f32 %v4316, 0.5
      %v4327 = vmul.f32 %v4321, 0.5
      %v4328 = vmul.f32 %v4306, 0.044715
      %v4329 = vmul.f32 %v4311, 0.044715
      %v4330 = vmul.f32 %v4316, 0.044715
      %v4331 = vmul.f32 %v4321, 0.044715
      %v4332 = vmul.f32 %v4328, %v4306
      %v4333 = vmul.f32 %v4329, %v4311
      %v4334 = vmul.f32 %v4330, %v4316
      %v4335 = vmul.f32 %v4331, %v4321
      %v4336 = vmul.f32 %v4332, %v4306
      %v4337 = vmul.f32 %v4333, %v4311
      %v4338 = vmul.f32 %v4334, %v4316
      %v4339 = vmul.f32 %v4335, %v4321
      %v4340 = vadd.f32 %v4306, %v4336
      %v4341 = vadd.f32 %v4311, %v4337
      %v4342 = vadd.f32 %v4316, %v4338
      %v4343 = vadd.f32 %v4321, %v4339
      %v4344 = vmul.f32 %v4340, 0.7978846
      %v4345 = vmul.f32 %v4341, 0.7978846
      %v4346 = vmul.f32 %v4342, 0.7978846
      %v4347 = vmul.f32 %v4343, 0.7978846
      %v4348 = vtanh.pop %v4344
      %v4349 = vtanh.pop %v4345
      %v4350 = vtanh.pop %v4346
      %v4351 = vtanh.pop %v4347
      %v4352 = vadd.f32 %v4348, 1.0
      %v4353 = vadd.f32 %v4349, 1.0
      %v4354 = vadd.f32 %v4350, 1.0
      %v4355 = vadd.f32 %v4351, 1.0
      %v4356 = vmul.f32 %v4324, %v4352
      %v4357 = vmul.f32 %v4325, %v4353
      %v4358 = vmul.f32 %v4326, %v4354
      %v4359 = vmul.f32 %v4327, %v4355
      %v4360 = vld [vmem:[%s6] sm:$0xff]
      %v4361 = vld [vmem:[%s6 + $0x8] sm:$0xff]
      %v4362 = vld [vmem:[%s6 + $0x10] sm:$0xff]
      %v4363 = vld [vmem:[%s6 + $0x18] sm:$0xff]
      %v4364 = vld [vmem:[%s6 + $0x20] sm:$0xff]
      %v4365 = vld [vmem:[%s6 + $0x28] sm:$0xff]
      %v4366 = vld [vmem:[%s6 + $0x30] sm:$0xff]
      %v4367 = vld [vmem:[%s6 + $0x38] sm:$0xff]
      %vm4368 = vcmask 523264
      %v4370 = vsel %vm4368, %v4356, 0
      %v4373 = vsel %vm4368, %v4357, 0
      %v4376 = vsel %vm4368, %v4358, 0
      %v4379 = vsel %vm4368, %v4359, 0
      %4381 = vmatprep.subr.mxu0 0.0
      %4382 = vmatpush1.msra.mxu0 %v4360
      %4383 = vmatprep.subr.mxu0 0.0
      %4384 = vmatpush1.msra.mxu0 %v4361
      %4385 = vmatprep.subr.mxu0 0.0
      %4386 = vmatpush1.msra.mxu0 %v4362
      %4387 = vmatprep.subr.mxu0 0.0
      %4388 = vmatpush1.msra.mxu0 %v4363
      %4389 = vmatprep.subr.mxu0 0.0
      %4390 = vmatpush1.msra.mxu0 %v4364
      %4391 = vmatprep.subr.mxu0 0.0
      %4392 = vmatpush1.msra.mxu0 %v4365
      %4393 = vmatprep.subr.mxu0 0.0
      %4394 = vmatpush1.msra.mxu0 %v4366
      %4395 = vmatprep.subr.mxu0 0.0
      %4396 = vmatpush1.msra.mxu0 %v4367
      %4397 = vmatprep.subr.mxu0 0.0
      %4398 = vmatpush1.msra.mxu0 0.0
      %4399 = vmatprep.subr.mxu0 0.0
      %4400 = vmatpush1.msra.mxu0 0.0
      %4401 = vmatprep.subr.mxu0 0.0
      %4402 = vmatpush1.msra.mxu0 0.0
      %4403 = vmatprep.subr.mxu0 0.0
      %4404 = vmatpush1.msra.mxu0 0.0
      %4405 = vmatprep.subr.mxu0 0.0
      %4406 = vmatpush1.msra.mxu0 0.0
      %4407 = vmatprep.subr.mxu0 0.0
      %4408 = vmatpush1.msra.mxu0 0.0
      %4409 = vmatprep.subr.mxu0 0.0
      %4410 = vmatpush1.msra.mxu0 0.0
      %4411 = vmatprep.subr.mxu0 0.0
      %4412 = vmatpush1.msra.mxu0 0.0
      %4413 = vmatprep.subr.mxu0 0.0
      %4414 = vmatpush1.msra.mxu0 0.0
      %4415 = vmatprep.subr.mxu0 0.0
      %4416 = vmatpush1.msra.mxu0 0.0
      %4417 = vmatprep.subr.mxu0 0.0
      %4418 = vmatpush1.msra.mxu0 0.0
      %4419 = vmatprep.subr.mxu0 0.0
      %4420 = vmatpush1.msra.mxu0 0.0
      %4421 = vmatprep.subr.mxu0 0.0
      %4422 = vmatpush1.msra.mxu0 0.0
      %4423 = vmatprep.subr.mxu0 0.0
      %4424 = vmatpush1.msra.mxu0 0.0
      %4425 = vmatprep.subr.mxu0 0.0
      %4426 = vmatpush1.msra.mxu0 0.0
      %4427 = vmatprep.subr.mxu0 0.0
      %4428 = vmatpush1.msra.mxu0 0.0
      %4429 = vmatprep.subr.mxu0 0.0
      %4430 = vmatpush1.msra.mxu0 0.0
      %4431 = vmatprep.subr.mxu0 0.0
      %4432 = vmatpush1.msra.mxu0 0.0
      %4433 = vmatprep.subr.mxu0 0.0
      %4434 = vmatpush1.msra.mxu0 0.0
      %4435 = vmatprep.subr.mxu0 0.0
      %4436 = vmatpush1.msra.mxu0 0.0
      %4437 = vmatprep.subr.mxu0 0.0
      %4438 = vmatpush1.msra.mxu0 0.0
      %4439 = vmatprep.subr.mxu0 0.0
      %4440 = vmatpush1.msra.mxu0 0.0
      %4441 = vmatprep.subr.mxu0 0.0
      %4442 = vmatpush1.msra.mxu0 0.0
      %4443 = vmatprep.subr.mxu0 0.0
      %4444 = vmatpush1.msra.mxu0 0.0
      %4445 = vmatprep.mubr.f32.mxu0 0.0
      %4446 = vmatmul.mubr.f32.gmra.mrb[0].mxu0 %v4370
      %v4447 = vpop.f32.mrb[0].mxu0
      %v4448 = vadd.f32 0.0, %v4447
      %v4449 = vpop.f32.mrb[0].mxu0
      %4450 = vmatprep.mubr.f32.mxu0 0.0
      %4451 = vmatmul.mubr.f32.gmra.mrb[0].mxu0 %v4373
      %v4452 = vpop.f32.mrb[0].mxu0
      %v4453 = vadd.f32 0.0, %v4452
      %v4454 = vpop.f32.mrb[0].mxu0
      %4455 = vmatprep.mubr.f32.mxu0 0.0
      %4456 = vmatmul.mubr.f32.gmra.mrb[0].mxu0 %v4376
      %v4457 = vpop.f32.mrb[0].mxu0
      %v4458 = vadd.f32 0.0, %v4457
      %v4459 = vpop.f32.mrb[0].mxu0
      %4460 = vmatprep.mubr.f32.mxu0 0.0
      %4461 = vmatmul.mubr.f32.gmra.mrb[0].mxu0 %v4379
      %v4462 = vpop.f32.mrb[0].mxu0
      %v4463 = vadd.f32 0.0, %v4462
      %v4464 = vpop.f32.mrb[0].mxu0
      %4465 = vdwg.mxu0
      %4466 = vrot.lane.b32.xlu0 %v4193, 32
      %v4467 = vpop.permute.xlu0 %4466
      %v4469 = vmul.f32 %v4208, %v4467
      %v4470 = vmul.f32 %v4209, %v4467
      %v4471 = vmul.f32 %v4210, %v4467
      %v4472 = vmul.f32 %v4211, %v4467
      %v4473 = vadd.f32 %v4469, %v4448
      %v4474 = vadd.f32 %v4470, %v4453
      %v4475 = vadd.f32 %v4471, %v4458
      %v4476 = vadd.f32 %v4472, %v4463
      %v4478 = vlaneseq
      %v4479 = vshrl.u32 %v4478, 7
      %v4480 = vsub.s32 0, %v4479
      %v4481 = vrot.slane %v2803, %v4480
      %v4483 = vadd.f32 %v4473, %v4481
      %v4484 = vadd.f32 %v4474, %v4481
      %v4485 = vadd.f32 %v4475, %v4481
      %v4486 = vadd.f32 %v4476, %v4481
      %s4487 = scalar_lea.vmem %s5, 64
      %v4488 = vld [vmem:[%s4487] sm:$0xff]
      %v4489 = vld [vmem:[%s4487 + $0x10] sm:$0xff]
      %v4490 = vld [vmem:[%s4487 + $0x20] sm:$0xff]
      %v4491 = vld [vmem:[%s4487 + $0x30] sm:$0xff]
      %v4492 = vld [vmem:[%s4487 + $0x8] sm:$0xff]
      %v4493 = vld [vmem:[%s4487 + $0x18] sm:$0xff]
      %v4494 = vld [vmem:[%s4487 + $0x28] sm:$0xff]
      %v4495 = vld [vmem:[%s4487 + $0x38] sm:$0xff]
      %s4496 = scalar_lea.vmem %s7, 3
      %v4497 = vld [vmem:[%s4496] sm:$0x1]
      %v4498 = vld [vmem:[%s4496] sm:$0x3]
      %v4499 = vld [vmem:[%s4496 + $0x1] sm:$0x1]
      %v4500 = vld [vmem:[%s4496 + $0x2] sm:$0x1]
      %v4502 = vlaneseq
      %v4503 = vshrl.u32 %v4502, 7
      %v4504 = vsub.s32 0, %v4503
      %v4505 = vrot.slane %v4497, %v4504
      %v4508 = vsel %vm2499, %v4483, 0
      %v4511 = vsel %vm2499, %v4484, 0
      %v4514 = vsel %vm2499, %v4485, 0
      %v4517 = vsel %vm2499, %v4486, 0
      %4519 = vmatprep.subr.mxu0 0.0
      %4520 = vmatpush1.msra.mxu0 %v4488
      %4521 = vmatprep.subr.mxu0 0.0
      %4522 = vmatpush1.msra.mxu0 %v4489
      %4523 = vmatprep.subr.mxu0 0.0
      %4524 = vmatpush1.msra.mxu0 %v4490
      %4525 = vmatprep.subr.mxu0 0.0
      %4526 = vmatpush1.msra.mxu0 %v4491
      %4527 = vmatprep.subr.mxu0 0.0
      %4528 = vmatpush1.msra.mxu0 0.0
      %4529 = vmatprep.subr.mxu0 0.0
      %4530 = vmatpush1.msra.mxu0 0.0
      %4531 = vmatprep.subr.mxu0 0.0
      %4532 = vmatpush1.msra.mxu0 0.0
      %4533 = vmatprep.subr.mxu0 0.0
      %4534 = vmatpush1.msra.mxu0 0.0
      %4535 = vmatprep.subr.mxu0 0.0
      %4536 = vmatpush1.msra.mxu0 0.0
      %4537 = vmatprep.subr.mxu0 0.0
      %4538 = vmatpush1.msra.mxu0 0.0
      %4539 = vmatprep.subr.mxu0 0.0
      %4540 = vmatpush1.msra.mxu0 0.0
      %4541 = vmatprep.subr.mxu0 0.0
      %4542 = vmatpush1.msra.mxu0 0.0
      %4543 = vmatprep.subr.mxu0 0.0
      %4544 = vmatpush1.msra.mxu0 0.0
      %4545 = vmatprep.subr.mxu0 0.0
      %4546 = vmatpush1.msra.mxu0 0.0
      %4547 = vmatprep.subr.mxu0 0.0
      %4548 = vmatpush1.msra.mxu0 0.0
      %4549 = vmatprep.subr.mxu0 0.0
      %4550 = vmatpush1.msra.mxu0 0.0
      %4551 = vmatprep.subr.mxu0 0.0
      %4552 = vmatpush1.msra.mxu0 0.0
      %4553 = vmatprep.subr.mxu0 0.0
      %4554 = vmatpush1.msra.mxu0 0.0
      %4555 = vmatprep.subr.mxu0 0.0
      %4556 = vmatpush1.msra.mxu0 0.0
      %4557 = vmatprep.subr.mxu0 0.0
      %4558 = vmatpush1.msra.mxu0 0.0
      %4559 = vmatprep.subr.mxu0 0.0
      %4560 = vmatpush1.msra.mxu0 0.0
      %4561 = vmatprep.subr.mxu0 0.0
      %4562 = vmatpush1.msra.mxu0 0.0
      %4563 = vmatprep.subr.mxu0 0.0
      %4564 = vmatpush1.msra.mxu0 0.0
      %4565 = vmatprep.subr.mxu0 0.0
      %4566 = vmatpush1.msra.mxu0 0.0
      %4567 = vmatprep.subr.mxu0 0.0
      %4568 = vmatpush1.msra.mxu0 0.0
      %4569 = vmatprep.subr.mxu0 0.0
      %4570 = vmatpush1.msra.mxu0 0.0
      %4571 = vmatprep.subr.mxu0 0.0
      %4572 = vmatpush1.msra.mxu0 0.0
      %4573 = vmatprep.subr.mxu0 0.0
      %4574 = vmatpush1.msra.mxu0 0.0
      %4575 = vmatprep.subr.mxu0 0.0
      %4576 = vmatpush1.msra.mxu0 0.0
      %4577 = vmatprep.subr.mxu0 0.0
      %4578 = vmatpush1.msra.mxu0 0.0
      %4579 = vmatprep.subr.mxu0 0.0
      %4580 = vmatpush1.msra.mxu0 0.0
      %4581 = vmatprep.subr.mxu0 0.0
      %4582 = vmatpush1.msra.mxu0 0.0
      %4583 = vmatprep.mubr.f32.mxu0 0.0
      %4584 = vmatmul.mubr.f32.gmra.mrb[0].mxu0 %v4508
      %v4585 = vpop.f32.mrb[0].mxu0
      %v4586 = vadd.f32 %v4505, %v4585
      %v4587 = vpop.f32.mrb[0].mxu0
      %4588 = vmatprep.mubr.f32.mxu0 0.0
      %4589 = vmatmul.mubr.f32.gmra.mrb[0].mxu0 %v4511
      %v4590 = vpop.f32.mrb[0].mxu0
      %v4591 = vadd.f32 %v4505, %v4590
      %v4592 = vpop.f32.mrb[0].mxu0
      %4593 = vmatprep.mubr.f32.mxu0 0.0
      %4594 = vmatmul.mubr.f32.gmra.mrb[0].mxu0 %v4514
      %v4595 = vpop.f32.mrb[0].mxu0
      %v4596 = vadd.f32 %v4505, %v4595
      %v4597 = vpop.f32.mrb[0].mxu0
      %4598 = vmatprep.mubr.f32.mxu0 0.0
      %4599 = vmatmul.mubr.f32.gmra.mrb[0].mxu0 %v4517
      %v4600 = vpop.f32.mrb[0].mxu0
      %v4601 = vadd.f32 %v4505, %v4600
      %v4602 = vpop.f32.mrb[0].mxu0
      %4603 = vdwg.mxu0
      %v4604 = vmul.f32 %v4586, 0.35355338
      %v4605 = vmul.f32 %v4591, 0.35355338
      %v4606 = vmul.f32 %v4596, 0.35355338
      %v4607 = vmul.f32 %v4601, 0.35355338
      %4612 = vrot.lane.b32.xlu0 %v4586, 96
      %v4613 = vpop.permute.xlu0 %4612
      %4614 = vrot.lane.b32.xlu0 %v4591, 96
      %v4615 = vpop.permute.xlu0 %4614
      %4616 = vrot.lane.b32.xlu0 %v4596, 96
      %v4617 = vpop.permute.xlu0 %4616
      %4618 = vrot.lane.b32.xlu0 %v4601, 96
      %v4619 = vpop.permute.xlu0 %4618
      %v4621 = vsel %vm2923, %v4604, 0
      %v4624 = vsel %vm2923, %v4605, 0
      %v4627 = vsel %vm2923, %v4606, 0
      %v4630 = vsel %vm2923, %v4607, 0
      %v4632 = vsel %vm2923, %v4613, 0
      %v4634 = vsel %vm2923, %v4615, 0
      %v4636 = vsel %vm2923, %v4617, 0
      %v4638 = vsel %vm2923, %v4619, 0
      %4640 = vmatprep.subr.mxu0 0.0
      %4641 = vmatpush1.xpose.msra.mxu0 %v4632
      %4642 = vmatprep.subr.mxu0 0.0
      %4643 = vmatpush1.xpose.msra.mxu0 %v4634
      %4644 = vmatprep.subr.mxu0 0.0
      %4645 = vmatpush1.xpose.msra.mxu0 %v4636
      %4646 = vmatprep.subr.mxu0 0.0
      %4647 = vmatpush1.xpose.msra.mxu0 %v4638
      %4648 = vmatprep.subr.mxu0 0.0
      %4649 = vmatpush1.xpose.msra.mxu0 0.0
      %4650 = vmatprep.subr.mxu0 0.0
      %4651 = vmatpush1.xpose.msra.mxu0 0.0
      %4652 = vmatprep.subr.mxu0 0.0
      %4653 = vmatpush1.xpose.msra.mxu0 0.0
      %4654 = vmatprep.subr.mxu0 0.0
      %4655 = vmatpush1.xpose.msra.mxu0 0.0
      %4656 = vmatprep.subr.mxu0 0.0
      %4657 = vmatpush1.xpose.msra.mxu0 0.0
      %4658 = vmatprep.subr.mxu0 0.0
      %4659 = vmatpush1.xpose.msra.mxu0 0.0
      %4660 = vmatprep.subr.mxu0 0.0
      %4661 = vmatpush1.xpose.msra.mxu0 0.0
      %4662 = vmatprep.subr.mxu0 0.0
      %4663 = vmatpush1.xpose.msra.mxu0 0.0
      %4664 = vmatprep.subr.mxu0 0.0
      %4665 = vmatpush1.xpose.msra.mxu0 0.0
      %4666 = vmatprep.subr.mxu0 0.0
      %4667 = vmatpush1.xpose.msra.mxu0 0.0
      %4668 = vmatprep.subr.mxu0 0.0
      %4669 = vmatpush1.xpose.msra.mxu0 0.0
      %4670 = vmatprep.subr.mxu0 0.0
      %4671 = vmatpush1.xpose.msra.mxu0 0.0
      %4672 = vmatprep.subr.mxu0 0.0
      %4673 = vmatpush1.xpose.msra.mxu0 0.0
      %4674 = vmatprep.subr.mxu0 0.0
      %4675 = vmatpush1.xpose.msra.mxu0 0.0
      %4676 = vmatprep.subr.mxu0 0.0
      %4677 = vmatpush1.xpose.msra.mxu0 0.0
      %4678 = vmatprep.subr.mxu0 0.0
      %4679 = vmatpush1.xpose.msra.mxu0 0.0
      %4680 = vmatprep.subr.mxu0 0.0
      %4681 = vmatpush1.xpose.msra.mxu0 0.0
      %4682 = vmatprep.subr.mxu0 0.0
      %4683 = vmatpush1.xpose.msra.mxu0 0.0
      %4684 = vmatprep.subr.mxu0 0.0
      %4685 = vmatpush1.xpose.msra.mxu0 0.0
      %4686 = vmatprep.subr.mxu0 0.0
      %4687 = vmatpush1.xpose.msra.mxu0 0.0
      %4688 = vmatprep.subr.mxu0 0.0
      %4689 = vmatpush1.xpose.msra.mxu0 0.0
      %4690 = vmatprep.subr.mxu0 0.0
      %4691 = vmatpush1.xpose.msra.mxu0 0.0
      %4692 = vmatprep.subr.mxu0 0.0
      %4693 = vmatpush1.xpose.msra.mxu0 0.0
      %4694 = vmatprep.subr.mxu0 0.0
      %4695 = vmatpush1.xpose.msra.mxu0 0.0
      %4696 = vmatprep.subr.mxu0 0.0
      %4697 = vmatpush1.xpose.msra.mxu0 0.0
      %4698 = vmatprep.subr.mxu0 0.0
      %4699 = vmatpush1.xpose.msra.mxu0 0.0
      %4700 = vmatprep.subr.mxu0 0.0
      %4701 = vmatpush1.xpose.msra.mxu0 0.0
      %4702 = vmatprep.subr.mxu0 0.0
      %4703 = vmatpush1.xpose.msra.mxu0 0.0
      %4704 = vmatprep.mubr.f32.mxu0 0.0
      %4705 = vmatmul.mubr.f32.gmra.mrb[0].mxu0 %v4621
      %v4706 = vpop.f32.mrb[0].mxu0
      %v4707 = vadd.f32 %v636, %v4706
      %v4708 = vpop.f32.mrb[0].mxu0
      %4709 = vmatprep.mubr.f32.mxu0 0.0
      %4710 = vmatmul.mubr.f32.gmra.mrb[0].mxu0 %v4624
      %v4711 = vpop.f32.mrb[0].mxu0
      %v4712 = vadd.f32 %v637, %v4711
      %v4713 = vpop.f32.mrb[0].mxu0
      %4714 = vmatprep.mubr.f32.mxu0 0.0
      %4715 = vmatmul.mubr.f32.gmra.mrb[0].mxu0 %v4627
      %v4716 = vpop.f32.mrb[0].mxu0
      %v4717 = vadd.f32 %v638, %v4716
      %v4718 = vpop.f32.mrb[0].mxu0
      %4719 = vmatprep.mubr.f32.mxu0 0.0
      %4720 = vmatmul.mubr.f32.gmra.mrb[0].mxu0 %v4630
      %v4721 = vpop.f32.mrb[0].mxu0
      %v4722 = vadd.f32 %v639, %v4721
      %v4723 = vpop.f32.mrb[0].mxu0
      %4724 = vdwg.mxu0
      %v4725 = vsel %vm3029, %v4707, -inf
      %4726 = vmax.xlane.f32.xlu0 %v4725
      %v4727 = vpop.xlane.xlu0 %4726
      %v4728 = vsel %vm3029, %v4712, -inf
      %4729 = vmax.xlane.f32.xlu0 %v4728
      %v4730 = vpop.xlane.xlu0 %4729
      %v4731 = vsel %vm3029, %v4717, -inf
      %4732 = vmax.xlane.f32.xlu0 %v4731
      %v4733 = vpop.xlane.xlu0 %4732
      %v4734 = vsel %vm3039, %v4722, -inf
      %4735 = vmax.xlane.f32.xlu0 %v4734
      %v4736 = vpop.xlane.xlu0 %4735
      %v4737 = vsub.f32 %v4707, %v4727
      %v4738 = vsub.f32 %v4712, %v4730
      %v4739 = vsub.f32 %v4717, %v4733
      %v4740 = vsub.f32 %v4722, %v4736
      %v4741 = vmul.f32 %v4737, 1.442695
      %v4742 = vpow.pop %v4741
      %v4743 = vmul.f32 %v4738, 1.442695
      %v4744 = vpow.pop %v4743
      %v4745 = vmul.f32 %v4739, 1.442695
      %v4746 = vpow.pop %v4745
      %v4747 = vmul.f32 %v4740, 1.442695
      %v4748 = vpow.pop %v4747
      %v4749 = vsel %vm3029, %v4742, 0.0
      %4750 = vadd.xlane.f32.xlu0 %v4749
      %v4751 = vpop.xlane.xlu0 %4750
      %v4752 = vsel %vm3029, %v4744, 0.0
      %4753 = vadd.xlane.f32.xlu0 %v4752
      %v4754 = vpop.xlane.xlu0 %4753
      %v4755 = vsel %vm3029, %v4746, 0.0
      %4756 = vadd.xlane.f32.xlu0 %v4755
      %v4757 = vpop.xlane.xlu0 %4756
      %v4758 = vsel %vm3039, %v4748, 0.0
      %4759 = vadd.xlane.f32.xlu0 %v4758
      %v4760 = vpop.xlane.xlu0 %4759
      %v4761 = vrcp.pop %v4751
      %v4762 = vmul.f32 1.0, %v4761
      %v4763 = vrcp.pop %v4754
      %v4764 = vmul.f32 1.0, %v4763
      %v4765 = vrcp.pop %v4757
      %v4766 = vmul.f32 1.0, %v4765
      %v4767 = vrcp.pop %v4760
      %v4768 = vmul.f32 1.0, %v4767
      %v4769 = vmul.f32 %v4742, %v4762
      %v4770 = vmul.f32 %v4744, %v4764
      %v4771 = vmul.f32 %v4746, %v4766
      %v4772 = vmul.f32 %v4748, %v4768
      %4773 = vrot.lane.b32.xlu0 %v4586, 64
      %v4774 = vpop.permute.xlu0 %4773
      %4775 = vrot.lane.b32.xlu0 %v4591, 64
      %v4776 = vpop.permute.xlu0 %4775
      %4777 = vrot.lane.b32.xlu0 %v4596, 64
      %v4778 = vpop.permute.xlu0 %4777
      %4779 = vrot.lane.b32.xlu0 %v4601, 64
      %v4780 = vpop.permute.xlu0 %4779
      %v4785 = vsel %vm3029, %v4769, 0
      %v4788 = vsel %vm3029, %v4770, 0
      %v4791 = vsel %vm3029, %v4771, 0
      %v4794 = vsel %vm3029, %v4772, 0
      %v4796 = vsel %vm3102, %v4780, 0
      %4798 = vmatprep.subr.mxu0 0.0
      %4799 = vmatpush1.msra.mxu0 %v4774
      %4800 = vmatprep.subr.mxu0 0.0
      %4801 = vmatpush1.msra.mxu0 %v4776
      %4802 = vmatprep.subr.mxu0 0.0
      %4803 = vmatpush1.msra.mxu0 %v4778
      %4804 = vmatprep.subr.mxu0 0.0
      %4805 = vmatpush1.msra.mxu0 %v4796
      %4806 = vmatprep.subr.mxu0 0.0
      %4807 = vmatpush1.msra.mxu0 0.0
      %4808 = vmatprep.subr.mxu0 0.0
      %4809 = vmatpush1.msra.mxu0 0.0
      %4810 = vmatprep.subr.mxu0 0.0
      %4811 = vmatpush1.msra.mxu0 0.0
      %4812 = vmatprep.subr.mxu0 0.0
      %4813 = vmatpush1.msra.mxu0 0.0
      %4814 = vmatprep.subr.mxu0 0.0
      %4815 = vmatpush1.msra.mxu0 0.0
      %4816 = vmatprep.subr.mxu0 0.0
      %4817 = vmatpush1.msra.mxu0 0.0
      %4818 = vmatprep.subr.mxu0 0.0
      %4819 = vmatpush1.msra.mxu0 0.0
      %4820 = vmatprep.subr.mxu0 0.0
      %4821 = vmatpush1.msra.mxu0 0.0
      %4822 = vmatprep.subr.mxu0 0.0
      %4823 = vmatpush1.msra.mxu0 0.0
      %4824 = vmatprep.subr.mxu0 0.0
      %4825 = vmatpush1.msra.mxu0 0.0
      %4826 = vmatprep.subr.mxu0 0.0
      %4827 = vmatpush1.msra.mxu0 0.0
      %4828 = vmatprep.subr.mxu0 0.0
      %4829 = vmatpush1.msra.mxu0 0.0
      %4830 = vmatprep.subr.mxu0 0.0
      %4831 = vmatpush1.msra.mxu0 0.0
      %4832 = vmatprep.subr.mxu0 0.0
      %4833 = vmatpush1.msra.mxu0 0.0
      %4834 = vmatprep.subr.mxu0 0.0
      %4835 = vmatpush1.msra.mxu0 0.0
      %4836 = vmatprep.subr.mxu0 0.0
      %4837 = vmatpush1.msra.mxu0 0.0
      %4838 = vmatprep.subr.mxu0 0.0
      %4839 = vmatpush1.msra.mxu0 0.0
      %4840 = vmatprep.subr.mxu0 0.0
      %4841 = vmatpush1.msra.mxu0 0.0
      %4842 = vmatprep.subr.mxu0 0.0
      %4843 = vmatpush1.msra.mxu0 0.0
      %4844 = vmatprep.subr.mxu0 0.0
      %4845 = vmatpush1.msra.mxu0 0.0
      %4846 = vmatprep.subr.mxu0 0.0
      %4847 = vmatpush1.msra.mxu0 0.0
      %4848 = vmatprep.subr.mxu0 0.0
      %4849 = vmatpush1.msra.mxu0 0.0
      %4850 = vmatprep.subr.mxu0 0.0
      %4851 = vmatpush1.msra.mxu0 0.0
      %4852 = vmatprep.subr.mxu0 0.0
      %4853 = vmatpush1.msra.mxu0 0.0
      %4854 = vmatprep.subr.mxu0 0.0
      %4855 = vmatpush1.msra.mxu0 0.0
      %4856 = vmatprep.subr.mxu0 0.0
      %4857 = vmatpush1.msra.mxu0 0.0
      %4858 = vmatprep.subr.mxu0 0.0
      %4859 = vmatpush1.msra.mxu0 0.0
      %4860 = vmatprep.subr.mxu0 0.0
      %4861 = vmatpush1.msra.mxu0 0.0
      %4862 = vmatprep.mubr.f32.mxu0 0.0
      %4863 = vmatmul.mubr.f32.gmra.mrb[0].mxu0 %v4785
      %v4864 = vpop.f32.mrb[0].mxu0
      %v4865 = vadd.f32 0.0, %v4864
      %v4866 = vpop.f32.mrb[0].mxu0
      %4867 = vmatprep.mubr.f32.mxu0 0.0
      %4868 = vmatmul.mubr.f32.gmra.mrb[0].mxu0 %v4788
      %v4869 = vpop.f32.mrb[0].mxu0
      %v4870 = vadd.f32 0.0, %v4869
      %v4871 = vpop.f32.mrb[0].mxu0
      %4872 = vmatprep.mubr.f32.mxu0 0.0
      %4873 = vmatmul.mubr.f32.gmra.mrb[0].mxu0 %v4791
      %v4874 = vpop.f32.mrb[0].mxu0
      %v4875 = vadd.f32 0.0, %v4874
      %v4876 = vpop.f32.mrb[0].mxu0
      %4877 = vmatprep.mubr.f32.mxu0 0.0
      %4878 = vmatmul.mubr.f32.gmra.mrb[0].mxu0 %v4794
      %v4879 = vpop.f32.mrb[0].mxu0
      %v4880 = vadd.f32 0.0, %v4879
      %v4881 = vpop.f32.mrb[0].mxu0
      %4882 = vdwg.mxu0
      %4883 = vrot.lane.b32.xlu0 %v4604, 120
      %v4884 = vpop.permute.xlu0 %4883
      %4885 = vrot.lane.b32.xlu0 %v4605, 120
      %v4886 = vpop.permute.xlu0 %4885
      %4887 = vrot.lane.b32.xlu0 %v4606, 120
      %v4888 = vpop.permute.xlu0 %4887
      %4889 = vrot.lane.b32.xlu0 %v4607, 120
      %v4890 = vpop.permute.xlu0 %4889
      %4891 = vrot.lane.b32.xlu0 %v4586, 88
      %v4892 = vpop.permute.xlu0 %4891
      %4893 = vrot.lane.b32.xlu0 %v4591, 88
      %v4894 = vpop.permute.xlu0 %4893
      %4895 = vrot.lane.b32.xlu0 %v4596, 88
      %v4896 = vpop.permute.xlu0 %4895
      %4897 = vrot.lane.b32.xlu0 %v4601, 88
      %v4898 = vpop.permute.xlu0 %4897
      %v4899 = vsel %vm2923, %v4884, 0
      %v4901 = vsel %vm2923, %v4886, 0
      %v4903 = vsel %vm2923, %v4888, 0
      %v4905 = vsel %vm2923, %v4890, 0
      %v4907 = vsel %vm2923, %v4892, 0
      %v4909 = vsel %vm2923, %v4894, 0
      %v4911 = vsel %vm2923, %v4896, 0
      %v4913 = vsel %vm2923, %v4898, 0
      %4915 = vmatprep.subr.mxu0 0.0
      %4916 = vmatpush1.xpose.msra.mxu0 %v4907
      %4917 = vmatprep.subr.mxu0 0.0
      %4918 = vmatpush1.xpose.msra.mxu0 %v4909
      %4919 = vmatprep.subr.mxu0 0.0
      %4920 = vmatpush1.xpose.msra.mxu0 %v4911
      %4921 = vmatprep.subr.mxu0 0.0
      %4922 = vmatpush1.xpose.msra.mxu0 %v4913
      %4923 = vmatprep.subr.mxu0 0.0
      %4924 = vmatpush1.xpose.msra.mxu0 0.0
      %4925 = vmatprep.subr.mxu0 0.0
      %4926 = vmatpush1.xpose.msra.mxu0 0.0
      %4927 = vmatprep.subr.mxu0 0.0
      %4928 = vmatpush1.xpose.msra.mxu0 0.0
      %4929 = vmatprep.subr.mxu0 0.0
      %4930 = vmatpush1.xpose.msra.mxu0 0.0
      %4931 = vmatprep.subr.mxu0 0.0
      %4932 = vmatpush1.xpose.msra.mxu0 0.0
      %4933 = vmatprep.subr.mxu0 0.0
      %4934 = vmatpush1.xpose.msra.mxu0 0.0
      %4935 = vmatprep.subr.mxu0 0.0
      %4936 = vmatpush1.xpose.msra.mxu0 0.0
      %4937 = vmatprep.subr.mxu0 0.0
      %4938 = vmatpush1.xpose.msra.mxu0 0.0
      %4939 = vmatprep.subr.mxu0 0.0
      %4940 = vmatpush1.xpose.msra.mxu0 0.0
      %4941 = vmatprep.subr.mxu0 0.0
      %4942 = vmatpush1.xpose.msra.mxu0 0.0
      %4943 = vmatprep.subr.mxu0 0.0
      %4944 = vmatpush1.xpose.msra.mxu0 0.0
      %4945 = vmatprep.subr.mxu0 0.0
      %4946 = vmatpush1.xpose.msra.mxu0 0.0
      %4947 = vmatprep.subr.mxu0 0.0
      %4948 = vmatpush1.xpose.msra.mxu0 0.0
      %4949 = vmatprep.subr.mxu0 0.0
      %4950 = vmatpush1.xpose.msra.mxu0 0.0
      %4951 = vmatprep.subr.mxu0 0.0
      %4952 = vmatpush1.xpose.msra.mxu0 0.0
      %4953 = vmatprep.subr.mxu0 0.0
      %4954 = vmatpush1.xpose.msra.mxu0 0.0
      %4955 = vmatprep.subr.mxu0 0.0
      %4956 = vmatpush1.xpose.msra.mxu0 0.0
      %4957 = vmatprep.subr.mxu0 0.0
      %4958 = vmatpush1.xpose.msra.mxu0 0.0
      %4959 = vmatprep.subr.mxu0 0.0
      %4960 = vmatpush1.xpose.msra.mxu0 0.0
      %4961 = vmatprep.subr.mxu0 0.0
      %4962 = vmatpush1.xpose.msra.mxu0 0.0
      %4963 = vmatprep.subr.mxu0 0.0
      %4964 = vmatpush1.xpose.msra.mxu0 0.0
      %4965 = vmatprep.subr.mxu0 0.0
      %4966 = vmatpush1.xpose.msra.mxu0 0.0
      %4967 = vmatprep.subr.mxu0 0.0
      %4968 = vmatpush1.xpose.msra.mxu0 0.0
      %4969 = vmatprep.subr.mxu0 0.0
      %4970 = vmatpush1.xpose.msra.mxu0 0.0
      %4971 = vmatprep.subr.mxu0 0.0
      %4972 = vmatpush1.xpose.msra.mxu0 0.0
      %4973 = vmatprep.subr.mxu0 0.0
      %4974 = vmatpush1.xpose.msra.mxu0 0.0
      %4975 = vmatprep.subr.mxu0 0.0
      %4976 = vmatpush1.xpose.msra.mxu0 0.0
      %4977 = vmatprep.subr.mxu0 0.0
      %4978 = vmatpush1.xpose.msra.mxu0 0.0
      %4979 = vmatprep.mubr.f32.mxu0 0.0
      %4980 = vmatmul.mubr.f32.gmra.mrb[0].mxu0 %v4899
      %v4981 = vpop.f32.mrb[0].mxu0
      %v4982 = vadd.f32 %v636, %v4981
      %v4983 = vpop.f32.mrb[0].mxu0
      %4984 = vmatprep.mubr.f32.mxu0 0.0
      %4985 = vmatmul.mubr.f32.gmra.mrb[0].mxu0 %v4901
      %v4986 = vpop.f32.mrb[0].mxu0
      %v4987 = vadd.f32 %v637, %v4986
      %v4988 = vpop.f32.mrb[0].mxu0
      %4989 = vmatprep.mubr.f32.mxu0 0.0
      %4990 = vmatmul.mubr.f32.gmra.mrb[0].mxu0 %v4903
      %v4991 = vpop.f32.mrb[0].mxu0
      %v4992 = vadd.f32 %v638, %v4991
      %v4993 = vpop.f32.mrb[0].mxu0
      %4994 = vmatprep.mubr.f32.mxu0 0.0
      %4995 = vmatmul.mubr.f32.gmra.mrb[0].mxu0 %v4905
      %v4996 = vpop.f32.mrb[0].mxu0
      %v4997 = vadd.f32 %v639, %v4996
      %v4998 = vpop.f32.mrb[0].mxu0
      %4999 = vdwg.mxu0
      %v5000 = vsel %vm3029, %v4982, -inf
      %5001 = vmax.xlane.f32.xlu0 %v5000
      %v5002 = vpop.xlane.xlu0 %5001
      %v5003 = vsel %vm3029, %v4987, -inf
      %5004 = vmax.xlane.f32.xlu0 %v5003
      %v5005 = vpop.xlane.xlu0 %5004
      %v5006 = vsel %vm3029, %v4992, -inf
      %5007 = vmax.xlane.f32.xlu0 %v5006
      %v5008 = vpop.xlane.xlu0 %5007
      %v5009 = vsel %vm3039, %v4997, -inf
      %5010 = vmax.xlane.f32.xlu0 %v5009
      %v5011 = vpop.xlane.xlu0 %5010
      %v5012 = vsub.f32 %v4982, %v5002
      %v5013 = vsub.f32 %v4987, %v5005
      %v5014 = vsub.f32 %v4992, %v5008
      %v5015 = vsub.f32 %v4997, %v5011
      %v5016 = vmul.f32 %v5012, 1.442695
      %v5017 = vpow.pop %v5016
      %v5018 = vmul.f32 %v5013, 1.442695
      %v5019 = vpow.pop %v5018
      %v5020 = vmul.f32 %v5014, 1.442695
      %v5021 = vpow.pop %v5020
      %v5022 = vmul.f32 %v5015, 1.442695
      %v5023 = vpow.pop %v5022
      %v5024 = vsel %vm3029, %v5017, 0.0
      %5025 = vadd.xlane.f32.xlu0 %v5024
      %v5026 = vpop.xlane.xlu0 %5025
      %v5027 = vsel %vm3029, %v5019, 0.0
      %5028 = vadd.xlane.f32.xlu0 %v5027
      %v5029 = vpop.xlane.xlu0 %5028
      %v5030 = vsel %vm3029, %v5021, 0.0
      %5031 = vadd.xlane.f32.xlu0 %v5030
      %v5032 = vpop.xlane.xlu0 %5031
      %v5033 = vsel %vm3039, %v5023, 0.0
      %5034 = vadd.xlane.f32.xlu0 %v5033
      %v5035 = vpop.xlane.xlu0 %5034
      %v5036 = vrcp.pop %v5026
      %v5037 = vmul.f32 1.0, %v5036
      %v5038 = vrcp.pop %v5029
      %v5039 = vmul.f32 1.0, %v5038
      %v5040 = vrcp.pop %v5032
      %v5041 = vmul.f32 1.0, %v5040
      %v5042 = vrcp.pop %v5035
      %v5043 = vmul.f32 1.0, %v5042
      %v5044 = vmul.f32 %v5017, %v5037
      %v5045 = vmul.f32 %v5019, %v5039
      %v5046 = vmul.f32 %v5021, %v5041
      %v5047 = vmul.f32 %v5023, %v5043
      %5048 = vrot.lane.b32.xlu0 %v4586, 56
      %v5049 = vpop.permute.xlu0 %5048
      %5050 = vrot.lane.b32.xlu0 %v4591, 56
      %v5051 = vpop.permute.xlu0 %5050
      %5052 = vrot.lane.b32.xlu0 %v4596, 56
      %v5053 = vpop.permute.xlu0 %5052
      %5054 = vrot.lane.b32.xlu0 %v4601, 56
      %v5055 = vpop.permute.xlu0 %5054
      %v5060 = vsel %vm3029, %v5044, 0
      %v5063 = vsel %vm3029, %v5045, 0
      %v5066 = vsel %vm3029, %v5046, 0
      %v5069 = vsel %vm3029, %v5047, 0
      %v5071 = vsel %vm3102, %v5055, 0
      %5073 = vmatprep.subr.mxu0 0.0
      %5074 = vmatpush1.msra.mxu0 %v5049
      %5075 = vmatprep.subr.mxu0 0.0
      %5076 = vmatpush1.msra.mxu0 %v5051
      %5077 = vmatprep.subr.mxu0 0.0
      %5078 = vmatpush1.msra.mxu0 %v5053
      %5079 = vmatprep.subr.mxu0 0.0
      %5080 = vmatpush1.msra.mxu0 %v5071
      %5081 = vmatprep.subr.mxu0 0.0
      %5082 = vmatpush1.msra.mxu0 0.0
      %5083 = vmatprep.subr.mxu0 0.0
      %5084 = vmatpush1.msra.mxu0 0.0
      %5085 = vmatprep.subr.mxu0 0.0
      %5086 = vmatpush1.msra.mxu0 0.0
      %5087 = vmatprep.subr.mxu0 0.0
      %5088 = vmatpush1.msra.mxu0 0.0
      %5089 = vmatprep.subr.mxu0 0.0
      %5090 = vmatpush1.msra.mxu0 0.0
      %5091 = vmatprep.subr.mxu0 0.0
      %5092 = vmatpush1.msra.mxu0 0.0
      %5093 = vmatprep.subr.mxu0 0.0
      %5094 = vmatpush1.msra.mxu0 0.0
      %5095 = vmatprep.subr.mxu0 0.0
      %5096 = vmatpush1.msra.mxu0 0.0
      %5097 = vmatprep.subr.mxu0 0.0
      %5098 = vmatpush1.msra.mxu0 0.0
      %5099 = vmatprep.subr.mxu0 0.0
      %5100 = vmatpush1.msra.mxu0 0.0
      %5101 = vmatprep.subr.mxu0 0.0
      %5102 = vmatpush1.msra.mxu0 0.0
      %5103 = vmatprep.subr.mxu0 0.0
      %5104 = vmatpush1.msra.mxu0 0.0
      %5105 = vmatprep.subr.mxu0 0.0
      %5106 = vmatpush1.msra.mxu0 0.0
      %5107 = vmatprep.subr.mxu0 0.0
      %5108 = vmatpush1.msra.mxu0 0.0
      %5109 = vmatprep.subr.mxu0 0.0
      %5110 = vmatpush1.msra.mxu0 0.0
      %5111 = vmatprep.subr.mxu0 0.0
      %5112 = vmatpush1.msra.mxu0 0.0
      %5113 = vmatprep.subr.mxu0 0.0
      %5114 = vmatpush1.msra.mxu0 0.0
      %5115 = vmatprep.subr.mxu0 0.0
      %5116 = vmatpush1.msra.mxu0 0.0
      %5117 = vmatprep.subr.mxu0 0.0
      %5118 = vmatpush1.msra.mxu0 0.0
      %5119 = vmatprep.subr.mxu0 0.0
      %5120 = vmatpush1.msra.mxu0 0.0
      %5121 = vmatprep.subr.mxu0 0.0
      %5122 = vmatpush1.msra.mxu0 0.0
      %5123 = vmatprep.subr.mxu0 0.0
      %5124 = vmatpush1.msra.mxu0 0.0
      %5125 = vmatprep.subr.mxu0 0.0
      %5126 = vmatpush1.msra.mxu0 0.0
      %5127 = vmatprep.subr.mxu0 0.0
      %5128 = vmatpush1.msra.mxu0 0.0
      %5129 = vmatprep.subr.mxu0 0.0
      %5130 = vmatpush1.msra.mxu0 0.0
      %5131 = vmatprep.subr.mxu0 0.0
      %5132 = vmatpush1.msra.mxu0 0.0
      %5133 = vmatprep.subr.mxu0 0.0
      %5134 = vmatpush1.msra.mxu0 0.0
      %5135 = vmatprep.subr.mxu0 0.0
      %5136 = vmatpush1.msra.mxu0 0.0
      %5137 = vmatprep.mubr.f32.mxu0 0.0
      %5138 = vmatmul.mubr.f32.gmra.mrb[0].mxu0 %v5060
      %v5139 = vpop.f32.mrb[0].mxu0
      %v5140 = vadd.f32 0.0, %v5139
      %v5141 = vpop.f32.mrb[0].mxu0
      %5142 = vmatprep.mubr.f32.mxu0 0.0
      %5143 = vmatmul.mubr.f32.gmra.mrb[0].mxu0 %v5063
      %v5144 = vpop.f32.mrb[0].mxu0
      %v5145 = vadd.f32 0.0, %v5144
      %v5146 = vpop.f32.mrb[0].mxu0
      %5147 = vmatprep.mubr.f32.mxu0 0.0
      %5148 = vmatmul.mubr.f32.gmra.mrb[0].mxu0 %v5066
      %v5149 = vpop.f32.mrb[0].mxu0
      %v5150 = vadd.f32 0.0, %v5149
      %v5151 = vpop.f32.mrb[0].mxu0
      %5152 = vmatprep.mubr.f32.mxu0 0.0
      %5153 = vmatmul.mubr.f32.gmra.mrb[0].mxu0 %v5069
      %v5154 = vpop.f32.mrb[0].mxu0
      %v5155 = vadd.f32 0.0, %v5154
      %v5156 = vpop.f32.mrb[0].mxu0
      %5157 = vdwg.mxu0
      %5158 = vrot.lane.b32.xlu0 %v4604, 112
      %v5159 = vpop.permute.xlu0 %5158
      %5160 = vrot.lane.b32.xlu0 %v4605, 112
      %v5161 = vpop.permute.xlu0 %5160
      %5162 = vrot.lane.b32.xlu0 %v4606, 112
      %v5163 = vpop.permute.xlu0 %5162
      %5164 = vrot.lane.b32.xlu0 %v4607, 112
      %v5165 = vpop.permute.xlu0 %5164
      %5166 = vrot.lane.b32.xlu0 %v4586, 80
      %v5167 = vpop.permute.xlu0 %5166
      %5168 = vrot.lane.b32.xlu0 %v4591, 80
      %v5169 = vpop.permute.xlu0 %5168
      %5170 = vrot.lane.b32.xlu0 %v4596, 80
      %v5171 = vpop.permute.xlu0 %5170
      %5172 = vrot.lane.b32.xlu0 %v4601, 80
      %v5173 = vpop.permute.xlu0 %5172
      %v5174 = vsel %vm2923, %v5159, 0
      %v5176 = vsel %vm2923, %v5161, 0
      %v5178 = vsel %vm2923, %v5163, 0
      %v5180 = vsel %vm2923, %v5165, 0
      %v5182 = vsel %vm2923, %v5167, 0
      %v5184 = vsel %vm2923, %v5169, 0
      %v5186 = vsel %vm2923, %v5171, 0
      %v5188 = vsel %vm2923, %v5173, 0
      %5190 = vmatprep.subr.mxu0 0.0
      %5191 = vmatpush1.xpose.msra.mxu0 %v5182
      %5192 = vmatprep.subr.mxu0 0.0
      %5193 = vmatpush1.xpose.msra.mxu0 %v5184
      %5194 = vmatprep.subr.mxu0 0.0
      %5195 = vmatpush1.xpose.msra.mxu0 %v5186
      %5196 = vmatprep.subr.mxu0 0.0
      %5197 = vmatpush1.xpose.msra.mxu0 %v5188
      %5198 = vmatprep.subr.mxu0 0.0
      %5199 = vmatpush1.xpose.msra.mxu0 0.0
      %5200 = vmatprep.subr.mxu0 0.0
      %5201 = vmatpush1.xpose.msra.mxu0 0.0
      %5202 = vmatprep.subr.mxu0 0.0
      %5203 = vmatpush1.xpose.msra.mxu0 0.0
      %5204 = vmatprep.subr.mxu0 0.0
      %5205 = vmatpush1.xpose.msra.mxu0 0.0
      %5206 = vmatprep.subr.mxu0 0.0
      %5207 = vmatpush1.xpose.msra.mxu0 0.0
      %5208 = vmatprep.subr.mxu0 0.0
      %5209 = vmatpush1.xpose.msra.mxu0 0.0
      %5210 = vmatprep.subr.mxu0 0.0
      %5211 = vmatpush1.xpose.msra.mxu0 0.0
      %5212 = vmatprep.subr.mxu0 0.0
      %5213 = vmatpush1.xpose.msra.mxu0 0.0
      %5214 = vmatprep.subr.mxu0 0.0
      %5215 = vmatpush1.xpose.msra.mxu0 0.0
      %5216 = vmatprep.subr.mxu0 0.0
      %5217 = vmatpush1.xpose.msra.mxu0 0.0
      %5218 = vmatprep.subr.mxu0 0.0
      %5219 = vmatpush1.xpose.msra.mxu0 0.0
      %5220 = vmatprep.subr.mxu0 0.0
      %5221 = vmatpush1.xpose.msra.mxu0 0.0
      %5222 = vmatprep.subr.mxu0 0.0
      %5223 = vmatpush1.xpose.msra.mxu0 0.0
      %5224 = vmatprep.subr.mxu0 0.0
      %5225 = vmatpush1.xpose.msra.mxu0 0.0
      %5226 = vmatprep.subr.mxu0 0.0
      %5227 = vmatpush1.xpose.msra.mxu0 0.0
      %5228 = vmatprep.subr.mxu0 0.0
      %5229 = vmatpush1.xpose.msra.mxu0 0.0
      %5230 = vmatprep.subr.mxu0 0.0
      %5231 = vmatpush1.xpose.msra.mxu0 0.0
      %5232 = vmatprep.subr.mxu0 0.0
      %5233 = vmatpush1.xpose.msra.mxu0 0.0
      %5234 = vmatprep.subr.mxu0 0.0
      %5235 = vmatpush1.xpose.msra.mxu0 0.0
      %5236 = vmatprep.subr.mxu0 0.0
      %5237 = vmatpush1.xpose.msra.mxu0 0.0
      %5238 = vmatprep.subr.mxu0 0.0
      %5239 = vmatpush1.xpose.msra.mxu0 0.0
      %5240 = vmatprep.subr.mxu0 0.0
      %5241 = vmatpush1.xpose.msra.mxu0 0.0
      %5242 = vmatprep.subr.mxu0 0.0
      %5243 = vmatpush1.xpose.msra.mxu0 0.0
      %5244 = vmatprep.subr.mxu0 0.0
      %5245 = vmatpush1.xpose.msra.mxu0 0.0
      %5246 = vmatprep.subr.mxu0 0.0
      %5247 = vmatpush1.xpose.msra.mxu0 0.0
      %5248 = vmatprep.subr.mxu0 0.0
      %5249 = vmatpush1.xpose.msra.mxu0 0.0
      %5250 = vmatprep.subr.mxu0 0.0
      %5251 = vmatpush1.xpose.msra.mxu0 0.0
      %5252 = vmatprep.subr.mxu0 0.0
      %5253 = vmatpush1.xpose.msra.mxu0 0.0
      %5254 = vmatprep.mubr.f32.mxu0 0.0
      %5255 = vmatmul.mubr.f32.gmra.mrb[0].mxu0 %v5174
      %v5256 = vpop.f32.mrb[0].mxu0
      %v5257 = vadd.f32 %v636, %v5256
      %v5258 = vpop.f32.mrb[0].mxu0
      %5259 = vmatprep.mubr.f32.mxu0 0.0
      %5260 = vmatmul.mubr.f32.gmra.mrb[0].mxu0 %v5176
      %v5261 = vpop.f32.mrb[0].mxu0
      %v5262 = vadd.f32 %v637, %v5261
      %v5263 = vpop.f32.mrb[0].mxu0
      %5264 = vmatprep.mubr.f32.mxu0 0.0
      %5265 = vmatmul.mubr.f32.gmra.mrb[0].mxu0 %v5178
      %v5266 = vpop.f32.mrb[0].mxu0
      %v5267 = vadd.f32 %v638, %v5266
      %v5268 = vpop.f32.mrb[0].mxu0
      %5269 = vmatprep.mubr.f32.mxu0 0.0
      %5270 = vmatmul.mubr.f32.gmra.mrb[0].mxu0 %v5180
      %v5271 = vpop.f32.mrb[0].mxu0
      %v5272 = vadd.f32 %v639, %v5271
      %v5273 = vpop.f32.mrb[0].mxu0
      %5274 = vdwg.mxu0
      %v5275 = vsel %vm3029, %v5257, -inf
      %5276 = vmax.xlane.f32.xlu0 %v5275
      %v5277 = vpop.xlane.xlu0 %5276
      %v5278 = vsel %vm3029, %v5262, -inf
      %5279 = vmax.xlane.f32.xlu0 %v5278
      %v5280 = vpop.xlane.xlu0 %5279
      %v5281 = vsel %vm3029, %v5267, -inf
      %5282 = vmax.xlane.f32.xlu0 %v5281
      %v5283 = vpop.xlane.xlu0 %5282
      %v5284 = vsel %vm3039, %v5272, -inf
      %5285 = vmax.xlane.f32.xlu0 %v5284
      %v5286 = vpop.xlane.xlu0 %5285
      %v5287 = vsub.f32 %v5257, %v5277
      %v5288 = vsub.f32 %v5262, %v5280
      %v5289 = vsub.f32 %v5267, %v5283
      %v5290 = vsub.f32 %v5272, %v5286
      %v5291 = vmul.f32 %v5287, 1.442695
      %v5292 = vpow.pop %v5291
      %v5293 = vmul.f32 %v5288, 1.442695
      %v5294 = vpow.pop %v5293
      %v5295 = vmul.f32 %v5289, 1.442695
      %v5296 = vpow.pop %v5295
      %v5297 = vmul.f32 %v5290, 1.442695
      %v5298 = vpow.pop %v5297
      %v5299 = vsel %vm3029, %v5292, 0.0
      %5300 = vadd.xlane.f32.xlu0 %v5299
      %v5301 = vpop.xlane.xlu0 %5300
      %v5302 = vsel %vm3029, %v5294, 0.0
      %5303 = vadd.xlane.f32.xlu0 %v5302
      %v5304 = vpop.xlane.xlu0 %5303
      %v5305 = vsel %vm3029, %v5296, 0.0
      %5306 = vadd.xlane.f32.xlu0 %v5305
      %v5307 = vpop.xlane.xlu0 %5306
      %v5308 = vsel %vm3039, %v5298, 0.0
      %5309 = vadd.xlane.f32.xlu0 %v5308
      %v5310 = vpop.xlane.xlu0 %5309
      %v5311 = vrcp.pop %v5301
      %v5312 = vmul.f32 1.0, %v5311
      %v5313 = vrcp.pop %v5304
      %v5314 = vmul.f32 1.0, %v5313
      %v5315 = vrcp.pop %v5307
      %v5316 = vmul.f32 1.0, %v5315
      %v5317 = vrcp.pop %v5310
      %v5318 = vmul.f32 1.0, %v5317
      %v5319 = vmul.f32 %v5292, %v5312
      %v5320 = vmul.f32 %v5294, %v5314
      %v5321 = vmul.f32 %v5296, %v5316
      %v5322 = vmul.f32 %v5298, %v5318
      %5323 = vrot.lane.b32.xlu0 %v4586, 48
      %v5324 = vpop.permute.xlu0 %5323
      %5325 = vrot.lane.b32.xlu0 %v4591, 48
      %v5326 = vpop.permute.xlu0 %5325
      %5327 = vrot.lane.b32.xlu0 %v4596, 48
      %v5328 = vpop.permute.xlu0 %5327
      %5329 = vrot.lane.b32.xlu0 %v4601, 48
      %v5330 = vpop.permute.xlu0 %5329
      %v5335 = vsel %vm3029, %v5319, 0
      %v5338 = vsel %vm3029, %v5320, 0
      %v5341 = vsel %vm3029, %v5321, 0
      %v5344 = vsel %vm3029, %v5322, 0
      %v5346 = vsel %vm3102, %v5330, 0
      %5348 = vmatprep.subr.mxu0 0.0
      %5349 = vmatpush1.msra.mxu0 %v5324
      %5350 = vmatprep.subr.mxu0 0.0
      %5351 = vmatpush1.msra.mxu0 %v5326
      %5352 = vmatprep.subr.mxu0 0.0
      %5353 = vmatpush1.msra.mxu0 %v5328
      %5354 = vmatprep.subr.mxu0 0.0
      %5355 = vmatpush1.msra.mxu0 %v5346
      %5356 = vmatprep.subr.mxu0 0.0
      %5357 = vmatpush1.msra.mxu0 0.0
      %5358 = vmatprep.subr.mxu0 0.0
      %5359 = vmatpush1.msra.mxu0 0.0
      %5360 = vmatprep.subr.mxu0 0.0
      %5361 = vmatpush1.msra.mxu0 0.0
      %5362 = vmatprep.subr.mxu0 0.0
      %5363 = vmatpush1.msra.mxu0 0.0
      %5364 = vmatprep.subr.mxu0 0.0
      %5365 = vmatpush1.msra.mxu0 0.0
      %5366 = vmatprep.subr.mxu0 0.0
      %5367 = vmatpush1.msra.mxu0 0.0
      %5368 = vmatprep.subr.mxu0 0.0
      %5369 = vmatpush1.msra.mxu0 0.0
      %5370 = vmatprep.subr.mxu0 0.0
      %5371 = vmatpush1.msra.mxu0 0.0
      %5372 = vmatprep.subr.mxu0 0.0
      %5373 = vmatpush1.msra.mxu0 0.0
      %5374 = vmatprep.subr.mxu0 0.0
      %5375 = vmatpush1.msra.mxu0 0.0
      %5376 = vmatprep.subr.mxu0 0.0
      %5377 = vmatpush1.msra.mxu0 0.0
      %5378 = vmatprep.subr.mxu0 0.0
      %5379 = vmatpush1.msra.mxu0 0.0
      %5380 = vmatprep.subr.mxu0 0.0
      %5381 = vmatpush1.msra.mxu0 0.0
      %5382 = vmatprep.subr.mxu0 0.0
      %5383 = vmatpush1.msra.mxu0 0.0
      %5384 = vmatprep.subr.mxu0 0.0
      %5385 = vmatpush1.msra.mxu0 0.0
      %5386 = vmatprep.subr.mxu0 0.0
      %5387 = vmatpush1.msra.mxu0 0.0
      %5388 = vmatprep.subr.mxu0 0.0
      %5389 = vmatpush1.msra.mxu0 0.0
      %5390 = vmatprep.subr.mxu0 0.0
      %5391 = vmatpush1.msra.mxu0 0.0
      %5392 = vmatprep.subr.mxu0 0.0
      %5393 = vmatpush1.msra.mxu0 0.0
      %5394 = vmatprep.subr.mxu0 0.0
      %5395 = vmatpush1.msra.mxu0 0.0
      %5396 = vmatprep.subr.mxu0 0.0
      %5397 = vmatpush1.msra.mxu0 0.0
      %5398 = vmatprep.subr.mxu0 0.0
      %5399 = vmatpush1.msra.mxu0 0.0
      %5400 = vmatprep.subr.mxu0 0.0
      %5401 = vmatpush1.msra.mxu0 0.0
      %5402 = vmatprep.subr.mxu0 0.0
      %5403 = vmatpush1.msra.mxu0 0.0
      %5404 = vmatprep.subr.mxu0 0.0
      %5405 = vmatpush1.msra.mxu0 0.0
      %5406 = vmatprep.subr.mxu0 0.0
      %5407 = vmatpush1.msra.mxu0 0.0
      %5408 = vmatprep.subr.mxu0 0.0
      %5409 = vmatpush1.msra.mxu0 0.0
      %5410 = vmatprep.subr.mxu0 0.0
      %5411 = vmatpush1.msra.mxu0 0.0
      %5412 = vmatprep.mubr.f32.mxu0 0.0
      %5413 = vmatmul.mubr.f32.gmra.mrb[0].mxu0 %v5335
      %v5414 = vpop.f32.mrb[0].mxu0
      %v5415 = vadd.f32 0.0, %v5414
      %v5416 = vpop.f32.mrb[0].mxu0
      %5417 = vmatprep.mubr.f32.mxu0 0.0
      %5418 = vmatmul.mubr.f32.gmra.mrb[0].mxu0 %v5338
      %v5419 = vpop.f32.mrb[0].mxu0
      %v5420 = vadd.f32 0.0, %v5419
      %v5421 = vpop.f32.mrb[0].mxu0
      %5422 = vmatprep.mubr.f32.mxu0 0.0
      %5423 = vmatmul.mubr.f32.gmra.mrb[0].mxu0 %v5341
      %v5424 = vpop.f32.mrb[0].mxu0
      %v5425 = vadd.f32 0.0, %v5424
      %v5426 = vpop.f32.mrb[0].mxu0
      %5427 = vmatprep.mubr.f32.mxu0 0.0
      %5428 = vmatmul.mubr.f32.gmra.mrb[0].mxu0 %v5344
      %v5429 = vpop.f32.mrb[0].mxu0
      %v5430 = vadd.f32 0.0, %v5429
      %v5431 = vpop.f32.mrb[0].mxu0
      %5432 = vdwg.mxu0
      %5433 = vrot.lane.b32.xlu0 %v4604, 104
      %v5434 = vpop.permute.xlu0 %5433
      %5435 = vrot.lane.b32.xlu0 %v4605, 104
      %v5436 = vpop.permute.xlu0 %5435
      %5437 = vrot.lane.b32.xlu0 %v4606, 104
      %v5438 = vpop.permute.xlu0 %5437
      %5439 = vrot.lane.b32.xlu0 %v4607, 104
      %v5440 = vpop.permute.xlu0 %5439
      %5441 = vrot.lane.b32.xlu0 %v4586, 72
      %v5442 = vpop.permute.xlu0 %5441
      %5443 = vrot.lane.b32.xlu0 %v4591, 72
      %v5444 = vpop.permute.xlu0 %5443
      %5445 = vrot.lane.b32.xlu0 %v4596, 72
      %v5446 = vpop.permute.xlu0 %5445
      %5447 = vrot.lane.b32.xlu0 %v4601, 72
      %v5448 = vpop.permute.xlu0 %5447
      %v5449 = vsel %vm2923, %v5434, 0
      %v5451 = vsel %vm2923, %v5436, 0
      %v5453 = vsel %vm2923, %v5438, 0
      %v5455 = vsel %vm2923, %v5440, 0
      %v5457 = vsel %vm2923, %v5442, 0
      %v5459 = vsel %vm2923, %v5444, 0
      %v5461 = vsel %vm2923, %v5446, 0
      %v5463 = vsel %vm2923, %v5448, 0
      %5465 = vmatprep.subr.mxu0 0.0
      %5466 = vmatpush1.xpose.msra.mxu0 %v5457
      %5467 = vmatprep.subr.mxu0 0.0
      %5468 = vmatpush1.xpose.msra.mxu0 %v5459
      %5469 = vmatprep.subr.mxu0 0.0
      %5470 = vmatpush1.xpose.msra.mxu0 %v5461
      %5471 = vmatprep.subr.mxu0 0.0
      %5472 = vmatpush1.xpose.msra.mxu0 %v5463
      %5473 = vmatprep.subr.mxu0 0.0
      %5474 = vmatpush1.xpose.msra.mxu0 0.0
      %5475 = vmatprep.subr.mxu0 0.0
      %5476 = vmatpush1.xpose.msra.mxu0 0.0
      %5477 = vmatprep.subr.mxu0 0.0
      %5478 = vmatpush1.xpose.msra.mxu0 0.0
      %5479 = vmatprep.subr.mxu0 0.0
      %5480 = vmatpush1.xpose.msra.mxu0 0.0
      %5481 = vmatprep.subr.mxu0 0.0
      %5482 = vmatpush1.xpose.msra.mxu0 0.0
      %5483 = vmatprep.subr.mxu0 0.0
      %5484 = vmatpush1.xpose.msra.mxu0 0.0
      %5485 = vmatprep.subr.mxu0 0.0
      %5486 = vmatpush1.xpose.msra.mxu0 0.0
      %5487 = vmatprep.subr.mxu0 0.0
      %5488 = vmatpush1.xpose.msra.mxu0 0.0
      %5489 = vmatprep.subr.mxu0 0.0
      %5490 = vmatpush1.xpose.msra.mxu0 0.0
      %5491 = vmatprep.subr.mxu0 0.0
      %5492 = vmatpush1.xpose.msra.mxu0 0.0
      %5493 = vmatprep.subr.mxu0 0.0
      %5494 = vmatpush1.xpose.msra.mxu0 0.0
      %5495 = vmatprep.subr.mxu0 0.0
      %5496 = vmatpush1.xpose.msra.mxu0 0.0
      %5497 = vmatprep.subr.mxu0 0.0
      %5498 = vmatpush1.xpose.msra.mxu0 0.0
      %5499 = vmatprep.subr.mxu0 0.0
      %5500 = vmatpush1.xpose.msra.mxu0 0.0
      %5501 = vmatprep.subr.mxu0 0.0
      %5502 = vmatpush1.xpose.msra.mxu0 0.0
      %5503 = vmatprep.subr.mxu0 0.0
      %5504 = vmatpush1.xpose.msra.mxu0 0.0
      %5505 = vmatprep.subr.mxu0 0.0
      %5506 = vmatpush1.xpose.msra.mxu0 0.0
      %5507 = vmatprep.subr.mxu0 0.0
      %5508 = vmatpush1.xpose.msra.mxu0 0.0
      %5509 = vmatprep.subr.mxu0 0.0
      %5510 = vmatpush1.xpose.msra.mxu0 0.0
      %5511 = vmatprep.subr.mxu0 0.0
      %5512 = vmatpush1.xpose.msra.mxu0 0.0
      %5513 = vmatprep.subr.mxu0 0.0
      %5514 = vmatpush1.xpose.msra.mxu0 0.0
      %5515 = vmatprep.subr.mxu0 0.0
      %5516 = vmatpush1.xpose.msra.mxu0 0.0
      %5517 = vmatprep.subr.mxu0 0.0
      %5518 = vmatpush1.xpose.msra.mxu0 0.0
      %5519 = vmatprep.subr.mxu0 0.0
      %5520 = vmatpush1.xpose.msra.mxu0 0.0
      %5521 = vmatprep.subr.mxu0 0.0
      %5522 = vmatpush1.xpose.msra.mxu0 0.0
      %5523 = vmatprep.subr.mxu0 0.0
      %5524 = vmatpush1.xpose.msra.mxu0 0.0
      %5525 = vmatprep.subr.mxu0 0.0
      %5526 = vmatpush1.xpose.msra.mxu0 0.0
      %5527 = vmatprep.subr.mxu0 0.0
      %5528 = vmatpush1.xpose.msra.mxu0 0.0
      %5529 = vmatprep.mubr.f32.mxu0 0.0
      %5530 = vmatmul.mubr.f32.gmra.mrb[0].mxu0 %v5449
      %v5531 = vpop.f32.mrb[0].mxu0
      %v5532 = vadd.f32 %v636, %v5531
      %v5533 = vpop.f32.mrb[0].mxu0
      %5534 = vmatprep.mubr.f32.mxu0 0.0
      %5535 = vmatmul.mubr.f32.gmra.mrb[0].mxu0 %v5451
      %v5536 = vpop.f32.mrb[0].mxu0
      %v5537 = vadd.f32 %v637, %v5536
      %v5538 = vpop.f32.mrb[0].mxu0
      %5539 = vmatprep.mubr.f32.mxu0 0.0
      %5540 = vmatmul.mubr.f32.gmra.mrb[0].mxu0 %v5453
      %v5541 = vpop.f32.mrb[0].mxu0
      %v5542 = vadd.f32 %v638, %v5541
      %v5543 = vpop.f32.mrb[0].mxu0
      %5544 = vmatprep.mubr.f32.mxu0 0.0
      %5545 = vmatmul.mubr.f32.gmra.mrb[0].mxu0 %v5455
      %v5546 = vpop.f32.mrb[0].mxu0
      %v5547 = vadd.f32 %v639, %v5546
      %v5548 = vpop.f32.mrb[0].mxu0
      %5549 = vdwg.mxu0
      %v5550 = vsel %vm3029, %v5532, -inf
      %5551 = vmax.xlane.f32.xlu0 %v5550
      %v5552 = vpop.xlane.xlu0 %5551
      %v5553 = vsel %vm3029, %v5537, -inf
      %5554 = vmax.xlane.f32.xlu0 %v5553
      %v5555 = vpop.xlane.xlu0 %5554
      %v5556 = vsel %vm3029, %v5542, -inf
      %5557 = vmax.xlane.f32.xlu0 %v5556
      %v5558 = vpop.xlane.xlu0 %5557
      %v5559 = vsel %vm3039, %v5547, -inf
      %5560 = vmax.xlane.f32.xlu0 %v5559
      %v5561 = vpop.xlane.xlu0 %5560
      %v5562 = vsub.f32 %v5532, %v5552
      %v5563 = vsub.f32 %v5537, %v5555
      %v5564 = vsub.f32 %v5542, %v5558
      %v5565 = vsub.f32 %v5547, %v5561
      %v5566 = vmul.f32 %v5562, 1.442695
      %v5567 = vpow.pop %v5566
      %v5568 = vmul.f32 %v5563, 1.442695
      %v5569 = vpow.pop %v5568
      %v5570 = vmul.f32 %v5564, 1.442695
      %v5571 = vpow.pop %v5570
      %v5572 = vmul.f32 %v5565, 1.442695
      %v5573 = vpow.pop %v5572
      %v5574 = vsel %vm3029, %v5567, 0.0
      %5575 = vadd.xlane.f32.xlu0 %v5574
      %v5576 = vpop.xlane.xlu0 %5575
      %v5577 = vsel %vm3029, %v5569, 0.0
      %5578 = vadd.xlane.f32.xlu0 %v5577
      %v5579 = vpop.xlane.xlu0 %5578
      %v5580 = vsel %vm3029, %v5571, 0.0
      %5581 = vadd.xlane.f32.xlu0 %v5580
      %v5582 = vpop.xlane.xlu0 %5581
      %v5583 = vsel %vm3039, %v5573, 0.0
      %5584 = vadd.xlane.f32.xlu0 %v5583
      %v5585 = vpop.xlane.xlu0 %5584
      %v5586 = vrcp.pop %v5576
      %v5587 = vmul.f32 1.0, %v5586
      %v5588 = vrcp.pop %v5579
      %v5589 = vmul.f32 1.0, %v5588
      %v5590 = vrcp.pop %v5582
      %v5591 = vmul.f32 1.0, %v5590
      %v5592 = vrcp.pop %v5585
      %v5593 = vmul.f32 1.0, %v5592
      %v5594 = vmul.f32 %v5567, %v5587
      %v5595 = vmul.f32 %v5569, %v5589
      %v5596 = vmul.f32 %v5571, %v5591
      %v5597 = vmul.f32 %v5573, %v5593
      %5598 = vrot.lane.b32.xlu0 %v4586, 40
      %v5599 = vpop.permute.xlu0 %5598
      %5600 = vrot.lane.b32.xlu0 %v4591, 40
      %v5601 = vpop.permute.xlu0 %5600
      %5602 = vrot.lane.b32.xlu0 %v4596, 40
      %v5603 = vpop.permute.xlu0 %5602
      %5604 = vrot.lane.b32.xlu0 %v4601, 40
      %v5605 = vpop.permute.xlu0 %5604
      %v5610 = vsel %vm3029, %v5594, 0
      %v5613 = vsel %vm3029, %v5595, 0
      %v5616 = vsel %vm3029, %v5596, 0
      %v5619 = vsel %vm3029, %v5597, 0
      %v5621 = vsel %vm3102, %v5605, 0
      %5623 = vmatprep.subr.mxu0 0.0
      %5624 = vmatpush1.msra.mxu0 %v5599
      %5625 = vmatprep.subr.mxu0 0.0
      %5626 = vmatpush1.msra.mxu0 %v5601
      %5627 = vmatprep.subr.mxu0 0.0
      %5628 = vmatpush1.msra.mxu0 %v5603
      %5629 = vmatprep.subr.mxu0 0.0
      %5630 = vmatpush1.msra.mxu0 %v5621
      %5631 = vmatprep.subr.mxu0 0.0
      %5632 = vmatpush1.msra.mxu0 0.0
      %5633 = vmatprep.subr.mxu0 0.0
      %5634 = vmatpush1.msra.mxu0 0.0
      %5635 = vmatprep.subr.mxu0 0.0
      %5636 = vmatpush1.msra.mxu0 0.0
      %5637 = vmatprep.subr.mxu0 0.0
      %5638 = vmatpush1.msra.mxu0 0.0
      %5639 = vmatprep.subr.mxu0 0.0
      %5640 = vmatpush1.msra.mxu0 0.0
      %5641 = vmatprep.subr.mxu0 0.0
      %5642 = vmatpush1.msra.mxu0 0.0
      %5643 = vmatprep.subr.mxu0 0.0
      %5644 = vmatpush1.msra.mxu0 0.0
      %5645 = vmatprep.subr.mxu0 0.0
      %5646 = vmatpush1.msra.mxu0 0.0
      %5647 = vmatprep.subr.mxu0 0.0
      %5648 = vmatpush1.msra.mxu0 0.0
      %5649 = vmatprep.subr.mxu0 0.0
      %5650 = vmatpush1.msra.mxu0 0.0
      %5651 = vmatprep.subr.mxu0 0.0
      %5652 = vmatpush1.msra.mxu0 0.0
      %5653 = vmatprep.subr.mxu0 0.0
      %5654 = vmatpush1.msra.mxu0 0.0
      %5655 = vmatprep.subr.mxu0 0.0
      %5656 = vmatpush1.msra.mxu0 0.0
      %5657 = vmatprep.subr.mxu0 0.0
      %5658 = vmatpush1.msra.mxu0 0.0
      %5659 = vmatprep.subr.mxu0 0.0
      %5660 = vmatpush1.msra.mxu0 0.0
      %5661 = vmatprep.subr.mxu0 0.0
      %5662 = vmatpush1.msra.mxu0 0.0
      %5663 = vmatprep.subr.mxu0 0.0
      %5664 = vmatpush1.msra.mxu0 0.0
      %5665 = vmatprep.subr.mxu0 0.0
      %5666 = vmatpush1.msra.mxu0 0.0
      %5667 = vmatprep.subr.mxu0 0.0
      %5668 = vmatpush1.msra.mxu0 0.0
      %5669 = vmatprep.subr.mxu0 0.0
      %5670 = vmatpush1.msra.mxu0 0.0
      %5671 = vmatprep.subr.mxu0 0.0
      %5672 = vmatpush1.msra.mxu0 0.0
      %5673 = vmatprep.subr.mxu0 0.0
      %5674 = vmatpush1.msra.mxu0 0.0
      %5675 = vmatprep.subr.mxu0 0.0
      %5676 = vmatpush1.msra.mxu0 0.0
      %5677 = vmatprep.subr.mxu0 0.0
      %5678 = vmatpush1.msra.mxu0 0.0
      %5679 = vmatprep.subr.mxu0 0.0
      %5680 = vmatpush1.msra.mxu0 0.0
      %5681 = vmatprep.subr.mxu0 0.0
      %5682 = vmatpush1.msra.mxu0 0.0
      %5683 = vmatprep.subr.mxu0 0.0
      %5684 = vmatpush1.msra.mxu0 0.0
      %5685 = vmatprep.subr.mxu0 0.0
      %5686 = vmatpush1.msra.mxu0 0.0
      %5687 = vmatprep.mubr.f32.mxu0 0.0
      %5688 = vmatmul.mubr.f32.gmra.mrb[0].mxu0 %v5610
      %v5689 = vpop.f32.mrb[0].mxu0
      %v5690 = vadd.f32 0.0, %v5689
      %v5691 = vpop.f32.mrb[0].mxu0
      %5692 = vmatprep.mubr.f32.mxu0 0.0
      %5693 = vmatmul.mubr.f32.gmra.mrb[0].mxu0 %v5613
      %v5694 = vpop.f32.mrb[0].mxu0
      %v5695 = vadd.f32 0.0, %v5694
      %v5696 = vpop.f32.mrb[0].mxu0
      %5697 = vmatprep.mubr.f32.mxu0 0.0
      %5698 = vmatmul.mubr.f32.gmra.mrb[0].mxu0 %v5616
      %v5699 = vpop.f32.mrb[0].mxu0
      %v5700 = vadd.f32 0.0, %v5699
      %v5701 = vpop.f32.mrb[0].mxu0
      %5702 = vmatprep.mubr.f32.mxu0 0.0
      %5703 = vmatmul.mubr.f32.gmra.mrb[0].mxu0 %v5619
      %v5704 = vpop.f32.mrb[0].mxu0
      %v5705 = vadd.f32 0.0, %v5704
      %v5706 = vpop.f32.mrb[0].mxu0
      %5707 = vdwg.mxu0
      %5712 = vrot.lane.b32.xlu0 %v5140, 8
      %v5713 = vpop.permute.xlu0 %5712
      %5714 = vrot.lane.b32.xlu0 %v5145, 8
      %v5715 = vpop.permute.xlu0 %5714
      %5716 = vrot.lane.b32.xlu0 %v5150, 8
      %v5717 = vpop.permute.xlu0 %5716
      %5718 = vrot.lane.b32.xlu0 %v5155, 8
      %v5719 = vpop.permute.xlu0 %5718
      %5728 = vrot.lane.b32.xlu0 %v5415, 16
      %v5729 = vpop.permute.xlu0 %5728
      %5730 = vrot.lane.b32.xlu0 %v5420, 16
      %v5731 = vpop.permute.xlu0 %5730
      %5732 = vrot.lane.b32.xlu0 %v5425, 16
      %v5733 = vpop.permute.xlu0 %5732
      %5734 = vrot.lane.b32.xlu0 %v5430, 16
      %v5735 = vpop.permute.xlu0 %5734
      %5744 = vrot.lane.b32.xlu0 %v5690, 24
      %v5745 = vpop.permute.xlu0 %5744
      %5746 = vrot.lane.b32.xlu0 %v5695, 24
      %v5747 = vpop.permute.xlu0 %5746
      %5748 = vrot.lane.b32.xlu0 %v5700, 24
      %v5749 = vpop.permute.xlu0 %5748
      %5750 = vrot.lane.b32.xlu0 %v5705, 24
      %v5751 = vpop.permute.xlu0 %5750
      %v5756 = vsel %vm2923, %v4865, %v5713
      %v5757 = vsel %vm2923, %v4870, %v5715
      %v5758 = vsel %vm2923, %v4875, %v5717
      %v5759 = vsel %vm2923, %v4880, %v5719
      %v5760 = vsel %vm676, %v5756, %v5729
      %v5761 = vsel %vm676, %v5757, %v5731
      %v5762 = vsel %vm676, %v5758, %v5733
      %v5763 = vsel %vm676, %v5759, %v5735
      %v5764 = vsel %vm4071, %v5760, %v5745
      %v5765 = vsel %vm4071, %v5761, %v5747
      %v5766 = vsel %vm4071, %v5762, %v5749
      %v5767 = vsel %vm4071, %v5763, %v5751
      %5772 = vrot.lane.b32.xlu0 %v4488, 32
      %v5773 = vpop.permute.xlu0 %5772
      %5774 = vrot.lane.b32.xlu0 %v4489, 32
      %v5775 = vpop.permute.xlu0 %5774
      %5776 = vrot.lane.b32.xlu0 %v4490, 32
      %v5777 = vpop.permute.xlu0 %5776
      %5778 = vrot.lane.b32.xlu0 %v4491, 32
      %v5779 = vpop.permute.xlu0 %5778
      %v5785 = vsel %vm2499, %v5764, 0
      %v5788 = vsel %vm2499, %v5765, 0
      %v5791 = vsel %vm2499, %v5766, 0
      %v5794 = vsel %vm2499, %v5767, 0
      %5796 = vmatprep.subr.mxu0 0.0
      %5797 = vmatpush1.msra.mxu0 %v5773
      %5798 = vmatprep.subr.mxu0 0.0
      %5799 = vmatpush1.msra.mxu0 %v5775
      %5800 = vmatprep.subr.mxu0 0.0
      %5801 = vmatpush1.msra.mxu0 %v5777
      %5802 = vmatprep.subr.mxu0 0.0
      %5803 = vmatpush1.msra.mxu0 %v5779
      %5804 = vmatprep.subr.mxu0 0.0
      %5805 = vmatpush1.msra.mxu0 0.0
      %5806 = vmatprep.subr.mxu0 0.0
      %5807 = vmatpush1.msra.mxu0 0.0
      %5808 = vmatprep.subr.mxu0 0.0
      %5809 = vmatpush1.msra.mxu0 0.0
      %5810 = vmatprep.subr.mxu0 0.0
      %5811 = vmatpush1.msra.mxu0 0.0
      %5812 = vmatprep.subr.mxu0 0.0
      %5813 = vmatpush1.msra.mxu0 0.0
      %5814 = vmatprep.subr.mxu0 0.0
      %5815 = vmatpush1.msra.mxu0 0.0
      %5816 = vmatprep.subr.mxu0 0.0
      %5817 = vmatpush1.msra.mxu0 0.0
      %5818 = vmatprep.subr.mxu0 0.0
      %5819 = vmatpush1.msra.mxu0 0.0
      %5820 = vmatprep.subr.mxu0 0.0
      %5821 = vmatpush1.msra.mxu0 0.0
      %5822 = vmatprep.subr.mxu0 0.0
      %5823 = vmatpush1.msra.mxu0 0.0
      %5824 = vmatprep.subr.mxu0 0.0
      %5825 = vmatpush1.msra.mxu0 0.0
      %5826 = vmatprep.subr.mxu0 0.0
      %5827 = vmatpush1.msra.mxu0 0.0
      %5828 = vmatprep.subr.mxu0 0.0
      %5829 = vmatpush1.msra.mxu0 0.0
      %5830 = vmatprep.subr.mxu0 0.0
      %5831 = vmatpush1.msra.mxu0 0.0
      %5832 = vmatprep.subr.mxu0 0.0
      %5833 = vmatpush1.msra.mxu0 0.0
      %5834 = vmatprep.subr.mxu0 0.0
      %5835 = vmatpush1.msra.mxu0 0.0
      %5836 = vmatprep.subr.mxu0 0.0
      %5837 = vmatpush1.msra.mxu0 0.0
      %5838 = vmatprep.subr.mxu0 0.0
      %5839 = vmatpush1.msra.mxu0 0.0
      %5840 = vmatprep.subr.mxu0 0.0
      %5841 = vmatpush1.msra.mxu0 0.0
      %5842 = vmatprep.subr.mxu0 0.0
      %5843 = vmatpush1.msra.mxu0 0.0
      %5844 = vmatprep.subr.mxu0 0.0
      %5845 = vmatpush1.msra.mxu0 0.0
      %5846 = vmatprep.subr.mxu0 0.0
      %5847 = vmatpush1.msra.mxu0 0.0
      %5848 = vmatprep.subr.mxu0 0.0
      %5849 = vmatpush1.msra.mxu0 0.0
      %5850 = vmatprep.subr.mxu0 0.0
      %5851 = vmatpush1.msra.mxu0 0.0
      %5852 = vmatprep.subr.mxu0 0.0
      %5853 = vmatpush1.msra.mxu0 0.0
      %5854 = vmatprep.subr.mxu0 0.0
      %5855 = vmatpush1.msra.mxu0 0.0
      %5856 = vmatprep.subr.mxu0 0.0
      %5857 = vmatpush1.msra.mxu0 0.0
      %5858 = vmatprep.subr.mxu0 0.0
      %5859 = vmatpush1.msra.mxu0 0.0
      %5860 = vmatprep.mubr.f32.mxu0 0.0
      %5861 = vmatmul.mubr.f32.gmra.mrb[0].mxu0 %v5785
      %v5862 = vpop.f32.mrb[0].mxu0
      %v5863 = vadd.f32 0.0, %v5862
      %v5864 = vpop.f32.mrb[0].mxu0
      %5865 = vmatprep.mubr.f32.mxu0 0.0
      %5866 = vmatmul.mubr.f32.gmra.mrb[0].mxu0 %v5788
      %v5867 = vpop.f32.mrb[0].mxu0
      %v5868 = vadd.f32 0.0, %v5867
      %v5869 = vpop.f32.mrb[0].mxu0
      %5870 = vmatprep.mubr.f32.mxu0 0.0
      %5871 = vmatmul.mubr.f32.gmra.mrb[0].mxu0 %v5791
      %v5872 = vpop.f32.mrb[0].mxu0
      %v5873 = vadd.f32 0.0, %v5872
      %v5874 = vpop.f32.mrb[0].mxu0
      %5875 = vmatprep.mubr.f32.mxu0 0.0
      %5876 = vmatmul.mubr.f32.gmra.mrb[0].mxu0 %v5794
      %v5877 = vpop.f32.mrb[0].mxu0
      %v5878 = vadd.f32 0.0, %v5877
      %v5879 = vpop.f32.mrb[0].mxu0
      %5880 = vdwg.mxu0
      %v5882 = vlaneseq
      %v5883 = vshrl.u32 %v5882, 7
      %v5884 = vsub.s32 0, %v5883
      %v5885 = vrot.slane %v4499, %v5884
      %5886 = vrot.lane.b32.xlu0 %v5885, 96
      %v5887 = vpop.permute.xlu0 %5886
      %v5889 = vmul.f32 %v4483, %v5887
      %v5890 = vmul.f32 %v4484, %v5887
      %v5891 = vmul.f32 %v4485, %v5887
      %v5892 = vmul.f32 %v4486, %v5887
      %v5893 = vadd.f32 %v5889, %v5863
      %v5894 = vadd.f32 %v5890, %v5868
      %v5895 = vadd.f32 %v5891, %v5873
      %v5896 = vadd.f32 %v5892, %v5878
      %5897 = vrot.lane.b32.xlu0 %v5885, 64
      %v5898 = vpop.permute.xlu0 %5897
      %v5900 = vadd.f32 %v5893, %v5898
      %v5901 = vadd.f32 %v5894, %v5898
      %v5902 = vadd.f32 %v5895, %v5898
      %v5903 = vadd.f32 %v5896, %v5898
      %v5905 = vlaneseq
      %v5906 = vshrl.u32 %v5905, 7
      %v5907 = vsub.s32 0, %v5906
      %v5908 = vrot.slane %v4498, %v5907
      %v5909 = vlaneseq
      %v5910 = vshrl.u32 %v5909, 7
      %v5911 = vsub.s32 1, %v5910
      %v5912 = vrot.slane %v4498, %v5911
      %5913 = vrot.lane.b32.xlu0 %v5908, 32
      %v5914 = vpop.permute.xlu0 %5913
      %5915 = vrot.lane.b32.xlu0 %v5912, 32
      %v5916 = vpop.permute.xlu0 %5915
      %v5917 = vsel %vm2499, %v5914, %v5916
      %v5920 = vsel %vm2499, %v5900, 0
      %v5923 = vsel %vm2499, %v5901, 0
      %v5926 = vsel %vm2499, %v5902, 0
      %v5929 = vsel %vm2499, %v5903, 0
      %5931 = vmatprep.subr.mxu0 0.0
      %5932 = vmatpush1.msra.mxu0 %v4492
      %5933 = vmatprep.subr.mxu0 0.0
      %5934 = vmatpush1.msra.mxu0 %v4493
      %5935 = vmatprep.subr.mxu0 0.0
      %5936 = vmatpush1.msra.mxu0 %v4494
      %5937 = vmatprep.subr.mxu0 0.0
      %5938 = vmatpush1.msra.mxu0 %v4495
      %5939 = vmatprep.subr.mxu0 0.0
      %5940 = vmatpush1.msra.mxu0 0.0
      %5941 = vmatprep.subr.mxu0 0.0
      %5942 = vmatpush1.msra.mxu0 0.0
      %5943 = vmatprep.subr.mxu0 0.0
      %5944 = vmatpush1.msra.mxu0 0.0
      %5945 = vmatprep.subr.mxu0 0.0
      %5946 = vmatpush1.msra.mxu0 0.0
      %5947 = vmatprep.subr.mxu0 0.0
      %5948 = vmatpush1.msra.mxu0 0.0
      %5949 = vmatprep.subr.mxu0 0.0
      %5950 = vmatpush1.msra.mxu0 0.0
      %5951 = vmatprep.subr.mxu0 0.0
      %5952 = vmatpush1.msra.mxu0 0.0
      %5953 = vmatprep.subr.mxu0 0.0
      %5954 = vmatpush1.msra.mxu0 0.0
      %5955 = vmatprep.subr.mxu0 0.0
      %5956 = vmatpush1.msra.mxu0 0.0
      %5957 = vmatprep.subr.mxu0 0.0
      %5958 = vmatpush1.msra.mxu0 0.0
      %5959 = vmatprep.subr.mxu0 0.0
      %5960 = vmatpush1.msra.mxu0 0.0
      %5961 = vmatprep.subr.mxu0 0.0
      %5962 = vmatpush1.msra.mxu0 0.0
      %5963 = vmatprep.subr.mxu0 0.0
      %5964 = vmatpush1.msra.mxu0 0.0
      %5965 = vmatprep.subr.mxu0 0.0
      %5966 = vmatpush1.msra.mxu0 0.0
      %5967 = vmatprep.subr.mxu0 0.0
      %5968 = vmatpush1.msra.mxu0 0.0
      %5969 = vmatprep.subr.mxu0 0.0
      %5970 = vmatpush1.msra.mxu0 0.0
      %5971 = vmatprep.subr.mxu0 0.0
      %5972 = vmatpush1.msra.mxu0 0.0
      %5973 = vmatprep.subr.mxu0 0.0
      %5974 = vmatpush1.msra.mxu0 0.0
      %5975 = vmatprep.subr.mxu0 0.0
      %5976 = vmatpush1.msra.mxu0 0.0
      %5977 = vmatprep.subr.mxu0 0.0
      %5978 = vmatpush1.msra.mxu0 0.0
      %5979 = vmatprep.subr.mxu0 0.0
      %5980 = vmatpush1.msra.mxu0 0.0
      %5981 = vmatprep.subr.mxu0 0.0
      %5982 = vmatpush1.msra.mxu0 0.0
      %5983 = vmatprep.subr.mxu0 0.0
      %5984 = vmatpush1.msra.mxu0 0.0
      %5985 = vmatprep.subr.mxu0 0.0
      %5986 = vmatpush1.msra.mxu0 0.0
      %5987 = vmatprep.subr.mxu0 0.0
      %5988 = vmatpush1.msra.mxu0 0.0
      %5989 = vmatprep.subr.mxu0 0.0
      %5990 = vmatpush1.msra.mxu0 0.0
      %5991 = vmatprep.subr.mxu0 0.0
      %5992 = vmatpush1.msra.mxu0 0.0
      %5993 = vmatprep.subr.mxu0 0.0
      %5994 = vmatpush1.msra.mxu0 0.0
      %5995 = vmatprep.mubr.f32.mxu0 0.0
      %5996 = vmatmul.mubr.f32.gmra.mrb[0].mxu0 %v5920
      %v5997 = vpop.f32.mrb[0].mxu0
      %v5998 = vadd.f32 %v5917, %v5997
      %v5999 = vpop.f32.mrb[0].mxu0
      %6000 = vmatprep.mubr.f32.mxu0 0.0
      %6001 = vmatmul.mubr.f32.gmra.mrb[0].mxu0 %v5923
      %v6002 = vpop.f32.mrb[0].mxu0
      %v6003 = vadd.f32 %v5917, %v6002
      %v6004 = vpop.f32.mrb[0].mxu0
      %6005 = vmatprep.mubr.f32.mxu0 0.0
      %6006 = vmatmul.mubr.f32.gmra.mrb[0].mxu0 %v5926
      %v6007 = vpop.f32.mrb[0].mxu0
      %v6008 = vadd.f32 %v5917, %v6007
      %v6009 = vpop.f32.mrb[0].mxu0
      %6010 = vmatprep.mubr.f32.mxu0 0.0
      %6011 = vmatmul.mubr.f32.gmra.mrb[0].mxu0 %v5929
      %v6012 = vpop.f32.mrb[0].mxu0
      %v6013 = vadd.f32 %v5917, %v6012
      %v6014 = vpop.f32.mrb[0].mxu0
      %6015 = vdwg.mxu0
      %v6016 = vmul.f32 %v5998, 0.5
      %v6017 = vmul.f32 %v6003, 0.5
      %v6018 = vmul.f32 %v6008, 0.5
      %v6019 = vmul.f32 %v6013, 0.5
      %v6020 = vmul.f32 %v5998, 0.044715
      %v6021 = vmul.f32 %v6003, 0.044715
      %v6022 = vmul.f32 %v6008, 0.044715
      %v6023 = vmul.f32 %v6013, 0.044715
      %v6024 = vmul.f32 %v6020, %v5998
      %v6025 = vmul.f32 %v6021, %v6003
      %v6026 = vmul.f32 %v6022, %v6008
      %v6027 = vmul.f32 %v6023, %v6013
      %v6028 = vmul.f32 %v6024, %v5998
      %v6029 = vmul.f32 %v6025, %v6003
      %v6030 = vmul.f32 %v6026, %v6008
      %v6031 = vmul.f32 %v6027, %v6013
      %v6032 = vadd.f32 %v5998, %v6028
      %v6033 = vadd.f32 %v6003, %v6029
      %v6034 = vadd.f32 %v6008, %v6030
      %v6035 = vadd.f32 %v6013, %v6031
      %v6036 = vmul.f32 %v6032, 0.7978846
      %v6037 = vmul.f32 %v6033, 0.7978846
      %v6038 = vmul.f32 %v6034, 0.7978846
      %v6039 = vmul.f32 %v6035, 0.7978846
      %v6040 = vtanh.pop %v6036
      %v6041 = vtanh.pop %v6037
      %v6042 = vtanh.pop %v6038
      %v6043 = vtanh.pop %v6039
      %v6044 = vadd.f32 %v6040, 1.0
      %v6045 = vadd.f32 %v6041, 1.0
      %v6046 = vadd.f32 %v6042, 1.0
      %v6047 = vadd.f32 %v6043, 1.0
      %v6048 = vmul.f32 %v6016, %v6044
      %v6049 = vmul.f32 %v6017, %v6045
      %v6050 = vmul.f32 %v6018, %v6046
      %v6051 = vmul.f32 %v6019, %v6047
      %s6052 = scalar_lea.vmem %s6, 64
      %v6053 = vld [vmem:[%s6052] sm:$0xff]
      %v6054 = vld [vmem:[%s6052 + $0x8] sm:$0xff]
      %v6055 = vld [vmem:[%s6052 + $0x10] sm:$0xff]
      %v6056 = vld [vmem:[%s6052 + $0x18] sm:$0xff]
      %v6057 = vld [vmem:[%s6052 + $0x20] sm:$0xff]
      %v6058 = vld [vmem:[%s6052 + $0x28] sm:$0xff]
      %v6059 = vld [vmem:[%s6052 + $0x30] sm:$0xff]
      %v6060 = vld [vmem:[%s6052 + $0x38] sm:$0xff]
      %v6062 = vsel %vm4368, %v6048, 0
      %v6065 = vsel %vm4368, %v6049, 0
      %v6068 = vsel %vm4368, %v6050, 0
      %v6071 = vsel %vm4368, %v6051, 0
      %6073 = vmatprep.subr.mxu0 0.0
      %6074 = vmatpush1.msra.mxu0 %v6053
      %6075 = vmatprep.subr.mxu0 0.0
      %6076 = vmatpush1.msra.mxu0 %v6054
      %6077 = vmatprep.subr.mxu0 0.0
      %6078 = vmatpush1.msra.mxu0 %v6055
      %6079 = vmatprep.subr.mxu0 0.0
      %6080 = vmatpush1.msra.mxu0 %v6056
      %6081 = vmatprep.subr.mxu0 0.0
      %6082 = vmatpush1.msra.mxu0 %v6057
      %6083 = vmatprep.subr.mxu0 0.0
      %6084 = vmatpush1.msra.mxu0 %v6058
      %6085 = vmatprep.subr.mxu0 0.0
      %6086 = vmatpush1.msra.mxu0 %v6059
      %6087 = vmatprep.subr.mxu0 0.0
      %6088 = vmatpush1.msra.mxu0 %v6060
      %6089 = vmatprep.subr.mxu0 0.0
      %6090 = vmatpush1.msra.mxu0 0.0
      %6091 = vmatprep.subr.mxu0 0.0
      %6092 = vmatpush1.msra.mxu0 0.0
      %6093 = vmatprep.subr.mxu0 0.0
      %6094 = vmatpush1.msra.mxu0 0.0
      %6095 = vmatprep.subr.mxu0 0.0
      %6096 = vmatpush1.msra.mxu0 0.0
      %6097 = vmatprep.subr.mxu0 0.0
      %6098 = vmatpush1.msra.mxu0 0.0
      %6099 = vmatprep.subr.mxu0 0.0
      %6100 = vmatpush1.msra.mxu0 0.0
      %6101 = vmatprep.subr.mxu0 0.0
      %6102 = vmatpush1.msra.mxu0 0.0
      %6103 = vmatprep.subr.mxu0 0.0
      %6104 = vmatpush1.msra.mxu0 0.0
      %6105 = vmatprep.subr.mxu0 0.0
      %6106 = vmatpush1.msra.mxu0 0.0
      %6107 = vmatprep.subr.mxu0 0.0
      %6108 = vmatpush1.msra.mxu0 0.0
      %6109 = vmatprep.subr.mxu0 0.0
      %6110 = vmatpush1.msra.mxu0 0.0
      %6111 = vmatprep.subr.mxu0 0.0
      %6112 = vmatpush1.msra.mxu0 0.0
      %6113 = vmatprep.subr.mxu0 0.0
      %6114 = vmatpush1.msra.mxu0 0.0
      %6115 = vmatprep.subr.mxu0 0.0
      %6116 = vmatpush1.msra.mxu0 0.0
      %6117 = vmatprep.subr.mxu0 0.0
      %6118 = vmatpush1.msra.mxu0 0.0
      %6119 = vmatprep.subr.mxu0 0.0
      %6120 = vmatpush1.msra.mxu0 0.0
      %6121 = vmatprep.subr.mxu0 0.0
      %6122 = vmatpush1.msra.mxu0 0.0
      %6123 = vmatprep.subr.mxu0 0.0
      %6124 = vmatpush1.msra.mxu0 0.0
      %6125 = vmatprep.subr.mxu0 0.0
      %6126 = vmatpush1.msra.mxu0 0.0
      %6127 = vmatprep.subr.mxu0 0.0
      %6128 = vmatpush1.msra.mxu0 0.0
      %6129 = vmatprep.subr.mxu0 0.0
      %6130 = vmatpush1.msra.mxu0 0.0
      %6131 = vmatprep.subr.mxu0 0.0
      %6132 = vmatpush1.msra.mxu0 0.0
      %6133 = vmatprep.subr.mxu0 0.0
      %6134 = vmatpush1.msra.mxu0 0.0
      %6135 = vmatprep.subr.mxu0 0.0
      %6136 = vmatpush1.msra.mxu0 0.0
      %6137 = vmatprep.mubr.f32.mxu0 0.0
      %6138 = vmatmul.mubr.f32.gmra.mrb[0].mxu0 %v6062
      %v6139 = vpop.f32.mrb[0].mxu0
      %v6140 = vadd.f32 0.0, %v6139
      %v6141 = vpop.f32.mrb[0].mxu0
      %6142 = vmatprep.mubr.f32.mxu0 0.0
      %6143 = vmatmul.mubr.f32.gmra.mrb[0].mxu0 %v6065
      %v6144 = vpop.f32.mrb[0].mxu0
      %v6145 = vadd.f32 0.0, %v6144
      %v6146 = vpop.f32.mrb[0].mxu0
      %6147 = vmatprep.mubr.f32.mxu0 0.0
      %6148 = vmatmul.mubr.f32.gmra.mrb[0].mxu0 %v6068
      %v6149 = vpop.f32.mrb[0].mxu0
      %v6150 = vadd.f32 0.0, %v6149
      %v6151 = vpop.f32.mrb[0].mxu0
      %6152 = vmatprep.mubr.f32.mxu0 0.0
      %6153 = vmatmul.mubr.f32.gmra.mrb[0].mxu0 %v6071
      %v6154 = vpop.f32.mrb[0].mxu0
      %v6155 = vadd.f32 0.0, %v6154
      %v6156 = vpop.f32.mrb[0].mxu0
      %6157 = vdwg.mxu0
      %6158 = vrot.lane.b32.xlu0 %v5885, 32
      %v6159 = vpop.permute.xlu0 %6158
      %v6161 = vmul.f32 %v5900, %v6159
      %v6162 = vmul.f32 %v5901, %v6159
      %v6163 = vmul.f32 %v5902, %v6159
      %v6164 = vmul.f32 %v5903, %v6159
      %v6165 = vadd.f32 %v6161, %v6140
      %v6166 = vadd.f32 %v6162, %v6145
      %v6167 = vadd.f32 %v6163, %v6150
      %v6168 = vadd.f32 %v6164, %v6155
      %v6170 = vlaneseq
      %v6171 = vshrl.u32 %v6170, 7
      %v6172 = vsub.s32 0, %v6171
      %v6173 = vrot.slane %v4500, %v6172
      %v6175 = vadd.f32 %v6165, %v6173
      %v6176 = vadd.f32 %v6166, %v6173
      %v6177 = vadd.f32 %v6167, %v6173
      %v6178 = vadd.f32 %v6168, %v6173
      %v6179 = vmul.f32 %v6175, 0.5
      %v6180 = vmul.f32 %v6176, 0.5
      %v6181 = vmul.f32 %v6177, 0.5
      %v6182 = vmul.f32 %v6178, 0.5
      %v6183 = vmul.f32 %v6175, 0.044715
      %v6184 = vmul.f32 %v6176, 0.044715
      %v6185 = vmul.f32 %v6177, 0.044715
      %v6186 = vmul.f32 %v6178, 0.044715
      %v6187 = vmul.f32 %v6183, %v6175
      %v6188 = vmul.f32 %v6184, %v6176
      %v6189 = vmul.f32 %v6185, %v6177
      %v6190 = vmul.f32 %v6186, %v6178
      %v6191 = vmul.f32 %v6187, %v6175
      %v6192 = vmul.f32 %v6188, %v6176
      %v6193 = vmul.f32 %v6189, %v6177
      %v6194 = vmul.f32 %v6190, %v6178
      %v6195 = vadd.f32 %v6175, %v6191
      %v6196 = vadd.f32 %v6176, %v6192
      %v6197 = vadd.f32 %v6177, %v6193
      %v6198 = vadd.f32 %v6178, %v6194
      %v6199 = vmul.f32 %v6195, 0.7978846
      %v6200 = vmul.f32 %v6196, 0.7978846
      %v6201 = vmul.f32 %v6197, 0.7978846
      %v6202 = vmul.f32 %v6198, 0.7978846
      %v6203 = vtanh.pop %v6199
      %v6204 = vtanh.pop %v6200
      %v6205 = vtanh.pop %v6201
      %v6206 = vtanh.pop %v6202
      %v6207 = vadd.f32 %v6203, 1.0
      %v6208 = vadd.f32 %v6204, 1.0
      %v6209 = vadd.f32 %v6205, 1.0
      %v6210 = vadd.f32 %v6206, 1.0
      %v6211 = vmul.f32 %v6179, %v6207
      %v6212 = vmul.f32 %v6180, %v6208
      %v6213 = vmul.f32 %v6181, %v6209
      %v6214 = vmul.f32 %v6182, %v6210
      %v6215 = vld [vmem:[%s8] sm:$0xff]
      %v6216 = vld [vmem:[%s8 + $0x8] sm:$0xff]
      %v6217 = vld [vmem:[%s8 + $0x10] sm:$0xff]
      %v6218 = vld [vmem:[%s8 + $0x18] sm:$0xff]
      %v6220 = vsel %vm2499, %v6211, 0
      %v6223 = vsel %vm2499, %v6212, 0
      %v6226 = vsel %vm2499, %v6213, 0
      %v6229 = vsel %vm2499, %v6214, 0
      %6231 = vmatprep.subr.mxu0 0.0
      %6232 = vmatpush1.msra.mxu0 %v6215
      %6233 = vmatprep.subr.mxu0 0.0
      %6234 = vmatpush1.msra.mxu0 %v6216
      %6235 = vmatprep.subr.mxu0 0.0
      %6236 = vmatpush1.msra.mxu0 %v6217
      %6237 = vmatprep.subr.mxu0 0.0
      %6238 = vmatpush1.msra.mxu0 %v6218
      %6239 = vmatprep.subr.mxu0 0.0
      %6240 = vmatpush1.msra.mxu0 0.0
      %6241 = vmatprep.subr.mxu0 0.0
      %6242 = vmatpush1.msra.mxu0 0.0
      %6243 = vmatprep.subr.mxu0 0.0
      %6244 = vmatpush1.msra.mxu0 0.0
      %6245 = vmatprep.subr.mxu0 0.0
      %6246 = vmatpush1.msra.mxu0 0.0
      %6247 = vmatprep.subr.mxu0 0.0
      %6248 = vmatpush1.msra.mxu0 0.0
      %6249 = vmatprep.subr.mxu0 0.0
      %6250 = vmatpush1.msra.mxu0 0.0
      %6251 = vmatprep.subr.mxu0 0.0
      %6252 = vmatpush1.msra.mxu0 0.0
      %6253 = vmatprep.subr.mxu0 0.0
      %6254 = vmatpush1.msra.mxu0 0.0
      %6255 = vmatprep.subr.mxu0 0.0
      %6256 = vmatpush1.msra.mxu0 0.0
      %6257 = vmatprep.subr.mxu0 0.0
      %6258 = vmatpush1.msra.mxu0 0.0
      %6259 = vmatprep.subr.mxu0 0.0
      %6260 = vmatpush1.msra.mxu0 0.0
      %6261 = vmatprep.subr.mxu0 0.0
      %6262 = vmatpush1.msra.mxu0 0.0
      %6263 = vmatprep.subr.mxu0 0.0
      %6264 = vmatpush1.msra.mxu0 0.0
      %6265 = vmatprep.subr.mxu0 0.0
      %6266 = vmatpush1.msra.mxu0 0.0
      %6267 = vmatprep.subr.mxu0 0.0
      %6268 = vmatpush1.msra.mxu0 0.0
      %6269 = vmatprep.subr.mxu0 0.0
      %6270 = vmatpush1.msra.mxu0 0.0
      %6271 = vmatprep.subr.mxu0 0.0
      %6272 = vmatpush1.msra.mxu0 0.0
      %6273 = vmatprep.subr.mxu0 0.0
      %6274 = vmatpush1.msra.mxu0 0.0
      %6275 = vmatprep.subr.mxu0 0.0
      %6276 = vmatpush1.msra.mxu0 0.0
      %6277 = vmatprep.subr.mxu0 0.0
      %6278 = vmatpush1.msra.mxu0 0.0
      %6279 = vmatprep.subr.mxu0 0.0
      %6280 = vmatpush1.msra.mxu0 0.0
      %6281 = vmatprep.subr.mxu0 0.0
      %6282 = vmatpush1.msra.mxu0 0.0
      %6283 = vmatprep.subr.mxu0 0.0
      %6284 = vmatpush1.msra.mxu0 0.0
      %6285 = vmatprep.subr.mxu0 0.0
      %6286 = vmatpush1.msra.mxu0 0.0
      %6287 = vmatprep.subr.mxu0 0.0
      %6288 = vmatpush1.msra.mxu0 0.0
      %6289 = vmatprep.subr.mxu0 0.0
      %6290 = vmatpush1.msra.mxu0 0.0
      %6291 = vmatprep.subr.mxu0 0.0
      %6292 = vmatpush1.msra.mxu0 0.0
      %6293 = vmatprep.subr.mxu0 0.0
      %6294 = vmatpush1.msra.mxu0 0.0
      %6295 = vmatprep.mubr.f32.mxu0 0.0
      %6296 = vmatmul.mubr.f32.gmra.mrb[0].mxu0 %v6220
      %v6297 = vpop.f32.mrb[0].mxu0
      %v6298 = vadd.f32 0.0, %v6297
      %v6299 = vpop.f32.mrb[0].mxu0
      %6300 = vmatprep.mubr.f32.mxu0 0.0
      %6301 = vmatmul.mubr.f32.gmra.mrb[0].mxu0 %v6223
      %v6302 = vpop.f32.mrb[0].mxu0
      %v6303 = vadd.f32 0.0, %v6302
      %v6304 = vpop.f32.mrb[0].mxu0
      %6305 = vmatprep.mubr.f32.mxu0 0.0
      %6306 = vmatmul.mubr.f32.gmra.mrb[0].mxu0 %v6226
      %v6307 = vpop.f32.mrb[0].mxu0
      %v6308 = vadd.f32 0.0, %v6307
      %v6309 = vpop.f32.mrb[0].mxu0
      %6310 = vmatprep.mubr.f32.mxu0 0.0
      %6311 = vmatmul.mubr.f32.gmra.mrb[0].mxu0 %v6229
      %v6312 = vpop.f32.mrb[0].mxu0
      %v6313 = vadd.f32 0.0, %v6312
      %v6314 = vpop.f32.mrb[0].mxu0
      %6315 = vdwg.mxu0
      %v6316 = vmul.f32 %v6298, %v650
      %v6317 = vmul.f32 %v6303, %v651
      %v6318 = vmul.f32 %v6308, %v652
      %v6319 = vmul.f32 %v6313, %v653
      %vm6320 = vcmask 171008
      %v6322 = vsel %vm6320, %v6316, 0
      %v6325 = vsel %vm6320, %v6317, 0
      %v6328 = vsel %vm6320, %v6318, 0
      %v6331 = vsel %vm6320, %v6319, 0
      %vm6333 = vcmask 1044480
      %v6335 = vsel %vm6333, %v662, 0
      %6337 = vmatprep.subr.mxu0 0.0
      %6338 = vmatpush1.msra.mxu0 %v660
      %6339 = vmatprep.subr.mxu0 0.0
      %6340 = vmatpush1.msra.mxu0 %v661
      %6341 = vmatprep.subr.mxu0 0.0
      %6342 = vmatpush1.msra.mxu0 %v6335
      %6343 = vmatprep.subr.mxu0 0.0
      %6344 = vmatpush1.msra.mxu0 0.0
      %6345 = vmatprep.subr.mxu0 0.0
      %6346 = vmatpush1.msra.mxu0 0.0
      %6347 = vmatprep.subr.mxu0 0.0
      %6348 = vmatpush1.msra.mxu0 0.0
      %6349 = vmatprep.subr.mxu0 0.0
      %6350 = vmatpush1.msra.mxu0 0.0
      %6351 = vmatprep.subr.mxu0 0.0
      %6352 = vmatpush1.msra.mxu0 0.0
      %6353 = vmatprep.subr.mxu0 0.0
      %6354 = vmatpush1.msra.mxu0 0.0
      %6355 = vmatprep.subr.mxu0 0.0
      %6356 = vmatpush1.msra.mxu0 0.0
      %6357 = vmatprep.subr.mxu0 0.0
      %6358 = vmatpush1.msra.mxu0 0.0
      %6359 = vmatprep.subr.mxu0 0.0
      %6360 = vmatpush1.msra.mxu0 0.0
      %6361 = vmatprep.subr.mxu0 0.0
      %6362 = vmatpush1.msra.mxu0 0.0
      %6363 = vmatprep.subr.mxu0 0.0
      %6364 = vmatpush1.msra.mxu0 0.0
      %6365 = vmatprep.subr.mxu0 0.0
      %6366 = vmatpush1.msra.mxu0 0.0
      %6367 = vmatprep.subr.mxu0 0.0
      %6368 = vmatpush1.msra.mxu0 0.0
      %6369 = vmatprep.subr.mxu0 0.0
      %6370 = vmatpush1.msra.mxu0 0.0
      %6371 = vmatprep.subr.mxu0 0.0
      %6372 = vmatpush1.msra.mxu0 0.0
      %6373 = vmatprep.subr.mxu0 0.0
      %6374 = vmatpush1.msra.mxu0 0.0
      %6375 = vmatprep.subr.mxu0 0.0
      %6376 = vmatpush1.msra.mxu0 0.0
      %6377 = vmatprep.subr.mxu0 0.0
      %6378 = vmatpush1.msra.mxu0 0.0
      %6379 = vmatprep.subr.mxu0 0.0
      %6380 = vmatpush1.msra.mxu0 0.0
      %6381 = vmatprep.subr.mxu0 0.0
      %6382 = vmatpush1.msra.mxu0 0.0
      %6383 = vmatprep.subr.mxu0 0.0
      %6384 = vmatpush1.msra.mxu0 0.0
      %6385 = vmatprep.subr.mxu0 0.0
      %6386 = vmatpush1.msra.mxu0 0.0
      %6387 = vmatprep.subr.mxu0 0.0
      %6388 = vmatpush1.msra.mxu0 0.0
      %6389 = vmatprep.subr.mxu0 0.0
      %6390 = vmatpush1.msra.mxu0 0.0
      %6391 = vmatprep.subr.mxu0 0.0
      %6392 = vmatpush1.msra.mxu0 0.0
      %6393 = vmatprep.subr.mxu0 0.0
      %6394 = vmatpush1.msra.mxu0 0.0
      %6395 = vmatprep.subr.mxu0 0.0
      %6396 = vmatpush1.msra.mxu0 0.0
      %6397 = vmatprep.subr.mxu0 0.0
      %6398 = vmatpush1.msra.mxu0 0.0
      %6399 = vmatprep.subr.mxu0 0.0
      %6400 = vmatpush1.msra.mxu0 0.0
      %6401 = vmatprep.mubr.f32.mxu0 0.0
      %6402 = vmatmul.mubr.f32.gmra.mrb[0].mxu0 %v6322
      %v6403 = vpop.f32.mrb[0].mxu0
      %v6404 = vadd.f32 0.0, %v6403
      %v6405 = vpop.f32.mrb[0].mxu0
      %6406 = vmatprep.mubr.f32.mxu0 0.0
      %6407 = vmatmul.mubr.f32.gmra.mrb[0].mxu0 %v6325
      %v6408 = vpop.f32.mrb[0].mxu0
      %v6409 = vadd.f32 0.0, %v6408
      %v6410 = vpop.f32.mrb[0].mxu0
      %6411 = vmatprep.mubr.f32.mxu0 0.0
      %6412 = vmatmul.mubr.f32.gmra.mrb[0].mxu0 %v6328
      %v6413 = vpop.f32.mrb[0].mxu0
      %v6414 = vadd.f32 0.0, %v6413
      %v6415 = vpop.f32.mrb[0].mxu0
      %6416 = vmatprep.mubr.f32.mxu0 0.0
      %6417 = vmatmul.mubr.f32.gmra.mrb[0].mxu0 %v6331
      %v6418 = vpop.f32.mrb[0].mxu0
      %v6419 = vadd.f32 0.0, %v6418
      %v6420 = vpop.f32.mrb[0].mxu0
      %6421 = vdwg.mxu0
      %v6422 = vld [vmem:[%s9] sm:$0x1]
      %v6424 = vlaneseq
      %v6425 = vshrl.u32 %v6424, 7
      %v6426 = vsub.s32 0, %v6425
      %v6427 = vrot.slane %v6422, %v6426
      %v6430 = vsel %vm3029, %v665, 0
      %v6433 = vsel %vm3102, %v6419, 0
      %6435 = vmatprep.subr.mxu0 0.0
      %6436 = vmatpush1.msra.mxu0 %v6404
      %6437 = vmatprep.subr.mxu0 0.0
      %6438 = vmatpush1.msra.mxu0 %v6409
      %6439 = vmatprep.subr.mxu0 0.0
      %6440 = vmatpush1.msra.mxu0 %v6414
      %6441 = vmatprep.subr.mxu0 0.0
      %6442 = vmatpush1.msra.mxu0 %v6433
      %6443 = vmatprep.subr.mxu0 0.0
      %6444 = vmatpush1.msra.mxu0 0.0
      %6445 = vmatprep.subr.mxu0 0.0
      %6446 = vmatpush1.msra.mxu0 0.0
      %6447 = vmatprep.subr.mxu0 0.0
      %6448 = vmatpush1.msra.mxu0 0.0
      %6449 = vmatprep.subr.mxu0 0.0
      %6450 = vmatpush1.msra.mxu0 0.0
      %6451 = vmatprep.subr.mxu0 0.0
      %6452 = vmatpush1.msra.mxu0 0.0
      %6453 = vmatprep.subr.mxu0 0.0
      %6454 = vmatpush1.msra.mxu0 0.0
      %6455 = vmatprep.subr.mxu0 0.0
      %6456 = vmatpush1.msra.mxu0 0.0
      %6457 = vmatprep.subr.mxu0 0.0
      %6458 = vmatpush1.msra.mxu0 0.0
      %6459 = vmatprep.subr.mxu0 0.0
      %6460 = vmatpush1.msra.mxu0 0.0
      %6461 = vmatprep.subr.mxu0 0.0
      %6462 = vmatpush1.msra.mxu0 0.0
      %6463 = vmatprep.subr.mxu0 0.0
      %6464 = vmatpush1.msra.mxu0 0.0
      %6465 = vmatprep.subr.mxu0 0.0
      %6466 = vmatpush1.msra.mxu0 0.0
      %6467 = vmatprep.subr.mxu0 0.0
      %6468 = vmatpush1.msra.mxu0 0.0
      %6469 = vmatprep.subr.mxu0 0.0
      %6470 = vmatpush1.msra.mxu0 0.0
      %6471 = vmatprep.subr.mxu0 0.0
      %6472 = vmatpush1.msra.mxu0 0.0
      %6473 = vmatprep.subr.mxu0 0.0
      %6474 = vmatpush1.msra.mxu0 0.0
      %6475 = vmatprep.subr.mxu0 0.0
      %6476 = vmatpush1.msra.mxu0 0.0
      %6477 = vmatprep.subr.mxu0 0.0
      %6478 = vmatpush1.msra.mxu0 0.0
      %6479 = vmatprep.subr.mxu0 0.0
      %6480 = vmatpush1.msra.mxu0 0.0
      %6481 = vmatprep.subr.mxu0 0.0
      %6482 = vmatpush1.msra.mxu0 0.0
      %6483 = vmatprep.subr.mxu0 0.0
      %6484 = vmatpush1.msra.mxu0 0.0
      %6485 = vmatprep.subr.mxu0 0.0
      %6486 = vmatpush1.msra.mxu0 0.0
      %6487 = vmatprep.subr.mxu0 0.0
      %6488 = vmatpush1.msra.mxu0 0.0
      %6489 = vmatprep.subr.mxu0 0.0
      %6490 = vmatpush1.msra.mxu0 0.0
      %6491 = vmatprep.subr.mxu0 0.0
      %6492 = vmatpush1.msra.mxu0 0.0
      %6493 = vmatprep.subr.mxu0 0.0
      %6494 = vmatpush1.msra.mxu0 0.0
      %6495 = vmatprep.subr.mxu0 0.0
      %6496 = vmatpush1.msra.mxu0 0.0
      %6497 = vmatprep.subr.mxu0 0.0
      %6498 = vmatpush1.msra.mxu0 0.0
      %6499 = vmatprep.mubr.f32.mxu0 0.0
      %6500 = vmatmul.mubr.f32.gmra.mrb[0].mxu0 %v6430
      %v6501 = vpop.f32.mrb[0].mxu0
      %v6502 = vadd.f32 %v6427, %v6501
      %v6503 = vpop.f32.mrb[0].mxu0
      %6504 = vdwg.mxu0
      %6505 = vst [vmem:[%s357] sm:$0xf] %v6502
      %p6506 = scmp.lt.s32.totalorder %s21, 1
      %s6507 = scalar_select %p6506, %s21, 1
      %s6508 = smul.addr %s6507, 4
      %s6509 = scalar_lea.vmem %s10, %s6508
      // Predicated region
      $region61: #{forward.1} parent=59 // pred_check
        %p6510 = pneg %p254
      $region62: #{forward.1} parent=59 // pred_check_branch
        %6512 = sbr.rel (%p6510) target = $region64
      $region63: #{forward.1} parent=59 // pred_region
        _
      $region64: #{forward.1} parent=59 // pred_fallthru
        _
    $region60: #{forward.1} parent=5 // pred_fallthru
      _
    %p6513 = scmp.le.s32.totalorder 2, %s16
    // Predicated region
    $region65: #{forward.1} parent=5 // pred_check
      %p6514 = pneg %p6513
    $region66: #{forward.1} parent=5 // pred_check_branch
      %6516 = sbr.rel (%p6514) target = $region68
    $region67: #{forward.1} parent=5 // pred_region
      %s6517 = ssub.s32 %s16, 2
      // Predicated region
      $region69: #{forward.1} parent=67 // pred_check
        %p6518 = pneg %p260
      $region70: #{forward.1} parent=67 // pred_check_branch
        %6520 = sbr.rel (%p6518) target = $region72
      $region71: #{forward.1} parent=67 // pred_region
        %p6521 = scmp.lt.s32.totalorder %s22, 1
        %s6522 = scalar_select %p6521, %s22, 1
        %s6523 = smul.addr %s6522, 4
        %s6524 = scalar_lea.vmem %s10, %s6523
      $region72: #{forward.1} parent=67 // pred_fallthru
        _
    $region68: #{forward.1} parent=5 // pred_fallthru
      _
  $region6: #{forward.1} parent=0 // loop_footer
    %s20 = sadd.s32 1, %s16
  $region7: #{forward.1} parent=0 // loop_footer_branch
    %15 = sbr.rel target = $region3
  $region8: #{forward.1} parent=0 // loop_exit
    _

</llo_original>
